<compile_context>
chip_gen: v7x
topology: tpu7x:2x2x1
jax: 0.10.0
libtpu: 0.0.40
codegen_flags: <defaults>
</compile_context>

<pallas_src>
import functools

import jax
import jax.numpy as jnp
import numpy as np
from jax.experimental import pallas as pl
from jax.experimental.pallas import tpu as pltpu

# ---------------- model hyper-parameters (small synthetic config) -------------
NUM_CLASSES = 5
NUM_BOXES_PER_FMAP = (4, 6, 6)     # anchors.num_boxes_per_fmap
OUT_CHANNELS = (32, 32, 32)        # feature_extractor.out_channels
FMAP_SIZES = (16, 8, 4)            # spatial size of each feature map
IMG_SHAPE = (2, 3, 32, 32)         # NCHW

LANE = 128                         # TPU lane width


def _round_up(v, m):
    return ((v + m - 1) // m) * m


# ------------------------------ Pallas kernel ---------------------------------
def build_tap_masks(H, W, L):
    """Per-tap validity masks (f32, 0/1) for a circular-roll 3x3 SAME conv on a
    lane-dense (C, N*HW) activation (lane index = n*HW + y*W + x)."""
    pos = np.arange(L)
    xx = pos % W
    yy = (pos // W) % H
    masks = []
    for dy in (-1, 0, 1):
        for dx in (-1, 0, 1):
            valid = ((yy + dy >= 0) & (yy + dy < H) &
                     (xx + dx >= 0) & (xx + dx < W))
            masks.append(valid.astype(np.float32))
    return jnp.asarray(np.stack(masks))                    # (9, L)


def _make_heads_kernel(fmap_statics):
    """Fused kernel: runs ONE head (selected by the grid index via BlockSpecs)
    of EVERY live feature map.

    fmap_statics: tuple of (H, W, L) per live feature map (static Python ints).

    Ref layout (all per-head blocks are selected by the grid index):
      x_i    : (C, L)              lane-dense activation (f32)
      mask_i : (9, L)              per-tap border masks (f32)
      wh_i   : (1, 4, 9, C, C)     4 hidden conv layers, per-tap (Cout, Cin), bf16
      bh_i   : (1, 4, C, 1)        f32
      wf_i   : (1, 9, Cpad, C)     final conv (Cout zero-padded to Cpad), bf16
      bf_i   : (1, Cpad, 1)        f32
      out_i  : (1, Cpad, L)        f32, lane-dense
    """
    n_f = len(fmap_statics)

    def kernel(*refs):
        x_refs = refs[:n_f]
        m_refs = refs[n_f:2 * n_f]
        p_refs = refs[2 * n_f:2 * n_f + 4 * n_f]
        o_refs = refs[2 * n_f + 4 * n_f:]

        for i, (H, W, L) in enumerate(fmap_statics):
            wh_ref, bh_ref, wf_ref, bf_ref = p_refs[4 * i:4 * (i + 1)]
            out_ref = o_refs[i]

            # Hoisted per-tap (lane-roll shift, validity mask); reused by all
            # 5 conv layers of this head.  Shifts are static; masks come from a
            # precomputed (9, L) input so no in-kernel integer div/mod.
            masks = m_refs[i][...]                          # (9, L) f32
            taps = []
            t = 0
            for dy in (-1, 0, 1):
                for dx in (-1, 0, 1):
                    shift = (-(dy * W + dx)) % L
                    taps.append((shift, masks[t:t + 1, :]))  # mask (1, L)
                    t += 1

            def conv3x3(act, w_tap, b, relu):
                # act: (C, L) f32;  w_tap(t) -> (Cout, C) bf16;  b: (Cout, 1) f32
                acc = None
                for tt, (shift, m) in enumerate(taps):
                    if shift == 0:                           # centre tap
                        a = act
                    else:
                        a = pltpu.roll(act, shift, axis=1) * m
                    d = jnp.dot(w_tap(tt), a.astype(jnp.bfloat16),
                                preferred_element_type=jnp.float32)
                    acc = d if acc is None else acc + d
                y = acc + b
                return jnp.maximum(y, 0.0) if relu else y

            act = x_refs[i][...]                             # (C, L) f32
            for l in range(4):                               # 4x Conv3x3 + ReLU
                act = conv3x3(act, lambda tt, l=l: wh_ref[0, l, tt],
                              bh_ref[0, l], True)
            out = conv3x3(act, lambda tt: wf_ref[0, tt], bf_ref[0], False)
            out_ref[0] = out.astype(out_ref.dtype)

    return kernel


def fused_heads_pallas(xs, masks, head_params, fmap_statics, out_cpads):
    """One pallas_call for both heads of every live feature map.

    Grid = (2,): step 0 = regression head, step 1 = classification head (the
    grid index only selects which stacked weights / output slab is used, via
    BlockSpec index maps — a parallel axis feeding both v7x TensorCores).
    """
    n_f = len(xs)
    kernel = _make_heads_kernel(tuple(fmap_statics))

    def const_spec(a):
        nd = a.ndim
        return pl.BlockSpec(a.shape, lambda h, _nd=nd: (0,) * _nd)

    def head_spec(a):
        nd = a.ndim
        return pl.BlockSpec((1,) + a.shape[1:],
                            lambda h, _nd=nd: (h,) + (0,) * (_nd - 1))

    flat_p = [p for fp in head_params for p in fp]
    in_specs = ([const_spec(x) for x in xs] +
                [const_spec(m) for m in masks] +
                [head_spec(p) for p in flat_p])
    out_shape = tuple(jax.ShapeDtypeStruct((2, cpad, L), jnp.float32)
                      for cpad, (_, _, L) in zip(out_cpads, fmap_statics))
    out_specs = tuple(pl.BlockSpec((1, cpad, L), lambda h: (h, 0, 0))
                      for cpad, (_, _, L) in zip(out_cpads, fmap_statics))

    return pl.pallas_call(
        kernel,
        out_shape=out_shape,
        grid=(2,),
        in_specs=in_specs,
        out_specs=out_specs,
        compiler_params=pltpu.CompilerParams(
            dimension_semantics=("parallel",)),
    )(*xs, *masks, *flat_p)


# --------------------------- parameter construction ---------------------------
def xavier_uniform(key, shape):
    # shape = (kH, kW, Cin, Cout); fan counts match nn.init.xavier_uniform_ on
    # a Conv2d weight (fan_in = Cin*kH*kW, fan_out = Cout*kH*kW).
    fan_in = shape[0] * shape[1] * shape[2]
    fan_out = shape[0] * shape[1] * shape[3]
    limit = float(np.sqrt(6.0 / (fan_in + fan_out)))
    return jax.random.uniform(key, shape, jnp.float32, -limit, limit)


def init_head_params(key):
    """Mirrors RetinaNet.__init__ head construction, including the lagged
    `num_boxes` (first head ends with 0 output channels)."""
    params = {"cls": [], "reg": []}
    num_boxes = 0
    for n_boxes, out_ch in zip(NUM_BOXES_PER_FMAP, OUT_CHANNELS):
        cls_layers, reg_layers = [], []
        for _ in range(4):  # 4x (Conv3x3 + ReLU)
            key, k1, k2 = jax.random.split(key, 3)
            cls_layers.append((xavier_uniform(k1, (3, 3, out_ch, out_ch)),
                               jnp.zeros((out_ch,), jnp.float32)))
            reg_layers.append((xavier_uniform(k2, (3, 3, out_ch, out_ch)),
                               jnp.zeros((out_ch,), jnp.float32)))
        cls_out = NUM_CLASSES * num_boxes
        reg_out = 4 * num_boxes
        if cls_out > 0:
            key, k3 = jax.random.split(key)
            cls_layers.append((xavier_uniform(k3, (3, 3, out_ch, cls_out)),
                               jnp.zeros((cls_out,), jnp.float32)))
        else:
            cls_layers.append(None)  # 0-output-channel final conv
        if reg_out > 0:
            key, k4 = jax.random.split(key)
            reg_layers.append((xavier_uniform(k4, (3, 3, out_ch, reg_out)),
                               jnp.zeros((reg_out,), jnp.float32)))
        else:
            reg_layers.append(None)
        params["cls"].append(cls_layers)
        params["reg"].append(reg_layers)
        num_boxes = n_boxes
    return params, key


def init_backbone_params(key):
    projs = []
    for out_ch in OUT_CHANNELS:
        key, k = jax.random.split(key)
        projs.append(jax.random.normal(k, (3, out_ch), jnp.float32) * 0.1)
    return projs, key


def build_plan(batch):
    """Static per-feature-map metadata (Python-only, never traced)."""
    plan = []
    lagged_boxes = (0,) + NUM_BOXES_PER_FMAP[:-1]   # reference code's lag
    for size, out_ch, nb in zip(FMAP_SIZES, OUT_CHANNELS, lagged_boxes):
        H = W = size
        hw = H * W
        live = nb > 0
        reg_out = 4 * nb
        cls_out = NUM_CLASSES * nb
        plan.append(dict(
            live=live, H=H, W=W, C=out_ch, hw=hw,
            reg_out=reg_out, cls_out=cls_out,
            c_pad=_round_up(max(reg_out, cls_out), 8) if live else 0,
            L=_round_up(max(batch * hw, LANE), LANE) if live else 0))
    return plan


def pack_params(params, plan):
    """Per live fmap: stack reg (head 0) / cls (head 1) weights for the kernel.
       wh (2,4,9,C,C) bf16, bh (2,4,C,1) f32, wf (2,9,Cpad,C) bf16, bf (2,Cpad,1) f32."""
    packed = []
    for idx, p in enumerate(plan):
        if not p["live"]:
            packed.append(None)
            continue
        c_pad = p["c_pad"]

        def hidden(layers):
            w = jnp.stack([jnp.transpose(w_, (0, 1, 3, 2))
                           .reshape(9, w_.shape[3], w_.shape[2])
                           for w_, _ in layers[:4]])                   # (4,9,C,C)
            b = jnp.stack([b_ for _, b_ in layers[:4]])[..., None]     # (4,C,1)
            return w, b

        def final(layers):
            w_, b_ = layers[4]
            cout, cin = w_.shape[3], w_.shape[2]
            w = jnp.transpose(w_, (0, 1, 3, 2)).reshape(9, cout, cin)
            w = jnp.pad(w, ((0, 0), (0, c_pad - cout), (0, 0)))        # (9,Cpad,C)
            b = jnp.pad(b_, (0, c_pad - cout))[:, None]                # (Cpad,1)
            return w, b

        reg_l, cls_l = params["reg"][idx], params["cls"][idx]
        whr, bhr = hidden(reg_l)
        wfr, bfr = final(reg_l)
        whc, bhc = hidden(cls_l)
        wfc, bfc = final(cls_l)
        packed.append((
            jnp.stack([whr, whc]).astype(jnp.bfloat16),
            jnp.stack([bhr, bhc]).astype(jnp.float32),
            jnp.stack([wfr, wfc]).astype(jnp.bfloat16),
            jnp.stack([bfr, bfc]).astype(jnp.float32)))
    return packed


# ------------------------------- forward pass ---------------------------------
def synthetic_backbone(img_nchw, projs):
    # TODO(synk): the real feature_extractor is an external module passed to
    # __init__; a deterministic avg-pool + channel-projection backbone stands in.
    N, C, H, W = img_nchw.shape
    feats = []
    for size, proj in zip(FMAP_SIZES, projs):
        f = H // size
        pooled = img_nchw.reshape(N, C, size, f, size, f).mean(axis=(3, 5))
        feats.append(jnp.einsum("nchw,cd->ndhw", pooled, proj))  # (N, 32, S, S)
    return feats


def retinanet_forward_pallas(img, packed, projs, plan):
    """Training-mode forward: features -> (bbox_delta, confidences)."""
    features = synthetic_backbone(img, projs)
    n = img.shape[0]
    live_idx = [i for i, p in enumerate(plan) if p["live"]]

    xs, masks, head_params, statics, cpads = [], [], [], [], []
    for i in live_idx:
        p = plan[i]
        x = features[i]                                       # (N, C, H, W)
        c = x.shape[1]
        x = jnp.transpose(x, (1, 0, 2, 3)).reshape(c, n * p["hw"])
        if p["L"] > n * p["hw"]:
            x = jnp.pad(x, ((0, 0), (0, p["L"] - n * p["hw"])))
        xs.append(x)
        masks.append(build_tap_masks(p["H"], p["W"], p["L"]))
        head_params.append(packed[i])
        statics.append((p["H"], p["W"], p["L"]))
        cpads.append(p["c_pad"])

    outs = fused_heads_pallas(xs, masks, head_params, statics, cpads)

    locations, confidences = [], []
    out_iter = iter(outs)
    for p in plan:
        if not p["live"]:
            # Final convs have 0 output channels -> the whole head is dead work;
            # contribute empty anchor slabs (no Pallas work).
            locations.append(jnp.zeros((n, 4, 0), jnp.float32))
            confidences.append(jnp.zeros((n, NUM_CLASSES, 0), jnp.float32))
            continue
        o = next(out_iter)                                    # (2, Cpad, L)
        hw = p["hw"]

        def unpack(slab, cout, hw=hw):
            v = slab[:cout, :n * hw]                          # (cout, N*HW)
            return v.reshape(cout, n, hw).transpose(1, 0, 2)  # (N, cout, HW)

        reg = unpack(o[0], p["reg_out"])
        cls = unpack(o[1], p["cls_out"])
        locations.append(reg.reshape(n, 4, -1))
        confidences.append(cls.reshape(n, NUM_CLASSES, -1))
    return (jnp.concatenate(locations, axis=2),
            jnp.concatenate(confidences, axis=2))

# TODO(synk): forward_test (anchor decoding + data-dependent NMS in
# filter_predictions) has no clean Pallas equivalent and is the eval-only path;
# only the training forward is implemented here.


# -------------------------- pure-JAX reference path ---------------------------
def conv3x3_ref(x_nchw, w_hwio, b, relu):
    y = jax.lax.conv_general_dilated(
        x_nchw, w_hwio, (1, 1), "SAME",
        dimension_numbers=("NCHW", "HWIO", "NCHW"),
        precision=jax.lax.Precision.HIGHEST)
    y = y + b[None, :, None, None]
    return jnp.maximum(y, 0.0) if relu else y


def run_head_ref(x, layers):
    N, _, H, W = x.shape
    if layers[4] is None:
        return jnp.zeros((N, 0, H, W), x.dtype)
    for w, b in layers[:4]:
        x = conv3x3_ref(x, w, b, True)
    w, b = layers[4]
    return conv3x3_ref(x, w, b, False)


def regress_boxes_ref(features, params):
    locations, confidences = [], []
    for idx, x in enumerate(features):
        N, _, H, W = x.shape
        reg = run_head_ref(x, params["reg"][idx])
        cls = run_head_ref(x, params["cls"][idx])
        na_reg = (reg.shape[1] // 4) * H * W
        na_cls = (cls.shape[1] // NUM_CLASSES) * H * W if cls.shape[1] else 0
        locations.append(reg.reshape(N, 4, na_reg))
        confidences.append(cls.reshape(N, NUM_CLASSES, na_cls))
    return (jnp.concatenate(locations, axis=2),
            jnp.concatenate(confidences, axis=2))


def retinanet_forward_ref(img_nchw, params, projs):
    features = synthetic_backbone(img_nchw, projs)
    return regress_boxes_ref(features, params)


# ------------------------------------ main -------------------------------------
if __name__ == "__main__":
    key = jax.random.PRNGKey(0)
    key, kimg = jax.random.split(key)
    img = jax.random.normal(kimg, IMG_SHAPE, jnp.float32)

    params, key = init_head_params(key)
    projs, key = init_backbone_params(key)

    plan = build_plan(IMG_SHAPE[0])
    packed = pack_params(params, plan)

    @jax.jit
    def forward(img_, packed_, projs_):
        return retinanet_forward_pallas(img_, packed_, projs_, plan)

    bbox_delta, confs = forward(img, packed, projs)
    bbox_delta = jax.block_until_ready(bbox_delta)
    confs = jax.block_until_ready(confs)

    # Expected anchor count (with the reference code's lagged num_boxes).
    expected_anchors = sum(nb_prev * s * s for nb_prev, s in
                           zip((0,) + NUM_BOXES_PER_FMAP[:-1], FMAP_SIZES))
    assert bbox_delta.shape == (IMG_SHAPE[0], 4, expected_anchors), bbox_delta.shape
    assert confs.shape == (IMG_SHAPE[0], NUM_CLASSES, expected_anchors), confs.shape

    # Correctness check against a pure-JAX conv reference (f32, HIGHEST precision).
    ref_delta, ref_confs = retinanet_forward_ref(img, params, projs)
    np.testing.assert_allclose(np.asarray(bbox_delta), np.asarray(ref_delta),
                               rtol=1e-2, atol=1e-2)
    np.testing.assert_allclose(np.asarray(confs), np.asarray(ref_confs),
                               rtol=1e-2, atol=1e-2)

    print("KERNEL_OK")
</pallas_src>

<mosaic_0001>
module attributes {stable_mosaic.version = 11 : i64} {
  func.func @kernel(%arg0: i32, %arg1: memref<32x128xf32, #tpu.memory_space<vmem>>, %arg2: memref<32x128xf32, #tpu.memory_space<vmem>>, %arg3: memref<9x128xf32, #tpu.memory_space<vmem>>, %arg4: memref<9x128xf32, #tpu.memory_space<vmem>>, %arg5: memref<1x4x9x32x32xbf16, #tpu.memory_space<vmem>>, %arg6: memref<1x4x32x1xf32, #tpu.memory_space<vmem>>, %arg7: memref<1x9x24x32xbf16, #tpu.memory_space<vmem>>, %arg8: memref<1x24x1xf32, #tpu.memory_space<vmem>>, %arg9: memref<1x4x9x32x32xbf16, #tpu.memory_space<vmem>>, %arg10: memref<1x4x32x1xf32, #tpu.memory_space<vmem>>, %arg11: memref<1x9x32x32xbf16, #tpu.memory_space<vmem>>, %arg12: memref<1x32x1xf32, #tpu.memory_space<vmem>>, %arg13: memref<1x24x128xf32, #tpu.memory_space<vmem>>, %arg14: memref<1x32x128xf32, #tpu.memory_space<vmem>>) attributes {dimension_semantics = [#tpu.dimension_semantics<parallel>], iteration_bounds = array<i64: 2>, scalar_prefetch = 0 : i64, scratch_operands = 0 : i64, tpu.core_type = #tpu.core_type<tc>, window_params = [{pipeline_mode = #tpu.pipeline_mode<synchronous>, transform_indices = @transform_0, window_bounds = array<i64: 32, 128>}, {pipeline_mode = #tpu.pipeline_mode<synchronous>, transform_indices = @transform_1, window_bounds = array<i64: 32, 128>}, {pipeline_mode = #tpu.pipeline_mode<synchronous>, transform_indices = @transform_2, window_bounds = array<i64: 9, 128>}, {pipeline_mode = #tpu.pipeline_mode<synchronous>, transform_indices = @transform_3, window_bounds = array<i64: 9, 128>}, {transform_indices = @transform_4, window_bounds = array<i64: 1, 4, 9, 32, 32>}, {transform_indices = @transform_5, window_bounds = array<i64: 1, 4, 32, 1>}, {transform_indices = @transform_6, window_bounds = array<i64: 1, 9, 24, 32>}, {transform_indices = @transform_7, window_bounds = array<i64: 1, 24, 1>}, {transform_indices = @transform_8, window_bounds = array<i64: 1, 4, 9, 32, 32>}, {transform_indices = @transform_9, window_bounds = array<i64: 1, 4, 32, 1>}, {transform_indices = @transform_10, window_bounds = array<i64: 1, 9, 32, 32>}, {transform_indices = @transform_11, window_bounds = array<i64: 1, 32, 1>}, {transform_indices = @transform_12, window_bounds = array<i64: 1, 24, 128>}, {transform_indices = @transform_13, window_bounds = array<i64: 1, 32, 128>}]} {
    %c0 = arith.constant 0 : index
    %c0_0 = arith.constant 0 : index
    %0 = vector.load %arg3[%c0, %c0_0] : memref<9x128xf32, #tpu.memory_space<vmem>>, vector<9x128xf32>
    %1 = vector.extract_strided_slice %0 {offsets = [0, 0], sizes = [1, 128], strides = [1, 1]} : vector<9x128xf32> to vector<1x128xf32>
    %2 = vector.extract_strided_slice %0 {offsets = [1, 0], sizes = [1, 128], strides = [1, 1]} : vector<9x128xf32> to vector<1x128xf32>
    %3 = vector.extract_strided_slice %0 {offsets = [2, 0], sizes = [1, 128], strides = [1, 1]} : vector<9x128xf32> to vector<1x128xf32>
    %4 = vector.extract_strided_slice %0 {offsets = [3, 0], sizes = [1, 128], strides = [1, 1]} : vector<9x128xf32> to vector<1x128xf32>
    %5 = vector.extract_strided_slice %0 {offsets = [5, 0], sizes = [1, 128], strides = [1, 1]} : vector<9x128xf32> to vector<1x128xf32>
    %6 = vector.extract_strided_slice %0 {offsets = [6, 0], sizes = [1, 128], strides = [1, 1]} : vector<9x128xf32> to vector<1x128xf32>
    %7 = vector.extract_strided_slice %0 {offsets = [7, 0], sizes = [1, 128], strides = [1, 1]} : vector<9x128xf32> to vector<1x128xf32>
    %8 = vector.extract_strided_slice %0 {offsets = [8, 0], sizes = [1, 128], strides = [1, 1]} : vector<9x128xf32> to vector<1x128xf32>
    %c0_1 = arith.constant 0 : index
    %c0_2 = arith.constant 0 : index
    %9 = vector.load %arg1[%c0_1, %c0_2] : memref<32x128xf32, #tpu.memory_space<vmem>>, vector<32x128xf32>
    %c0_3 = arith.constant 0 : index
    %c0_4 = arith.constant 0 : index
    %c0_5 = arith.constant 0 : index
    %c0_6 = arith.constant 0 : index
    %10 = vector.load %arg6[%c0_3, %c0_4, %c0_5, %c0_6] : memref<1x4x32x1xf32, #tpu.memory_space<vmem>>, vector<1x1x32x1xf32>
    %11 = vector.shape_cast %10 : vector<1x1x32x1xf32> to vector<32x1xf32>
    %c9_i32 = arith.constant 9 : i32
    %12 = tpu.dynamic_rotate %9 by %c9_i32 dim 1 : vector<32x128xf32>, i32 -> vector<32x128xf32>
    %13 = vector.broadcast %1 : vector<1x128xf32> to vector<32x128xf32>
    %14 = arith.mulf %12, %13 : vector<32x128xf32>
    %c0_7 = arith.constant 0 : index
    %c0_8 = arith.constant 0 : index
    %c0_9 = arith.constant 0 : index
    %c0_10 = arith.constant 0 : index
    %c0_11 = arith.constant 0 : index
    %15 = vector.load %arg5[%c0_7, %c0_8, %c0_9, %c0_10, %c0_11] : memref<1x4x9x32x32xbf16, #tpu.memory_space<vmem>>, vector<1x1x1x32x32xbf16>
    %16 = vector.shape_cast %15 : vector<1x1x1x32x32xbf16> to vector<32x32xbf16>
    %17 = arith.truncf %14 : vector<32x128xf32> to vector<32x128xbf16>
    %cst = arith.constant dense<0.000000e+00> : vector<32x128xf32>
    %18 = tpu.matmul %16, %17, %cst {dimension_numbers = #tpu.dot_dimension_numbers<[1], [0], [0], [1], [0, 0, 1, 1], [], []>} : vector<32x32xbf16>, vector<32x128xbf16>, vector<32x128xf32> -> vector<32x128xf32>
    %c8_i32 = arith.constant 8 : i32
    %19 = tpu.dynamic_rotate %9 by %c8_i32 dim 1 : vector<32x128xf32>, i32 -> vector<32x128xf32>
    %20 = vector.broadcast %2 : vector<1x128xf32> to vector<32x128xf32>
    %21 = arith.mulf %19, %20 : vector<32x128xf32>
    %c0_12 = arith.constant 0 : index
    %c0_13 = arith.constant 0 : index
    %c1 = arith.constant 1 : index
    %c0_14 = arith.constant 0 : index
    %c0_15 = arith.constant 0 : index
    %22 = vector.load %arg5[%c0_12, %c0_13, %c1, %c0_14, %c0_15] : memref<1x4x9x32x32xbf16, #tpu.memory_space<vmem>>, vector<1x1x1x32x32xbf16>
    %23 = vector.shape_cast %22 : vector<1x1x1x32x32xbf16> to vector<32x32xbf16>
    %24 = arith.truncf %21 : vector<32x128xf32> to vector<32x128xbf16>
    %cst_16 = arith.constant dense<0.000000e+00> : vector<32x128xf32>
    %25 = tpu.matmul %23, %24, %cst_16 {dimension_numbers = #tpu.dot_dimension_numbers<[1], [0], [0], [1], [0, 0, 1, 1], [], []>} : vector<32x32xbf16>, vector<32x128xbf16>, vector<32x128xf32> -> vector<32x128xf32>
    %26 = arith.addf %18, %25 : vector<32x128xf32>
    %c7_i32 = arith.constant 7 : i32
    %27 = tpu.dynamic_rotate %9 by %c7_i32 dim 1 : vector<32x128xf32>, i32 -> vector<32x128xf32>
    %28 = vector.broadcast %3 : vector<1x128xf32> to vector<32x128xf32>
    %29 = arith.mulf %27, %28 : vector<32x128xf32>
    %c0_17 = arith.constant 0 : index
    %c0_18 = arith.constant 0 : index
    %c2 = arith.constant 2 : index
    %c0_19 = arith.constant 0 : index
    %c0_20 = arith.constant 0 : index
    %30 = vector.load %arg5[%c0_17, %c0_18, %c2, %c0_19, %c0_20] : memref<1x4x9x32x32xbf16, #tpu.memory_space<vmem>>, vector<1x1x1x32x32xbf16>
    %31 = vector.shape_cast %30 : vector<1x1x1x32x32xbf16> to vector<32x32xbf16>
    %32 = arith.truncf %29 : vector<32x128xf32> to vector<32x128xbf16>
    %cst_21 = arith.constant dense<0.000000e+00> : vector<32x128xf32>
    %33 = tpu.matmul %31, %32, %cst_21 {dimension_numbers = #tpu.dot_dimension_numbers<[1], [0], [0], [1], [0, 0, 1, 1], [], []>} : vector<32x32xbf16>, vector<32x128xbf16>, vector<32x128xf32> -> vector<32x128xf32>
    %34 = arith.addf %26, %33 : vector<32x128xf32>
    %c1_i32 = arith.constant 1 : i32
    %35 = tpu.dynamic_rotate %9 by %c1_i32 dim 1 : vector<32x128xf32>, i32 -> vector<32x128xf32>
    %36 = vector.broadcast %4 : vector<1x128xf32> to vector<32x128xf32>
    %37 = arith.mulf %35, %36 : vector<32x128xf32>
    %c0_22 = arith.constant 0 : index
    %c0_23 = arith.constant 0 : index
    %c3 = arith.constant 3 : index
    %c0_24 = arith.constant 0 : index
    %c0_25 = arith.constant 0 : index
    %38 = vector.load %arg5[%c0_22, %c0_23, %c3, %c0_24, %c0_25] : memref<1x4x9x32x32xbf16, #tpu.memory_space<vmem>>, vector<1x1x1x32x32xbf16>
    %39 = vector.shape_cast %38 : vector<1x1x1x32x32xbf16> to vector<32x32xbf16>
    %40 = arith.truncf %37 : vector<32x128xf32> to vector<32x128xbf16>
    %cst_26 = arith.constant dense<0.000000e+00> : vector<32x128xf32>
    %41 = tpu.matmul %39, %40, %cst_26 {dimension_numbers = #tpu.dot_dimension_numbers<[1], [0], [0], [1], [0, 0, 1, 1], [], []>} : vector<32x32xbf16>, vector<32x128xbf16>, vector<32x128xf32> -> vector<32x128xf32>
    %42 = arith.addf %34, %41 : vector<32x128xf32>
    %c0_27 = arith.constant 0 : index
    %c0_28 = arith.constant 0 : index
    %c4 = arith.constant 4 : index
    %c0_29 = arith.constant 0 : index
    %c0_30 = arith.constant 0 : index
    %43 = vector.load %arg5[%c0_27, %c0_28, %c4, %c0_29, %c0_30] : memref<1x4x9x32x32xbf16, #tpu.memory_space<vmem>>, vector<1x1x1x32x32xbf16>
    %44 = vector.shape_cast %43 : vector<1x1x1x32x32xbf16> to vector<32x32xbf16>
    %45 = arith.truncf %9 : vector<32x128xf32> to vector<32x128xbf16>
    %cst_31 = arith.constant dense<0.000000e+00> : vector<32x128xf32>
    %46 = tpu.matmul %44, %45, %cst_31 {dimension_numbers = #tpu.dot_dimension_numbers<[1], [0], [0], [1], [0, 0, 1, 1], [], []>} : vector<32x32xbf16>, vector<32x128xbf16>, vector<32x128xf32> -> vector<32x128xf32>
    %47 = arith.addf %42, %46 : vector<32x128xf32>
    %c127_i32 = arith.constant 127 : i32
    %48 = tpu.dynamic_rotate %9 by %c127_i32 dim 1 : vector<32x128xf32>, i32 -> vector<32x128xf32>
    %49 = vector.broadcast %5 : vector<1x128xf32> to vector<32x128xf32>
    %50 = arith.mulf %48, %49 : vector<32x128xf32>
    %c0_32 = arith.constant 0 : index
    %c0_33 = arith.constant 0 : index
    %c5 = arith.constant 5 : index
    %c0_34 = arith.constant 0 : index
    %c0_35 = arith.constant 0 : index
    %51 = vector.load %arg5[%c0_32, %c0_33, %c5, %c0_34, %c0_35] : memref<1x4x9x32x32xbf16, #tpu.memory_space<vmem>>, vector<1x1x1x32x32xbf16>
    %52 = vector.shape_cast %51 : vector<1x1x1x32x32xbf16> to vector<32x32xbf16>
    %53 = arith.truncf %50 : vector<32x128xf32> to vector<32x128xbf16>
    %cst_36 = arith.constant dense<0.000000e+00> : vector<32x128xf32>
    %54 = tpu.matmul %52, %53, %cst_36 {dimension_numbers = #tpu.dot_dimension_numbers<[1], [0], [0], [1], [0, 0, 1, 1], [], []>} : vector<32x32xbf16>, vector<32x128xbf16>, vector<32x128xf32> -> vector<32x128xf32>
    %55 = arith.addf %47, %54 : vector<32x128xf32>
    %c121_i32 = arith.constant 121 : i32
    %56 = tpu.dynamic_rotate %9 by %c121_i32 dim 1 : vector<32x128xf32>, i32 -> vector<32x128xf32>
    %57 = vector.broadcast %6 : vector<1x128xf32> to vector<32x128xf32>
    %58 = arith.mulf %56, %57 : vector<32x128xf32>
    %c0_37 = arith.constant 0 : index
    %c0_38 = arith.constant 0 : index
    %c6 = arith.constant 6 : index
    %c0_39 = arith.constant 0 : index
    %c0_40 = arith.constant 0 : index
    %59 = vector.load %arg5[%c0_37, %c0_38, %c6, %c0_39, %c0_40] : memref<1x4x9x32x32xbf16, #tpu.memory_space<vmem>>, vector<1x1x1x32x32xbf16>
    %60 = vector.shape_cast %59 : vector<1x1x1x32x32xbf16> to vector<32x32xbf16>
    %61 = arith.truncf %58 : vector<32x128xf32> to vector<32x128xbf16>
    %cst_41 = arith.constant dense<0.000000e+00> : vector<32x128xf32>
    %62 = tpu.matmul %60, %61, %cst_41 {dimension_numbers = #tpu.dot_dimension_numbers<[1], [0], [0], [1], [0, 0, 1, 1], [], []>} : vector<32x32xbf16>, vector<32x128xbf16>, vector<32x128xf32> -> vector<32x128xf32>
    %63 = arith.addf %55, %62 : vector<32x128xf32>
    %c120_i32 = arith.constant 120 : i32
    %64 = tpu.dynamic_rotate %9 by %c120_i32 dim 1 : vector<32x128xf32>, i32 -> vector<32x128xf32>
    %65 = vector.broadcast %7 : vector<1x128xf32> to vector<32x128xf32>
    %66 = arith.mulf %64, %65 : vector<32x128xf32>
    %c0_42 = arith.constant 0 : index
    %c0_43 = arith.constant 0 : index
    %c7 = arith.constant 7 : index
    %c0_44 = arith.constant 0 : index
    %c0_45 = arith.constant 0 : index
    %67 = vector.load %arg5[%c0_42, %c0_43, %c7, %c0_44, %c0_45] : memref<1x4x9x32x32xbf16, #tpu.memory_space<vmem>>, vector<1x1x1x32x32xbf16>
    %68 = vector.shape_cast %67 : vector<1x1x1x32x32xbf16> to vector<32x32xbf16>
    %69 = arith.truncf %66 : vector<32x128xf32> to vector<32x128xbf16>
    %cst_46 = arith.constant dense<0.000000e+00> : vector<32x128xf32>
    %70 = tpu.matmul %68, %69, %cst_46 {dimension_numbers = #tpu.dot_dimension_numbers<[1], [0], [0], [1], [0, 0, 1, 1], [], []>} : vector<32x32xbf16>, vector<32x128xbf16>, vector<32x128xf32> -> vector<32x128xf32>
    %71 = arith.addf %63, %70 : vector<32x128xf32>
    %c119_i32 = arith.constant 119 : i32
    %72 = tpu.dynamic_rotate %9 by %c119_i32 dim 1 : vector<32x128xf32>, i32 -> vector<32x128xf32>
    %73 = vector.broadcast %8 : vector<1x128xf32> to vector<32x128xf32>
    %74 = arith.mulf %72, %73 : vector<32x128xf32>
    %c0_47 = arith.constant 0 : index
    %c0_48 = arith.constant 0 : index
    %c8 = arith.constant 8 : index
    %c0_49 = arith.constant 0 : index
    %c0_50 = arith.constant 0 : index
    %75 = vector.load %arg5[%c0_47, %c0_48, %c8, %c0_49, %c0_50] : memref<1x4x9x32x32xbf16, #tpu.memory_space<vmem>>, vector<1x1x1x32x32xbf16>
    %76 = vector.shape_cast %75 : vector<1x1x1x32x32xbf16> to vector<32x32xbf16>
    %77 = arith.truncf %74 : vector<32x128xf32> to vector<32x128xbf16>
    %cst_51 = arith.constant dense<0.000000e+00> : vector<32x128xf32>
    %78 = tpu.matmul %76, %77, %cst_51 {dimension_numbers = #tpu.dot_dimension_numbers<[1], [0], [0], [1], [0, 0, 1, 1], [], []>} : vector<32x32xbf16>, vector<32x128xbf16>, vector<32x128xf32> -> vector<32x128xf32>
    %79 = arith.addf %71, %78 : vector<32x128xf32>
    %80 = vector.broadcast %11 : vector<32x1xf32> to vector<32x128xf32>
    %81 = arith.addf %79, %80 : vector<32x128xf32>
    %cst_52 = arith.constant 0.000000e+00 : f32
    %82 = vector.broadcast %cst_52 : f32 to vector<32x128xf32>
    %83 = arith.maximumf %81, %82 : vector<32x128xf32>
    %c0_53 = arith.constant 0 : index
    %c1_54 = arith.constant 1 : index
    %c0_55 = arith.constant 0 : index
    %c0_56 = arith.constant 0 : index
    %84 = vector.load %arg6[%c0_53, %c1_54, %c0_55, %c0_56] : memref<1x4x32x1xf32, #tpu.memory_space<vmem>>, vector<1x1x32x1xf32>
    %85 = vector.shape_cast %84 : vector<1x1x32x1xf32> to vector<32x1xf32>
    %c9_i32_57 = arith.constant 9 : i32
    %86 = tpu.dynamic_rotate %83 by %c9_i32_57 dim 1 : vector<32x128xf32>, i32 -> vector<32x128xf32>
    %87 = vector.broadcast %1 : vector<1x128xf32> to vector<32x128xf32>
    %88 = arith.mulf %86, %87 : vector<32x128xf32>
    %c0_58 = arith.constant 0 : index
    %c1_59 = arith.constant 1 : index
    %c0_60 = arith.constant 0 : index
    %c0_61 = arith.constant 0 : index
    %c0_62 = arith.constant 0 : index
    %89 = vector.load %arg5[%c0_58, %c1_59, %c0_60, %c0_61, %c0_62] : memref<1x4x9x32x32xbf16, #tpu.memory_space<vmem>>, vector<1x1x1x32x32xbf16>
    %90 = vector.shape_cast %89 : vector<1x1x1x32x32xbf16> to vector<32x32xbf16>
    %91 = arith.truncf %88 : vector<32x128xf32> to vector<32x128xbf16>
    %cst_63 = arith.constant dense<0.000000e+00> : vector<32x128xf32>
    %92 = tpu.matmul %90, %91, %cst_63 {dimension_numbers = #tpu.dot_dimension_numbers<[1], [0], [0], [1], [0, 0, 1, 1], [], []>} : vector<32x32xbf16>, vector<32x128xbf16>, vector<32x128xf32> -> vector<32x128xf32>
    %c8_i32_64 = arith.constant 8 : i32
    %93 = tpu.dynamic_rotate %83 by %c8_i32_64 dim 1 : vector<32x128xf32>, i32 -> vector<32x128xf32>
    %94 = vector.broadcast %2 : vector<1x128xf32> to vector<32x128xf32>
    %95 = arith.mulf %93, %94 : vector<32x128xf32>
    %c0_65 = arith.constant 0 : index
    %c1_66 = arith.constant 1 : index
    %c1_67 = arith.constant 1 : index
    %c0_68 = arith.constant 0 : index
    %c0_69 = arith.constant 0 : index
    %96 = vector.load %arg5[%c0_65, %c1_66, %c1_67, %c0_68, %c0_69] : memref<1x4x9x32x32xbf16, #tpu.memory_space<vmem>>, vector<1x1x1x32x32xbf16>
    %97 = vector.shape_cast %96 : vector<1x1x1x32x32xbf16> to vector<32x32xbf16>
    %98 = arith.truncf %95 : vector<32x128xf32> to vector<32x128xbf16>
    %cst_70 = arith.constant dense<0.000000e+00> : vector<32x128xf32>
    %99 = tpu.matmul %97, %98, %cst_70 {dimension_numbers = #tpu.dot_dimension_numbers<[1], [0], [0], [1], [0, 0, 1, 1], [], []>} : vector<32x32xbf16>, vector<32x128xbf16>, vector<32x128xf32> -> vector<32x128xf32>
    %100 = arith.addf %92, %99 : vector<32x128xf32>
    %c7_i32_71 = arith.constant 7 : i32
    %101 = tpu.dynamic_rotate %83 by %c7_i32_71 dim 1 : vector<32x128xf32>, i32 -> vector<32x128xf32>
    %102 = vector.broadcast %3 : vector<1x128xf32> to vector<32x128xf32>
    %103 = arith.mulf %101, %102 : vector<32x128xf32>
    %c0_72 = arith.constant 0 : index
    %c1_73 = arith.constant 1 : index
    %c2_74 = arith.constant 2 : index
    %c0_75 = arith.constant 0 : index
    %c0_76 = arith.constant 0 : index
    %104 = vector.load %arg5[%c0_72, %c1_73, %c2_74, %c0_75, %c0_76] : memref<1x4x9x32x32xbf16, #tpu.memory_space<vmem>>, vector<1x1x1x32x32xbf16>
    %105 = vector.shape_cast %104 : vector<1x1x1x32x32xbf16> to vector<32x32xbf16>
    %106 = arith.truncf %103 : vector<32x128xf32> to vector<32x128xbf16>
    %cst_77 = arith.constant dense<0.000000e+00> : vector<32x128xf32>
    %107 = tpu.matmul %105, %106, %cst_77 {dimension_numbers = #tpu.dot_dimension_numbers<[1], [0], [0], [1], [0, 0, 1, 1], [], []>} : vector<32x32xbf16>, vector<32x128xbf16>, vector<32x128xf32> -> vector<32x128xf32>
    %108 = arith.addf %100, %107 : vector<32x128xf32>
    %c1_i32_78 = arith.constant 1 : i32
    %109 = tpu.dynamic_rotate %83 by %c1_i32_78 dim 1 : vector<32x128xf32>, i32 -> vector<32x128xf32>
    %110 = vector.broadcast %4 : vector<1x128xf32> to vector<32x128xf32>
    %111 = arith.mulf %109, %110 : vector<32x128xf32>
    %c0_79 = arith.constant 0 : index
    %c1_80 = arith.constant 1 : index
    %c3_81 = arith.constant 3 : index
    %c0_82 = arith.constant 0 : index
    %c0_83 = arith.constant 0 : index
    %112 = vector.load %arg5[%c0_79, %c1_80, %c3_81, %c0_82, %c0_83] : memref<1x4x9x32x32xbf16, #tpu.memory_space<vmem>>, vector<1x1x1x32x32xbf16>
    %113 = vector.shape_cast %112 : vector<1x1x1x32x32xbf16> to vector<32x32xbf16>
    %114 = arith.truncf %111 : vector<32x128xf32> to vector<32x128xbf16>
    %cst_84 = arith.constant dense<0.000000e+00> : vector<32x128xf32>
    %115 = tpu.matmul %113, %114, %cst_84 {dimension_numbers = #tpu.dot_dimension_numbers<[1], [0], [0], [1], [0, 0, 1, 1], [], []>} : vector<32x32xbf16>, vector<32x128xbf16>, vector<32x128xf32> -> vector<32x128xf32>
    %116 = arith.addf %108, %115 : vector<32x128xf32>
    %c0_85 = arith.constant 0 : index
    %c1_86 = arith.constant 1 : index
    %c4_87 = arith.constant 4 : index
    %c0_88 = arith.constant 0 : index
    %c0_89 = arith.constant 0 : index
    %117 = vector.load %arg5[%c0_85, %c1_86, %c4_87, %c0_88, %c0_89] : memref<1x4x9x32x32xbf16, #tpu.memory_space<vmem>>, vector<1x1x1x32x32xbf16>
    %118 = vector.shape_cast %117 : vector<1x1x1x32x32xbf16> to vector<32x32xbf16>
    %119 = arith.truncf %83 : vector<32x128xf32> to vector<32x128xbf16>
    %cst_90 = arith.constant dense<0.000000e+00> : vector<32x128xf32>
    %120 = tpu.matmul %118, %119, %cst_90 {dimension_numbers = #tpu.dot_dimension_numbers<[1], [0], [0], [1], [0, 0, 1, 1], [], []>} : vector<32x32xbf16>, vector<32x128xbf16>, vector<32x128xf32> -> vector<32x128xf32>
    %121 = arith.addf %116, %120 : vector<32x128xf32>
    %c127_i32_91 = arith.constant 127 : i32
    %122 = tpu.dynamic_rotate %83 by %c127_i32_91 dim 1 : vector<32x128xf32>, i32 -> vector<32x128xf32>
    %123 = vector.broadcast %5 : vector<1x128xf32> to vector<32x128xf32>
    %124 = arith.mulf %122, %123 : vector<32x128xf32>
    %c0_92 = arith.constant 0 : index
    %c1_93 = arith.constant 1 : index
    %c5_94 = arith.constant 5 : index
    %c0_95 = arith.constant 0 : index
    %c0_96 = arith.constant 0 : index
    %125 = vector.load %arg5[%c0_92, %c1_93, %c5_94, %c0_95, %c0_96] : memref<1x4x9x32x32xbf16, #tpu.memory_space<vmem>>, vector<1x1x1x32x32xbf16>
    %126 = vector.shape_cast %125 : vector<1x1x1x32x32xbf16> to vector<32x32xbf16>
    %127 = arith.truncf %124 : vector<32x128xf32> to vector<32x128xbf16>
    %cst_97 = arith.constant dense<0.000000e+00> : vector<32x128xf32>
    %128 = tpu.matmul %126, %127, %cst_97 {dimension_numbers = #tpu.dot_dimension_numbers<[1], [0], [0], [1], [0, 0, 1, 1], [], []>} : vector<32x32xbf16>, vector<32x128xbf16>, vector<32x128xf32> -> vector<32x128xf32>
    %129 = arith.addf %121, %128 : vector<32x128xf32>
    %c121_i32_98 = arith.constant 121 : i32
    %130 = tpu.dynamic_rotate %83 by %c121_i32_98 dim 1 : vector<32x128xf32>, i32 -> vector<32x128xf32>
    %131 = vector.broadcast %6 : vector<1x128xf32> to vector<32x128xf32>
    %132 = arith.mulf %130, %131 : vector<32x128xf32>
    %c0_99 = arith.constant 0 : index
    %c1_100 = arith.constant 1 : index
    %c6_101 = arith.constant 6 : index
    %c0_102 = arith.constant 0 : index
    %c0_103 = arith.constant 0 : index
    %133 = vector.load %arg5[%c0_99, %c1_100, %c6_101, %c0_102, %c0_103] : memref<1x4x9x32x32xbf16, #tpu.memory_space<vmem>>, vector<1x1x1x32x32xbf16>
    %134 = vector.shape_cast %133 : vector<1x1x1x32x32xbf16> to vector<32x32xbf16>
    %135 = arith.truncf %132 : vector<32x128xf32> to vector<32x128xbf16>
    %cst_104 = arith.constant dense<0.000000e+00> : vector<32x128xf32>
    %136 = tpu.matmul %134, %135, %cst_104 {dimension_numbers = #tpu.dot_dimension_numbers<[1], [0], [0], [1], [0, 0, 1, 1], [], []>} : vector<32x32xbf16>, vector<32x128xbf16>, vector<32x128xf32> -> vector<32x128xf32>
    %137 = arith.addf %129, %136 : vector<32x128xf32>
    %c120_i32_105 = arith.constant 120 : i32
    %138 = tpu.dynamic_rotate %83 by %c120_i32_105 dim 1 : vector<32x128xf32>, i32 -> vector<32x128xf32>
    %139 = vector.broadcast %7 : vector<1x128xf32> to vector<32x128xf32>
    %140 = arith.mulf %138, %139 : vector<32x128xf32>
    %c0_106 = arith.constant 0 : index
    %c1_107 = arith.constant 1 : index
    %c7_108 = arith.constant 7 : index
    %c0_109 = arith.constant 0 : index
    %c0_110 = arith.constant 0 : index
    %141 = vector.load %arg5[%c0_106, %c1_107, %c7_108, %c0_109, %c0_110] : memref<1x4x9x32x32xbf16, #tpu.memory_space<vmem>>, vector<1x1x1x32x32xbf16>
    %142 = vector.shape_cast %141 : vector<1x1x1x32x32xbf16> to vector<32x32xbf16>
    %143 = arith.truncf %140 : vector<32x128xf32> to vector<32x128xbf16>
    %cst_111 = arith.constant dense<0.000000e+00> : vector<32x128xf32>
    %144 = tpu.matmul %142, %143, %cst_111 {dimension_numbers = #tpu.dot_dimension_numbers<[1], [0], [0], [1], [0, 0, 1, 1], [], []>} : vector<32x32xbf16>, vector<32x128xbf16>, vector<32x128xf32> -> vector<32x128xf32>
    %145 = arith.addf %137, %144 : vector<32x128xf32>
    %c119_i32_112 = arith.constant 119 : i32
    %146 = tpu.dynamic_rotate %83 by %c119_i32_112 dim 1 : vector<32x128xf32>, i32 -> vector<32x128xf32>
    %147 = vector.broadcast %8 : vector<1x128xf32> to vector<32x128xf32>
    %148 = arith.mulf %146, %147 : vector<32x128xf32>
    %c0_113 = arith.constant 0 : index
    %c1_114 = arith.constant 1 : index
    %c8_115 = arith.constant 8 : index
    %c0_116 = arith.constant 0 : index
    %c0_117 = arith.constant 0 : index
    %149 = vector.load %arg5[%c0_113, %c1_114, %c8_115, %c0_116, %c0_117] : memref<1x4x9x32x32xbf16, #tpu.memory_space<vmem>>, vector<1x1x1x32x32xbf16>
    %150 = vector.shape_cast %149 : vector<1x1x1x32x32xbf16> to vector<32x32xbf16>
    %151 = arith.truncf %148 : vector<32x128xf32> to vector<32x128xbf16>
    %cst_118 = arith.constant dense<0.000000e+00> : vector<32x128xf32>
    %152 = tpu.matmul %150, %151, %cst_118 {dimension_numbers = #tpu.dot_dimension_numbers<[1], [0], [0], [1], [0, 0, 1, 1], [], []>} : vector<32x32xbf16>, vector<32x128xbf16>, vector<32x128xf32> -> vector<32x128xf32>
    %153 = arith.addf %145, %152 : vector<32x128xf32>
    %154 = vector.broadcast %85 : vector<32x1xf32> to vector<32x128xf32>
    %155 = arith.addf %153, %154 : vector<32x128xf32>
    %cst_119 = arith.constant 0.000000e+00 : f32
    %156 = vector.broadcast %cst_119 : f32 to vector<32x128xf32>
    %157 = arith.maximumf %155, %156 : vector<32x128xf32>
    %c0_120 = arith.constant 0 : index
    %c2_121 = arith.constant 2 : index
    %c0_122 = arith.constant 0 : index
    %c0_123 = arith.constant 0 : index
    %158 = vector.load %arg6[%c0_120, %c2_121, %c0_122, %c0_123] : memref<1x4x32x1xf32, #tpu.memory_space<vmem>>, vector<1x1x32x1xf32>
    %159 = vector.shape_cast %158 : vector<1x1x32x1xf32> to vector<32x1xf32>
    %c9_i32_124 = arith.constant 9 : i32
    %160 = tpu.dynamic_rotate %157 by %c9_i32_124 dim 1 : vector<32x128xf32>, i32 -> vector<32x128xf32>
    %161 = vector.broadcast %1 : vector<1x128xf32> to vector<32x128xf32>
    %162 = arith.mulf %160, %161 : vector<32x128xf32>
    %c0_125 = arith.constant 0 : index
    %c2_126 = arith.constant 2 : index
    %c0_127 = arith.constant 0 : index
    %c0_128 = arith.constant 0 : index
    %c0_129 = arith.constant 0 : index
    %163 = vector.load %arg5[%c0_125, %c2_126, %c0_127, %c0_128, %c0_129] : memref<1x4x9x32x32xbf16, #tpu.memory_space<vmem>>, vector<1x1x1x32x32xbf16>
    %164 = vector.shape_cast %163 : vector<1x1x1x32x32xbf16> to vector<32x32xbf16>
    %165 = arith.truncf %162 : vector<32x128xf32> to vector<32x128xbf16>
    %cst_130 = arith.constant dense<0.000000e+00> : vector<32x128xf32>
    %166 = tpu.matmul %164, %165, %cst_130 {dimension_numbers = #tpu.dot_dimension_numbers<[1], [0], [0], [1], [0, 0, 1, 1], [], []>} : vector<32x32xbf16>, vector<32x128xbf16>, vector<32x128xf32> -> vector<32x128xf32>
    %c8_i32_131 = arith.constant 8 : i32
    %167 = tpu.dynamic_rotate %157 by %c8_i32_131 dim 1 : vector<32x128xf32>, i32 -> vector<32x128xf32>
    %168 = vector.broadcast %2 : vector<1x128xf32> to vector<32x128xf32>
    %169 = arith.mulf %167, %168 : vector<32x128xf32>
    %c0_132 = arith.constant 0 : index
    %c2_133 = arith.constant 2 : index
    %c1_134 = arith.constant 1 : index
    %c0_135 = arith.constant 0 : index
    %c0_136 = arith.constant 0 : index
    %170 = vector.load %arg5[%c0_132, %c2_133, %c1_134, %c0_135, %c0_136] : memref<1x4x9x32x32xbf16, #tpu.memory_space<vmem>>, vector<1x1x1x32x32xbf16>
    %171 = vector.shape_cast %170 : vector<1x1x1x32x32xbf16> to vector<32x32xbf16>
    %172 = arith.truncf %169 : vector<32x128xf32> to vector<32x128xbf16>
    %cst_137 = arith.constant dense<0.000000e+00> : vector<32x128xf32>
    %173 = tpu.matmul %171, %172, %cst_137 {dimension_numbers = #tpu.dot_dimension_numbers<[1], [0], [0], [1], [0, 0, 1, 1], [], []>} : vector<32x32xbf16>, vector<32x128xbf16>, vector<32x128xf32> -> vector<32x128xf32>
    %174 = arith.addf %166, %173 : vector<32x128xf32>
    %c7_i32_138 = arith.constant 7 : i32
    %175 = tpu.dynamic_rotate %157 by %c7_i32_138 dim 1 : vector<32x128xf32>, i32 -> vector<32x128xf32>
    %176 = vector.broadcast %3 : vector<1x128xf32> to vector<32x128xf32>
    %177 = arith.mulf %175, %176 : vector<32x128xf32>
    %c0_139 = arith.constant 0 : index
    %c2_140 = arith.constant 2 : index
    %c2_141 = arith.constant 2 : index
    %c0_142 = arith.constant 0 : index
    %c0_143 = arith.constant 0 : index
    %178 = vector.load %arg5[%c0_139, %c2_140, %c2_141, %c0_142, %c0_143] : memref<1x4x9x32x32xbf16, #tpu.memory_space<vmem>>, vector<1x1x1x32x32xbf16>
    %179 = vector.shape_cast %178 : vector<1x1x1x32x32xbf16> to vector<32x32xbf16>
    %180 = arith.truncf %177 : vector<32x128xf32> to vector<32x128xbf16>
    %cst_144 = arith.constant dense<0.000000e+00> : vector<32x128xf32>
    %181 = tpu.matmul %179, %180, %cst_144 {dimension_numbers = #tpu.dot_dimension_numbers<[1], [0], [0], [1], [0, 0, 1, 1], [], []>} : vector<32x32xbf16>, vector<32x128xbf16>, vector<32x128xf32> -> vector<32x128xf32>
    %182 = arith.addf %174, %181 : vector<32x128xf32>
    %c1_i32_145 = arith.constant 1 : i32
    %183 = tpu.dynamic_rotate %157 by %c1_i32_145 dim 1 : vector<32x128xf32>, i32 -> vector<32x128xf32>
    %184 = vector.broadcast %4 : vector<1x128xf32> to vector<32x128xf32>
    %185 = arith.mulf %183, %184 : vector<32x128xf32>
    %c0_146 = arith.constant 0 : index
    %c2_147 = arith.constant 2 : index
    %c3_148 = arith.constant 3 : index
    %c0_149 = arith.constant 0 : index
    %c0_150 = arith.constant 0 : index
    %186 = vector.load %arg5[%c0_146, %c2_147, %c3_148, %c0_149, %c0_150] : memref<1x4x9x32x32xbf16, #tpu.memory_space<vmem>>, vector<1x1x1x32x32xbf16>
    %187 = vector.shape_cast %186 : vector<1x1x1x32x32xbf16> to vector<32x32xbf16>
    %188 = arith.truncf %185 : vector<32x128xf32> to vector<32x128xbf16>
    %cst_151 = arith.constant dense<0.000000e+00> : vector<32x128xf32>
    %189 = tpu.matmul %187, %188, %cst_151 {dimension_numbers = #tpu.dot_dimension_numbers<[1], [0], [0], [1], [0, 0, 1, 1], [], []>} : vector<32x32xbf16>, vector<32x128xbf16>, vector<32x128xf32> -> vector<32x128xf32>
    %190 = arith.addf %182, %189 : vector<32x128xf32>
    %c0_152 = arith.constant 0 : index
    %c2_153 = arith.constant 2 : index
    %c4_154 = arith.constant 4 : index
    %c0_155 = arith.constant 0 : index
    %c0_156 = arith.constant 0 : index
    %191 = vector.load %arg5[%c0_152, %c2_153, %c4_154, %c0_155, %c0_156] : memref<1x4x9x32x32xbf16, #tpu.memory_space<vmem>>, vector<1x1x1x32x32xbf16>
    %192 = vector.shape_cast %191 : vector<1x1x1x32x32xbf16> to vector<32x32xbf16>
    %193 = arith.truncf %157 : vector<32x128xf32> to vector<32x128xbf16>
    %cst_157 = arith.constant dense<0.000000e+00> : vector<32x128xf32>
    %194 = tpu.matmul %192, %193, %cst_157 {dimension_numbers = #tpu.dot_dimension_numbers<[1], [0], [0], [1], [0, 0, 1, 1], [], []>} : vector<32x32xbf16>, vector<32x128xbf16>, vector<32x128xf32> -> vector<32x128xf32>
    %195 = arith.addf %190, %194 : vector<32x128xf32>
    %c127_i32_158 = arith.constant 127 : i32
    %196 = tpu.dynamic_rotate %157 by %c127_i32_158 dim 1 : vector<32x128xf32>, i32 -> vector<32x128xf32>
    %197 = vector.broadcast %5 : vector<1x128xf32> to vector<32x128xf32>
    %198 = arith.mulf %196, %197 : vector<32x128xf32>
    %c0_159 = arith.constant 0 : index
    %c2_160 = arith.constant 2 : index
    %c5_161 = arith.constant 5 : index
    %c0_162 = arith.constant 0 : index
    %c0_163 = arith.constant 0 : index
    %199 = vector.load %arg5[%c0_159, %c2_160, %c5_161, %c0_162, %c0_163] : memref<1x4x9x32x32xbf16, #tpu.memory_space<vmem>>, vector<1x1x1x32x32xbf16>
    %200 = vector.shape_cast %199 : vector<1x1x1x32x32xbf16> to vector<32x32xbf16>
    %201 = arith.truncf %198 : vector<32x128xf32> to vector<32x128xbf16>
    %cst_164 = arith.constant dense<0.000000e+00> : vector<32x128xf32>
    %202 = tpu.matmul %200, %201, %cst_164 {dimension_numbers = #tpu.dot_dimension_numbers<[1], [0], [0], [1], [0, 0, 1, 1], [], []>} : vector<32x32xbf16>, vector<32x128xbf16>, vector<32x128xf32> -> vector<32x128xf32>
    %203 = arith.addf %195, %202 : vector<32x128xf32>
    %c121_i32_165 = arith.constant 121 : i32
    %204 = tpu.dynamic_rotate %157 by %c121_i32_165 dim 1 : vector<32x128xf32>, i32 -> vector<32x128xf32>
    %205 = vector.broadcast %6 : vector<1x128xf32> to vector<32x128xf32>
    %206 = arith.mulf %204, %205 : vector<32x128xf32>
    %c0_166 = arith.constant 0 : index
    %c2_167 = arith.constant 2 : index
    %c6_168 = arith.constant 6 : index
    %c0_169 = arith.constant 0 : index
    %c0_170 = arith.constant 0 : index
    %207 = vector.load %arg5[%c0_166, %c2_167, %c6_168, %c0_169, %c0_170] : memref<1x4x9x32x32xbf16, #tpu.memory_space<vmem>>, vector<1x1x1x32x32xbf16>
    %208 = vector.shape_cast %207 : vector<1x1x1x32x32xbf16> to vector<32x32xbf16>
    %209 = arith.truncf %206 : vector<32x128xf32> to vector<32x128xbf16>
    %cst_171 = arith.constant dense<0.000000e+00> : vector<32x128xf32>
    %210 = tpu.matmul %208, %209, %cst_171 {dimension_numbers = #tpu.dot_dimension_numbers<[1], [0], [0], [1], [0, 0, 1, 1], [], []>} : vector<32x32xbf16>, vector<32x128xbf16>, vector<32x128xf32> -> vector<32x128xf32>
    %211 = arith.addf %203, %210 : vector<32x128xf32>
    %c120_i32_172 = arith.constant 120 : i32
    %212 = tpu.dynamic_rotate %157 by %c120_i32_172 dim 1 : vector<32x128xf32>, i32 -> vector<32x128xf32>
    %213 = vector.broadcast %7 : vector<1x128xf32> to vector<32x128xf32>
    %214 = arith.mulf %212, %213 : vector<32x128xf32>
    %c0_173 = arith.constant 0 : index
    %c2_174 = arith.constant 2 : index
    %c7_175 = arith.constant 7 : index
    %c0_176 = arith.constant 0 : index
    %c0_177 = arith.constant 0 : index
    %215 = vector.load %arg5[%c0_173, %c2_174, %c7_175, %c0_176, %c0_177] : memref<1x4x9x32x32xbf16, #tpu.memory_space<vmem>>, vector<1x1x1x32x32xbf16>
    %216 = vector.shape_cast %215 : vector<1x1x1x32x32xbf16> to vector<32x32xbf16>
    %217 = arith.truncf %214 : vector<32x128xf32> to vector<32x128xbf16>
    %cst_178 = arith.constant dense<0.000000e+00> : vector<32x128xf32>
    %218 = tpu.matmul %216, %217, %cst_178 {dimension_numbers = #tpu.dot_dimension_numbers<[1], [0], [0], [1], [0, 0, 1, 1], [], []>} : vector<32x32xbf16>, vector<32x128xbf16>, vector<32x128xf32> -> vector<32x128xf32>
    %219 = arith.addf %211, %218 : vector<32x128xf32>
    %c119_i32_179 = arith.constant 119 : i32
    %220 = tpu.dynamic_rotate %157 by %c119_i32_179 dim 1 : vector<32x128xf32>, i32 -> vector<32x128xf32>
    %221 = vector.broadcast %8 : vector<1x128xf32> to vector<32x128xf32>
    %222 = arith.mulf %220, %221 : vector<32x128xf32>
    %c0_180 = arith.constant 0 : index
    %c2_181 = arith.constant 2 : index
    %c8_182 = arith.constant 8 : index
    %c0_183 = arith.constant 0 : index
    %c0_184 = arith.constant 0 : index
    %223 = vector.load %arg5[%c0_180, %c2_181, %c8_182, %c0_183, %c0_184] : memref<1x4x9x32x32xbf16, #tpu.memory_space<vmem>>, vector<1x1x1x32x32xbf16>
    %224 = vector.shape_cast %223 : vector<1x1x1x32x32xbf16> to vector<32x32xbf16>
    %225 = arith.truncf %222 : vector<32x128xf32> to vector<32x128xbf16>
    %cst_185 = arith.constant dense<0.000000e+00> : vector<32x128xf32>
    %226 = tpu.matmul %224, %225, %cst_185 {dimension_numbers = #tpu.dot_dimension_numbers<[1], [0], [0], [1], [0, 0, 1, 1], [], []>} : vector<32x32xbf16>, vector<32x128xbf16>, vector<32x128xf32> -> vector<32x128xf32>
    %227 = arith.addf %219, %226 : vector<32x128xf32>
    %228 = vector.broadcast %159 : vector<32x1xf32> to vector<32x128xf32>
    %229 = arith.addf %227, %228 : vector<32x128xf32>
    %cst_186 = arith.constant 0.000000e+00 : f32
    %230 = vector.broadcast %cst_186 : f32 to vector<32x128xf32>
    %231 = arith.maximumf %229, %230 : vector<32x128xf32>
    %c0_187 = arith.constant 0 : index
    %c3_188 = arith.constant 3 : index
    %c0_189 = arith.constant 0 : index
    %c0_190 = arith.constant 0 : index
    %232 = vector.load %arg6[%c0_187, %c3_188, %c0_189, %c0_190] : memref<1x4x32x1xf32, #tpu.memory_space<vmem>>, vector<1x1x32x1xf32>
    %233 = vector.shape_cast %232 : vector<1x1x32x1xf32> to vector<32x1xf32>
    %c9_i32_191 = arith.constant 9 : i32
    %234 = tpu.dynamic_rotate %231 by %c9_i32_191 dim 1 : vector<32x128xf32>, i32 -> vector<32x128xf32>
    %235 = vector.broadcast %1 : vector<1x128xf32> to vector<32x128xf32>
    %236 = arith.mulf %234, %235 : vector<32x128xf32>
    %c0_192 = arith.constant 0 : index
    %c3_193 = arith.constant 3 : index
    %c0_194 = arith.constant 0 : index
    %c0_195 = arith.constant 0 : index
    %c0_196 = arith.constant 0 : index
    %237 = vector.load %arg5[%c0_192, %c3_193, %c0_194, %c0_195, %c0_196] : memref<1x4x9x32x32xbf16, #tpu.memory_space<vmem>>, vector<1x1x1x32x32xbf16>
    %238 = vector.shape_cast %237 : vector<1x1x1x32x32xbf16> to vector<32x32xbf16>
    %239 = arith.truncf %236 : vector<32x128xf32> to vector<32x128xbf16>
    %cst_197 = arith.constant dense<0.000000e+00> : vector<32x128xf32>
    %240 = tpu.matmul %238, %239, %cst_197 {dimension_numbers = #tpu.dot_dimension_numbers<[1], [0], [0], [1], [0, 0, 1, 1], [], []>} : vector<32x32xbf16>, vector<32x128xbf16>, vector<32x128xf32> -> vector<32x128xf32>
    %c8_i32_198 = arith.constant 8 : i32
    %241 = tpu.dynamic_rotate %231 by %c8_i32_198 dim 1 : vector<32x128xf32>, i32 -> vector<32x128xf32>
    %242 = vector.broadcast %2 : vector<1x128xf32> to vector<32x128xf32>
    %243 = arith.mulf %241, %242 : vector<32x128xf32>
    %c0_199 = arith.constant 0 : index
    %c3_200 = arith.constant 3 : index
    %c1_201 = arith.constant 1 : index
    %c0_202 = arith.constant 0 : index
    %c0_203 = arith.constant 0 : index
    %244 = vector.load %arg5[%c0_199, %c3_200, %c1_201, %c0_202, %c0_203] : memref<1x4x9x32x32xbf16, #tpu.memory_space<vmem>>, vector<1x1x1x32x32xbf16>
    %245 = vector.shape_cast %244 : vector<1x1x1x32x32xbf16> to vector<32x32xbf16>
    %246 = arith.truncf %243 : vector<32x128xf32> to vector<32x128xbf16>
    %cst_204 = arith.constant dense<0.000000e+00> : vector<32x128xf32>
    %247 = tpu.matmul %245, %246, %cst_204 {dimension_numbers = #tpu.dot_dimension_numbers<[1], [0], [0], [1], [0, 0, 1, 1], [], []>} : vector<32x32xbf16>, vector<32x128xbf16>, vector<32x128xf32> -> vector<32x128xf32>
    %248 = arith.addf %240, %247 : vector<32x128xf32>
    %c7_i32_205 = arith.constant 7 : i32
    %249 = tpu.dynamic_rotate %231 by %c7_i32_205 dim 1 : vector<32x128xf32>, i32 -> vector<32x128xf32>
    %250 = vector.broadcast %3 : vector<1x128xf32> to vector<32x128xf32>
    %251 = arith.mulf %249, %250 : vector<32x128xf32>
    %c0_206 = arith.constant 0 : index
    %c3_207 = arith.constant 3 : index
    %c2_208 = arith.constant 2 : index
    %c0_209 = arith.constant 0 : index
    %c0_210 = arith.constant 0 : index
    %252 = vector.load %arg5[%c0_206, %c3_207, %c2_208, %c0_209, %c0_210] : memref<1x4x9x32x32xbf16, #tpu.memory_space<vmem>>, vector<1x1x1x32x32xbf16>
    %253 = vector.shape_cast %252 : vector<1x1x1x32x32xbf16> to vector<32x32xbf16>
    %254 = arith.truncf %251 : vector<32x128xf32> to vector<32x128xbf16>
    %cst_211 = arith.constant dense<0.000000e+00> : vector<32x128xf32>
    %255 = tpu.matmul %253, %254, %cst_211 {dimension_numbers = #tpu.dot_dimension_numbers<[1], [0], [0], [1], [0, 0, 1, 1], [], []>} : vector<32x32xbf16>, vector<32x128xbf16>, vector<32x128xf32> -> vector<32x128xf32>
    %256 = arith.addf %248, %255 : vector<32x128xf32>
    %c1_i32_212 = arith.constant 1 : i32
    %257 = tpu.dynamic_rotate %231 by %c1_i32_212 dim 1 : vector<32x128xf32>, i32 -> vector<32x128xf32>
    %258 = vector.broadcast %4 : vector<1x128xf32> to vector<32x128xf32>
    %259 = arith.mulf %257, %258 : vector<32x128xf32>
    %c0_213 = arith.constant 0 : index
    %c3_214 = arith.constant 3 : index
    %c3_215 = arith.constant 3 : index
    %c0_216 = arith.constant 0 : index
    %c0_217 = arith.constant 0 : index
    %260 = vector.load %arg5[%c0_213, %c3_214, %c3_215, %c0_216, %c0_217] : memref<1x4x9x32x32xbf16, #tpu.memory_space<vmem>>, vector<1x1x1x32x32xbf16>
    %261 = vector.shape_cast %260 : vector<1x1x1x32x32xbf16> to vector<32x32xbf16>
    %262 = arith.truncf %259 : vector<32x128xf32> to vector<32x128xbf16>
    %cst_218 = arith.constant dense<0.000000e+00> : vector<32x128xf32>
    %263 = tpu.matmul %261, %262, %cst_218 {dimension_numbers = #tpu.dot_dimension_numbers<[1], [0], [0], [1], [0, 0, 1, 1], [], []>} : vector<32x32xbf16>, vector<32x128xbf16>, vector<32x128xf32> -> vector<32x128xf32>
    %264 = arith.addf %256, %263 : vector<32x128xf32>
    %c0_219 = arith.constant 0 : index
    %c3_220 = arith.constant 3 : index
    %c4_221 = arith.constant 4 : index
    %c0_222 = arith.constant 0 : index
    %c0_223 = arith.constant 0 : index
    %265 = vector.load %arg5[%c0_219, %c3_220, %c4_221, %c0_222, %c0_223] : memref<1x4x9x32x32xbf16, #tpu.memory_space<vmem>>, vector<1x1x1x32x32xbf16>
    %266 = vector.shape_cast %265 : vector<1x1x1x32x32xbf16> to vector<32x32xbf16>
    %267 = arith.truncf %231 : vector<32x128xf32> to vector<32x128xbf16>
    %cst_224 = arith.constant dense<0.000000e+00> : vector<32x128xf32>
    %268 = tpu.matmul %266, %267, %cst_224 {dimension_numbers = #tpu.dot_dimension_numbers<[1], [0], [0], [1], [0, 0, 1, 1], [], []>} : vector<32x32xbf16>, vector<32x128xbf16>, vector<32x128xf32> -> vector<32x128xf32>
    %269 = arith.addf %264, %268 : vector<32x128xf32>
    %c127_i32_225 = arith.constant 127 : i32
    %270 = tpu.dynamic_rotate %231 by %c127_i32_225 dim 1 : vector<32x128xf32>, i32 -> vector<32x128xf32>
    %271 = vector.broadcast %5 : vector<1x128xf32> to vector<32x128xf32>
    %272 = arith.mulf %270, %271 : vector<32x128xf32>
    %c0_226 = arith.constant 0 : index
    %c3_227 = arith.constant 3 : index
    %c5_228 = arith.constant 5 : index
    %c0_229 = arith.constant 0 : index
    %c0_230 = arith.constant 0 : index
    %273 = vector.load %arg5[%c0_226, %c3_227, %c5_228, %c0_229, %c0_230] : memref<1x4x9x32x32xbf16, #tpu.memory_space<vmem>>, vector<1x1x1x32x32xbf16>
    %274 = vector.shape_cast %273 : vector<1x1x1x32x32xbf16> to vector<32x32xbf16>
    %275 = arith.truncf %272 : vector<32x128xf32> to vector<32x128xbf16>
    %cst_231 = arith.constant dense<0.000000e+00> : vector<32x128xf32>
    %276 = tpu.matmul %274, %275, %cst_231 {dimension_numbers = #tpu.dot_dimension_numbers<[1], [0], [0], [1], [0, 0, 1, 1], [], []>} : vector<32x32xbf16>, vector<32x128xbf16>, vector<32x128xf32> -> vector<32x128xf32>
    %277 = arith.addf %269, %276 : vector<32x128xf32>
    %c121_i32_232 = arith.constant 121 : i32
    %278 = tpu.dynamic_rotate %231 by %c121_i32_232 dim 1 : vector<32x128xf32>, i32 -> vector<32x128xf32>
    %279 = vector.broadcast %6 : vector<1x128xf32> to vector<32x128xf32>
    %280 = arith.mulf %278, %279 : vector<32x128xf32>
    %c0_233 = arith.constant 0 : index
    %c3_234 = arith.constant 3 : index
    %c6_235 = arith.constant 6 : index
    %c0_236 = arith.constant 0 : index
    %c0_237 = arith.constant 0 : index
    %281 = vector.load %arg5[%c0_233, %c3_234, %c6_235, %c0_236, %c0_237] : memref<1x4x9x32x32xbf16, #tpu.memory_space<vmem>>, vector<1x1x1x32x32xbf16>
    %282 = vector.shape_cast %281 : vector<1x1x1x32x32xbf16> to vector<32x32xbf16>
    %283 = arith.truncf %280 : vector<32x128xf32> to vector<32x128xbf16>
    %cst_238 = arith.constant dense<0.000000e+00> : vector<32x128xf32>
    %284 = tpu.matmul %282, %283, %cst_238 {dimension_numbers = #tpu.dot_dimension_numbers<[1], [0], [0], [1], [0, 0, 1, 1], [], []>} : vector<32x32xbf16>, vector<32x128xbf16>, vector<32x128xf32> -> vector<32x128xf32>
    %285 = arith.addf %277, %284 : vector<32x128xf32>
    %c120_i32_239 = arith.constant 120 : i32
    %286 = tpu.dynamic_rotate %231 by %c120_i32_239 dim 1 : vector<32x128xf32>, i32 -> vector<32x128xf32>
    %287 = vector.broadcast %7 : vector<1x128xf32> to vector<32x128xf32>
    %288 = arith.mulf %286, %287 : vector<32x128xf32>
    %c0_240 = arith.constant 0 : index
    %c3_241 = arith.constant 3 : index
    %c7_242 = arith.constant 7 : index
    %c0_243 = arith.constant 0 : index
    %c0_244 = arith.constant 0 : index
    %289 = vector.load %arg5[%c0_240, %c3_241, %c7_242, %c0_243, %c0_244] : memref<1x4x9x32x32xbf16, #tpu.memory_space<vmem>>, vector<1x1x1x32x32xbf16>
    %290 = vector.shape_cast %289 : vector<1x1x1x32x32xbf16> to vector<32x32xbf16>
    %291 = arith.truncf %288 : vector<32x128xf32> to vector<32x128xbf16>
    %cst_245 = arith.constant dense<0.000000e+00> : vector<32x128xf32>
    %292 = tpu.matmul %290, %291, %cst_245 {dimension_numbers = #tpu.dot_dimension_numbers<[1], [0], [0], [1], [0, 0, 1, 1], [], []>} : vector<32x32xbf16>, vector<32x128xbf16>, vector<32x128xf32> -> vector<32x128xf32>
    %293 = arith.addf %285, %292 : vector<32x128xf32>
    %c119_i32_246 = arith.constant 119 : i32
    %294 = tpu.dynamic_rotate %231 by %c119_i32_246 dim 1 : vector<32x128xf32>, i32 -> vector<32x128xf32>
    %295 = vector.broadcast %8 : vector<1x128xf32> to vector<32x128xf32>
    %296 = arith.mulf %294, %295 : vector<32x128xf32>
    %c0_247 = arith.constant 0 : index
    %c3_248 = arith.constant 3 : index
    %c8_249 = arith.constant 8 : index
    %c0_250 = arith.constant 0 : index
    %c0_251 = arith.constant 0 : index
    %297 = vector.load %arg5[%c0_247, %c3_248, %c8_249, %c0_250, %c0_251] : memref<1x4x9x32x32xbf16, #tpu.memory_space<vmem>>, vector<1x1x1x32x32xbf16>
    %298 = vector.shape_cast %297 : vector<1x1x1x32x32xbf16> to vector<32x32xbf16>
    %299 = arith.truncf %296 : vector<32x128xf32> to vector<32x128xbf16>
    %cst_252 = arith.constant dense<0.000000e+00> : vector<32x128xf32>
    %300 = tpu.matmul %298, %299, %cst_252 {dimension_numbers = #tpu.dot_dimension_numbers<[1], [0], [0], [1], [0, 0, 1, 1], [], []>} : vector<32x32xbf16>, vector<32x128xbf16>, vector<32x128xf32> -> vector<32x128xf32>
    %301 = arith.addf %293, %300 : vector<32x128xf32>
    %302 = vector.broadcast %233 : vector<32x1xf32> to vector<32x128xf32>
    %303 = arith.addf %301, %302 : vector<32x128xf32>
    %cst_253 = arith.constant 0.000000e+00 : f32
    %304 = vector.broadcast %cst_253 : f32 to vector<32x128xf32>
    %305 = arith.maximumf %303, %304 : vector<32x128xf32>
    %c0_254 = arith.constant 0 : index
    %c0_255 = arith.constant 0 : index
    %c0_256 = arith.constant 0 : index
    %306 = vector.load %arg8[%c0_254, %c0_255, %c0_256] : memref<1x24x1xf32, #tpu.memory_space<vmem>>, vector<1x24x1xf32>
    %307 = vector.shape_cast %306 : vector<1x24x1xf32> to vector<24x1xf32>
    %c9_i32_257 = arith.constant 9 : i32
    %308 = tpu.dynamic_rotate %305 by %c9_i32_257 dim 1 : vector<32x128xf32>, i32 -> vector<32x128xf32>
    %309 = vector.broadcast %1 : vector<1x128xf32> to vector<32x128xf32>
    %310 = arith.mulf %308, %309 : vector<32x128xf32>
    %c0_258 = arith.constant 0 : index
    %c0_259 = arith.constant 0 : index
    %c0_260 = arith.constant 0 : index
    %c0_261 = arith.constant 0 : index
    %311 = vector.load %arg7[%c0_258, %c0_259, %c0_260, %c0_261] : memref<1x9x24x32xbf16, #tpu.memory_space<vmem>>, vector<1x1x24x32xbf16>
    %312 = vector.shape_cast %311 : vector<1x1x24x32xbf16> to vector<24x32xbf16>
    %313 = arith.truncf %310 : vector<32x128xf32> to vector<32x128xbf16>
    %cst_262 = arith.constant dense<0.000000e+00> : vector<24x128xf32>
    %314 = tpu.matmul %312, %313, %cst_262 {dimension_numbers = #tpu.dot_dimension_numbers<[1], [0], [0], [1], [0, 0, 1, 1], [], []>} : vector<24x32xbf16>, vector<32x128xbf16>, vector<24x128xf32> -> vector<24x128xf32>
    %c8_i32_263 = arith.constant 8 : i32
    %315 = tpu.dynamic_rotate %305 by %c8_i32_263 dim 1 : vector<32x128xf32>, i32 -> vector<32x128xf32>
    %316 = vector.broadcast %2 : vector<1x128xf32> to vector<32x128xf32>
    %317 = arith.mulf %315, %316 : vector<32x128xf32>
    %c0_264 = arith.constant 0 : index
    %c1_265 = arith.constant 1 : index
    %c0_266 = arith.constant 0 : index
    %c0_267 = arith.constant 0 : index
    %318 = vector.load %arg7[%c0_264, %c1_265, %c0_266, %c0_267] : memref<1x9x24x32xbf16, #tpu.memory_space<vmem>>, vector<1x1x24x32xbf16>
    %319 = vector.shape_cast %318 : vector<1x1x24x32xbf16> to vector<24x32xbf16>
    %320 = arith.truncf %317 : vector<32x128xf32> to vector<32x128xbf16>
    %cst_268 = arith.constant dense<0.000000e+00> : vector<24x128xf32>
    %321 = tpu.matmul %319, %320, %cst_268 {dimension_numbers = #tpu.dot_dimension_numbers<[1], [0], [0], [1], [0, 0, 1, 1], [], []>} : vector<24x32xbf16>, vector<32x128xbf16>, vector<24x128xf32> -> vector<24x128xf32>
    %322 = arith.addf %314, %321 : vector<24x128xf32>
    %c7_i32_269 = arith.constant 7 : i32
    %323 = tpu.dynamic_rotate %305 by %c7_i32_269 dim 1 : vector<32x128xf32>, i32 -> vector<32x128xf32>
    %324 = vector.broadcast %3 : vector<1x128xf32> to vector<32x128xf32>
    %325 = arith.mulf %323, %324 : vector<32x128xf32>
    %c0_270 = arith.constant 0 : index
    %c2_271 = arith.constant 2 : index
    %c0_272 = arith.constant 0 : index
    %c0_273 = arith.constant 0 : index
    %326 = vector.load %arg7[%c0_270, %c2_271, %c0_272, %c0_273] : memref<1x9x24x32xbf16, #tpu.memory_space<vmem>>, vector<1x1x24x32xbf16>
    %327 = vector.shape_cast %326 : vector<1x1x24x32xbf16> to vector<24x32xbf16>
    %328 = arith.truncf %325 : vector<32x128xf32> to vector<32x128xbf16>
    %cst_274 = arith.constant dense<0.000000e+00> : vector<24x128xf32>
    %329 = tpu.matmul %327, %328, %cst_274 {dimension_numbers = #tpu.dot_dimension_numbers<[1], [0], [0], [1], [0, 0, 1, 1], [], []>} : vector<24x32xbf16>, vector<32x128xbf16>, vector<24x128xf32> -> vector<24x128xf32>
    %330 = arith.addf %322, %329 : vector<24x128xf32>
    %c1_i32_275 = arith.constant 1 : i32
    %331 = tpu.dynamic_rotate %305 by %c1_i32_275 dim 1 : vector<32x128xf32>, i32 -> vector<32x128xf32>
    %332 = vector.broadcast %4 : vector<1x128xf32> to vector<32x128xf32>
    %333 = arith.mulf %331, %332 : vector<32x128xf32>
    %c0_276 = arith.constant 0 : index
    %c3_277 = arith.constant 3 : index
    %c0_278 = arith.constant 0 : index
    %c0_279 = arith.constant 0 : index
    %334 = vector.load %arg7[%c0_276, %c3_277, %c0_278, %c0_279] : memref<1x9x24x32xbf16, #tpu.memory_space<vmem>>, vector<1x1x24x32xbf16>
    %335 = vector.shape_cast %334 : vector<1x1x24x32xbf16> to vector<24x32xbf16>
    %336 = arith.truncf %333 : vector<32x128xf32> to vector<32x128xbf16>
    %cst_280 = arith.constant dense<0.000000e+00> : vector<24x128xf32>
    %337 = tpu.matmul %335, %336, %cst_280 {dimension_numbers = #tpu.dot_dimension_numbers<[1], [0], [0], [1], [0, 0, 1, 1], [], []>} : vector<24x32xbf16>, vector<32x128xbf16>, vector<24x128xf32> -> vector<24x128xf32>
    %338 = arith.addf %330, %337 : vector<24x128xf32>
    %c0_281 = arith.constant 0 : index
    %c4_282 = arith.constant 4 : index
    %c0_283 = arith.constant 0 : index
    %c0_284 = arith.constant 0 : index
    %339 = vector.load %arg7[%c0_281, %c4_282, %c0_283, %c0_284] : memref<1x9x24x32xbf16, #tpu.memory_space<vmem>>, vector<1x1x24x32xbf16>
    %340 = vector.shape_cast %339 : vector<1x1x24x32xbf16> to vector<24x32xbf16>
    %341 = arith.truncf %305 : vector<32x128xf32> to vector<32x128xbf16>
    %cst_285 = arith.constant dense<0.000000e+00> : vector<24x128xf32>
    %342 = tpu.matmul %340, %341, %cst_285 {dimension_numbers = #tpu.dot_dimension_numbers<[1], [0], [0], [1], [0, 0, 1, 1], [], []>} : vector<24x32xbf16>, vector<32x128xbf16>, vector<24x128xf32> -> vector<24x128xf32>
    %343 = arith.addf %338, %342 : vector<24x128xf32>
    %c127_i32_286 = arith.constant 127 : i32
    %344 = tpu.dynamic_rotate %305 by %c127_i32_286 dim 1 : vector<32x128xf32>, i32 -> vector<32x128xf32>
    %345 = vector.broadcast %5 : vector<1x128xf32> to vector<32x128xf32>
    %346 = arith.mulf %344, %345 : vector<32x128xf32>
    %c0_287 = arith.constant 0 : index
    %c5_288 = arith.constant 5 : index
    %c0_289 = arith.constant 0 : index
    %c0_290 = arith.constant 0 : index
    %347 = vector.load %arg7[%c0_287, %c5_288, %c0_289, %c0_290] : memref<1x9x24x32xbf16, #tpu.memory_space<vmem>>, vector<1x1x24x32xbf16>
    %348 = vector.shape_cast %347 : vector<1x1x24x32xbf16> to vector<24x32xbf16>
    %349 = arith.truncf %346 : vector<32x128xf32> to vector<32x128xbf16>
    %cst_291 = arith.constant dense<0.000000e+00> : vector<24x128xf32>
    %350 = tpu.matmul %348, %349, %cst_291 {dimension_numbers = #tpu.dot_dimension_numbers<[1], [0], [0], [1], [0, 0, 1, 1], [], []>} : vector<24x32xbf16>, vector<32x128xbf16>, vector<24x128xf32> -> vector<24x128xf32>
    %351 = arith.addf %343, %350 : vector<24x128xf32>
    %c121_i32_292 = arith.constant 121 : i32
    %352 = tpu.dynamic_rotate %305 by %c121_i32_292 dim 1 : vector<32x128xf32>, i32 -> vector<32x128xf32>
    %353 = vector.broadcast %6 : vector<1x128xf32> to vector<32x128xf32>
    %354 = arith.mulf %352, %353 : vector<32x128xf32>
    %c0_293 = arith.constant 0 : index
    %c6_294 = arith.constant 6 : index
    %c0_295 = arith.constant 0 : index
    %c0_296 = arith.constant 0 : index
    %355 = vector.load %arg7[%c0_293, %c6_294, %c0_295, %c0_296] : memref<1x9x24x32xbf16, #tpu.memory_space<vmem>>, vector<1x1x24x32xbf16>
    %356 = vector.shape_cast %355 : vector<1x1x24x32xbf16> to vector<24x32xbf16>
    %357 = arith.truncf %354 : vector<32x128xf32> to vector<32x128xbf16>
    %cst_297 = arith.constant dense<0.000000e+00> : vector<24x128xf32>
    %358 = tpu.matmul %356, %357, %cst_297 {dimension_numbers = #tpu.dot_dimension_numbers<[1], [0], [0], [1], [0, 0, 1, 1], [], []>} : vector<24x32xbf16>, vector<32x128xbf16>, vector<24x128xf32> -> vector<24x128xf32>
    %359 = arith.addf %351, %358 : vector<24x128xf32>
    %c120_i32_298 = arith.constant 120 : i32
    %360 = tpu.dynamic_rotate %305 by %c120_i32_298 dim 1 : vector<32x128xf32>, i32 -> vector<32x128xf32>
    %361 = vector.broadcast %7 : vector<1x128xf32> to vector<32x128xf32>
    %362 = arith.mulf %360, %361 : vector<32x128xf32>
    %c0_299 = arith.constant 0 : index
    %c7_300 = arith.constant 7 : index
    %c0_301 = arith.constant 0 : index
    %c0_302 = arith.constant 0 : index
    %363 = vector.load %arg7[%c0_299, %c7_300, %c0_301, %c0_302] : memref<1x9x24x32xbf16, #tpu.memory_space<vmem>>, vector<1x1x24x32xbf16>
    %364 = vector.shape_cast %363 : vector<1x1x24x32xbf16> to vector<24x32xbf16>
    %365 = arith.truncf %362 : vector<32x128xf32> to vector<32x128xbf16>
    %cst_303 = arith.constant dense<0.000000e+00> : vector<24x128xf32>
    %366 = tpu.matmul %364, %365, %cst_303 {dimension_numbers = #tpu.dot_dimension_numbers<[1], [0], [0], [1], [0, 0, 1, 1], [], []>} : vector<24x32xbf16>, vector<32x128xbf16>, vector<24x128xf32> -> vector<24x128xf32>
    %367 = arith.addf %359, %366 : vector<24x128xf32>
    %c119_i32_304 = arith.constant 119 : i32
    %368 = tpu.dynamic_rotate %305 by %c119_i32_304 dim 1 : vector<32x128xf32>, i32 -> vector<32x128xf32>
    %369 = vector.broadcast %8 : vector<1x128xf32> to vector<32x128xf32>
    %370 = arith.mulf %368, %369 : vector<32x128xf32>
    %c0_305 = arith.constant 0 : index
    %c8_306 = arith.constant 8 : index
    %c0_307 = arith.constant 0 : index
    %c0_308 = arith.constant 0 : index
    %371 = vector.load %arg7[%c0_305, %c8_306, %c0_307, %c0_308] : memref<1x9x24x32xbf16, #tpu.memory_space<vmem>>, vector<1x1x24x32xbf16>
    %372 = vector.shape_cast %371 : vector<1x1x24x32xbf16> to vector<24x32xbf16>
    %373 = arith.truncf %370 : vector<32x128xf32> to vector<32x128xbf16>
    %cst_309 = arith.constant dense<0.000000e+00> : vector<24x128xf32>
    %374 = tpu.matmul %372, %373, %cst_309 {dimension_numbers = #tpu.dot_dimension_numbers<[1], [0], [0], [1], [0, 0, 1, 1], [], []>} : vector<24x32xbf16>, vector<32x128xbf16>, vector<24x128xf32> -> vector<24x128xf32>
    %375 = arith.addf %367, %374 : vector<24x128xf32>
    %376 = vector.broadcast %307 : vector<24x1xf32> to vector<24x128xf32>
    %377 = arith.addf %375, %376 : vector<24x128xf32>
    %c0_310 = arith.constant 0 : index
    %c0_311 = arith.constant 0 : index
    %c0_312 = arith.constant 0 : index
    %378 = vector.load %arg13[%c0_310, %c0_311, %c0_312] : memref<1x24x128xf32, #tpu.memory_space<vmem>>, vector<1x24x128xf32>
    %379 = vector.shape_cast %378 : vector<1x24x128xf32> to vector<24x128xf32>
    %380 = vector.shape_cast %377 : vector<24x128xf32> to vector<1x24x128xf32>
    tpu.vector_store %arg13[%c0_310, %c0_311, %c0_312], %380 {strides = array<i32>} : memref<1x24x128xf32, #tpu.memory_space<vmem>>, vector<1x24x128xf32>,
    %c0_313 = arith.constant 0 : index
    %c0_314 = arith.constant 0 : index
    %381 = vector.load %arg4[%c0_313, %c0_314] : memref<9x128xf32, #tpu.memory_space<vmem>>, vector<9x128xf32>
    %382 = vector.extract_strided_slice %381 {offsets = [0, 0], sizes = [1, 128], strides = [1, 1]} : vector<9x128xf32> to vector<1x128xf32>
    %383 = vector.extract_strided_slice %381 {offsets = [1, 0], sizes = [1, 128], strides = [1, 1]} : vector<9x128xf32> to vector<1x128xf32>
    %384 = vector.extract_strided_slice %381 {offsets = [2, 0], sizes = [1, 128], strides = [1, 1]} : vector<9x128xf32> to vector<1x128xf32>
    %385 = vector.extract_strided_slice %381 {offsets = [3, 0], sizes = [1, 128], strides = [1, 1]} : vector<9x128xf32> to vector<1x128xf32>
    %386 = vector.extract_strided_slice %381 {offsets = [5, 0], sizes = [1, 128], strides = [1, 1]} : vector<9x128xf32> to vector<1x128xf32>
    %387 = vector.extract_strided_slice %381 {offsets = [6, 0], sizes = [1, 128], strides = [1, 1]} : vector<9x128xf32> to vector<1x128xf32>
    %388 = vector.extract_strided_slice %381 {offsets = [7, 0], sizes = [1, 128], strides = [1, 1]} : vector<9x128xf32> to vector<1x128xf32>
    %389 = vector.extract_strided_slice %381 {offsets = [8, 0], sizes = [1, 128], strides = [1, 1]} : vector<9x128xf32> to vector<1x128xf32>
    %c0_315 = arith.constant 0 : index
    %c0_316 = arith.constant 0 : index
    %390 = vector.load %arg2[%c0_315, %c0_316] : memref<32x128xf32, #tpu.memory_space<vmem>>, vector<32x128xf32>
    %c0_317 = arith.constant 0 : index
    %c0_318 = arith.constant 0 : index
    %c0_319 = arith.constant 0 : index
    %c0_320 = arith.constant 0 : index
    %391 = vector.load %arg10[%c0_317, %c0_318, %c0_319, %c0_320] : memref<1x4x32x1xf32, #tpu.memory_space<vmem>>, vector<1x1x32x1xf32>
    %392 = vector.shape_cast %391 : vector<1x1x32x1xf32> to vector<32x1xf32>
    %c5_i32 = arith.constant 5 : i32
    %393 = tpu.dynamic_rotate %390 by %c5_i32 dim 1 : vector<32x128xf32>, i32 -> vector<32x128xf32>
    %394 = vector.broadcast %382 : vector<1x128xf32> to vector<32x128xf32>
    %395 = arith.mulf %393, %394 : vector<32x128xf32>
    %c0_321 = arith.constant 0 : index
    %c0_322 = arith.constant 0 : index
    %c0_323 = arith.constant 0 : index
    %c0_324 = arith.constant 0 : index
    %c0_325 = arith.constant 0 : index
    %396 = vector.load %arg9[%c0_321, %c0_322, %c0_323, %c0_324, %c0_325] : memref<1x4x9x32x32xbf16, #tpu.memory_space<vmem>>, vector<1x1x1x32x32xbf16>
    %397 = vector.shape_cast %396 : vector<1x1x1x32x32xbf16> to vector<32x32xbf16>
    %398 = arith.truncf %395 : vector<32x128xf32> to vector<32x128xbf16>
    %cst_326 = arith.constant dense<0.000000e+00> : vector<32x128xf32>
    %399 = tpu.matmul %397, %398, %cst_326 {dimension_numbers = #tpu.dot_dimension_numbers<[1], [0], [0], [1], [0, 0, 1, 1], [], []>} : vector<32x32xbf16>, vector<32x128xbf16>, vector<32x128xf32> -> vector<32x128xf32>
    %c4_i32 = arith.constant 4 : i32
    %400 = tpu.dynamic_rotate %390 by %c4_i32 dim 1 : vector<32x128xf32>, i32 -> vector<32x128xf32>
    %401 = vector.broadcast %383 : vector<1x128xf32> to vector<32x128xf32>
    %402 = arith.mulf %400, %401 : vector<32x128xf32>
    %c0_327 = arith.constant 0 : index
    %c0_328 = arith.constant 0 : index
    %c1_329 = arith.constant 1 : index
    %c0_330 = arith.constant 0 : index
    %c0_331 = arith.constant 0 : index
    %403 = vector.load %arg9[%c0_327, %c0_328, %c1_329, %c0_330, %c0_331] : memref<1x4x9x32x32xbf16, #tpu.memory_space<vmem>>, vector<1x1x1x32x32xbf16>
    %404 = vector.shape_cast %403 : vector<1x1x1x32x32xbf16> to vector<32x32xbf16>
    %405 = arith.truncf %402 : vector<32x128xf32> to vector<32x128xbf16>
    %cst_332 = arith.constant dense<0.000000e+00> : vector<32x128xf32>
    %406 = tpu.matmul %404, %405, %cst_332 {dimension_numbers = #tpu.dot_dimension_numbers<[1], [0], [0], [1], [0, 0, 1, 1], [], []>} : vector<32x32xbf16>, vector<32x128xbf16>, vector<32x128xf32> -> vector<32x128xf32>
    %407 = arith.addf %399, %406 : vector<32x128xf32>
    %c3_i32 = arith.constant 3 : i32
    %408 = tpu.dynamic_rotate %390 by %c3_i32 dim 1 : vector<32x128xf32>, i32 -> vector<32x128xf32>
    %409 = vector.broadcast %384 : vector<1x128xf32> to vector<32x128xf32>
    %410 = arith.mulf %408, %409 : vector<32x128xf32>
    %c0_333 = arith.constant 0 : index
    %c0_334 = arith.constant 0 : index
    %c2_335 = arith.constant 2 : index
    %c0_336 = arith.constant 0 : index
    %c0_337 = arith.constant 0 : index
    %411 = vector.load %arg9[%c0_333, %c0_334, %c2_335, %c0_336, %c0_337] : memref<1x4x9x32x32xbf16, #tpu.memory_space<vmem>>, vector<1x1x1x32x32xbf16>
    %412 = vector.shape_cast %411 : vector<1x1x1x32x32xbf16> to vector<32x32xbf16>
    %413 = arith.truncf %410 : vector<32x128xf32> to vector<32x128xbf16>
    %cst_338 = arith.constant dense<0.000000e+00> : vector<32x128xf32>
    %414 = tpu.matmul %412, %413, %cst_338 {dimension_numbers = #tpu.dot_dimension_numbers<[1], [0], [0], [1], [0, 0, 1, 1], [], []>} : vector<32x32xbf16>, vector<32x128xbf16>, vector<32x128xf32> -> vector<32x128xf32>
    %415 = arith.addf %407, %414 : vector<32x128xf32>
    %c1_i32_339 = arith.constant 1 : i32
    %416 = tpu.dynamic_rotate %390 by %c1_i32_339 dim 1 : vector<32x128xf32>, i32 -> vector<32x128xf32>
    %417 = vector.broadcast %385 : vector<1x128xf32> to vector<32x128xf32>
    %418 = arith.mulf %416, %417 : vector<32x128xf32>
    %c0_340 = arith.constant 0 : index
    %c0_341 = arith.constant 0 : index
    %c3_342 = arith.constant 3 : index
    %c0_343 = arith.constant 0 : index
    %c0_344 = arith.constant 0 : index
    %419 = vector.load %arg9[%c0_340, %c0_341, %c3_342, %c0_343, %c0_344] : memref<1x4x9x32x32xbf16, #tpu.memory_space<vmem>>, vector<1x1x1x32x32xbf16>
    %420 = vector.shape_cast %419 : vector<1x1x1x32x32xbf16> to vector<32x32xbf16>
    %421 = arith.truncf %418 : vector<32x128xf32> to vector<32x128xbf16>
    %cst_345 = arith.constant dense<0.000000e+00> : vector<32x128xf32>
    %422 = tpu.matmul %420, %421, %cst_345 {dimension_numbers = #tpu.dot_dimension_numbers<[1], [0], [0], [1], [0, 0, 1, 1], [], []>} : vector<32x32xbf16>, vector<32x128xbf16>, vector<32x128xf32> -> vector<32x128xf32>
    %423 = arith.addf %415, %422 : vector<32x128xf32>
    %c0_346 = arith.constant 0 : index
    %c0_347 = arith.constant 0 : index
    %c4_348 = arith.constant 4 : index
    %c0_349 = arith.constant 0 : index
    %c0_350 = arith.constant 0 : index
    %424 = vector.load %arg9[%c0_346, %c0_347, %c4_348, %c0_349, %c0_350] : memref<1x4x9x32x32xbf16, #tpu.memory_space<vmem>>, vector<1x1x1x32x32xbf16>
    %425 = vector.shape_cast %424 : vector<1x1x1x32x32xbf16> to vector<32x32xbf16>
    %426 = arith.truncf %390 : vector<32x128xf32> to vector<32x128xbf16>
    %cst_351 = arith.constant dense<0.000000e+00> : vector<32x128xf32>
    %427 = tpu.matmul %425, %426, %cst_351 {dimension_numbers = #tpu.dot_dimension_numbers<[1], [0], [0], [1], [0, 0, 1, 1], [], []>} : vector<32x32xbf16>, vector<32x128xbf16>, vector<32x128xf32> -> vector<32x128xf32>
    %428 = arith.addf %423, %427 : vector<32x128xf32>
    %c127_i32_352 = arith.constant 127 : i32
    %429 = tpu.dynamic_rotate %390 by %c127_i32_352 dim 1 : vector<32x128xf32>, i32 -> vector<32x128xf32>
    %430 = vector.broadcast %386 : vector<1x128xf32> to vector<32x128xf32>
    %431 = arith.mulf %429, %430 : vector<32x128xf32>
    %c0_353 = arith.constant 0 : index
    %c0_354 = arith.constant 0 : index
    %c5_355 = arith.constant 5 : index
    %c0_356 = arith.constant 0 : index
    %c0_357 = arith.constant 0 : index
    %432 = vector.load %arg9[%c0_353, %c0_354, %c5_355, %c0_356, %c0_357] : memref<1x4x9x32x32xbf16, #tpu.memory_space<vmem>>, vector<1x1x1x32x32xbf16>
    %433 = vector.shape_cast %432 : vector<1x1x1x32x32xbf16> to vector<32x32xbf16>
    %434 = arith.truncf %431 : vector<32x128xf32> to vector<32x128xbf16>
    %cst_358 = arith.constant dense<0.000000e+00> : vector<32x128xf32>
    %435 = tpu.matmul %433, %434, %cst_358 {dimension_numbers = #tpu.dot_dimension_numbers<[1], [0], [0], [1], [0, 0, 1, 1], [], []>} : vector<32x32xbf16>, vector<32x128xbf16>, vector<32x128xf32> -> vector<32x128xf32>
    %436 = arith.addf %428, %435 : vector<32x128xf32>
    %c125_i32 = arith.constant 125 : i32
    %437 = tpu.dynamic_rotate %390 by %c125_i32 dim 1 : vector<32x128xf32>, i32 -> vector<32x128xf32>
    %438 = vector.broadcast %387 : vector<1x128xf32> to vector<32x128xf32>
    %439 = arith.mulf %437, %438 : vector<32x128xf32>
    %c0_359 = arith.constant 0 : index
    %c0_360 = arith.constant 0 : index
    %c6_361 = arith.constant 6 : index
    %c0_362 = arith.constant 0 : index
    %c0_363 = arith.constant 0 : index
    %440 = vector.load %arg9[%c0_359, %c0_360, %c6_361, %c0_362, %c0_363] : memref<1x4x9x32x32xbf16, #tpu.memory_space<vmem>>, vector<1x1x1x32x32xbf16>
    %441 = vector.shape_cast %440 : vector<1x1x1x32x32xbf16> to vector<32x32xbf16>
    %442 = arith.truncf %439 : vector<32x128xf32> to vector<32x128xbf16>
    %cst_364 = arith.constant dense<0.000000e+00> : vector<32x128xf32>
    %443 = tpu.matmul %441, %442, %cst_364 {dimension_numbers = #tpu.dot_dimension_numbers<[1], [0], [0], [1], [0, 0, 1, 1], [], []>} : vector<32x32xbf16>, vector<32x128xbf16>, vector<32x128xf32> -> vector<32x128xf32>
    %444 = arith.addf %436, %443 : vector<32x128xf32>
    %c124_i32 = arith.constant 124 : i32
    %445 = tpu.dynamic_rotate %390 by %c124_i32 dim 1 : vector<32x128xf32>, i32 -> vector<32x128xf32>
    %446 = vector.broadcast %388 : vector<1x128xf32> to vector<32x128xf32>
    %447 = arith.mulf %445, %446 : vector<32x128xf32>
    %c0_365 = arith.constant 0 : index
    %c0_366 = arith.constant 0 : index
    %c7_367 = arith.constant 7 : index
    %c0_368 = arith.constant 0 : index
    %c0_369 = arith.constant 0 : index
    %448 = vector.load %arg9[%c0_365, %c0_366, %c7_367, %c0_368, %c0_369] : memref<1x4x9x32x32xbf16, #tpu.memory_space<vmem>>, vector<1x1x1x32x32xbf16>
    %449 = vector.shape_cast %448 : vector<1x1x1x32x32xbf16> to vector<32x32xbf16>
    %450 = arith.truncf %447 : vector<32x128xf32> to vector<32x128xbf16>
    %cst_370 = arith.constant dense<0.000000e+00> : vector<32x128xf32>
    %451 = tpu.matmul %449, %450, %cst_370 {dimension_numbers = #tpu.dot_dimension_numbers<[1], [0], [0], [1], [0, 0, 1, 1], [], []>} : vector<32x32xbf16>, vector<32x128xbf16>, vector<32x128xf32> -> vector<32x128xf32>
    %452 = arith.addf %444, %451 : vector<32x128xf32>
    %c123_i32 = arith.constant 123 : i32
    %453 = tpu.dynamic_rotate %390 by %c123_i32 dim 1 : vector<32x128xf32>, i32 -> vector<32x128xf32>
    %454 = vector.broadcast %389 : vector<1x128xf32> to vector<32x128xf32>
    %455 = arith.mulf %453, %454 : vector<32x128xf32>
    %c0_371 = arith.constant 0 : index
    %c0_372 = arith.constant 0 : index
    %c8_373 = arith.constant 8 : index
    %c0_374 = arith.constant 0 : index
    %c0_375 = arith.constant 0 : index
    %456 = vector.load %arg9[%c0_371, %c0_372, %c8_373, %c0_374, %c0_375] : memref<1x4x9x32x32xbf16, #tpu.memory_space<vmem>>, vector<1x1x1x32x32xbf16>
    %457 = vector.shape_cast %456 : vector<1x1x1x32x32xbf16> to vector<32x32xbf16>
    %458 = arith.truncf %455 : vector<32x128xf32> to vector<32x128xbf16>
    %cst_376 = arith.constant dense<0.000000e+00> : vector<32x128xf32>
    %459 = tpu.matmul %457, %458, %cst_376 {dimension_numbers = #tpu.dot_dimension_numbers<[1], [0], [0], [1], [0, 0, 1, 1], [], []>} : vector<32x32xbf16>, vector<32x128xbf16>, vector<32x128xf32> -> vector<32x128xf32>
    %460 = arith.addf %452, %459 : vector<32x128xf32>
    %461 = vector.broadcast %392 : vector<32x1xf32> to vector<32x128xf32>
    %462 = arith.addf %460, %461 : vector<32x128xf32>
    %cst_377 = arith.constant 0.000000e+00 : f32
    %463 = vector.broadcast %cst_377 : f32 to vector<32x128xf32>
    %464 = arith.maximumf %462, %463 : vector<32x128xf32>
    %c0_378 = arith.constant 0 : index
    %c1_379 = arith.constant 1 : index
    %c0_380 = arith.constant 0 : index
    %c0_381 = arith.constant 0 : index
    %465 = vector.load %arg10[%c0_378, %c1_379, %c0_380, %c0_381] : memref<1x4x32x1xf32, #tpu.memory_space<vmem>>, vector<1x1x32x1xf32>
    %466 = vector.shape_cast %465 : vector<1x1x32x1xf32> to vector<32x1xf32>
    %c5_i32_382 = arith.constant 5 : i32
    %467 = tpu.dynamic_rotate %464 by %c5_i32_382 dim 1 : vector<32x128xf32>, i32 -> vector<32x128xf32>
    %468 = vector.broadcast %382 : vector<1x128xf32> to vector<32x128xf32>
    %469 = arith.mulf %467, %468 : vector<32x128xf32>
    %c0_383 = arith.constant 0 : index
    %c1_384 = arith.constant 1 : index
    %c0_385 = arith.constant 0 : index
    %c0_386 = arith.constant 0 : index
    %c0_387 = arith.constant 0 : index
    %470 = vector.load %arg9[%c0_383, %c1_384, %c0_385, %c0_386, %c0_387] : memref<1x4x9x32x32xbf16, #tpu.memory_space<vmem>>, vector<1x1x1x32x32xbf16>
    %471 = vector.shape_cast %470 : vector<1x1x1x32x32xbf16> to vector<32x32xbf16>
    %472 = arith.truncf %469 : vector<32x128xf32> to vector<32x128xbf16>
    %cst_388 = arith.constant dense<0.000000e+00> : vector<32x128xf32>
    %473 = tpu.matmul %471, %472, %cst_388 {dimension_numbers = #tpu.dot_dimension_numbers<[1], [0], [0], [1], [0, 0, 1, 1], [], []>} : vector<32x32xbf16>, vector<32x128xbf16>, vector<32x128xf32> -> vector<32x128xf32>
    %c4_i32_389 = arith.constant 4 : i32
    %474 = tpu.dynamic_rotate %464 by %c4_i32_389 dim 1 : vector<32x128xf32>, i32 -> vector<32x128xf32>
    %475 = vector.broadcast %383 : vector<1x128xf32> to vector<32x128xf32>
    %476 = arith.mulf %474, %475 : vector<32x128xf32>
    %c0_390 = arith.constant 0 : index
    %c1_391 = arith.constant 1 : index
    %c1_392 = arith.constant 1 : index
    %c0_393 = arith.constant 0 : index
    %c0_394 = arith.constant 0 : index
    %477 = vector.load %arg9[%c0_390, %c1_391, %c1_392, %c0_393, %c0_394] : memref<1x4x9x32x32xbf16, #tpu.memory_space<vmem>>, vector<1x1x1x32x32xbf16>
    %478 = vector.shape_cast %477 : vector<1x1x1x32x32xbf16> to vector<32x32xbf16>
    %479 = arith.truncf %476 : vector<32x128xf32> to vector<32x128xbf16>
    %cst_395 = arith.constant dense<0.000000e+00> : vector<32x128xf32>
    %480 = tpu.matmul %478, %479, %cst_395 {dimension_numbers = #tpu.dot_dimension_numbers<[1], [0], [0], [1], [0, 0, 1, 1], [], []>} : vector<32x32xbf16>, vector<32x128xbf16>, vector<32x128xf32> -> vector<32x128xf32>
    %481 = arith.addf %473, %480 : vector<32x128xf32>
    %c3_i32_396 = arith.constant 3 : i32
    %482 = tpu.dynamic_rotate %464 by %c3_i32_396 dim 1 : vector<32x128xf32>, i32 -> vector<32x128xf32>
    %483 = vector.broadcast %384 : vector<1x128xf32> to vector<32x128xf32>
    %484 = arith.mulf %482, %483 : vector<32x128xf32>
    %c0_397 = arith.constant 0 : index
    %c1_398 = arith.constant 1 : index
    %c2_399 = arith.constant 2 : index
    %c0_400 = arith.constant 0 : index
    %c0_401 = arith.constant 0 : index
    %485 = vector.load %arg9[%c0_397, %c1_398, %c2_399, %c0_400, %c0_401] : memref<1x4x9x32x32xbf16, #tpu.memory_space<vmem>>, vector<1x1x1x32x32xbf16>
    %486 = vector.shape_cast %485 : vector<1x1x1x32x32xbf16> to vector<32x32xbf16>
    %487 = arith.truncf %484 : vector<32x128xf32> to vector<32x128xbf16>
    %cst_402 = arith.constant dense<0.000000e+00> : vector<32x128xf32>
    %488 = tpu.matmul %486, %487, %cst_402 {dimension_numbers = #tpu.dot_dimension_numbers<[1], [0], [0], [1], [0, 0, 1, 1], [], []>} : vector<32x32xbf16>, vector<32x128xbf16>, vector<32x128xf32> -> vector<32x128xf32>
    %489 = arith.addf %481, %488 : vector<32x128xf32>
    %c1_i32_403 = arith.constant 1 : i32
    %490 = tpu.dynamic_rotate %464 by %c1_i32_403 dim 1 : vector<32x128xf32>, i32 -> vector<32x128xf32>
    %491 = vector.broadcast %385 : vector<1x128xf32> to vector<32x128xf32>
    %492 = arith.mulf %490, %491 : vector<32x128xf32>
    %c0_404 = arith.constant 0 : index
    %c1_405 = arith.constant 1 : index
    %c3_406 = arith.constant 3 : index
    %c0_407 = arith.constant 0 : index
    %c0_408 = arith.constant 0 : index
    %493 = vector.load %arg9[%c0_404, %c1_405, %c3_406, %c0_407, %c0_408] : memref<1x4x9x32x32xbf16, #tpu.memory_space<vmem>>, vector<1x1x1x32x32xbf16>
    %494 = vector.shape_cast %493 : vector<1x1x1x32x32xbf16> to vector<32x32xbf16>
    %495 = arith.truncf %492 : vector<32x128xf32> to vector<32x128xbf16>
    %cst_409 = arith.constant dense<0.000000e+00> : vector<32x128xf32>
    %496 = tpu.matmul %494, %495, %cst_409 {dimension_numbers = #tpu.dot_dimension_numbers<[1], [0], [0], [1], [0, 0, 1, 1], [], []>} : vector<32x32xbf16>, vector<32x128xbf16>, vector<32x128xf32> -> vector<32x128xf32>
    %497 = arith.addf %489, %496 : vector<32x128xf32>
    %c0_410 = arith.constant 0 : index
    %c1_411 = arith.constant 1 : index
    %c4_412 = arith.constant 4 : index
    %c0_413 = arith.constant 0 : index
    %c0_414 = arith.constant 0 : index
    %498 = vector.load %arg9[%c0_410, %c1_411, %c4_412, %c0_413, %c0_414] : memref<1x4x9x32x32xbf16, #tpu.memory_space<vmem>>, vector<1x1x1x32x32xbf16>
    %499 = vector.shape_cast %498 : vector<1x1x1x32x32xbf16> to vector<32x32xbf16>
    %500 = arith.truncf %464 : vector<32x128xf32> to vector<32x128xbf16>
    %cst_415 = arith.constant dense<0.000000e+00> : vector<32x128xf32>
    %501 = tpu.matmul %499, %500, %cst_415 {dimension_numbers = #tpu.dot_dimension_numbers<[1], [0], [0], [1], [0, 0, 1, 1], [], []>} : vector<32x32xbf16>, vector<32x128xbf16>, vector<32x128xf32> -> vector<32x128xf32>
    %502 = arith.addf %497, %501 : vector<32x128xf32>
    %c127_i32_416 = arith.constant 127 : i32
    %503 = tpu.dynamic_rotate %464 by %c127_i32_416 dim 1 : vector<32x128xf32>, i32 -> vector<32x128xf32>
    %504 = vector.broadcast %386 : vector<1x128xf32> to vector<32x128xf32>
    %505 = arith.mulf %503, %504 : vector<32x128xf32>
    %c0_417 = arith.constant 0 : index
    %c1_418 = arith.constant 1 : index
    %c5_419 = arith.constant 5 : index
    %c0_420 = arith.constant 0 : index
    %c0_421 = arith.constant 0 : index
    %506 = vector.load %arg9[%c0_417, %c1_418, %c5_419, %c0_420, %c0_421] : memref<1x4x9x32x32xbf16, #tpu.memory_space<vmem>>, vector<1x1x1x32x32xbf16>
    %507 = vector.shape_cast %506 : vector<1x1x1x32x32xbf16> to vector<32x32xbf16>
    %508 = arith.truncf %505 : vector<32x128xf32> to vector<32x128xbf16>
    %cst_422 = arith.constant dense<0.000000e+00> : vector<32x128xf32>
    %509 = tpu.matmul %507, %508, %cst_422 {dimension_numbers = #tpu.dot_dimension_numbers<[1], [0], [0], [1], [0, 0, 1, 1], [], []>} : vector<32x32xbf16>, vector<32x128xbf16>, vector<32x128xf32> -> vector<32x128xf32>
    %510 = arith.addf %502, %509 : vector<32x128xf32>
    %c125_i32_423 = arith.constant 125 : i32
    %511 = tpu.dynamic_rotate %464 by %c125_i32_423 dim 1 : vector<32x128xf32>, i32 -> vector<32x128xf32>
    %512 = vector.broadcast %387 : vector<1x128xf32> to vector<32x128xf32>
    %513 = arith.mulf %511, %512 : vector<32x128xf32>
    %c0_424 = arith.constant 0 : index
    %c1_425 = arith.constant 1 : index
    %c6_426 = arith.constant 6 : index
    %c0_427 = arith.constant 0 : index
    %c0_428 = arith.constant 0 : index
    %514 = vector.load %arg9[%c0_424, %c1_425, %c6_426, %c0_427, %c0_428] : memref<1x4x9x32x32xbf16, #tpu.memory_space<vmem>>, vector<1x1x1x32x32xbf16>
    %515 = vector.shape_cast %514 : vector<1x1x1x32x32xbf16> to vector<32x32xbf16>
    %516 = arith.truncf %513 : vector<32x128xf32> to vector<32x128xbf16>
    %cst_429 = arith.constant dense<0.000000e+00> : vector<32x128xf32>
    %517 = tpu.matmul %515, %516, %cst_429 {dimension_numbers = #tpu.dot_dimension_numbers<[1], [0], [0], [1], [0, 0, 1, 1], [], []>} : vector<32x32xbf16>, vector<32x128xbf16>, vector<32x128xf32> -> vector<32x128xf32>
    %518 = arith.addf %510, %517 : vector<32x128xf32>
    %c124_i32_430 = arith.constant 124 : i32
    %519 = tpu.dynamic_rotate %464 by %c124_i32_430 dim 1 : vector<32x128xf32>, i32 -> vector<32x128xf32>
    %520 = vector.broadcast %388 : vector<1x128xf32> to vector<32x128xf32>
    %521 = arith.mulf %519, %520 : vector<32x128xf32>
    %c0_431 = arith.constant 0 : index
    %c1_432 = arith.constant 1 : index
    %c7_433 = arith.constant 7 : index
    %c0_434 = arith.constant 0 : index
    %c0_435 = arith.constant 0 : index
    %522 = vector.load %arg9[%c0_431, %c1_432, %c7_433, %c0_434, %c0_435] : memref<1x4x9x32x32xbf16, #tpu.memory_space<vmem>>, vector<1x1x1x32x32xbf16>
    %523 = vector.shape_cast %522 : vector<1x1x1x32x32xbf16> to vector<32x32xbf16>
    %524 = arith.truncf %521 : vector<32x128xf32> to vector<32x128xbf16>
    %cst_436 = arith.constant dense<0.000000e+00> : vector<32x128xf32>
    %525 = tpu.matmul %523, %524, %cst_436 {dimension_numbers = #tpu.dot_dimension_numbers<[1], [0], [0], [1], [0, 0, 1, 1], [], []>} : vector<32x32xbf16>, vector<32x128xbf16>, vector<32x128xf32> -> vector<32x128xf32>
    %526 = arith.addf %518, %525 : vector<32x128xf32>
    %c123_i32_437 = arith.constant 123 : i32
    %527 = tpu.dynamic_rotate %464 by %c123_i32_437 dim 1 : vector<32x128xf32>, i32 -> vector<32x128xf32>
    %528 = vector.broadcast %389 : vector<1x128xf32> to vector<32x128xf32>
    %529 = arith.mulf %527, %528 : vector<32x128xf32>
    %c0_438 = arith.constant 0 : index
    %c1_439 = arith.constant 1 : index
    %c8_440 = arith.constant 8 : index
    %c0_441 = arith.constant 0 : index
    %c0_442 = arith.constant 0 : index
    %530 = vector.load %arg9[%c0_438, %c1_439, %c8_440, %c0_441, %c0_442] : memref<1x4x9x32x32xbf16, #tpu.memory_space<vmem>>, vector<1x1x1x32x32xbf16>
    %531 = vector.shape_cast %530 : vector<1x1x1x32x32xbf16> to vector<32x32xbf16>
    %532 = arith.truncf %529 : vector<32x128xf32> to vector<32x128xbf16>
    %cst_443 = arith.constant dense<0.000000e+00> : vector<32x128xf32>
    %533 = tpu.matmul %531, %532, %cst_443 {dimension_numbers = #tpu.dot_dimension_numbers<[1], [0], [0], [1], [0, 0, 1, 1], [], []>} : vector<32x32xbf16>, vector<32x128xbf16>, vector<32x128xf32> -> vector<32x128xf32>
    %534 = arith.addf %526, %533 : vector<32x128xf32>
    %535 = vector.broadcast %466 : vector<32x1xf32> to vector<32x128xf32>
    %536 = arith.addf %534, %535 : vector<32x128xf32>
    %cst_444 = arith.constant 0.000000e+00 : f32
    %537 = vector.broadcast %cst_444 : f32 to vector<32x128xf32>
    %538 = arith.maximumf %536, %537 : vector<32x128xf32>
    %c0_445 = arith.constant 0 : index
    %c2_446 = arith.constant 2 : index
    %c0_447 = arith.constant 0 : index
    %c0_448 = arith.constant 0 : index
    %539 = vector.load %arg10[%c0_445, %c2_446, %c0_447, %c0_448] : memref<1x4x32x1xf32, #tpu.memory_space<vmem>>, vector<1x1x32x1xf32>
    %540 = vector.shape_cast %539 : vector<1x1x32x1xf32> to vector<32x1xf32>
    %c5_i32_449 = arith.constant 5 : i32
    %541 = tpu.dynamic_rotate %538 by %c5_i32_449 dim 1 : vector<32x128xf32>, i32 -> vector<32x128xf32>
    %542 = vector.broadcast %382 : vector<1x128xf32> to vector<32x128xf32>
    %543 = arith.mulf %541, %542 : vector<32x128xf32>
    %c0_450 = arith.constant 0 : index
    %c2_451 = arith.constant 2 : index
    %c0_452 = arith.constant 0 : index
    %c0_453 = arith.constant 0 : index
    %c0_454 = arith.constant 0 : index
    %544 = vector.load %arg9[%c0_450, %c2_451, %c0_452, %c0_453, %c0_454] : memref<1x4x9x32x32xbf16, #tpu.memory_space<vmem>>, vector<1x1x1x32x32xbf16>
    %545 = vector.shape_cast %544 : vector<1x1x1x32x32xbf16> to vector<32x32xbf16>
    %546 = arith.truncf %543 : vector<32x128xf32> to vector<32x128xbf16>
    %cst_455 = arith.constant dense<0.000000e+00> : vector<32x128xf32>
    %547 = tpu.matmul %545, %546, %cst_455 {dimension_numbers = #tpu.dot_dimension_numbers<[1], [0], [0], [1], [0, 0, 1, 1], [], []>} : vector<32x32xbf16>, vector<32x128xbf16>, vector<32x128xf32> -> vector<32x128xf32>
    %c4_i32_456 = arith.constant 4 : i32
    %548 = tpu.dynamic_rotate %538 by %c4_i32_456 dim 1 : vector<32x128xf32>, i32 -> vector<32x128xf32>
    %549 = vector.broadcast %383 : vector<1x128xf32> to vector<32x128xf32>
    %550 = arith.mulf %548, %549 : vector<32x128xf32>
    %c0_457 = arith.constant 0 : index
    %c2_458 = arith.constant 2 : index
    %c1_459 = arith.constant 1 : index
    %c0_460 = arith.constant 0 : index
    %c0_461 = arith.constant 0 : index
    %551 = vector.load %arg9[%c0_457, %c2_458, %c1_459, %c0_460, %c0_461] : memref<1x4x9x32x32xbf16, #tpu.memory_space<vmem>>, vector<1x1x1x32x32xbf16>
    %552 = vector.shape_cast %551 : vector<1x1x1x32x32xbf16> to vector<32x32xbf16>
    %553 = arith.truncf %550 : vector<32x128xf32> to vector<32x128xbf16>
    %cst_462 = arith.constant dense<0.000000e+00> : vector<32x128xf32>
    %554 = tpu.matmul %552, %553, %cst_462 {dimension_numbers = #tpu.dot_dimension_numbers<[1], [0], [0], [1], [0, 0, 1, 1], [], []>} : vector<32x32xbf16>, vector<32x128xbf16>, vector<32x128xf32> -> vector<32x128xf32>
    %555 = arith.addf %547, %554 : vector<32x128xf32>
    %c3_i32_463 = arith.constant 3 : i32
    %556 = tpu.dynamic_rotate %538 by %c3_i32_463 dim 1 : vector<32x128xf32>, i32 -> vector<32x128xf32>
    %557 = vector.broadcast %384 : vector<1x128xf32> to vector<32x128xf32>
    %558 = arith.mulf %556, %557 : vector<32x128xf32>
    %c0_464 = arith.constant 0 : index
    %c2_465 = arith.constant 2 : index
    %c2_466 = arith.constant 2 : index
    %c0_467 = arith.constant 0 : index
    %c0_468 = arith.constant 0 : index
    %559 = vector.load %arg9[%c0_464, %c2_465, %c2_466, %c0_467, %c0_468] : memref<1x4x9x32x32xbf16, #tpu.memory_space<vmem>>, vector<1x1x1x32x32xbf16>
    %560 = vector.shape_cast %559 : vector<1x1x1x32x32xbf16> to vector<32x32xbf16>
    %561 = arith.truncf %558 : vector<32x128xf32> to vector<32x128xbf16>
    %cst_469 = arith.constant dense<0.000000e+00> : vector<32x128xf32>
    %562 = tpu.matmul %560, %561, %cst_469 {dimension_numbers = #tpu.dot_dimension_numbers<[1], [0], [0], [1], [0, 0, 1, 1], [], []>} : vector<32x32xbf16>, vector<32x128xbf16>, vector<32x128xf32> -> vector<32x128xf32>
    %563 = arith.addf %555, %562 : vector<32x128xf32>
    %c1_i32_470 = arith.constant 1 : i32
    %564 = tpu.dynamic_rotate %538 by %c1_i32_470 dim 1 : vector<32x128xf32>, i32 -> vector<32x128xf32>
    %565 = vector.broadcast %385 : vector<1x128xf32> to vector<32x128xf32>
    %566 = arith.mulf %564, %565 : vector<32x128xf32>
    %c0_471 = arith.constant 0 : index
    %c2_472 = arith.constant 2 : index
    %c3_473 = arith.constant 3 : index
    %c0_474 = arith.constant 0 : index
    %c0_475 = arith.constant 0 : index
    %567 = vector.load %arg9[%c0_471, %c2_472, %c3_473, %c0_474, %c0_475] : memref<1x4x9x32x32xbf16, #tpu.memory_space<vmem>>, vector<1x1x1x32x32xbf16>
    %568 = vector.shape_cast %567 : vector<1x1x1x32x32xbf16> to vector<32x32xbf16>
    %569 = arith.truncf %566 : vector<32x128xf32> to vector<32x128xbf16>
    %cst_476 = arith.constant dense<0.000000e+00> : vector<32x128xf32>
    %570 = tpu.matmul %568, %569, %cst_476 {dimension_numbers = #tpu.dot_dimension_numbers<[1], [0], [0], [1], [0, 0, 1, 1], [], []>} : vector<32x32xbf16>, vector<32x128xbf16>, vector<32x128xf32> -> vector<32x128xf32>
    %571 = arith.addf %563, %570 : vector<32x128xf32>
    %c0_477 = arith.constant 0 : index
    %c2_478 = arith.constant 2 : index
    %c4_479 = arith.constant 4 : index
    %c0_480 = arith.constant 0 : index
    %c0_481 = arith.constant 0 : index
    %572 = vector.load %arg9[%c0_477, %c2_478, %c4_479, %c0_480, %c0_481] : memref<1x4x9x32x32xbf16, #tpu.memory_space<vmem>>, vector<1x1x1x32x32xbf16>
    %573 = vector.shape_cast %572 : vector<1x1x1x32x32xbf16> to vector<32x32xbf16>
    %574 = arith.truncf %538 : vector<32x128xf32> to vector<32x128xbf16>
    %cst_482 = arith.constant dense<0.000000e+00> : vector<32x128xf32>
    %575 = tpu.matmul %573, %574, %cst_482 {dimension_numbers = #tpu.dot_dimension_numbers<[1], [0], [0], [1], [0, 0, 1, 1], [], []>} : vector<32x32xbf16>, vector<32x128xbf16>, vector<32x128xf32> -> vector<32x128xf32>
    %576 = arith.addf %571, %575 : vector<32x128xf32>
    %c127_i32_483 = arith.constant 127 : i32
    %577 = tpu.dynamic_rotate %538 by %c127_i32_483 dim 1 : vector<32x128xf32>, i32 -> vector<32x128xf32>
    %578 = vector.broadcast %386 : vector<1x128xf32> to vector<32x128xf32>
    %579 = arith.mulf %577, %578 : vector<32x128xf32>
    %c0_484 = arith.constant 0 : index
    %c2_485 = arith.constant 2 : index
    %c5_486 = arith.constant 5 : index
    %c0_487 = arith.constant 0 : index
    %c0_488 = arith.constant 0 : index
    %580 = vector.load %arg9[%c0_484, %c2_485, %c5_486, %c0_487, %c0_488] : memref<1x4x9x32x32xbf16, #tpu.memory_space<vmem>>, vector<1x1x1x32x32xbf16>
    %581 = vector.shape_cast %580 : vector<1x1x1x32x32xbf16> to vector<32x32xbf16>
    %582 = arith.truncf %579 : vector<32x128xf32> to vector<32x128xbf16>
    %cst_489 = arith.constant dense<0.000000e+00> : vector<32x128xf32>
    %583 = tpu.matmul %581, %582, %cst_489 {dimension_numbers = #tpu.dot_dimension_numbers<[1], [0], [0], [1], [0, 0, 1, 1], [], []>} : vector<32x32xbf16>, vector<32x128xbf16>, vector<32x128xf32> -> vector<32x128xf32>
    %584 = arith.addf %576, %583 : vector<32x128xf32>
    %c125_i32_490 = arith.constant 125 : i32
    %585 = tpu.dynamic_rotate %538 by %c125_i32_490 dim 1 : vector<32x128xf32>, i32 -> vector<32x128xf32>
    %586 = vector.broadcast %387 : vector<1x128xf32> to vector<32x128xf32>
    %587 = arith.mulf %585, %586 : vector<32x128xf32>
    %c0_491 = arith.constant 0 : index
    %c2_492 = arith.constant 2 : index
    %c6_493 = arith.constant 6 : index
    %c0_494 = arith.constant 0 : index
    %c0_495 = arith.constant 0 : index
    %588 = vector.load %arg9[%c0_491, %c2_492, %c6_493, %c0_494, %c0_495] : memref<1x4x9x32x32xbf16, #tpu.memory_space<vmem>>, vector<1x1x1x32x32xbf16>
    %589 = vector.shape_cast %588 : vector<1x1x1x32x32xbf16> to vector<32x32xbf16>
    %590 = arith.truncf %587 : vector<32x128xf32> to vector<32x128xbf16>
    %cst_496 = arith.constant dense<0.000000e+00> : vector<32x128xf32>
    %591 = tpu.matmul %589, %590, %cst_496 {dimension_numbers = #tpu.dot_dimension_numbers<[1], [0], [0], [1], [0, 0, 1, 1], [], []>} : vector<32x32xbf16>, vector<32x128xbf16>, vector<32x128xf32> -> vector<32x128xf32>
    %592 = arith.addf %584, %591 : vector<32x128xf32>
    %c124_i32_497 = arith.constant 124 : i32
    %593 = tpu.dynamic_rotate %538 by %c124_i32_497 dim 1 : vector<32x128xf32>, i32 -> vector<32x128xf32>
    %594 = vector.broadcast %388 : vector<1x128xf32> to vector<32x128xf32>
    %595 = arith.mulf %593, %594 : vector<32x128xf32>
    %c0_498 = arith.constant 0 : index
    %c2_499 = arith.constant 2 : index
    %c7_500 = arith.constant 7 : index
    %c0_501 = arith.constant 0 : index
    %c0_502 = arith.constant 0 : index
    %596 = vector.load %arg9[%c0_498, %c2_499, %c7_500, %c0_501, %c0_502] : memref<1x4x9x32x32xbf16, #tpu.memory_space<vmem>>, vector<1x1x1x32x32xbf16>
    %597 = vector.shape_cast %596 : vector<1x1x1x32x32xbf16> to vector<32x32xbf16>
    %598 = arith.truncf %595 : vector<32x128xf32> to vector<32x128xbf16>
    %cst_503 = arith.constant dense<0.000000e+00> : vector<32x128xf32>
    %599 = tpu.matmul %597, %598, %cst_503 {dimension_numbers = #tpu.dot_dimension_numbers<[1], [0], [0], [1], [0, 0, 1, 1], [], []>} : vector<32x32xbf16>, vector<32x128xbf16>, vector<32x128xf32> -> vector<32x128xf32>
    %600 = arith.addf %592, %599 : vector<32x128xf32>
    %c123_i32_504 = arith.constant 123 : i32
    %601 = tpu.dynamic_rotate %538 by %c123_i32_504 dim 1 : vector<32x128xf32>, i32 -> vector<32x128xf32>
    %602 = vector.broadcast %389 : vector<1x128xf32> to vector<32x128xf32>
    %603 = arith.mulf %601, %602 : vector<32x128xf32>
    %c0_505 = arith.constant 0 : index
    %c2_506 = arith.constant 2 : index
    %c8_507 = arith.constant 8 : index
    %c0_508 = arith.constant 0 : index
    %c0_509 = arith.constant 0 : index
    %604 = vector.load %arg9[%c0_505, %c2_506, %c8_507, %c0_508, %c0_509] : memref<1x4x9x32x32xbf16, #tpu.memory_space<vmem>>, vector<1x1x1x32x32xbf16>
    %605 = vector.shape_cast %604 : vector<1x1x1x32x32xbf16> to vector<32x32xbf16>
    %606 = arith.truncf %603 : vector<32x128xf32> to vector<32x128xbf16>
    %cst_510 = arith.constant dense<0.000000e+00> : vector<32x128xf32>
    %607 = tpu.matmul %605, %606, %cst_510 {dimension_numbers = #tpu.dot_dimension_numbers<[1], [0], [0], [1], [0, 0, 1, 1], [], []>} : vector<32x32xbf16>, vector<32x128xbf16>, vector<32x128xf32> -> vector<32x128xf32>
    %608 = arith.addf %600, %607 : vector<32x128xf32>
    %609 = vector.broadcast %540 : vector<32x1xf32> to vector<32x128xf32>
    %610 = arith.addf %608, %609 : vector<32x128xf32>
    %cst_511 = arith.constant 0.000000e+00 : f32
    %611 = vector.broadcast %cst_511 : f32 to vector<32x128xf32>
    %612 = arith.maximumf %610, %611 : vector<32x128xf32>
    %c0_512 = arith.constant 0 : index
    %c3_513 = arith.constant 3 : index
    %c0_514 = arith.constant 0 : index
    %c0_515 = arith.constant 0 : index
    %613 = vector.load %arg10[%c0_512, %c3_513, %c0_514, %c0_515] : memref<1x4x32x1xf32, #tpu.memory_space<vmem>>, vector<1x1x32x1xf32>
    %614 = vector.shape_cast %613 : vector<1x1x32x1xf32> to vector<32x1xf32>
    %c5_i32_516 = arith.constant 5 : i32
    %615 = tpu.dynamic_rotate %612 by %c5_i32_516 dim 1 : vector<32x128xf32>, i32 -> vector<32x128xf32>
    %616 = vector.broadcast %382 : vector<1x128xf32> to vector<32x128xf32>
    %617 = arith.mulf %615, %616 : vector<32x128xf32>
    %c0_517 = arith.constant 0 : index
    %c3_518 = arith.constant 3 : index
    %c0_519 = arith.constant 0 : index
    %c0_520 = arith.constant 0 : index
    %c0_521 = arith.constant 0 : index
    %618 = vector.load %arg9[%c0_517, %c3_518, %c0_519, %c0_520, %c0_521] : memref<1x4x9x32x32xbf16, #tpu.memory_space<vmem>>, vector<1x1x1x32x32xbf16>
    %619 = vector.shape_cast %618 : vector<1x1x1x32x32xbf16> to vector<32x32xbf16>
    %620 = arith.truncf %617 : vector<32x128xf32> to vector<32x128xbf16>
    %cst_522 = arith.constant dense<0.000000e+00> : vector<32x128xf32>
    %621 = tpu.matmul %619, %620, %cst_522 {dimension_numbers = #tpu.dot_dimension_numbers<[1], [0], [0], [1], [0, 0, 1, 1], [], []>} : vector<32x32xbf16>, vector<32x128xbf16>, vector<32x128xf32> -> vector<32x128xf32>
    %c4_i32_523 = arith.constant 4 : i32
    %622 = tpu.dynamic_rotate %612 by %c4_i32_523 dim 1 : vector<32x128xf32>, i32 -> vector<32x128xf32>
    %623 = vector.broadcast %383 : vector<1x128xf32> to vector<32x128xf32>
    %624 = arith.mulf %622, %623 : vector<32x128xf32>
    %c0_524 = arith.constant 0 : index
    %c3_525 = arith.constant 3 : index
    %c1_526 = arith.constant 1 : index
    %c0_527 = arith.constant 0 : index
    %c0_528 = arith.constant 0 : index
    %625 = vector.load %arg9[%c0_524, %c3_525, %c1_526, %c0_527, %c0_528] : memref<1x4x9x32x32xbf16, #tpu.memory_space<vmem>>, vector<1x1x1x32x32xbf16>
    %626 = vector.shape_cast %625 : vector<1x1x1x32x32xbf16> to vector<32x32xbf16>
    %627 = arith.truncf %624 : vector<32x128xf32> to vector<32x128xbf16>
    %cst_529 = arith.constant dense<0.000000e+00> : vector<32x128xf32>
    %628 = tpu.matmul %626, %627, %cst_529 {dimension_numbers = #tpu.dot_dimension_numbers<[1], [0], [0], [1], [0, 0, 1, 1], [], []>} : vector<32x32xbf16>, vector<32x128xbf16>, vector<32x128xf32> -> vector<32x128xf32>
    %629 = arith.addf %621, %628 : vector<32x128xf32>
    %c3_i32_530 = arith.constant 3 : i32
    %630 = tpu.dynamic_rotate %612 by %c3_i32_530 dim 1 : vector<32x128xf32>, i32 -> vector<32x128xf32>
    %631 = vector.broadcast %384 : vector<1x128xf32> to vector<32x128xf32>
    %632 = arith.mulf %630, %631 : vector<32x128xf32>
    %c0_531 = arith.constant 0 : index
    %c3_532 = arith.constant 3 : index
    %c2_533 = arith.constant 2 : index
    %c0_534 = arith.constant 0 : index
    %c0_535 = arith.constant 0 : index
    %633 = vector.load %arg9[%c0_531, %c3_532, %c2_533, %c0_534, %c0_535] : memref<1x4x9x32x32xbf16, #tpu.memory_space<vmem>>, vector<1x1x1x32x32xbf16>
    %634 = vector.shape_cast %633 : vector<1x1x1x32x32xbf16> to vector<32x32xbf16>
    %635 = arith.truncf %632 : vector<32x128xf32> to vector<32x128xbf16>
    %cst_536 = arith.constant dense<0.000000e+00> : vector<32x128xf32>
    %636 = tpu.matmul %634, %635, %cst_536 {dimension_numbers = #tpu.dot_dimension_numbers<[1], [0], [0], [1], [0, 0, 1, 1], [], []>} : vector<32x32xbf16>, vector<32x128xbf16>, vector<32x128xf32> -> vector<32x128xf32>
    %637 = arith.addf %629, %636 : vector<32x128xf32>
    %c1_i32_537 = arith.constant 1 : i32
    %638 = tpu.dynamic_rotate %612 by %c1_i32_537 dim 1 : vector<32x128xf32>, i32 -> vector<32x128xf32>
    %639 = vector.broadcast %385 : vector<1x128xf32> to vector<32x128xf32>
    %640 = arith.mulf %638, %639 : vector<32x128xf32>
    %c0_538 = arith.constant 0 : index
    %c3_539 = arith.constant 3 : index
    %c3_540 = arith.constant 3 : index
    %c0_541 = arith.constant 0 : index
    %c0_542 = arith.constant 0 : index
    %641 = vector.load %arg9[%c0_538, %c3_539, %c3_540, %c0_541, %c0_542] : memref<1x4x9x32x32xbf16, #tpu.memory_space<vmem>>, vector<1x1x1x32x32xbf16>
    %642 = vector.shape_cast %641 : vector<1x1x1x32x32xbf16> to vector<32x32xbf16>
    %643 = arith.truncf %640 : vector<32x128xf32> to vector<32x128xbf16>
    %cst_543 = arith.constant dense<0.000000e+00> : vector<32x128xf32>
    %644 = tpu.matmul %642, %643, %cst_543 {dimension_numbers = #tpu.dot_dimension_numbers<[1], [0], [0], [1], [0, 0, 1, 1], [], []>} : vector<32x32xbf16>, vector<32x128xbf16>, vector<32x128xf32> -> vector<32x128xf32>
    %645 = arith.addf %637, %644 : vector<32x128xf32>
    %c0_544 = arith.constant 0 : index
    %c3_545 = arith.constant 3 : index
    %c4_546 = arith.constant 4 : index
    %c0_547 = arith.constant 0 : index
    %c0_548 = arith.constant 0 : index
    %646 = vector.load %arg9[%c0_544, %c3_545, %c4_546, %c0_547, %c0_548] : memref<1x4x9x32x32xbf16, #tpu.memory_space<vmem>>, vector<1x1x1x32x32xbf16>
    %647 = vector.shape_cast %646 : vector<1x1x1x32x32xbf16> to vector<32x32xbf16>
    %648 = arith.truncf %612 : vector<32x128xf32> to vector<32x128xbf16>
    %cst_549 = arith.constant dense<0.000000e+00> : vector<32x128xf32>
    %649 = tpu.matmul %647, %648, %cst_549 {dimension_numbers = #tpu.dot_dimension_numbers<[1], [0], [0], [1], [0, 0, 1, 1], [], []>} : vector<32x32xbf16>, vector<32x128xbf16>, vector<32x128xf32> -> vector<32x128xf32>
    %650 = arith.addf %645, %649 : vector<32x128xf32>
    %c127_i32_550 = arith.constant 127 : i32
    %651 = tpu.dynamic_rotate %612 by %c127_i32_550 dim 1 : vector<32x128xf32>, i32 -> vector<32x128xf32>
    %652 = vector.broadcast %386 : vector<1x128xf32> to vector<32x128xf32>
    %653 = arith.mulf %651, %652 : vector<32x128xf32>
    %c0_551 = arith.constant 0 : index
    %c3_552 = arith.constant 3 : index
    %c5_553 = arith.constant 5 : index
    %c0_554 = arith.constant 0 : index
    %c0_555 = arith.constant 0 : index
    %654 = vector.load %arg9[%c0_551, %c3_552, %c5_553, %c0_554, %c0_555] : memref<1x4x9x32x32xbf16, #tpu.memory_space<vmem>>, vector<1x1x1x32x32xbf16>
    %655 = vector.shape_cast %654 : vector<1x1x1x32x32xbf16> to vector<32x32xbf16>
    %656 = arith.truncf %653 : vector<32x128xf32> to vector<32x128xbf16>
    %cst_556 = arith.constant dense<0.000000e+00> : vector<32x128xf32>
    %657 = tpu.matmul %655, %656, %cst_556 {dimension_numbers = #tpu.dot_dimension_numbers<[1], [0], [0], [1], [0, 0, 1, 1], [], []>} : vector<32x32xbf16>, vector<32x128xbf16>, vector<32x128xf32> -> vector<32x128xf32>
    %658 = arith.addf %650, %657 : vector<32x128xf32>
    %c125_i32_557 = arith.constant 125 : i32
    %659 = tpu.dynamic_rotate %612 by %c125_i32_557 dim 1 : vector<32x128xf32>, i32 -> vector<32x128xf32>
    %660 = vector.broadcast %387 : vector<1x128xf32> to vector<32x128xf32>
    %661 = arith.mulf %659, %660 : vector<32x128xf32>
    %c0_558 = arith.constant 0 : index
    %c3_559 = arith.constant 3 : index
    %c6_560 = arith.constant 6 : index
    %c0_561 = arith.constant 0 : index
    %c0_562 = arith.constant 0 : index
    %662 = vector.load %arg9[%c0_558, %c3_559, %c6_560, %c0_561, %c0_562] : memref<1x4x9x32x32xbf16, #tpu.memory_space<vmem>>, vector<1x1x1x32x32xbf16>
    %663 = vector.shape_cast %662 : vector<1x1x1x32x32xbf16> to vector<32x32xbf16>
    %664 = arith.truncf %661 : vector<32x128xf32> to vector<32x128xbf16>
    %cst_563 = arith.constant dense<0.000000e+00> : vector<32x128xf32>
    %665 = tpu.matmul %663, %664, %cst_563 {dimension_numbers = #tpu.dot_dimension_numbers<[1], [0], [0], [1], [0, 0, 1, 1], [], []>} : vector<32x32xbf16>, vector<32x128xbf16>, vector<32x128xf32> -> vector<32x128xf32>
    %666 = arith.addf %658, %665 : vector<32x128xf32>
    %c124_i32_564 = arith.constant 124 : i32
    %667 = tpu.dynamic_rotate %612 by %c124_i32_564 dim 1 : vector<32x128xf32>, i32 -> vector<32x128xf32>
    %668 = vector.broadcast %388 : vector<1x128xf32> to vector<32x128xf32>
    %669 = arith.mulf %667, %668 : vector<32x128xf32>
    %c0_565 = arith.constant 0 : index
    %c3_566 = arith.constant 3 : index
    %c7_567 = arith.constant 7 : index
    %c0_568 = arith.constant 0 : index
    %c0_569 = arith.constant 0 : index
    %670 = vector.load %arg9[%c0_565, %c3_566, %c7_567, %c0_568, %c0_569] : memref<1x4x9x32x32xbf16, #tpu.memory_space<vmem>>, vector<1x1x1x32x32xbf16>
    %671 = vector.shape_cast %670 : vector<1x1x1x32x32xbf16> to vector<32x32xbf16>
    %672 = arith.truncf %669 : vector<32x128xf32> to vector<32x128xbf16>
    %cst_570 = arith.constant dense<0.000000e+00> : vector<32x128xf32>
    %673 = tpu.matmul %671, %672, %cst_570 {dimension_numbers = #tpu.dot_dimension_numbers<[1], [0], [0], [1], [0, 0, 1, 1], [], []>} : vector<32x32xbf16>, vector<32x128xbf16>, vector<32x128xf32> -> vector<32x128xf32>
    %674 = arith.addf %666, %673 : vector<32x128xf32>
    %c123_i32_571 = arith.constant 123 : i32
    %675 = tpu.dynamic_rotate %612 by %c123_i32_571 dim 1 : vector<32x128xf32>, i32 -> vector<32x128xf32>
    %676 = vector.broadcast %389 : vector<1x128xf32> to vector<32x128xf32>
    %677 = arith.mulf %675, %676 : vector<32x128xf32>
    %c0_572 = arith.constant 0 : index
    %c3_573 = arith.constant 3 : index
    %c8_574 = arith.constant 8 : index
    %c0_575 = arith.constant 0 : index
    %c0_576 = arith.constant 0 : index
    %678 = vector.load %arg9[%c0_572, %c3_573, %c8_574, %c0_575, %c0_576] : memref<1x4x9x32x32xbf16, #tpu.memory_space<vmem>>, vector<1x1x1x32x32xbf16>
    %679 = vector.shape_cast %678 : vector<1x1x1x32x32xbf16> to vector<32x32xbf16>
    %680 = arith.truncf %677 : vector<32x128xf32> to vector<32x128xbf16>
    %cst_577 = arith.constant dense<0.000000e+00> : vector<32x128xf32>
    %681 = tpu.matmul %679, %680, %cst_577 {dimension_numbers = #tpu.dot_dimension_numbers<[1], [0], [0], [1], [0, 0, 1, 1], [], []>} : vector<32x32xbf16>, vector<32x128xbf16>, vector<32x128xf32> -> vector<32x128xf32>
    %682 = arith.addf %674, %681 : vector<32x128xf32>
    %683 = vector.broadcast %614 : vector<32x1xf32> to vector<32x128xf32>
    %684 = arith.addf %682, %683 : vector<32x128xf32>
    %cst_578 = arith.constant 0.000000e+00 : f32
    %685 = vector.broadcast %cst_578 : f32 to vector<32x128xf32>
    %686 = arith.maximumf %684, %685 : vector<32x128xf32>
    %c0_579 = arith.constant 0 : index
    %c0_580 = arith.constant 0 : index
    %c0_581 = arith.constant 0 : index
    %687 = vector.load %arg12[%c0_579, %c0_580, %c0_581] : memref<1x32x1xf32, #tpu.memory_space<vmem>>, vector<1x32x1xf32>
    %688 = vector.shape_cast %687 : vector<1x32x1xf32> to vector<32x1xf32>
    %c5_i32_582 = arith.constant 5 : i32
    %689 = tpu.dynamic_rotate %686 by %c5_i32_582 dim 1 : vector<32x128xf32>, i32 -> vector<32x128xf32>
    %690 = vector.broadcast %382 : vector<1x128xf32> to vector<32x128xf32>
    %691 = arith.mulf %689, %690 : vector<32x128xf32>
    %c0_583 = arith.constant 0 : index
    %c0_584 = arith.constant 0 : index
    %c0_585 = arith.constant 0 : index
    %c0_586 = arith.constant 0 : index
    %692 = vector.load %arg11[%c0_583, %c0_584, %c0_585, %c0_586] : memref<1x9x32x32xbf16, #tpu.memory_space<vmem>>, vector<1x1x32x32xbf16>
    %693 = vector.shape_cast %692 : vector<1x1x32x32xbf16> to vector<32x32xbf16>
    %694 = arith.truncf %691 : vector<32x128xf32> to vector<32x128xbf16>
    %cst_587 = arith.constant dense<0.000000e+00> : vector<32x128xf32>
    %695 = tpu.matmul %693, %694, %cst_587 {dimension_numbers = #tpu.dot_dimension_numbers<[1], [0], [0], [1], [0, 0, 1, 1], [], []>} : vector<32x32xbf16>, vector<32x128xbf16>, vector<32x128xf32> -> vector<32x128xf32>
    %c4_i32_588 = arith.constant 4 : i32
    %696 = tpu.dynamic_rotate %686 by %c4_i32_588 dim 1 : vector<32x128xf32>, i32 -> vector<32x128xf32>
    %697 = vector.broadcast %383 : vector<1x128xf32> to vector<32x128xf32>
    %698 = arith.mulf %696, %697 : vector<32x128xf32>
    %c0_589 = arith.constant 0 : index
    %c1_590 = arith.constant 1 : index
    %c0_591 = arith.constant 0 : index
    %c0_592 = arith.constant 0 : index
    %699 = vector.load %arg11[%c0_589, %c1_590, %c0_591, %c0_592] : memref<1x9x32x32xbf16, #tpu.memory_space<vmem>>, vector<1x1x32x32xbf16>
    %700 = vector.shape_cast %699 : vector<1x1x32x32xbf16> to vector<32x32xbf16>
    %701 = arith.truncf %698 : vector<32x128xf32> to vector<32x128xbf16>
    %cst_593 = arith.constant dense<0.000000e+00> : vector<32x128xf32>
    %702 = tpu.matmul %700, %701, %cst_593 {dimension_numbers = #tpu.dot_dimension_numbers<[1], [0], [0], [1], [0, 0, 1, 1], [], []>} : vector<32x32xbf16>, vector<32x128xbf16>, vector<32x128xf32> -> vector<32x128xf32>
    %703 = arith.addf %695, %702 : vector<32x128xf32>
    %c3_i32_594 = arith.constant 3 : i32
    %704 = tpu.dynamic_rotate %686 by %c3_i32_594 dim 1 : vector<32x128xf32>, i32 -> vector<32x128xf32>
    %705 = vector.broadcast %384 : vector<1x128xf32> to vector<32x128xf32>
    %706 = arith.mulf %704, %705 : vector<32x128xf32>
    %c0_595 = arith.constant 0 : index
    %c2_596 = arith.constant 2 : index
    %c0_597 = arith.constant 0 : index
    %c0_598 = arith.constant 0 : index
    %707 = vector.load %arg11[%c0_595, %c2_596, %c0_597, %c0_598] : memref<1x9x32x32xbf16, #tpu.memory_space<vmem>>, vector<1x1x32x32xbf16>
    %708 = vector.shape_cast %707 : vector<1x1x32x32xbf16> to vector<32x32xbf16>
    %709 = arith.truncf %706 : vector<32x128xf32> to vector<32x128xbf16>
    %cst_599 = arith.constant dense<0.000000e+00> : vector<32x128xf32>
    %710 = tpu.matmul %708, %709, %cst_599 {dimension_numbers = #tpu.dot_dimension_numbers<[1], [0], [0], [1], [0, 0, 1, 1], [], []>} : vector<32x32xbf16>, vector<32x128xbf16>, vector<32x128xf32> -> vector<32x128xf32>
    %711 = arith.addf %703, %710 : vector<32x128xf32>
    %c1_i32_600 = arith.constant 1 : i32
    %712 = tpu.dynamic_rotate %686 by %c1_i32_600 dim 1 : vector<32x128xf32>, i32 -> vector<32x128xf32>
    %713 = vector.broadcast %385 : vector<1x128xf32> to vector<32x128xf32>
    %714 = arith.mulf %712, %713 : vector<32x128xf32>
    %c0_601 = arith.constant 0 : index
    %c3_602 = arith.constant 3 : index
    %c0_603 = arith.constant 0 : index
    %c0_604 = arith.constant 0 : index
    %715 = vector.load %arg11[%c0_601, %c3_602, %c0_603, %c0_604] : memref<1x9x32x32xbf16, #tpu.memory_space<vmem>>, vector<1x1x32x32xbf16>
    %716 = vector.shape_cast %715 : vector<1x1x32x32xbf16> to vector<32x32xbf16>
    %717 = arith.truncf %714 : vector<32x128xf32> to vector<32x128xbf16>
    %cst_605 = arith.constant dense<0.000000e+00> : vector<32x128xf32>
    %718 = tpu.matmul %716, %717, %cst_605 {dimension_numbers = #tpu.dot_dimension_numbers<[1], [0], [0], [1], [0, 0, 1, 1], [], []>} : vector<32x32xbf16>, vector<32x128xbf16>, vector<32x128xf32> -> vector<32x128xf32>
    %719 = arith.addf %711, %718 : vector<32x128xf32>
    %c0_606 = arith.constant 0 : index
    %c4_607 = arith.constant 4 : index
    %c0_608 = arith.constant 0 : index
    %c0_609 = arith.constant 0 : index
    %720 = vector.load %arg11[%c0_606, %c4_607, %c0_608, %c0_609] : memref<1x9x32x32xbf16, #tpu.memory_space<vmem>>, vector<1x1x32x32xbf16>
    %721 = vector.shape_cast %720 : vector<1x1x32x32xbf16> to vector<32x32xbf16>
    %722 = arith.truncf %686 : vector<32x128xf32> to vector<32x128xbf16>
    %cst_610 = arith.constant dense<0.000000e+00> : vector<32x128xf32>
    %723 = tpu.matmul %721, %722, %cst_610 {dimension_numbers = #tpu.dot_dimension_numbers<[1], [0], [0], [1], [0, 0, 1, 1], [], []>} : vector<32x32xbf16>, vector<32x128xbf16>, vector<32x128xf32> -> vector<32x128xf32>
    %724 = arith.addf %719, %723 : vector<32x128xf32>
    %c127_i32_611 = arith.constant 127 : i32
    %725 = tpu.dynamic_rotate %686 by %c127_i32_611 dim 1 : vector<32x128xf32>, i32 -> vector<32x128xf32>
    %726 = vector.broadcast %386 : vector<1x128xf32> to vector<32x128xf32>
    %727 = arith.mulf %725, %726 : vector<32x128xf32>
    %c0_612 = arith.constant 0 : index
    %c5_613 = arith.constant 5 : index
    %c0_614 = arith.constant 0 : index
    %c0_615 = arith.constant 0 : index
    %728 = vector.load %arg11[%c0_612, %c5_613, %c0_614, %c0_615] : memref<1x9x32x32xbf16, #tpu.memory_space<vmem>>, vector<1x1x32x32xbf16>
    %729 = vector.shape_cast %728 : vector<1x1x32x32xbf16> to vector<32x32xbf16>
    %730 = arith.truncf %727 : vector<32x128xf32> to vector<32x128xbf16>
    %cst_616 = arith.constant dense<0.000000e+00> : vector<32x128xf32>
    %731 = tpu.matmul %729, %730, %cst_616 {dimension_numbers = #tpu.dot_dimension_numbers<[1], [0], [0], [1], [0, 0, 1, 1], [], []>} : vector<32x32xbf16>, vector<32x128xbf16>, vector<32x128xf32> -> vector<32x128xf32>
    %732 = arith.addf %724, %731 : vector<32x128xf32>
    %c125_i32_617 = arith.constant 125 : i32
    %733 = tpu.dynamic_rotate %686 by %c125_i32_617 dim 1 : vector<32x128xf32>, i32 -> vector<32x128xf32>
    %734 = vector.broadcast %387 : vector<1x128xf32> to vector<32x128xf32>
    %735 = arith.mulf %733, %734 : vector<32x128xf32>
    %c0_618 = arith.constant 0 : index
    %c6_619 = arith.constant 6 : index
    %c0_620 = arith.constant 0 : index
    %c0_621 = arith.constant 0 : index
    %736 = vector.load %arg11[%c0_618, %c6_619, %c0_620, %c0_621] : memref<1x9x32x32xbf16, #tpu.memory_space<vmem>>, vector<1x1x32x32xbf16>
    %737 = vector.shape_cast %736 : vector<1x1x32x32xbf16> to vector<32x32xbf16>
    %738 = arith.truncf %735 : vector<32x128xf32> to vector<32x128xbf16>
    %cst_622 = arith.constant dense<0.000000e+00> : vector<32x128xf32>
    %739 = tpu.matmul %737, %738, %cst_622 {dimension_numbers = #tpu.dot_dimension_numbers<[1], [0], [0], [1], [0, 0, 1, 1], [], []>} : vector<32x32xbf16>, vector<32x128xbf16>, vector<32x128xf32> -> vector<32x128xf32>
    %740 = arith.addf %732, %739 : vector<32x128xf32>
    %c124_i32_623 = arith.constant 124 : i32
    %741 = tpu.dynamic_rotate %686 by %c124_i32_623 dim 1 : vector<32x128xf32>, i32 -> vector<32x128xf32>
    %742 = vector.broadcast %388 : vector<1x128xf32> to vector<32x128xf32>
    %743 = arith.mulf %741, %742 : vector<32x128xf32>
    %c0_624 = arith.constant 0 : index
    %c7_625 = arith.constant 7 : index
    %c0_626 = arith.constant 0 : index
    %c0_627 = arith.constant 0 : index
    %744 = vector.load %arg11[%c0_624, %c7_625, %c0_626, %c0_627] : memref<1x9x32x32xbf16, #tpu.memory_space<vmem>>, vector<1x1x32x32xbf16>
    %745 = vector.shape_cast %744 : vector<1x1x32x32xbf16> to vector<32x32xbf16>
    %746 = arith.truncf %743 : vector<32x128xf32> to vector<32x128xbf16>
    %cst_628 = arith.constant dense<0.000000e+00> : vector<32x128xf32>
    %747 = tpu.matmul %745, %746, %cst_628 {dimension_numbers = #tpu.dot_dimension_numbers<[1], [0], [0], [1], [0, 0, 1, 1], [], []>} : vector<32x32xbf16>, vector<32x128xbf16>, vector<32x128xf32> -> vector<32x128xf32>
    %748 = arith.addf %740, %747 : vector<32x128xf32>
    %c123_i32_629 = arith.constant 123 : i32
    %749 = tpu.dynamic_rotate %686 by %c123_i32_629 dim 1 : vector<32x128xf32>, i32 -> vector<32x128xf32>
    %750 = vector.broadcast %389 : vector<1x128xf32> to vector<32x128xf32>
    %751 = arith.mulf %749, %750 : vector<32x128xf32>
    %c0_630 = arith.constant 0 : index
    %c8_631 = arith.constant 8 : index
    %c0_632 = arith.constant 0 : index
    %c0_633 = arith.constant 0 : index
    %752 = vector.load %arg11[%c0_630, %c8_631, %c0_632, %c0_633] : memref<1x9x32x32xbf16, #tpu.memory_space<vmem>>, vector<1x1x32x32xbf16>
    %753 = vector.shape_cast %752 : vector<1x1x32x32xbf16> to vector<32x32xbf16>
    %754 = arith.truncf %751 : vector<32x128xf32> to vector<32x128xbf16>
    %cst_634 = arith.constant dense<0.000000e+00> : vector<32x128xf32>
    %755 = tpu.matmul %753, %754, %cst_634 {dimension_numbers = #tpu.dot_dimension_numbers<[1], [0], [0], [1], [0, 0, 1, 1], [], []>} : vector<32x32xbf16>, vector<32x128xbf16>, vector<32x128xf32> -> vector<32x128xf32>
    %756 = arith.addf %748, %755 : vector<32x128xf32>
    %757 = vector.broadcast %688 : vector<32x1xf32> to vector<32x128xf32>
    %758 = arith.addf %756, %757 : vector<32x128xf32>
    %c0_635 = arith.constant 0 : index
    %c0_636 = arith.constant 0 : index
    %c0_637 = arith.constant 0 : index
    %759 = vector.load %arg14[%c0_635, %c0_636, %c0_637] : memref<1x32x128xf32, #tpu.memory_space<vmem>>, vector<1x32x128xf32>
    %760 = vector.shape_cast %759 : vector<1x32x128xf32> to vector<32x128xf32>
    %761 = vector.shape_cast %758 : vector<32x128xf32> to vector<1x32x128xf32>
    tpu.vector_store %arg14[%c0_635, %c0_636, %c0_637], %761 {strides = array<i32>} : memref<1x32x128xf32, #tpu.memory_space<vmem>>, vector<1x32x128xf32>,
    return
  }
  func.func @transform_0(%arg0: i32) -> (i32, i32) {
    %c0_i32 = arith.constant 0 : i32
    %c0_i32_0 = arith.constant 0 : i32
    %c0_i32_1 = arith.constant 0 : i32
    return %c0_i32, %c0_i32_0 : i32, i32
  }
  func.func @transform_1(%arg0: i32) -> (i32, i32) {
    %c0_i32 = arith.constant 0 : i32
    %c0_i32_0 = arith.constant 0 : i32
    %c0_i32_1 = arith.constant 0 : i32
    return %c0_i32, %c0_i32_0 : i32, i32
  }
  func.func @transform_2(%arg0: i32) -> (i32, i32) {
    %c0_i32 = arith.constant 0 : i32
    %c0_i32_0 = arith.constant 0 : i32
    %c0_i32_1 = arith.constant 0 : i32
    return %c0_i32, %c0_i32_0 : i32, i32
  }
  func.func @transform_3(%arg0: i32) -> (i32, i32) {
    %c0_i32 = arith.constant 0 : i32
    %c0_i32_0 = arith.constant 0 : i32
    %c0_i32_1 = arith.constant 0 : i32
    return %c0_i32, %c0_i32_0 : i32, i32
  }
  func.func @transform_4(%arg0: i32) -> (i32, i32, i32, i32, i32) {
    %c0_i32 = arith.constant 0 : i32
    %c0_i32_0 = arith.constant 0 : i32
    %c0_i32_1 = arith.constant 0 : i32
    %c0_i32_2 = arith.constant 0 : i32
    %c0_i32_3 = arith.constant 0 : i32
    return %arg0, %c0_i32, %c0_i32_0, %c0_i32_1, %c0_i32_2 : i32, i32, i32, i32, i32
  }
  func.func @transform_5(%arg0: i32) -> (i32, i32, i32, i32) {
    %c0_i32 = arith.constant 0 : i32
    %c0_i32_0 = arith.constant 0 : i32
    %c0_i32_1 = arith.constant 0 : i32
    %c0_i32_2 = arith.constant 0 : i32
    return %arg0, %c0_i32, %c0_i32_0, %c0_i32_1 : i32, i32, i32, i32
  }
  func.func @transform_6(%arg0: i32) -> (i32, i32, i32, i32) {
    %c0_i32 = arith.constant 0 : i32
    %c0_i32_0 = arith.constant 0 : i32
    %c0_i32_1 = arith.constant 0 : i32
    %c0_i32_2 = arith.constant 0 : i32
    return %arg0, %c0_i32, %c0_i32_0, %c0_i32_1 : i32, i32, i32, i32
  }
  func.func @transform_7(%arg0: i32) -> (i32, i32, i32) {
    %c0_i32 = arith.constant 0 : i32
    %c0_i32_0 = arith.constant 0 : i32
    %c0_i32_1 = arith.constant 0 : i32
    return %arg0, %c0_i32, %c0_i32_0 : i32, i32, i32
  }
  func.func @transform_8(%arg0: i32) -> (i32, i32, i32, i32, i32) {
    %c0_i32 = arith.constant 0 : i32
    %c0_i32_0 = arith.constant 0 : i32
    %c0_i32_1 = arith.constant 0 : i32
    %c0_i32_2 = arith.constant 0 : i32
    %c0_i32_3 = arith.constant 0 : i32
    return %arg0, %c0_i32, %c0_i32_0, %c0_i32_1, %c0_i32_2 : i32, i32, i32, i32, i32
  }
  func.func @transform_9(%arg0: i32) -> (i32, i32, i32, i32) {
    %c0_i32 = arith.constant 0 : i32
    %c0_i32_0 = arith.constant 0 : i32
    %c0_i32_1 = arith.constant 0 : i32
    %c0_i32_2 = arith.constant 0 : i32
    return %arg0, %c0_i32, %c0_i32_0, %c0_i32_1 : i32, i32, i32, i32
  }
  func.func @transform_10(%arg0: i32) -> (i32, i32, i32, i32) {
    %c0_i32 = arith.constant 0 : i32
    %c0_i32_0 = arith.constant 0 : i32
    %c0_i32_1 = arith.constant 0 : i32
    %c0_i32_2 = arith.constant 0 : i32
    return %arg0, %c0_i32, %c0_i32_0, %c0_i32_1 : i32, i32, i32, i32
  }
  func.func @transform_11(%arg0: i32) -> (i32, i32, i32) {
    %c0_i32 = arith.constant 0 : i32
    %c0_i32_0 = arith.constant 0 : i32
    %c0_i32_1 = arith.constant 0 : i32
    return %arg0, %c0_i32, %c0_i32_0 : i32, i32, i32
  }
  func.func @transform_12(%arg0: i32) -> (i32, i32, i32) {
    %c0_i32 = arith.constant 0 : i32
    %c0_i32_0 = arith.constant 0 : i32
    %c0_i32_1 = arith.constant 0 : i32
    return %arg0, %c0_i32, %c0_i32_0 : i32, i32, i32
  }
  func.func @transform_13(%arg0: i32) -> (i32, i32, i32) {
    %c0_i32 = arith.constant 0 : i32
    %c0_i32_0 = arith.constant 0 : i32
    %c0_i32_1 = arith.constant 0 : i32
    return %arg0, %c0_i32, %c0_i32_0 : i32, i32, i32
  }
}

</mosaic_0001>

<llo_original>
// kernel: forward.1
$region0: #{forward.1}
  #allocation0 [shape = 'u32[]', space=smem, size = 0x4, offset = 0x4, fixed_abs, tag = 'smem constant byte address 0x4 - core index']
  #allocation1 [shape = 'u32[144,128]{1,0:T(1,128)}', space=vmem, size = 0x12000, scoped, tag = 'internal scratch']
  %s0 = inlined_call_operand.vmem [shape: f32[32,128], index: 0, kind: input, shape index: {}]
  %s1 = inlined_call_operand.vmem [shape: f32[32,128], index: 1, kind: input, shape index: {}]
  %s2 = inlined_call_operand.vmem [shape: f32[9,128], index: 2, kind: input, shape index: {}]
  %s3 = inlined_call_operand.vmem [shape: f32[9,128], index: 3, kind: input, shape index: {}]
  %s4 = inlined_call_operand.vmem [shape: bf16[2,4,9,32,32], index: 4, kind: input, shape index: {}]
  %s5 = inlined_call_operand.vmem [shape: f32[2,4,32,1], index: 5, kind: input, shape index: {}]
  %s6 = inlined_call_operand.vmem [shape: bf16[2,9,24,32], index: 6, kind: input, shape index: {}]
  %s7 = inlined_call_operand.vmem [shape: f32[2,24,1], index: 7, kind: input, shape index: {}]
  %s8 = inlined_call_operand.vmem [shape: bf16[2,4,9,32,32], index: 8, kind: input, shape index: {}]
  %s9 = inlined_call_operand.vmem [shape: f32[2,4,32,1], index: 9, kind: input, shape index: {}]
  %s10 = inlined_call_operand.vmem [shape: bf16[2,9,32,32], index: 10, kind: input, shape index: {}]
  %s11 = inlined_call_operand.vmem [shape: f32[2,32,1], index: 11, kind: input, shape index: {}]
  %s12 = inlined_call_operand.vmem [shape: f32[2,24,128], index: 12, kind: output, shape index: {0}]
  %s13 = inlined_call_operand.vmem [shape: f32[2,32,128], index: 13, kind: output, shape index: {1}]
  %14 = xla_tuple %s12, %s13
  %s15 = sld [smem:[#allocation0]]
  $region89: #{forward.1} parent=0
    _
  %s17 = ssub.s32 1, %s15
  %s18 = scalar_select 0, %s17, %s15
  loop: start=0, step=1, limit=4
  $region2: #{forward.1} parent=0 // loop_pre_header
    _
  $region3: #{forward.1} parent=0 // loop_header
    %s20 = sphi 0, %s24
    %p21 = scmp.ge.s32.totalorder %s20, 4
    %s28 = sphi 0, %s28
    %s30 = sphi 0, %s28
    %s31 = sphi 0, %s30
    %s45 = sphi 0, %s31
    %s49 = sphi 0, %s49
    %s51 = sphi 0, %s49
    %s52 = sphi 0, %s51
    %s66 = sphi 0, %s52
    %s70 = sphi 0, %s70
    %s72 = sphi 0, %s70
    %s73 = sphi 0, %s72
    %s87 = sphi 0, %s73
    %s91 = sphi 0, %s91
    %s93 = sphi 0, %s91
    %s94 = sphi 0, %s93
    %s108 = sphi 0, %s94
    %s114 = sphi 0, %s116
    %s117 = sphi 0, %s114
    %s118 = sphi 0, %s117
    %s134 = sphi 0, %s118
    %s140 = sphi 0, %s142
    %s143 = sphi 0, %s140
    %s144 = sphi 0, %s143
    %s160 = sphi 0, %s144
    %s166 = sphi 0, %s168
    %s169 = sphi 0, %s166
    %s170 = sphi 0, %s169
    %s186 = sphi 0, %s170
    %s192 = sphi 0, %s194
    %s195 = sphi 0, %s192
    %s196 = sphi 0, %s195
    %s212 = sphi 0, %s196
    %s218 = sphi 0, %s220
    %s221 = sphi 0, %s218
    %s222 = sphi 0, %s221
    %s238 = sphi 0, %s222
    %s244 = sphi 0, %s246
    %s247 = sphi 0, %s244
    %s248 = sphi 0, %s247
    %s264 = sphi 0, %s248
    %s270 = sphi 0, %s272
    %s273 = sphi 0, %s270
    %s274 = sphi 0, %s273
    %s290 = sphi 0, %s274
    %s296 = sphi 0, %s298
    %s299 = sphi 0, %s296
    %s300 = sphi 0, %s299
    %s316 = sphi 0, %s300
    %s322 = sphi 0, %s324
    %s325 = sphi 0, %s322
    %s326 = sphi 0, %s325
    %s342 = sphi 0, %s326
    %s348 = sphi 0, %s350
    %s351 = sphi 0, %s348
    %s352 = sphi 0, %s351
    %s368 = sphi 0, %s352
  $region4: #{forward.1} parent=0 // loop_header_branch
    %23 = sbr.rel (%p21) target = $region8
  $region5: #{forward.1} parent=0 // loop_body
    %s25 = ssub.s32 %s20, 1
    %s26 = ssub.s32 %s20, 2
    %s27 = sadd.s32 %s20, 1
    %s29 = sadd.s32 %s28, 1
    %p32 = scmp.eq.s32.totalorder %s20, 1
    %p33 = scmp.ne.s32.totalorder %s28, %s30
    %p34 = scmp.eq.s32.totalorder %s20, 0
    %p35 = por %p33, %p34
    %p36 = scmp.ne.s32.totalorder %s28, %s30
    %p37 = scmp.eq.s32.totalorder %s25, 1
    %p38 = por %p36, %p37
    %p39 = scmp.ne.s32.totalorder %s30, %s31
    %p40 = scmp.eq.s32.totalorder %s25, 0
    %p41 = por %p39, %p40
    %p42 = scmp.ne.s32.totalorder %s30, %s31
    %p43 = scmp.eq.s32.totalorder %s26, 1
    %p44 = por %p42, %p43
    %p46 = scmp.ne.s32.totalorder %s31, %s45
    %p47 = scmp.eq.s32.totalorder %s26, 0
    %p48 = por %p46, %p47
    %s50 = sadd.s32 %s49, 1
    %p53 = scmp.eq.s32.totalorder %s20, 1
    %p54 = scmp.ne.s32.totalorder %s49, %s51
    %p55 = scmp.eq.s32.totalorder %s20, 0
    %p56 = por %p54, %p55
    %p57 = scmp.ne.s32.totalorder %s49, %s51
    %p58 = scmp.eq.s32.totalorder %s25, 1
    %p59 = por %p57, %p58
    %p60 = scmp.ne.s32.totalorder %s51, %s52
    %p61 = scmp.eq.s32.totalorder %s25, 0
    %p62 = por %p60, %p61
    %p63 = scmp.ne.s32.totalorder %s51, %s52
    %p64 = scmp.eq.s32.totalorder %s26, 1
    %p65 = por %p63, %p64
    %p67 = scmp.ne.s32.totalorder %s52, %s66
    %p68 = scmp.eq.s32.totalorder %s26, 0
    %p69 = por %p67, %p68
    %s71 = sadd.s32 %s70, 1
    %p74 = scmp.eq.s32.totalorder %s20, 1
    %p75 = scmp.ne.s32.totalorder %s70, %s72
    %p76 = scmp.eq.s32.totalorder %s20, 0
    %p77 = por %p75, %p76
    %p78 = scmp.ne.s32.totalorder %s70, %s72
    %p79 = scmp.eq.s32.totalorder %s25, 1
    %p80 = por %p78, %p79
    %p81 = scmp.ne.s32.totalorder %s72, %s73
    %p82 = scmp.eq.s32.totalorder %s25, 0
    %p83 = por %p81, %p82
    %p84 = scmp.ne.s32.totalorder %s72, %s73
    %p85 = scmp.eq.s32.totalorder %s26, 1
    %p86 = por %p84, %p85
    %p88 = scmp.ne.s32.totalorder %s73, %s87
    %p89 = scmp.eq.s32.totalorder %s26, 0
    %p90 = por %p88, %p89
    %s92 = sadd.s32 %s91, 1
    %p95 = scmp.eq.s32.totalorder %s20, 1
    %p96 = scmp.ne.s32.totalorder %s91, %s93
    %p97 = scmp.eq.s32.totalorder %s20, 0
    %p98 = por %p96, %p97
    %p99 = scmp.ne.s32.totalorder %s91, %s93
    %p100 = scmp.eq.s32.totalorder %s25, 1
    %p101 = por %p99, %p100
    %p102 = scmp.ne.s32.totalorder %s93, %s94
    %p103 = scmp.eq.s32.totalorder %s25, 0
    %p104 = por %p102, %p103
    %p105 = scmp.ne.s32.totalorder %s93, %s94
    %p106 = scmp.eq.s32.totalorder %s26, 1
    %p107 = por %p105, %p106
    %p109 = scmp.ne.s32.totalorder %s94, %s108
    %p110 = scmp.eq.s32.totalorder %s26, 0
    %p111 = por %p109, %p110
    %s112 = ssub.s32 %s20, %s27
    %p113 = scmp.eq.s32.totalorder %s112, 0
    %s115 = sadd.s32 %s114, 1
    %s116 = scalar_select %p113, %s114, %s115
    %p119 = pneg %p113
    %p120 = scmp.eq.s32.totalorder %s20, 1
    %p121 = por %p119, %p120
    %p122 = scmp.ne.s32.totalorder %s114, %s117
    %p123 = scmp.eq.s32.totalorder %s20, 0
    %p124 = por %p122, %p123
    %p125 = scmp.ne.s32.totalorder %s114, %s117
    %p126 = scmp.eq.s32.totalorder %s25, 1
    %p127 = por %p125, %p126
    %p128 = scmp.ne.s32.totalorder %s117, %s118
    %p129 = scmp.eq.s32.totalorder %s25, 0
    %p130 = por %p128, %p129
    %p131 = scmp.ne.s32.totalorder %s117, %s118
    %p132 = scmp.eq.s32.totalorder %s26, 1
    %p133 = por %p131, %p132
    %p135 = scmp.ne.s32.totalorder %s118, %s134
    %p136 = scmp.eq.s32.totalorder %s26, 0
    %p137 = por %p135, %p136
    %s138 = ssub.s32 %s20, %s27
    %p139 = scmp.eq.s32.totalorder %s138, 0
    %s141 = sadd.s32 %s140, 1
    %s142 = scalar_select %p139, %s140, %s141
    %p145 = pneg %p139
    %p146 = scmp.eq.s32.totalorder %s20, 1
    %p147 = por %p145, %p146
    %p148 = scmp.ne.s32.totalorder %s140, %s143
    %p149 = scmp.eq.s32.totalorder %s20, 0
    %p150 = por %p148, %p149
    %p151 = scmp.ne.s32.totalorder %s140, %s143
    %p152 = scmp.eq.s32.totalorder %s25, 1
    %p153 = por %p151, %p152
    %p154 = scmp.ne.s32.totalorder %s143, %s144
    %p155 = scmp.eq.s32.totalorder %s25, 0
    %p156 = por %p154, %p155
    %p157 = scmp.ne.s32.totalorder %s143, %s144
    %p158 = scmp.eq.s32.totalorder %s26, 1
    %p159 = por %p157, %p158
    %p161 = scmp.ne.s32.totalorder %s144, %s160
    %p162 = scmp.eq.s32.totalorder %s26, 0
    %p163 = por %p161, %p162
    %s164 = ssub.s32 %s20, %s27
    %p165 = scmp.eq.s32.totalorder %s164, 0
    %s167 = sadd.s32 %s166, 1
    %s168 = scalar_select %p165, %s166, %s167
    %p171 = pneg %p165
    %p172 = scmp.eq.s32.totalorder %s20, 1
    %p173 = por %p171, %p172
    %p174 = scmp.ne.s32.totalorder %s166, %s169
    %p175 = scmp.eq.s32.totalorder %s20, 0
    %p176 = por %p174, %p175
    %p177 = scmp.ne.s32.totalorder %s166, %s169
    %p178 = scmp.eq.s32.totalorder %s25, 1
    %p179 = por %p177, %p178
    %p180 = scmp.ne.s32.totalorder %s169, %s170
    %p181 = scmp.eq.s32.totalorder %s25, 0
    %p182 = por %p180, %p181
    %p183 = scmp.ne.s32.totalorder %s169, %s170
    %p184 = scmp.eq.s32.totalorder %s26, 1
    %p185 = por %p183, %p184
    %p187 = scmp.ne.s32.totalorder %s170, %s186
    %p188 = scmp.eq.s32.totalorder %s26, 0
    %p189 = por %p187, %p188
    %s190 = ssub.s32 %s20, %s27
    %p191 = scmp.eq.s32.totalorder %s190, 0
    %s193 = sadd.s32 %s192, 1
    %s194 = scalar_select %p191, %s192, %s193
    %p197 = pneg %p191
    %p198 = scmp.eq.s32.totalorder %s20, 1
    %p199 = por %p197, %p198
    %p200 = scmp.ne.s32.totalorder %s192, %s195
    %p201 = scmp.eq.s32.totalorder %s20, 0
    %p202 = por %p200, %p201
    %p203 = scmp.ne.s32.totalorder %s192, %s195
    %p204 = scmp.eq.s32.totalorder %s25, 1
    %p205 = por %p203, %p204
    %p206 = scmp.ne.s32.totalorder %s195, %s196
    %p207 = scmp.eq.s32.totalorder %s25, 0
    %p208 = por %p206, %p207
    %p209 = scmp.ne.s32.totalorder %s195, %s196
    %p210 = scmp.eq.s32.totalorder %s26, 1
    %p211 = por %p209, %p210
    %p213 = scmp.ne.s32.totalorder %s196, %s212
    %p214 = scmp.eq.s32.totalorder %s26, 0
    %p215 = por %p213, %p214
    %s216 = ssub.s32 %s20, %s27
    %p217 = scmp.eq.s32.totalorder %s216, 0
    %s219 = sadd.s32 %s218, 1
    %s220 = scalar_select %p217, %s218, %s219
    %p223 = pneg %p217
    %p224 = scmp.eq.s32.totalorder %s20, 1
    %p225 = por %p223, %p224
    %p226 = scmp.ne.s32.totalorder %s218, %s221
    %p227 = scmp.eq.s32.totalorder %s20, 0
    %p228 = por %p226, %p227
    %p229 = scmp.ne.s32.totalorder %s218, %s221
    %p230 = scmp.eq.s32.totalorder %s25, 1
    %p231 = por %p229, %p230
    %p232 = scmp.ne.s32.totalorder %s221, %s222
    %p233 = scmp.eq.s32.totalorder %s25, 0
    %p234 = por %p232, %p233
    %p235 = scmp.ne.s32.totalorder %s221, %s222
    %p236 = scmp.eq.s32.totalorder %s26, 1
    %p237 = por %p235, %p236
    %p239 = scmp.ne.s32.totalorder %s222, %s238
    %p240 = scmp.eq.s32.totalorder %s26, 0
    %p241 = por %p239, %p240
    %s242 = ssub.s32 %s20, %s27
    %p243 = scmp.eq.s32.totalorder %s242, 0
    %s245 = sadd.s32 %s244, 1
    %s246 = scalar_select %p243, %s244, %s245
    %p249 = pneg %p243
    %p250 = scmp.eq.s32.totalorder %s20, 1
    %p251 = por %p249, %p250
    %p252 = scmp.ne.s32.totalorder %s244, %s247
    %p253 = scmp.eq.s32.totalorder %s20, 0
    %p254 = por %p252, %p253
    %p255 = scmp.ne.s32.totalorder %s244, %s247
    %p256 = scmp.eq.s32.totalorder %s25, 1
    %p257 = por %p255, %p256
    %p258 = scmp.ne.s32.totalorder %s247, %s248
    %p259 = scmp.eq.s32.totalorder %s25, 0
    %p260 = por %p258, %p259
    %p261 = scmp.ne.s32.totalorder %s247, %s248
    %p262 = scmp.eq.s32.totalorder %s26, 1
    %p263 = por %p261, %p262
    %p265 = scmp.ne.s32.totalorder %s248, %s264
    %p266 = scmp.eq.s32.totalorder %s26, 0
    %p267 = por %p265, %p266
    %s268 = ssub.s32 %s20, %s27
    %p269 = scmp.eq.s32.totalorder %s268, 0
    %s271 = sadd.s32 %s270, 1
    %s272 = scalar_select %p269, %s270, %s271
    %p275 = pneg %p269
    %p276 = scmp.eq.s32.totalorder %s20, 1
    %p277 = por %p275, %p276
    %p278 = scmp.ne.s32.totalorder %s270, %s273
    %p279 = scmp.eq.s32.totalorder %s20, 0
    %p280 = por %p278, %p279
    %p281 = scmp.ne.s32.totalorder %s270, %s273
    %p282 = scmp.eq.s32.totalorder %s25, 1
    %p283 = por %p281, %p282
    %p284 = scmp.ne.s32.totalorder %s273, %s274
    %p285 = scmp.eq.s32.totalorder %s25, 0
    %p286 = por %p284, %p285
    %p287 = scmp.ne.s32.totalorder %s273, %s274
    %p288 = scmp.eq.s32.totalorder %s26, 1
    %p289 = por %p287, %p288
    %p291 = scmp.ne.s32.totalorder %s274, %s290
    %p292 = scmp.eq.s32.totalorder %s26, 0
    %p293 = por %p291, %p292
    %s294 = ssub.s32 %s20, %s27
    %p295 = scmp.eq.s32.totalorder %s294, 0
    %s297 = sadd.s32 %s296, 1
    %s298 = scalar_select %p295, %s296, %s297
    %p301 = pneg %p295
    %p302 = scmp.eq.s32.totalorder %s20, 1
    %p303 = por %p301, %p302
    %p304 = scmp.ne.s32.totalorder %s296, %s299
    %p305 = scmp.eq.s32.totalorder %s20, 0
    %p306 = por %p304, %p305
    %p307 = scmp.ne.s32.totalorder %s296, %s299
    %p308 = scmp.eq.s32.totalorder %s25, 1
    %p309 = por %p307, %p308
    %p310 = scmp.ne.s32.totalorder %s299, %s300
    %p311 = scmp.eq.s32.totalorder %s25, 0
    %p312 = por %p310, %p311
    %p313 = scmp.ne.s32.totalorder %s299, %s300
    %p314 = scmp.eq.s32.totalorder %s26, 1
    %p315 = por %p313, %p314
    %p317 = scmp.ne.s32.totalorder %s300, %s316
    %p318 = scmp.eq.s32.totalorder %s26, 0
    %p319 = por %p317, %p318
    %s320 = ssub.s32 %s20, %s27
    %p321 = scmp.eq.s32.totalorder %s320, 0
    %s323 = sadd.s32 %s322, 1
    %s324 = scalar_select %p321, %s322, %s323
    %p327 = pneg %p321
    %p328 = scmp.eq.s32.totalorder %s20, 1
    %p329 = por %p327, %p328
    %p330 = scmp.ne.s32.totalorder %s322, %s325
    %p331 = scmp.eq.s32.totalorder %s20, 0
    %p332 = por %p330, %p331
    %p333 = scmp.ne.s32.totalorder %s322, %s325
    %p334 = scmp.eq.s32.totalorder %s25, 1
    %p335 = por %p333, %p334
    %p336 = scmp.ne.s32.totalorder %s325, %s326
    %p337 = scmp.eq.s32.totalorder %s25, 0
    %p338 = por %p336, %p337
    %p339 = scmp.ne.s32.totalorder %s325, %s326
    %p340 = scmp.eq.s32.totalorder %s26, 1
    %p341 = por %p339, %p340
    %p343 = scmp.ne.s32.totalorder %s326, %s342
    %p344 = scmp.eq.s32.totalorder %s26, 0
    %p345 = por %p343, %p344
    %s346 = ssub.s32 %s20, %s27
    %p347 = scmp.eq.s32.totalorder %s346, 0
    %s349 = sadd.s32 %s348, 1
    %s350 = scalar_select %p347, %s348, %s349
    %p353 = pneg %p347
    %p354 = scmp.eq.s32.totalorder %s20, 1
    %p355 = por %p353, %p354
    %p356 = scmp.ne.s32.totalorder %s348, %s351
    %p357 = scmp.eq.s32.totalorder %s20, 0
    %p358 = por %p356, %p357
    %p359 = scmp.ne.s32.totalorder %s348, %s351
    %p360 = scmp.eq.s32.totalorder %s25, 1
    %p361 = por %p359, %p360
    %p362 = scmp.ne.s32.totalorder %s351, %s352
    %p363 = scmp.eq.s32.totalorder %s25, 0
    %p364 = por %p362, %p363
    %p365 = scmp.ne.s32.totalorder %s351, %s352
    %p366 = scmp.eq.s32.totalorder %s26, 1
    %p367 = por %p365, %p366
    %p369 = scmp.ne.s32.totalorder %s352, %s368
    %p370 = scmp.eq.s32.totalorder %s26, 0
    %p371 = por %p369, %p370
    %p372 = scmp.le.s32.totalorder 1, %s20
    %p373 = scmp.lt.s32.totalorder %s20, 3
    %p374 = pnand %p372, %p373
    %p375 = pneg %p374
    // Predicated region
    $region9: #{forward.1} parent=5 // pred_check
      _
    $region10: #{forward.1} parent=5 // pred_check_branch
      %377 = sbr.rel (%p374) target = $region12
    $region11: #{forward.1} parent=5 // pred_region
      %s378 = ssub.s32 %s20, 1
      // Predicated region
      $region13: #{forward.1} parent=11 // pred_check
        %p379 = pneg %p41
      $region14: #{forward.1} parent=11 // pred_check_branch
        %381 = sbr.rel (%p379) target = $region16
      $region15: #{forward.1} parent=11 // pred_region
        _
      $region16: #{forward.1} parent=11 // pred_fallthru
        _
      // Predicated region
      $region17: #{forward.1} parent=11 // pred_check
        %p382 = pneg %p62
      $region18: #{forward.1} parent=11 // pred_check_branch
        %384 = sbr.rel (%p382) target = $region20
      $region19: #{forward.1} parent=11 // pred_region
        _
      $region20: #{forward.1} parent=11 // pred_fallthru
        _
      // Predicated region
      $region21: #{forward.1} parent=11 // pred_check
        %p385 = pneg %p83
      $region22: #{forward.1} parent=11 // pred_check_branch
        %387 = sbr.rel (%p385) target = $region24
      $region23: #{forward.1} parent=11 // pred_region
        _
      $region24: #{forward.1} parent=11 // pred_fallthru
        _
      // Predicated region
      $region25: #{forward.1} parent=11 // pred_check
        %p388 = pneg %p104
      $region26: #{forward.1} parent=11 // pred_check_branch
        %390 = sbr.rel (%p388) target = $region28
      $region27: #{forward.1} parent=11 // pred_region
        _
      $region28: #{forward.1} parent=11 // pred_fallthru
        _
    $region12: #{forward.1} parent=5 // pred_fallthru
      _
    %p391 = scmp.lt.s32.totalorder %s20, 2
    // Predicated region
    $region29: #{forward.1} parent=5 // pred_check
      %p392 = pneg %p391
    $region30: #{forward.1} parent=5 // pred_check_branch
      %394 = sbr.rel (%p392) target = $region32
    $region31: #{forward.1} parent=5 // pred_region
      // Predicated region
      $region33: #{forward.1} parent=31 // pred_check
        %p395 = pneg %p124
      $region34: #{forward.1} parent=31 // pred_check_branch
        %397 = sbr.rel (%p395) target = $region36
      $region35: #{forward.1} parent=31 // pred_region
        %p398 = scmp.lt.s32.totalorder %s20, 1
        %s399 = scalar_select %p398, %s20, 1
        %s400 = smul.addr %s399, 144
        %s401 = smul.addr %s400, 4
        %s402 = scalar_lea.vmem %s4, %s401
      $region36: #{forward.1} parent=31 // pred_fallthru
        _
      // Predicated region
      $region37: #{forward.1} parent=31 // pred_check
        %p403 = pneg %p150
      $region38: #{forward.1} parent=31 // pred_check_branch
        %405 = sbr.rel (%p403) target = $region40
      $region39: #{forward.1} parent=31 // pred_region
        %p406 = scmp.lt.s32.totalorder %s20, 1
        %s407 = scalar_select %p406, %s20, 1
        %s408 = smul.addr %s407, 16
        %s409 = smul.addr %s408, 8
        %s410 = scalar_lea.vmem %s5, %s409
      $region40: #{forward.1} parent=31 // pred_fallthru
        _
      // Predicated region
      $region41: #{forward.1} parent=31 // pred_check
        %p411 = pneg %p176
      $region42: #{forward.1} parent=31 // pred_check_branch
        %413 = sbr.rel (%p411) target = $region44
      $region43: #{forward.1} parent=31 // pred_region
        %p414 = scmp.lt.s32.totalorder %s20, 1
        %s415 = scalar_select %p414, %s20, 1
        %s416 = smul.addr %s415, 27
        %s417 = smul.addr %s416, 4
        %s418 = scalar_lea.vmem %s6, %s417
      $region44: #{forward.1} parent=31 // pred_fallthru
        _
      // Predicated region
      $region45: #{forward.1} parent=31 // pred_check
        %p419 = pneg %p202
      $region46: #{forward.1} parent=31 // pred_check_branch
        %421 = sbr.rel (%p419) target = $region48
      $region47: #{forward.1} parent=31 // pred_region
        %p422 = scmp.lt.s32.totalorder %s20, 1
        %s423 = scalar_select %p422, %s20, 1
        %s424 = smul.addr %s423, 3
        %s425 = smul.addr %s424, 8
        %s426 = scalar_lea.vmem %s7, %s425
      $region48: #{forward.1} parent=31 // pred_fallthru
        _
      // Predicated region
      $region49: #{forward.1} parent=31 // pred_check
        %p427 = pneg %p228
      $region50: #{forward.1} parent=31 // pred_check_branch
        %429 = sbr.rel (%p427) target = $region52
      $region51: #{forward.1} parent=31 // pred_region
        %p430 = scmp.lt.s32.totalorder %s20, 1
        %s431 = scalar_select %p430, %s20, 1
        %s432 = smul.addr %s431, 144
        %s433 = smul.addr %s432, 4
        %s434 = scalar_lea.vmem %s8, %s433
      $region52: #{forward.1} parent=31 // pred_fallthru
        _
      // Predicated region
      $region53: #{forward.1} parent=31 // pred_check
        %p435 = pneg %p254
      $region54: #{forward.1} parent=31 // pred_check_branch
        %437 = sbr.rel (%p435) target = $region56
      $region55: #{forward.1} parent=31 // pred_region
        %p438 = scmp.lt.s32.totalorder %s20, 1
        %s439 = scalar_select %p438, %s20, 1
        %s440 = smul.addr %s439, 16
        %s441 = smul.addr %s440, 8
        %s442 = scalar_lea.vmem %s9, %s441
      $region56: #{forward.1} parent=31 // pred_fallthru
        _
      // Predicated region
      $region57: #{forward.1} parent=31 // pred_check
        %p443 = pneg %p280
      $region58: #{forward.1} parent=31 // pred_check_branch
        %445 = sbr.rel (%p443) target = $region60
      $region59: #{forward.1} parent=31 // pred_region
        %p446 = scmp.lt.s32.totalorder %s20, 1
        %s447 = scalar_select %p446, %s20, 1
        %s448 = smul.addr %s447, 36
        %s449 = smul.addr %s448, 4
        %s450 = scalar_lea.vmem %s10, %s449
      $region60: #{forward.1} parent=31 // pred_fallthru
        _
      // Predicated region
      $region61: #{forward.1} parent=31 // pred_check
        %p451 = pneg %p306
      $region62: #{forward.1} parent=31 // pred_check_branch
        %453 = sbr.rel (%p451) target = $region64
      $region63: #{forward.1} parent=31 // pred_region
        %p454 = scmp.lt.s32.totalorder %s20, 1
        %s455 = scalar_select %p454, %s20, 1
        %s456 = smul.addr %s455, 4
        %s457 = smul.addr %s456, 8
        %s458 = scalar_lea.vmem %s11, %s457
      $region64: #{forward.1} parent=31 // pred_fallthru
        _
    $region32: #{forward.1} parent=5 // pred_fallthru
      _
    %p459 = scmp.le.s32.totalorder 1, %s20
    %p460 = scmp.lt.s32.totalorder %s20, 3
    %p461 = pnand %p459, %p460
    %p462 = pneg %p461
    // Predicated region
    $region65: #{forward.1} parent=5 // pred_check
      _
    $region66: #{forward.1} parent=5 // pred_check_branch
      %464 = sbr.rel (%p461) target = $region68
    $region67: #{forward.1} parent=5 // pred_region
      %s465 = ssub.s32 %s20, 1
      %p466 = pneg %p41
      %p467 = pneg %p38
      %p468 = pneg %p62
      %p469 = pneg %p59
      %p470 = pneg %p83
      %p471 = pneg %p80
      %p472 = pneg %p104
      %p473 = pneg %p101
      %p474 = scmp.lt.s32.totalorder %s25, 1
      %s475 = scalar_select %p474, %s25, 1
      %s476 = smul.addr %s475, 144
      %s477 = smul.addr %s476, 4
      %s478 = scalar_lea.vmem %s4, %s477
      %p479 = pneg %p130
      %p480 = pneg %p127
      %p481 = scmp.lt.s32.totalorder %s25, 1
      %s482 = scalar_select %p481, %s25, 1
      %s483 = smul.addr %s482, 16
      %s484 = smul.addr %s483, 8
      %s485 = scalar_lea.vmem %s5, %s484
      %p486 = pneg %p156
      %p487 = pneg %p153
      %p488 = scmp.lt.s32.totalorder %s25, 1
      %s489 = scalar_select %p488, %s25, 1
      %s490 = smul.addr %s489, 27
      %s491 = smul.addr %s490, 4
      %s492 = scalar_lea.vmem %s6, %s491
      %p493 = pneg %p182
      %p494 = pneg %p179
      %p495 = scmp.lt.s32.totalorder %s25, 1
      %s496 = scalar_select %p495, %s25, 1
      %s497 = smul.addr %s496, 3
      %s498 = smul.addr %s497, 8
      %s499 = scalar_lea.vmem %s7, %s498
      %p500 = pneg %p208
      %p501 = pneg %p205
      %p502 = scmp.lt.s32.totalorder %s25, 1
      %s503 = scalar_select %p502, %s25, 1
      %s504 = smul.addr %s503, 144
      %s505 = smul.addr %s504, 4
      %s506 = scalar_lea.vmem %s8, %s505
      %p507 = pneg %p234
      %p508 = pneg %p231
      %p509 = scmp.lt.s32.totalorder %s25, 1
      %s510 = scalar_select %p509, %s25, 1
      %s511 = smul.addr %s510, 16
      %s512 = smul.addr %s511, 8
      %s513 = scalar_lea.vmem %s9, %s512
      %p514 = pneg %p260
      %p515 = pneg %p257
      %p516 = scmp.lt.s32.totalorder %s25, 1
      %s517 = scalar_select %p516, %s25, 1
      %s518 = smul.addr %s517, 36
      %s519 = smul.addr %s518, 4
      %s520 = scalar_lea.vmem %s10, %s519
      %p521 = pneg %p286
      %p522 = pneg %p283
      %p523 = scmp.lt.s32.totalorder %s25, 1
      %s524 = scalar_select %p523, %s25, 1
      %s525 = smul.addr %s524, 4
      %s526 = smul.addr %s525, 8
      %s527 = scalar_lea.vmem %s11, %s526
      %p528 = pneg %p312
      %p529 = pneg %p309
      %p530 = pneg %p338
      %p531 = pneg %p335
      %p532 = scmp.lt.s32.totalorder %s25, 1
      %s533 = scalar_select %p532, %s25, 1
      %s534 = smul.addr %s533, 3
      %s535 = smul.addr %s534, 8
      %s536 = scalar_lea.vmem %s12, %s535
      %p537 = pneg %p364
      %p538 = pneg %p361
      %p539 = scmp.lt.s32.totalorder %s25, 1
      %s540 = scalar_select %p539, %s25, 1
      %s541 = smul.addr %s540, 4
      %s542 = smul.addr %s541, 8
      %s543 = scalar_lea.vmem %s13, %s542
      %p544 = scmp.lt.s32.totalorder %s25, 1
      %s545 = scalar_select %p544, %s25, 1
      %s546 = smul.addr %s545, 144
      %s547 = smul.addr %s546, 4
      %s548 = scalar_lea.vmem %s4, %s547
      %p549 = scmp.lt.s32.totalorder %s25, 1
      %s550 = scalar_select %p549, %s25, 1
      %s551 = smul.addr %s550, 16
      %s552 = smul.addr %s551, 8
      %s553 = scalar_lea.vmem %s5, %s552
      %p554 = scmp.lt.s32.totalorder %s25, 1
      %s555 = scalar_select %p554, %s25, 1
      %s556 = smul.addr %s555, 27
      %s557 = smul.addr %s556, 4
      %s558 = scalar_lea.vmem %s6, %s557
      %p559 = scmp.lt.s32.totalorder %s25, 1
      %s560 = scalar_select %p559, %s25, 1
      %s561 = smul.addr %s560, 3
      %s562 = smul.addr %s561, 8
      %s563 = scalar_lea.vmem %s7, %s562
      %p564 = scmp.lt.s32.totalorder %s25, 1
      %s565 = scalar_select %p564, %s25, 1
      %s566 = smul.addr %s565, 144
      %s567 = smul.addr %s566, 4
      %s568 = scalar_lea.vmem %s8, %s567
      %p569 = scmp.lt.s32.totalorder %s25, 1
      %s570 = scalar_select %p569, %s25, 1
      %s571 = smul.addr %s570, 16
      %s572 = smul.addr %s571, 8
      %s573 = scalar_lea.vmem %s9, %s572
      %p574 = scmp.lt.s32.totalorder %s25, 1
      %s575 = scalar_select %p574, %s25, 1
      %s576 = smul.addr %s575, 36
      %s577 = smul.addr %s576, 4
      %s578 = scalar_lea.vmem %s10, %s577
      %p579 = scmp.lt.s32.totalorder %s25, 1
      %s580 = scalar_select %p579, %s25, 1
      %s581 = smul.addr %s580, 4
      %s582 = smul.addr %s581, 8
      %s583 = scalar_lea.vmem %s11, %s582
      %p584 = scmp.lt.s32.totalorder %s25, 1
      %s585 = scalar_select %p584, %s25, 1
      %s586 = smul.addr %s585, 3
      %s587 = smul.addr %s586, 8
      %s588 = scalar_lea.vmem %s12, %s587
      %p589 = scmp.lt.s32.totalorder %s25, 1
      %s590 = scalar_select %p589, %s25, 1
      %s591 = smul.addr %s590, 4
      %s592 = smul.addr %s591, 8
      %s593 = scalar_lea.vmem %s13, %s592
      %v595 = vld [vmem:[%s2] sm:$0xff]
      %v596 = vld [vmem:[%s2 + $0x8] sm:$0x1]
      %v597 = vld [vmem:[%s0] sm:$0xff]
      %v598 = vld [vmem:[%s0 + $0x8] sm:$0xff]
      %v599 = vld [vmem:[%s0 + $0x10] sm:$0xff]
      %v600 = vld [vmem:[%s0 + $0x18] sm:$0xff]
      %v601 = vld [vmem:[%s553] sm:$0xff]
      %v602 = vld [vmem:[%s553 + $0x8] sm:$0xff]
      %v603 = vld [vmem:[%s553 + $0x10] sm:$0xff]
      %v604 = vld [vmem:[%s553 + $0x18] sm:$0xff]
      %605 = vrot.lane.b32.xlu0 %v597, 9
      %v606 = vpop.permute.xlu0 %605
      %607 = vrot.lane.b32.xlu0 %v598, 9
      %v608 = vpop.permute.xlu0 %607
      %609 = vrot.lane.b32.xlu0 %v599, 9
      %v610 = vpop.permute.xlu0 %609
      %611 = vrot.lane.b32.xlu0 %v600, 9
      %v612 = vpop.permute.xlu0 %611
      %v613 = vlaneseq
      %v614 = vshrl.u32 %v613, 7
      %v615 = vsub.s32 0, %v614
      %v616 = vrot.slane %v595, %v615
      %v617 = vmul.f32 %v606, %v616
      %v618 = vmul.f32 %v608, %v616
      %v619 = vmul.f32 %v610, %v616
      %v620 = vmul.f32 %v612, %v616
      %v621 = vld [vmem:[%s548] sm:$0xf]
      %v622 = vld [vmem:[%s548 + $0x4] sm:$0xf]
      %v623 = vld [vmem:[%s548 + $0x8] sm:$0xf]
      %v624 = vld [vmem:[%s548 + $0xc] sm:$0xf]
      %v625 = vpack.c.bf16 %v618, %v617
      %v626 = vpack.c.bf16 %v620, %v619
      %627 = vrot.lane.b32.xlu0 %v597, 8
      %v628 = vpop.permute.xlu0 %627
      %629 = vrot.lane.b32.xlu0 %v598, 8
      %v630 = vpop.permute.xlu0 %629
      %631 = vrot.lane.b32.xlu0 %v599, 8
      %v632 = vpop.permute.xlu0 %631
      %633 = vrot.lane.b32.xlu0 %v600, 8
      %v634 = vpop.permute.xlu0 %633
      %v635 = vlaneseq
      %v636 = vshrl.u32 %v635, 7
      %v637 = vsub.s32 1, %v636
      %v638 = vrot.slane %v595, %v637
      %v639 = vmul.f32 %v628, %v638
      %v640 = vmul.f32 %v630, %v638
      %v641 = vmul.f32 %v632, %v638
      %v642 = vmul.f32 %v634, %v638
      %s643 = scalar_lea.vmem %s548, 16
      %v644 = vld [vmem:[%s643] sm:$0xf]
      %v645 = vld [vmem:[%s643 + $0x4] sm:$0xf]
      %v646 = vld [vmem:[%s643 + $0x8] sm:$0xf]
      %v647 = vld [vmem:[%s643 + $0xc] sm:$0xf]
      %v648 = vpack.c.bf16 %v640, %v639
      %v649 = vpack.c.bf16 %v642, %v641
      %v654 = vunpack.c.l.b16 %v644
      %v655 = vunpack.c.l.b16 %v645
      %v656 = vunpack.c.l.b16 %v646
      %v657 = vunpack.c.l.b16 %v647
      %v658 = vpack.c.b16 %v655, %v654
      %v659 = vpack.c.b16 %v657, %v656
      %vm660 = vcmask 261120
      %v662 = vsel %vm660, %v658, 0
      %v665 = vsel %vm660, %v659, 0
      %667 = vmatprep.subr.bf16.mxu0 0
      %668 = vmatpush1.bf16.msra.mxu0 %v648
      %669 = vmatprep.subr.bf16.mxu0 0
      %670 = vmatpush1.bf16.msra.mxu0 %v649
      %671 = vmatprep.subr.bf16.mxu0 0
      %672 = vmatpush1.bf16.msra.mxu0 0
      %673 = vmatprep.subr.bf16.mxu0 0
      %674 = vmatpush1.bf16.msra.mxu0 0
      %675 = vmatprep.subr.bf16.mxu0 0
      %676 = vmatpush1.bf16.msra.mxu0 0
      %677 = vmatprep.subr.bf16.mxu0 0
      %678 = vmatpush1.bf16.msra.mxu0 0
      %679 = vmatprep.subr.bf16.mxu0 0
      %680 = vmatpush1.bf16.msra.mxu0 0
      %681 = vmatprep.subr.bf16.mxu0 0
      %682 = vmatpush1.bf16.msra.mxu0 0
      %683 = vmatprep.subr.bf16.mxu0 0
      %684 = vmatpush1.bf16.msra.mxu0 0
      %685 = vmatprep.subr.bf16.mxu0 0
      %686 = vmatpush1.bf16.msra.mxu0 0
      %687 = vmatprep.subr.bf16.mxu0 0
      %688 = vmatpush1.bf16.msra.mxu0 0
      %689 = vmatprep.subr.bf16.mxu0 0
      %690 = vmatpush1.bf16.msra.mxu0 0
      %691 = vmatprep.subr.bf16.mxu0 0
      %692 = vmatpush1.bf16.msra.mxu0 0
      %693 = vmatprep.subr.bf16.mxu0 0
      %694 = vmatpush1.bf16.msra.mxu0 0
      %695 = vmatprep.subr.bf16.mxu0 0
      %696 = vmatpush1.bf16.msra.mxu0 0
      %697 = vmatprep.subr.bf16.mxu0 0
      %698 = vmatpush1.bf16.msra.mxu0 0
      %699 = vmatprep.mubr.bf16.mxu0 0
      %700 = vmatmul.mubr.bf16.gmra.mrb[0].mxu0 %v662
      %v701 = vpop.f32.mrb[0].mxu0
      %v702 = vadd.f32 0.0, %v701
      %v703 = vpop.f32.mrb[0].mxu0
      %v704 = vpop.f32.mrb[0].mxu0
      %v705 = vadd.f32 0.0, %v704
      %v706 = vpop.f32.mrb[0].mxu0
      %707 = vmatprep.mubr.bf16.mxu0 0
      %708 = vmatmul.mubr.bf16.gmra.mrb[0].mxu0 %v665
      %v709 = vpop.f32.mrb[0].mxu0
      %v710 = vadd.f32 0.0, %v709
      %v711 = vpop.f32.mrb[0].mxu0
      %v712 = vpop.f32.mrb[0].mxu0
      %v713 = vadd.f32 0.0, %v712
      %v714 = vpop.f32.mrb[0].mxu0
      %715 = vdwg.mxu0
      %v720 = vunpack.c.l.b16 %v621
      %v721 = vunpack.c.l.b16 %v622
      %v722 = vunpack.c.l.b16 %v623
      %v723 = vunpack.c.l.b16 %v624
      %v724 = vpack.c.b16 %v721, %v720
      %v725 = vpack.c.b16 %v723, %v722
      %v727 = vsel %vm660, %v724, 0
      %v730 = vsel %vm660, %v725, 0
      %732 = vmatprep.subr.bf16.mxu0 0
      %733 = vmatpush1.bf16.msra.mxu0 %v625
      %734 = vmatprep.subr.bf16.mxu0 0
      %735 = vmatpush1.bf16.msra.mxu0 %v626
      %736 = vmatprep.subr.bf16.mxu0 0
      %737 = vmatpush1.bf16.msra.mxu0 0
      %738 = vmatprep.subr.bf16.mxu0 0
      %739 = vmatpush1.bf16.msra.mxu0 0
      %740 = vmatprep.subr.bf16.mxu0 0
      %741 = vmatpush1.bf16.msra.mxu0 0
      %742 = vmatprep.subr.bf16.mxu0 0
      %743 = vmatpush1.bf16.msra.mxu0 0
      %744 = vmatprep.subr.bf16.mxu0 0
      %745 = vmatpush1.bf16.msra.mxu0 0
      %746 = vmatprep.subr.bf16.mxu0 0
      %747 = vmatpush1.bf16.msra.mxu0 0
      %748 = vmatprep.subr.bf16.mxu0 0
      %749 = vmatpush1.bf16.msra.mxu0 0
      %750 = vmatprep.subr.bf16.mxu0 0
      %751 = vmatpush1.bf16.msra.mxu0 0
      %752 = vmatprep.subr.bf16.mxu0 0
      %753 = vmatpush1.bf16.msra.mxu0 0
      %754 = vmatprep.subr.bf16.mxu0 0
      %755 = vmatpush1.bf16.msra.mxu0 0
      %756 = vmatprep.subr.bf16.mxu0 0
      %757 = vmatpush1.bf16.msra.mxu0 0
      %758 = vmatprep.subr.bf16.mxu0 0
      %759 = vmatpush1.bf16.msra.mxu0 0
      %760 = vmatprep.subr.bf16.mxu0 0
      %761 = vmatpush1.bf16.msra.mxu0 0
      %762 = vmatprep.subr.bf16.mxu0 0
      %763 = vmatpush1.bf16.msra.mxu0 0
      %764 = vmatprep.mubr.bf16.mxu0 0
      %765 = vmatmul.mubr.bf16.gmra.mrb[0].mxu0 %v727
      %v766 = vpop.f32.mrb[0].mxu0
      %v767 = vadd.f32 %v702, %v766
      %v768 = vpop.f32.mrb[0].mxu0
      %v769 = vpop.f32.mrb[0].mxu0
      %v770 = vadd.f32 %v705, %v769
      %v771 = vpop.f32.mrb[0].mxu0
      %772 = vmatprep.mubr.bf16.mxu0 0
      %773 = vmatmul.mubr.bf16.gmra.mrb[0].mxu0 %v730
      %v774 = vpop.f32.mrb[0].mxu0
      %v775 = vadd.f32 %v710, %v774
      %v776 = vpop.f32.mrb[0].mxu0
      %v777 = vpop.f32.mrb[0].mxu0
      %v778 = vadd.f32 %v713, %v777
      %v779 = vpop.f32.mrb[0].mxu0
      %780 = vdwg.mxu0
      %781 = vrot.lane.b32.xlu0 %v597, 7
      %v782 = vpop.permute.xlu0 %781
      %783 = vrot.lane.b32.xlu0 %v598, 7
      %v784 = vpop.permute.xlu0 %783
      %785 = vrot.lane.b32.xlu0 %v599, 7
      %v786 = vpop.permute.xlu0 %785
      %787 = vrot.lane.b32.xlu0 %v600, 7
      %v788 = vpop.permute.xlu0 %787
      %v789 = vlaneseq
      %v790 = vshrl.u32 %v789, 7
      %v791 = vsub.s32 2, %v790
      %v792 = vrot.slane %v595, %v791
      %v793 = vmul.f32 %v782, %v792
      %v794 = vmul.f32 %v784, %v792
      %v795 = vmul.f32 %v786, %v792
      %v796 = vmul.f32 %v788, %v792
      %s797 = scalar_lea.vmem %s548, 32
      %v798 = vld [vmem:[%s797] sm:$0xf]
      %v799 = vld [vmem:[%s797 + $0x4] sm:$0xf]
      %v800 = vld [vmem:[%s797 + $0x8] sm:$0xf]
      %v801 = vld [vmem:[%s797 + $0xc] sm:$0xf]
      %v802 = vpack.c.bf16 %v794, %v793
      %v803 = vpack.c.bf16 %v796, %v795
      %v808 = vunpack.c.l.b16 %v798
      %v809 = vunpack.c.l.b16 %v799
      %v810 = vunpack.c.l.b16 %v800
      %v811 = vunpack.c.l.b16 %v801
      %v812 = vpack.c.b16 %v809, %v808
      %v813 = vpack.c.b16 %v811, %v810
      %v815 = vsel %vm660, %v812, 0
      %v818 = vsel %vm660, %v813, 0
      %820 = vmatprep.subr.bf16.mxu0 0
      %821 = vmatpush1.bf16.msra.mxu0 %v802
      %822 = vmatprep.subr.bf16.mxu0 0
      %823 = vmatpush1.bf16.msra.mxu0 %v803
      %824 = vmatprep.subr.bf16.mxu0 0
      %825 = vmatpush1.bf16.msra.mxu0 0
      %826 = vmatprep.subr.bf16.mxu0 0
      %827 = vmatpush1.bf16.msra.mxu0 0
      %828 = vmatprep.subr.bf16.mxu0 0
      %829 = vmatpush1.bf16.msra.mxu0 0
      %830 = vmatprep.subr.bf16.mxu0 0
      %831 = vmatpush1.bf16.msra.mxu0 0
      %832 = vmatprep.subr.bf16.mxu0 0
      %833 = vmatpush1.bf16.msra.mxu0 0
      %834 = vmatprep.subr.bf16.mxu0 0
      %835 = vmatpush1.bf16.msra.mxu0 0
      %836 = vmatprep.subr.bf16.mxu0 0
      %837 = vmatpush1.bf16.msra.mxu0 0
      %838 = vmatprep.subr.bf16.mxu0 0
      %839 = vmatpush1.bf16.msra.mxu0 0
      %840 = vmatprep.subr.bf16.mxu0 0
      %841 = vmatpush1.bf16.msra.mxu0 0
      %842 = vmatprep.subr.bf16.mxu0 0
      %843 = vmatpush1.bf16.msra.mxu0 0
      %844 = vmatprep.subr.bf16.mxu0 0
      %845 = vmatpush1.bf16.msra.mxu0 0
      %846 = vmatprep.subr.bf16.mxu0 0
      %847 = vmatpush1.bf16.msra.mxu0 0
      %848 = vmatprep.subr.bf16.mxu0 0
      %849 = vmatpush1.bf16.msra.mxu0 0
      %850 = vmatprep.subr.bf16.mxu0 0
      %851 = vmatpush1.bf16.msra.mxu0 0
      %852 = vmatprep.mubr.bf16.mxu0 0
      %853 = vmatmul.mubr.bf16.gmra.mrb[0].mxu0 %v815
      %v854 = vpop.f32.mrb[0].mxu0
      %v855 = vadd.f32 0.0, %v854
      %v856 = vpop.f32.mrb[0].mxu0
      %v857 = vpop.f32.mrb[0].mxu0
      %v858 = vadd.f32 0.0, %v857
      %v859 = vpop.f32.mrb[0].mxu0
      %860 = vmatprep.mubr.bf16.mxu0 0
      %861 = vmatmul.mubr.bf16.gmra.mrb[0].mxu0 %v818
      %v862 = vpop.f32.mrb[0].mxu0
      %v863 = vadd.f32 0.0, %v862
      %v864 = vpop.f32.mrb[0].mxu0
      %v865 = vpop.f32.mrb[0].mxu0
      %v866 = vadd.f32 0.0, %v865
      %v867 = vpop.f32.mrb[0].mxu0
      %868 = vdwg.mxu0
      %v869 = vadd.f32 %v767, %v855
      %v870 = vadd.f32 %v770, %v858
      %v871 = vadd.f32 %v775, %v863
      %v872 = vadd.f32 %v778, %v866
      %873 = vrot.lane.b32.xlu0 %v597, 1
      %v874 = vpop.permute.xlu0 %873
      %875 = vrot.lane.b32.xlu0 %v598, 1
      %v876 = vpop.permute.xlu0 %875
      %877 = vrot.lane.b32.xlu0 %v599, 1
      %v878 = vpop.permute.xlu0 %877
      %879 = vrot.lane.b32.xlu0 %v600, 1
      %v880 = vpop.permute.xlu0 %879
      %v881 = vlaneseq
      %v882 = vshrl.u32 %v881, 7
      %v883 = vsub.s32 3, %v882
      %v884 = vrot.slane %v595, %v883
      %v885 = vmul.f32 %v874, %v884
      %v886 = vmul.f32 %v876, %v884
      %v887 = vmul.f32 %v878, %v884
      %v888 = vmul.f32 %v880, %v884
      %s889 = scalar_lea.vmem %s548, 48
      %v890 = vld [vmem:[%s889] sm:$0xf]
      %v891 = vld [vmem:[%s889 + $0x4] sm:$0xf]
      %v892 = vld [vmem:[%s889 + $0x8] sm:$0xf]
      %v893 = vld [vmem:[%s889 + $0xc] sm:$0xf]
      %v894 = vpack.c.bf16 %v886, %v885
      %v895 = vpack.c.bf16 %v888, %v887
      %v900 = vunpack.c.l.b16 %v890
      %v901 = vunpack.c.l.b16 %v891
      %v902 = vunpack.c.l.b16 %v892
      %v903 = vunpack.c.l.b16 %v893
      %v904 = vpack.c.b16 %v901, %v900
      %v905 = vpack.c.b16 %v903, %v902
      %v907 = vsel %vm660, %v904, 0
      %v910 = vsel %vm660, %v905, 0
      %912 = vmatprep.subr.bf16.mxu0 0
      %913 = vmatpush1.bf16.msra.mxu0 %v894
      %914 = vmatprep.subr.bf16.mxu0 0
      %915 = vmatpush1.bf16.msra.mxu0 %v895
      %916 = vmatprep.subr.bf16.mxu0 0
      %917 = vmatpush1.bf16.msra.mxu0 0
      %918 = vmatprep.subr.bf16.mxu0 0
      %919 = vmatpush1.bf16.msra.mxu0 0
      %920 = vmatprep.subr.bf16.mxu0 0
      %921 = vmatpush1.bf16.msra.mxu0 0
      %922 = vmatprep.subr.bf16.mxu0 0
      %923 = vmatpush1.bf16.msra.mxu0 0
      %924 = vmatprep.subr.bf16.mxu0 0
      %925 = vmatpush1.bf16.msra.mxu0 0
      %926 = vmatprep.subr.bf16.mxu0 0
      %927 = vmatpush1.bf16.msra.mxu0 0
      %928 = vmatprep.subr.bf16.mxu0 0
      %929 = vmatpush1.bf16.msra.mxu0 0
      %930 = vmatprep.subr.bf16.mxu0 0
      %931 = vmatpush1.bf16.msra.mxu0 0
      %932 = vmatprep.subr.bf16.mxu0 0
      %933 = vmatpush1.bf16.msra.mxu0 0
      %934 = vmatprep.subr.bf16.mxu0 0
      %935 = vmatpush1.bf16.msra.mxu0 0
      %936 = vmatprep.subr.bf16.mxu0 0
      %937 = vmatpush1.bf16.msra.mxu0 0
      %938 = vmatprep.subr.bf16.mxu0 0
      %939 = vmatpush1.bf16.msra.mxu0 0
      %940 = vmatprep.subr.bf16.mxu0 0
      %941 = vmatpush1.bf16.msra.mxu0 0
      %942 = vmatprep.subr.bf16.mxu0 0
      %943 = vmatpush1.bf16.msra.mxu0 0
      %944 = vmatprep.mubr.bf16.mxu0 0
      %945 = vmatmul.mubr.bf16.gmra.mrb[0].mxu0 %v907
      %v946 = vpop.f32.mrb[0].mxu0
      %v947 = vadd.f32 0.0, %v946
      %v948 = vpop.f32.mrb[0].mxu0
      %v949 = vpop.f32.mrb[0].mxu0
      %v950 = vadd.f32 0.0, %v949
      %v951 = vpop.f32.mrb[0].mxu0
      %952 = vmatprep.mubr.bf16.mxu0 0
      %953 = vmatmul.mubr.bf16.gmra.mrb[0].mxu0 %v910
      %v954 = vpop.f32.mrb[0].mxu0
      %v955 = vadd.f32 0.0, %v954
      %v956 = vpop.f32.mrb[0].mxu0
      %v957 = vpop.f32.mrb[0].mxu0
      %v958 = vadd.f32 0.0, %v957
      %v959 = vpop.f32.mrb[0].mxu0
      %960 = vdwg.mxu0
      %v961 = vadd.f32 %v869, %v947
      %v962 = vadd.f32 %v870, %v950
      %v963 = vadd.f32 %v871, %v955
      %v964 = vadd.f32 %v872, %v958
      %s965 = scalar_lea.vmem %s548, 64
      %v966 = vld [vmem:[%s965] sm:$0xf]
      %v967 = vld [vmem:[%s965 + $0x4] sm:$0xf]
      %v968 = vld [vmem:[%s965 + $0x8] sm:$0xf]
      %v969 = vld [vmem:[%s965 + $0xc] sm:$0xf]
      %v970 = vpack.c.bf16 %v598, %v597
      %v971 = vpack.c.bf16 %v600, %v599
      %v976 = vunpack.c.l.b16 %v966
      %v977 = vunpack.c.l.b16 %v967
      %v978 = vunpack.c.l.b16 %v968
      %v979 = vunpack.c.l.b16 %v969
      %v980 = vpack.c.b16 %v977, %v976
      %v981 = vpack.c.b16 %v979, %v978
      %v983 = vsel %vm660, %v980, 0
      %v986 = vsel %vm660, %v981, 0
      %988 = vmatprep.subr.bf16.mxu0 0
      %989 = vmatpush1.bf16.msra.mxu0 %v970
      %990 = vmatprep.subr.bf16.mxu0 0
      %991 = vmatpush1.bf16.msra.mxu0 %v971
      %992 = vmatprep.subr.bf16.mxu0 0
      %993 = vmatpush1.bf16.msra.mxu0 0
      %994 = vmatprep.subr.bf16.mxu0 0
      %995 = vmatpush1.bf16.msra.mxu0 0
      %996 = vmatprep.subr.bf16.mxu0 0
      %997 = vmatpush1.bf16.msra.mxu0 0
      %998 = vmatprep.subr.bf16.mxu0 0
      %999 = vmatpush1.bf16.msra.mxu0 0
      %1000 = vmatprep.subr.bf16.mxu0 0
      %1001 = vmatpush1.bf16.msra.mxu0 0
      %1002 = vmatprep.subr.bf16.mxu0 0
      %1003 = vmatpush1.bf16.msra.mxu0 0
      %1004 = vmatprep.subr.bf16.mxu0 0
      %1005 = vmatpush1.bf16.msra.mxu0 0
      %1006 = vmatprep.subr.bf16.mxu0 0
      %1007 = vmatpush1.bf16.msra.mxu0 0
      %1008 = vmatprep.subr.bf16.mxu0 0
      %1009 = vmatpush1.bf16.msra.mxu0 0
      %1010 = vmatprep.subr.bf16.mxu0 0
      %1011 = vmatpush1.bf16.msra.mxu0 0
      %1012 = vmatprep.subr.bf16.mxu0 0
      %1013 = vmatpush1.bf16.msra.mxu0 0
      %1014 = vmatprep.subr.bf16.mxu0 0
      %1015 = vmatpush1.bf16.msra.mxu0 0
      %1016 = vmatprep.subr.bf16.mxu0 0
      %1017 = vmatpush1.bf16.msra.mxu0 0
      %1018 = vmatprep.subr.bf16.mxu0 0
      %1019 = vmatpush1.bf16.msra.mxu0 0
      %1020 = vmatprep.mubr.bf16.mxu0 0
      %1021 = vmatmul.mubr.bf16.gmra.mrb[0].mxu0 %v983
      %v1022 = vpop.f32.mrb[0].mxu0
      %v1023 = vadd.f32 0.0, %v1022
      %v1024 = vpop.f32.mrb[0].mxu0
      %v1025 = vpop.f32.mrb[0].mxu0
      %v1026 = vadd.f32 0.0, %v1025
      %v1027 = vpop.f32.mrb[0].mxu0
      %1028 = vmatprep.mubr.bf16.mxu0 0
      %1029 = vmatmul.mubr.bf16.gmra.mrb[0].mxu0 %v986
      %v1030 = vpop.f32.mrb[0].mxu0
      %v1031 = vadd.f32 0.0, %v1030
      %v1032 = vpop.f32.mrb[0].mxu0
      %v1033 = vpop.f32.mrb[0].mxu0
      %v1034 = vadd.f32 0.0, %v1033
      %v1035 = vpop.f32.mrb[0].mxu0
      %1036 = vdwg.mxu0
      %v1037 = vadd.f32 %v961, %v1023
      %v1038 = vadd.f32 %v962, %v1026
      %v1039 = vadd.f32 %v963, %v1031
      %v1040 = vadd.f32 %v964, %v1034
      %1041 = vrot.lane.b32.xlu0 %v597, 127
      %v1042 = vpop.permute.xlu0 %1041
      %1043 = vrot.lane.b32.xlu0 %v598, 127
      %v1044 = vpop.permute.xlu0 %1043
      %1045 = vrot.lane.b32.xlu0 %v599, 127
      %v1046 = vpop.permute.xlu0 %1045
      %1047 = vrot.lane.b32.xlu0 %v600, 127
      %v1048 = vpop.permute.xlu0 %1047
      %v1049 = vlaneseq
      %v1050 = vshrl.u32 %v1049, 7
      %v1051 = vsub.s32 5, %v1050
      %v1052 = vrot.slane %v595, %v1051
      %v1053 = vmul.f32 %v1042, %v1052
      %v1054 = vmul.f32 %v1044, %v1052
      %v1055 = vmul.f32 %v1046, %v1052
      %v1056 = vmul.f32 %v1048, %v1052
      %s1057 = scalar_lea.vmem %s548, 80
      %v1058 = vld [vmem:[%s1057] sm:$0xf]
      %v1059 = vld [vmem:[%s1057 + $0x4] sm:$0xf]
      %v1060 = vld [vmem:[%s1057 + $0x8] sm:$0xf]
      %v1061 = vld [vmem:[%s1057 + $0xc] sm:$0xf]
      %v1062 = vpack.c.bf16 %v1054, %v1053
      %v1063 = vpack.c.bf16 %v1056, %v1055
      %v1068 = vunpack.c.l.b16 %v1058
      %v1069 = vunpack.c.l.b16 %v1059
      %v1070 = vunpack.c.l.b16 %v1060
      %v1071 = vunpack.c.l.b16 %v1061
      %v1072 = vpack.c.b16 %v1069, %v1068
      %v1073 = vpack.c.b16 %v1071, %v1070
      %v1075 = vsel %vm660, %v1072, 0
      %v1078 = vsel %vm660, %v1073, 0
      %1080 = vmatprep.subr.bf16.mxu0 0
      %1081 = vmatpush1.bf16.msra.mxu0 %v1062
      %1082 = vmatprep.subr.bf16.mxu0 0
      %1083 = vmatpush1.bf16.msra.mxu0 %v1063
      %1084 = vmatprep.subr.bf16.mxu0 0
      %1085 = vmatpush1.bf16.msra.mxu0 0
      %1086 = vmatprep.subr.bf16.mxu0 0
      %1087 = vmatpush1.bf16.msra.mxu0 0
      %1088 = vmatprep.subr.bf16.mxu0 0
      %1089 = vmatpush1.bf16.msra.mxu0 0
      %1090 = vmatprep.subr.bf16.mxu0 0
      %1091 = vmatpush1.bf16.msra.mxu0 0
      %1092 = vmatprep.subr.bf16.mxu0 0
      %1093 = vmatpush1.bf16.msra.mxu0 0
      %1094 = vmatprep.subr.bf16.mxu0 0
      %1095 = vmatpush1.bf16.msra.mxu0 0
      %1096 = vmatprep.subr.bf16.mxu0 0
      %1097 = vmatpush1.bf16.msra.mxu0 0
      %1098 = vmatprep.subr.bf16.mxu0 0
      %1099 = vmatpush1.bf16.msra.mxu0 0
      %1100 = vmatprep.subr.bf16.mxu0 0
      %1101 = vmatpush1.bf16.msra.mxu0 0
      %1102 = vmatprep.subr.bf16.mxu0 0
      %1103 = vmatpush1.bf16.msra.mxu0 0
      %1104 = vmatprep.subr.bf16.mxu0 0
      %1105 = vmatpush1.bf16.msra.mxu0 0
      %1106 = vmatprep.subr.bf16.mxu0 0
      %1107 = vmatpush1.bf16.msra.mxu0 0
      %1108 = vmatprep.subr.bf16.mxu0 0
      %1109 = vmatpush1.bf16.msra.mxu0 0
      %1110 = vmatprep.subr.bf16.mxu0 0
      %1111 = vmatpush1.bf16.msra.mxu0 0
      %1112 = vmatprep.mubr.bf16.mxu0 0
      %1113 = vmatmul.mubr.bf16.gmra.mrb[0].mxu0 %v1075
      %v1114 = vpop.f32.mrb[0].mxu0
      %v1115 = vadd.f32 0.0, %v1114
      %v1116 = vpop.f32.mrb[0].mxu0
      %v1117 = vpop.f32.mrb[0].mxu0
      %v1118 = vadd.f32 0.0, %v1117
      %v1119 = vpop.f32.mrb[0].mxu0
      %1120 = vmatprep.mubr.bf16.mxu0 0
      %1121 = vmatmul.mubr.bf16.gmra.mrb[0].mxu0 %v1078
      %v1122 = vpop.f32.mrb[0].mxu0
      %v1123 = vadd.f32 0.0, %v1122
      %v1124 = vpop.f32.mrb[0].mxu0
      %v1125 = vpop.f32.mrb[0].mxu0
      %v1126 = vadd.f32 0.0, %v1125
      %v1127 = vpop.f32.mrb[0].mxu0
      %1128 = vdwg.mxu0
      %v1129 = vadd.f32 %v1037, %v1115
      %v1130 = vadd.f32 %v1038, %v1118
      %v1131 = vadd.f32 %v1039, %v1123
      %v1132 = vadd.f32 %v1040, %v1126
      %1133 = vrot.lane.b32.xlu0 %v597, 121
      %v1134 = vpop.permute.xlu0 %1133
      %1135 = vrot.lane.b32.xlu0 %v598, 121
      %v1136 = vpop.permute.xlu0 %1135
      %1137 = vrot.lane.b32.xlu0 %v599, 121
      %v1138 = vpop.permute.xlu0 %1137
      %1139 = vrot.lane.b32.xlu0 %v600, 121
      %v1140 = vpop.permute.xlu0 %1139
      %v1141 = vlaneseq
      %v1142 = vshrl.u32 %v1141, 7
      %v1143 = vsub.s32 6, %v1142
      %v1144 = vrot.slane %v595, %v1143
      %v1145 = vmul.f32 %v1134, %v1144
      %v1146 = vmul.f32 %v1136, %v1144
      %v1147 = vmul.f32 %v1138, %v1144
      %v1148 = vmul.f32 %v1140, %v1144
      %s1149 = scalar_lea.vmem %s548, 96
      %v1150 = vld [vmem:[%s1149] sm:$0xf]
      %v1151 = vld [vmem:[%s1149 + $0x4] sm:$0xf]
      %v1152 = vld [vmem:[%s1149 + $0x8] sm:$0xf]
      %v1153 = vld [vmem:[%s1149 + $0xc] sm:$0xf]
      %v1154 = vpack.c.bf16 %v1146, %v1145
      %v1155 = vpack.c.bf16 %v1148, %v1147
      %v1160 = vunpack.c.l.b16 %v1150
      %v1161 = vunpack.c.l.b16 %v1151
      %v1162 = vunpack.c.l.b16 %v1152
      %v1163 = vunpack.c.l.b16 %v1153
      %v1164 = vpack.c.b16 %v1161, %v1160
      %v1165 = vpack.c.b16 %v1163, %v1162
      %v1167 = vsel %vm660, %v1164, 0
      %v1170 = vsel %vm660, %v1165, 0
      %1172 = vmatprep.subr.bf16.mxu0 0
      %1173 = vmatpush1.bf16.msra.mxu0 %v1154
      %1174 = vmatprep.subr.bf16.mxu0 0
      %1175 = vmatpush1.bf16.msra.mxu0 %v1155
      %1176 = vmatprep.subr.bf16.mxu0 0
      %1177 = vmatpush1.bf16.msra.mxu0 0
      %1178 = vmatprep.subr.bf16.mxu0 0
      %1179 = vmatpush1.bf16.msra.mxu0 0
      %1180 = vmatprep.subr.bf16.mxu0 0
      %1181 = vmatpush1.bf16.msra.mxu0 0
      %1182 = vmatprep.subr.bf16.mxu0 0
      %1183 = vmatpush1.bf16.msra.mxu0 0
      %1184 = vmatprep.subr.bf16.mxu0 0
      %1185 = vmatpush1.bf16.msra.mxu0 0
      %1186 = vmatprep.subr.bf16.mxu0 0
      %1187 = vmatpush1.bf16.msra.mxu0 0
      %1188 = vmatprep.subr.bf16.mxu0 0
      %1189 = vmatpush1.bf16.msra.mxu0 0
      %1190 = vmatprep.subr.bf16.mxu0 0
      %1191 = vmatpush1.bf16.msra.mxu0 0
      %1192 = vmatprep.subr.bf16.mxu0 0
      %1193 = vmatpush1.bf16.msra.mxu0 0
      %1194 = vmatprep.subr.bf16.mxu0 0
      %1195 = vmatpush1.bf16.msra.mxu0 0
      %1196 = vmatprep.subr.bf16.mxu0 0
      %1197 = vmatpush1.bf16.msra.mxu0 0
      %1198 = vmatprep.subr.bf16.mxu0 0
      %1199 = vmatpush1.bf16.msra.mxu0 0
      %1200 = vmatprep.subr.bf16.mxu0 0
      %1201 = vmatpush1.bf16.msra.mxu0 0
      %1202 = vmatprep.subr.bf16.mxu0 0
      %1203 = vmatpush1.bf16.msra.mxu0 0
      %1204 = vmatprep.mubr.bf16.mxu0 0
      %1205 = vmatmul.mubr.bf16.gmra.mrb[0].mxu0 %v1167
      %v1206 = vpop.f32.mrb[0].mxu0
      %v1207 = vadd.f32 0.0, %v1206
      %v1208 = vpop.f32.mrb[0].mxu0
      %v1209 = vpop.f32.mrb[0].mxu0
      %v1210 = vadd.f32 0.0, %v1209
      %v1211 = vpop.f32.mrb[0].mxu0
      %1212 = vmatprep.mubr.bf16.mxu0 0
      %1213 = vmatmul.mubr.bf16.gmra.mrb[0].mxu0 %v1170
      %v1214 = vpop.f32.mrb[0].mxu0
      %v1215 = vadd.f32 0.0, %v1214
      %v1216 = vpop.f32.mrb[0].mxu0
      %v1217 = vpop.f32.mrb[0].mxu0
      %v1218 = vadd.f32 0.0, %v1217
      %v1219 = vpop.f32.mrb[0].mxu0
      %1220 = vdwg.mxu0
      %v1221 = vadd.f32 %v1129, %v1207
      %v1222 = vadd.f32 %v1130, %v1210
      %v1223 = vadd.f32 %v1131, %v1215
      %v1224 = vadd.f32 %v1132, %v1218
      %1225 = vrot.lane.b32.xlu0 %v597, 120
      %v1226 = vpop.permute.xlu0 %1225
      %1227 = vrot.lane.b32.xlu0 %v598, 120
      %v1228 = vpop.permute.xlu0 %1227
      %1229 = vrot.lane.b32.xlu0 %v599, 120
      %v1230 = vpop.permute.xlu0 %1229
      %1231 = vrot.lane.b32.xlu0 %v600, 120
      %v1232 = vpop.permute.xlu0 %1231
      %v1233 = vlaneseq
      %v1234 = vshrl.u32 %v1233, 7
      %v1235 = vsub.s32 7, %v1234
      %v1236 = vrot.slane %v595, %v1235
      %v1237 = vmul.f32 %v1226, %v1236
      %v1238 = vmul.f32 %v1228, %v1236
      %v1239 = vmul.f32 %v1230, %v1236
      %v1240 = vmul.f32 %v1232, %v1236
      %s1241 = scalar_lea.vmem %s548, 112
      %v1242 = vld [vmem:[%s1241] sm:$0xf]
      %v1243 = vld [vmem:[%s1241 + $0x4] sm:$0xf]
      %v1244 = vld [vmem:[%s1241 + $0x8] sm:$0xf]
      %v1245 = vld [vmem:[%s1241 + $0xc] sm:$0xf]
      %v1246 = vpack.c.bf16 %v1238, %v1237
      %v1247 = vpack.c.bf16 %v1240, %v1239
      %v1252 = vunpack.c.l.b16 %v1242
      %v1253 = vunpack.c.l.b16 %v1243
      %v1254 = vunpack.c.l.b16 %v1244
      %v1255 = vunpack.c.l.b16 %v1245
      %v1256 = vpack.c.b16 %v1253, %v1252
      %v1257 = vpack.c.b16 %v1255, %v1254
      %v1259 = vsel %vm660, %v1256, 0
      %v1262 = vsel %vm660, %v1257, 0
      %1264 = vmatprep.subr.bf16.mxu0 0
      %1265 = vmatpush1.bf16.msra.mxu0 %v1246
      %1266 = vmatprep.subr.bf16.mxu0 0
      %1267 = vmatpush1.bf16.msra.mxu0 %v1247
      %1268 = vmatprep.subr.bf16.mxu0 0
      %1269 = vmatpush1.bf16.msra.mxu0 0
      %1270 = vmatprep.subr.bf16.mxu0 0
      %1271 = vmatpush1.bf16.msra.mxu0 0
      %1272 = vmatprep.subr.bf16.mxu0 0
      %1273 = vmatpush1.bf16.msra.mxu0 0
      %1274 = vmatprep.subr.bf16.mxu0 0
      %1275 = vmatpush1.bf16.msra.mxu0 0
      %1276 = vmatprep.subr.bf16.mxu0 0
      %1277 = vmatpush1.bf16.msra.mxu0 0
      %1278 = vmatprep.subr.bf16.mxu0 0
      %1279 = vmatpush1.bf16.msra.mxu0 0
      %1280 = vmatprep.subr.bf16.mxu0 0
      %1281 = vmatpush1.bf16.msra.mxu0 0
      %1282 = vmatprep.subr.bf16.mxu0 0
      %1283 = vmatpush1.bf16.msra.mxu0 0
      %1284 = vmatprep.subr.bf16.mxu0 0
      %1285 = vmatpush1.bf16.msra.mxu0 0
      %1286 = vmatprep.subr.bf16.mxu0 0
      %1287 = vmatpush1.bf16.msra.mxu0 0
      %1288 = vmatprep.subr.bf16.mxu0 0
      %1289 = vmatpush1.bf16.msra.mxu0 0
      %1290 = vmatprep.subr.bf16.mxu0 0
      %1291 = vmatpush1.bf16.msra.mxu0 0
      %1292 = vmatprep.subr.bf16.mxu0 0
      %1293 = vmatpush1.bf16.msra.mxu0 0
      %1294 = vmatprep.subr.bf16.mxu0 0
      %1295 = vmatpush1.bf16.msra.mxu0 0
      %1296 = vmatprep.mubr.bf16.mxu0 0
      %1297 = vmatmul.mubr.bf16.gmra.mrb[0].mxu0 %v1259
      %v1298 = vpop.f32.mrb[0].mxu0
      %v1299 = vadd.f32 0.0, %v1298
      %v1300 = vpop.f32.mrb[0].mxu0
      %v1301 = vpop.f32.mrb[0].mxu0
      %v1302 = vadd.f32 0.0, %v1301
      %v1303 = vpop.f32.mrb[0].mxu0
      %1304 = vmatprep.mubr.bf16.mxu0 0
      %1305 = vmatmul.mubr.bf16.gmra.mrb[0].mxu0 %v1262
      %v1306 = vpop.f32.mrb[0].mxu0
      %v1307 = vadd.f32 0.0, %v1306
      %v1308 = vpop.f32.mrb[0].mxu0
      %v1309 = vpop.f32.mrb[0].mxu0
      %v1310 = vadd.f32 0.0, %v1309
      %v1311 = vpop.f32.mrb[0].mxu0
      %1312 = vdwg.mxu0
      %v1313 = vadd.f32 %v1221, %v1299
      %v1314 = vadd.f32 %v1222, %v1302
      %v1315 = vadd.f32 %v1223, %v1307
      %v1316 = vadd.f32 %v1224, %v1310
      %1317 = vrot.lane.b32.xlu0 %v597, 119
      %v1318 = vpop.permute.xlu0 %1317
      %1319 = vrot.lane.b32.xlu0 %v598, 119
      %v1320 = vpop.permute.xlu0 %1319
      %1321 = vrot.lane.b32.xlu0 %v599, 119
      %v1322 = vpop.permute.xlu0 %1321
      %1323 = vrot.lane.b32.xlu0 %v600, 119
      %v1324 = vpop.permute.xlu0 %1323
      %v1325 = vlaneseq
      %v1326 = vshrl.u32 %v1325, 7
      %v1327 = vsub.s32 0, %v1326
      %v1328 = vrot.slane %v596, %v1327
      %v1329 = vmul.f32 %v1318, %v1328
      %v1330 = vmul.f32 %v1320, %v1328
      %v1331 = vmul.f32 %v1322, %v1328
      %v1332 = vmul.f32 %v1324, %v1328
      %s1333 = scalar_lea.vmem %s548, 128
      %v1334 = vld [vmem:[%s1333] sm:$0xf]
      %v1335 = vld [vmem:[%s1333 + $0x4] sm:$0xf]
      %v1336 = vld [vmem:[%s1333 + $0x8] sm:$0xf]
      %v1337 = vld [vmem:[%s1333 + $0xc] sm:$0xf]
      %v1338 = vpack.c.bf16 %v1330, %v1329
      %v1339 = vpack.c.bf16 %v1332, %v1331
      %v1344 = vunpack.c.l.b16 %v1334
      %v1345 = vunpack.c.l.b16 %v1335
      %v1346 = vunpack.c.l.b16 %v1336
      %v1347 = vunpack.c.l.b16 %v1337
      %v1348 = vpack.c.b16 %v1345, %v1344
      %v1349 = vpack.c.b16 %v1347, %v1346
      %v1351 = vsel %vm660, %v1348, 0
      %v1354 = vsel %vm660, %v1349, 0
      %1356 = vmatprep.subr.bf16.mxu0 0
      %1357 = vmatpush1.bf16.msra.mxu0 %v1338
      %1358 = vmatprep.subr.bf16.mxu0 0
      %1359 = vmatpush1.bf16.msra.mxu0 %v1339
      %1360 = vmatprep.subr.bf16.mxu0 0
      %1361 = vmatpush1.bf16.msra.mxu0 0
      %1362 = vmatprep.subr.bf16.mxu0 0
      %1363 = vmatpush1.bf16.msra.mxu0 0
      %1364 = vmatprep.subr.bf16.mxu0 0
      %1365 = vmatpush1.bf16.msra.mxu0 0
      %1366 = vmatprep.subr.bf16.mxu0 0
      %1367 = vmatpush1.bf16.msra.mxu0 0
      %1368 = vmatprep.subr.bf16.mxu0 0
      %1369 = vmatpush1.bf16.msra.mxu0 0
      %1370 = vmatprep.subr.bf16.mxu0 0
      %1371 = vmatpush1.bf16.msra.mxu0 0
      %1372 = vmatprep.subr.bf16.mxu0 0
      %1373 = vmatpush1.bf16.msra.mxu0 0
      %1374 = vmatprep.subr.bf16.mxu0 0
      %1375 = vmatpush1.bf16.msra.mxu0 0
      %1376 = vmatprep.subr.bf16.mxu0 0
      %1377 = vmatpush1.bf16.msra.mxu0 0
      %1378 = vmatprep.subr.bf16.mxu0 0
      %1379 = vmatpush1.bf16.msra.mxu0 0
      %1380 = vmatprep.subr.bf16.mxu0 0
      %1381 = vmatpush1.bf16.msra.mxu0 0
      %1382 = vmatprep.subr.bf16.mxu0 0
      %1383 = vmatpush1.bf16.msra.mxu0 0
      %1384 = vmatprep.subr.bf16.mxu0 0
      %1385 = vmatpush1.bf16.msra.mxu0 0
      %1386 = vmatprep.subr.bf16.mxu0 0
      %1387 = vmatpush1.bf16.msra.mxu0 0
      %1388 = vmatprep.mubr.bf16.mxu0 0
      %1389 = vmatmul.mubr.bf16.gmra.mrb[0].mxu0 %v1351
      %v1390 = vpop.f32.mrb[0].mxu0
      %v1391 = vadd.f32 0.0, %v1390
      %v1392 = vpop.f32.mrb[0].mxu0
      %v1393 = vpop.f32.mrb[0].mxu0
      %v1394 = vadd.f32 0.0, %v1393
      %v1395 = vpop.f32.mrb[0].mxu0
      %1396 = vmatprep.mubr.bf16.mxu0 0
      %1397 = vmatmul.mubr.bf16.gmra.mrb[0].mxu0 %v1354
      %v1398 = vpop.f32.mrb[0].mxu0
      %v1399 = vadd.f32 0.0, %v1398
      %v1400 = vpop.f32.mrb[0].mxu0
      %v1401 = vpop.f32.mrb[0].mxu0
      %v1402 = vadd.f32 0.0, %v1401
      %v1403 = vpop.f32.mrb[0].mxu0
      %1404 = vdwg.mxu0
      %v1405 = vadd.f32 %v1313, %v1391
      %v1406 = vadd.f32 %v1314, %v1394
      %v1407 = vadd.f32 %v1315, %v1399
      %v1408 = vadd.f32 %v1316, %v1402
      %1410 = vset.pattern.permute.xlu0 0
      %1411 = vperm.xlu0 %1410, %v601
      %v1412 = vpop.permute.xlu0 %1411
      %1415 = vset.pattern.permute.xlu0 0
      %1416 = vperm.xlu0 %1415, %v602
      %v1417 = vpop.permute.xlu0 %1416
      %1420 = vset.pattern.permute.xlu0 0
      %1421 = vperm.xlu0 %1420, %v603
      %v1422 = vpop.permute.xlu0 %1421
      %1425 = vset.pattern.permute.xlu0 0
      %1426 = vperm.xlu0 %1425, %v604
      %v1427 = vpop.permute.xlu0 %1426
      %v1429 = vadd.f32 %v1405, %v1412
      %v1430 = vadd.f32 %v1406, %v1417
      %v1431 = vadd.f32 %v1407, %v1422
      %v1432 = vadd.f32 %v1408, %v1427
      %v1433 = vmax.f32 %v1429, 0.0
      %v1434 = vmax.f32 %v1430, 0.0
      %v1435 = vmax.f32 %v1431, 0.0
      %v1436 = vmax.f32 %v1432, 0.0
      %s1437 = scalar_lea.vmem %s553, 32
      %v1438 = vld [vmem:[%s1437] sm:$0xff]
      %v1439 = vld [vmem:[%s1437 + $0x8] sm:$0xff]
      %v1440 = vld [vmem:[%s1437 + $0x10] sm:$0xff]
      %v1441 = vld [vmem:[%s1437 + $0x18] sm:$0xff]
      %1442 = vrot.lane.b32.xlu0 %v1433, 9
      %v1443 = vpop.permute.xlu0 %1442
      %1444 = vrot.lane.b32.xlu0 %v1434, 9
      %v1445 = vpop.permute.xlu0 %1444
      %1446 = vrot.lane.b32.xlu0 %v1435, 9
      %v1447 = vpop.permute.xlu0 %1446
      %1448 = vrot.lane.b32.xlu0 %v1436, 9
      %v1449 = vpop.permute.xlu0 %1448
      %v1450 = vmul.f32 %v1443, %v616
      %v1451 = vmul.f32 %v1445, %v616
      %v1452 = vmul.f32 %v1447, %v616
      %v1453 = vmul.f32 %v1449, %v616
      %s1454 = scalar_lea.vmem %s548, 144
      %v1455 = vld [vmem:[%s1454] sm:$0xf]
      %v1456 = vld [vmem:[%s1454 + $0x4] sm:$0xf]
      %v1457 = vld [vmem:[%s1454 + $0x8] sm:$0xf]
      %v1458 = vld [vmem:[%s1454 + $0xc] sm:$0xf]
      %v1459 = vpack.c.bf16 %v1451, %v1450
      %v1460 = vpack.c.bf16 %v1453, %v1452
      %1461 = vrot.lane.b32.xlu0 %v1433, 8
      %v1462 = vpop.permute.xlu0 %1461
      %1463 = vrot.lane.b32.xlu0 %v1434, 8
      %v1464 = vpop.permute.xlu0 %1463
      %1465 = vrot.lane.b32.xlu0 %v1435, 8
      %v1466 = vpop.permute.xlu0 %1465
      %1467 = vrot.lane.b32.xlu0 %v1436, 8
      %v1468 = vpop.permute.xlu0 %1467
      %v1469 = vmul.f32 %v1462, %v638
      %v1470 = vmul.f32 %v1464, %v638
      %v1471 = vmul.f32 %v1466, %v638
      %v1472 = vmul.f32 %v1468, %v638
      %s1473 = scalar_lea.vmem %s548, 160
      %v1474 = vld [vmem:[%s1473] sm:$0xf]
      %v1475 = vld [vmem:[%s1473 + $0x4] sm:$0xf]
      %v1476 = vld [vmem:[%s1473 + $0x8] sm:$0xf]
      %v1477 = vld [vmem:[%s1473 + $0xc] sm:$0xf]
      %v1478 = vpack.c.bf16 %v1470, %v1469
      %v1479 = vpack.c.bf16 %v1472, %v1471
      %v1484 = vunpack.c.l.b16 %v1474
      %v1485 = vunpack.c.l.b16 %v1475
      %v1486 = vunpack.c.l.b16 %v1476
      %v1487 = vunpack.c.l.b16 %v1477
      %v1488 = vpack.c.b16 %v1485, %v1484
      %v1489 = vpack.c.b16 %v1487, %v1486
      %v1491 = vsel %vm660, %v1488, 0
      %v1494 = vsel %vm660, %v1489, 0
      %1496 = vmatprep.subr.bf16.mxu0 0
      %1497 = vmatpush1.bf16.msra.mxu0 %v1478
      %1498 = vmatprep.subr.bf16.mxu0 0
      %1499 = vmatpush1.bf16.msra.mxu0 %v1479
      %1500 = vmatprep.subr.bf16.mxu0 0
      %1501 = vmatpush1.bf16.msra.mxu0 0
      %1502 = vmatprep.subr.bf16.mxu0 0
      %1503 = vmatpush1.bf16.msra.mxu0 0
      %1504 = vmatprep.subr.bf16.mxu0 0
      %1505 = vmatpush1.bf16.msra.mxu0 0
      %1506 = vmatprep.subr.bf16.mxu0 0
      %1507 = vmatpush1.bf16.msra.mxu0 0
      %1508 = vmatprep.subr.bf16.mxu0 0
      %1509 = vmatpush1.bf16.msra.mxu0 0
      %1510 = vmatprep.subr.bf16.mxu0 0
      %1511 = vmatpush1.bf16.msra.mxu0 0
      %1512 = vmatprep.subr.bf16.mxu0 0
      %1513 = vmatpush1.bf16.msra.mxu0 0
      %1514 = vmatprep.subr.bf16.mxu0 0
      %1515 = vmatpush1.bf16.msra.mxu0 0
      %1516 = vmatprep.subr.bf16.mxu0 0
      %1517 = vmatpush1.bf16.msra.mxu0 0
      %1518 = vmatprep.subr.bf16.mxu0 0
      %1519 = vmatpush1.bf16.msra.mxu0 0
      %1520 = vmatprep.subr.bf16.mxu0 0
      %1521 = vmatpush1.bf16.msra.mxu0 0
      %1522 = vmatprep.subr.bf16.mxu0 0
      %1523 = vmatpush1.bf16.msra.mxu0 0
      %1524 = vmatprep.subr.bf16.mxu0 0
      %1525 = vmatpush1.bf16.msra.mxu0 0
      %1526 = vmatprep.subr.bf16.mxu0 0
      %1527 = vmatpush1.bf16.msra.mxu0 0
      %1528 = vmatprep.mubr.bf16.mxu0 0
      %1529 = vmatmul.mubr.bf16.gmra.mrb[0].mxu0 %v1491
      %v1530 = vpop.f32.mrb[0].mxu0
      %v1531 = vadd.f32 0.0, %v1530
      %v1532 = vpop.f32.mrb[0].mxu0
      %v1533 = vpop.f32.mrb[0].mxu0
      %v1534 = vadd.f32 0.0, %v1533
      %v1535 = vpop.f32.mrb[0].mxu0
      %1536 = vmatprep.mubr.bf16.mxu0 0
      %1537 = vmatmul.mubr.bf16.gmra.mrb[0].mxu0 %v1494
      %v1538 = vpop.f32.mrb[0].mxu0
      %v1539 = vadd.f32 0.0, %v1538
      %v1540 = vpop.f32.mrb[0].mxu0
      %v1541 = vpop.f32.mrb[0].mxu0
      %v1542 = vadd.f32 0.0, %v1541
      %v1543 = vpop.f32.mrb[0].mxu0
      %1544 = vdwg.mxu0
      %v1549 = vunpack.c.l.b16 %v1455
      %v1550 = vunpack.c.l.b16 %v1456
      %v1551 = vunpack.c.l.b16 %v1457
      %v1552 = vunpack.c.l.b16 %v1458
      %v1553 = vpack.c.b16 %v1550, %v1549
      %v1554 = vpack.c.b16 %v1552, %v1551
      %v1556 = vsel %vm660, %v1553, 0
      %v1559 = vsel %vm660, %v1554, 0
      %1561 = vmatprep.subr.bf16.mxu0 0
      %1562 = vmatpush1.bf16.msra.mxu0 %v1459
      %1563 = vmatprep.subr.bf16.mxu0 0
      %1564 = vmatpush1.bf16.msra.mxu0 %v1460
      %1565 = vmatprep.subr.bf16.mxu0 0
      %1566 = vmatpush1.bf16.msra.mxu0 0
      %1567 = vmatprep.subr.bf16.mxu0 0
      %1568 = vmatpush1.bf16.msra.mxu0 0
      %1569 = vmatprep.subr.bf16.mxu0 0
      %1570 = vmatpush1.bf16.msra.mxu0 0
      %1571 = vmatprep.subr.bf16.mxu0 0
      %1572 = vmatpush1.bf16.msra.mxu0 0
      %1573 = vmatprep.subr.bf16.mxu0 0
      %1574 = vmatpush1.bf16.msra.mxu0 0
      %1575 = vmatprep.subr.bf16.mxu0 0
      %1576 = vmatpush1.bf16.msra.mxu0 0
      %1577 = vmatprep.subr.bf16.mxu0 0
      %1578 = vmatpush1.bf16.msra.mxu0 0
      %1579 = vmatprep.subr.bf16.mxu0 0
      %1580 = vmatpush1.bf16.msra.mxu0 0
      %1581 = vmatprep.subr.bf16.mxu0 0
      %1582 = vmatpush1.bf16.msra.mxu0 0
      %1583 = vmatprep.subr.bf16.mxu0 0
      %1584 = vmatpush1.bf16.msra.mxu0 0
      %1585 = vmatprep.subr.bf16.mxu0 0
      %1586 = vmatpush1.bf16.msra.mxu0 0
      %1587 = vmatprep.subr.bf16.mxu0 0
      %1588 = vmatpush1.bf16.msra.mxu0 0
      %1589 = vmatprep.subr.bf16.mxu0 0
      %1590 = vmatpush1.bf16.msra.mxu0 0
      %1591 = vmatprep.subr.bf16.mxu0 0
      %1592 = vmatpush1.bf16.msra.mxu0 0
      %1593 = vmatprep.mubr.bf16.mxu0 0
      %1594 = vmatmul.mubr.bf16.gmra.mrb[0].mxu0 %v1556
      %v1595 = vpop.f32.mrb[0].mxu0
      %v1596 = vadd.f32 %v1531, %v1595
      %v1597 = vpop.f32.mrb[0].mxu0
      %v1598 = vpop.f32.mrb[0].mxu0
      %v1599 = vadd.f32 %v1534, %v1598
      %v1600 = vpop.f32.mrb[0].mxu0
      %1601 = vmatprep.mubr.bf16.mxu0 0
      %1602 = vmatmul.mubr.bf16.gmra.mrb[0].mxu0 %v1559
      %v1603 = vpop.f32.mrb[0].mxu0
      %v1604 = vadd.f32 %v1539, %v1603
      %v1605 = vpop.f32.mrb[0].mxu0
      %v1606 = vpop.f32.mrb[0].mxu0
      %v1607 = vadd.f32 %v1542, %v1606
      %v1608 = vpop.f32.mrb[0].mxu0
      %1609 = vdwg.mxu0
      %1610 = vrot.lane.b32.xlu0 %v1433, 7
      %v1611 = vpop.permute.xlu0 %1610
      %1612 = vrot.lane.b32.xlu0 %v1434, 7
      %v1613 = vpop.permute.xlu0 %1612
      %1614 = vrot.lane.b32.xlu0 %v1435, 7
      %v1615 = vpop.permute.xlu0 %1614
      %1616 = vrot.lane.b32.xlu0 %v1436, 7
      %v1617 = vpop.permute.xlu0 %1616
      %v1618 = vmul.f32 %v1611, %v792
      %v1619 = vmul.f32 %v1613, %v792
      %v1620 = vmul.f32 %v1615, %v792
      %v1621 = vmul.f32 %v1617, %v792
      %s1622 = scalar_lea.vmem %s548, 176
      %v1623 = vld [vmem:[%s1622] sm:$0xf]
      %v1624 = vld [vmem:[%s1622 + $0x4] sm:$0xf]
      %v1625 = vld [vmem:[%s1622 + $0x8] sm:$0xf]
      %v1626 = vld [vmem:[%s1622 + $0xc] sm:$0xf]
      %v1627 = vpack.c.bf16 %v1619, %v1618
      %v1628 = vpack.c.bf16 %v1621, %v1620
      %v1633 = vunpack.c.l.b16 %v1623
      %v1634 = vunpack.c.l.b16 %v1624
      %v1635 = vunpack.c.l.b16 %v1625
      %v1636 = vunpack.c.l.b16 %v1626
      %v1637 = vpack.c.b16 %v1634, %v1633
      %v1638 = vpack.c.b16 %v1636, %v1635
      %v1640 = vsel %vm660, %v1637, 0
      %v1643 = vsel %vm660, %v1638, 0
      %1645 = vmatprep.subr.bf16.mxu0 0
      %1646 = vmatpush1.bf16.msra.mxu0 %v1627
      %1647 = vmatprep.subr.bf16.mxu0 0
      %1648 = vmatpush1.bf16.msra.mxu0 %v1628
      %1649 = vmatprep.subr.bf16.mxu0 0
      %1650 = vmatpush1.bf16.msra.mxu0 0
      %1651 = vmatprep.subr.bf16.mxu0 0
      %1652 = vmatpush1.bf16.msra.mxu0 0
      %1653 = vmatprep.subr.bf16.mxu0 0
      %1654 = vmatpush1.bf16.msra.mxu0 0
      %1655 = vmatprep.subr.bf16.mxu0 0
      %1656 = vmatpush1.bf16.msra.mxu0 0
      %1657 = vmatprep.subr.bf16.mxu0 0
      %1658 = vmatpush1.bf16.msra.mxu0 0
      %1659 = vmatprep.subr.bf16.mxu0 0
      %1660 = vmatpush1.bf16.msra.mxu0 0
      %1661 = vmatprep.subr.bf16.mxu0 0
      %1662 = vmatpush1.bf16.msra.mxu0 0
      %1663 = vmatprep.subr.bf16.mxu0 0
      %1664 = vmatpush1.bf16.msra.mxu0 0
      %1665 = vmatprep.subr.bf16.mxu0 0
      %1666 = vmatpush1.bf16.msra.mxu0 0
      %1667 = vmatprep.subr.bf16.mxu0 0
      %1668 = vmatpush1.bf16.msra.mxu0 0
      %1669 = vmatprep.subr.bf16.mxu0 0
      %1670 = vmatpush1.bf16.msra.mxu0 0
      %1671 = vmatprep.subr.bf16.mxu0 0
      %1672 = vmatpush1.bf16.msra.mxu0 0
      %1673 = vmatprep.subr.bf16.mxu0 0
      %1674 = vmatpush1.bf16.msra.mxu0 0
      %1675 = vmatprep.subr.bf16.mxu0 0
      %1676 = vmatpush1.bf16.msra.mxu0 0
      %1677 = vmatprep.mubr.bf16.mxu0 0
      %1678 = vmatmul.mubr.bf16.gmra.mrb[0].mxu0 %v1640
      %v1679 = vpop.f32.mrb[0].mxu0
      %v1680 = vadd.f32 0.0, %v1679
      %v1681 = vpop.f32.mrb[0].mxu0
      %v1682 = vpop.f32.mrb[0].mxu0
      %v1683 = vadd.f32 0.0, %v1682
      %v1684 = vpop.f32.mrb[0].mxu0
      %1685 = vmatprep.mubr.bf16.mxu0 0
      %1686 = vmatmul.mubr.bf16.gmra.mrb[0].mxu0 %v1643
      %v1687 = vpop.f32.mrb[0].mxu0
      %v1688 = vadd.f32 0.0, %v1687
      %v1689 = vpop.f32.mrb[0].mxu0
      %v1690 = vpop.f32.mrb[0].mxu0
      %v1691 = vadd.f32 0.0, %v1690
      %v1692 = vpop.f32.mrb[0].mxu0
      %1693 = vdwg.mxu0
      %v1694 = vadd.f32 %v1596, %v1680
      %v1695 = vadd.f32 %v1599, %v1683
      %v1696 = vadd.f32 %v1604, %v1688
      %v1697 = vadd.f32 %v1607, %v1691
      %1698 = vrot.lane.b32.xlu0 %v1433, 1
      %v1699 = vpop.permute.xlu0 %1698
      %1700 = vrot.lane.b32.xlu0 %v1434, 1
      %v1701 = vpop.permute.xlu0 %1700
      %1702 = vrot.lane.b32.xlu0 %v1435, 1
      %v1703 = vpop.permute.xlu0 %1702
      %1704 = vrot.lane.b32.xlu0 %v1436, 1
      %v1705 = vpop.permute.xlu0 %1704
      %v1706 = vmul.f32 %v1699, %v884
      %v1707 = vmul.f32 %v1701, %v884
      %v1708 = vmul.f32 %v1703, %v884
      %v1709 = vmul.f32 %v1705, %v884
      %s1710 = scalar_lea.vmem %s548, 192
      %v1711 = vld [vmem:[%s1710] sm:$0xf]
      %v1712 = vld [vmem:[%s1710 + $0x4] sm:$0xf]
      %v1713 = vld [vmem:[%s1710 + $0x8] sm:$0xf]
      %v1714 = vld [vmem:[%s1710 + $0xc] sm:$0xf]
      %v1715 = vpack.c.bf16 %v1707, %v1706
      %v1716 = vpack.c.bf16 %v1709, %v1708
      %v1721 = vunpack.c.l.b16 %v1711
      %v1722 = vunpack.c.l.b16 %v1712
      %v1723 = vunpack.c.l.b16 %v1713
      %v1724 = vunpack.c.l.b16 %v1714
      %v1725 = vpack.c.b16 %v1722, %v1721
      %v1726 = vpack.c.b16 %v1724, %v1723
      %v1728 = vsel %vm660, %v1725, 0
      %v1731 = vsel %vm660, %v1726, 0
      %1733 = vmatprep.subr.bf16.mxu0 0
      %1734 = vmatpush1.bf16.msra.mxu0 %v1715
      %1735 = vmatprep.subr.bf16.mxu0 0
      %1736 = vmatpush1.bf16.msra.mxu0 %v1716
      %1737 = vmatprep.subr.bf16.mxu0 0
      %1738 = vmatpush1.bf16.msra.mxu0 0
      %1739 = vmatprep.subr.bf16.mxu0 0
      %1740 = vmatpush1.bf16.msra.mxu0 0
      %1741 = vmatprep.subr.bf16.mxu0 0
      %1742 = vmatpush1.bf16.msra.mxu0 0
      %1743 = vmatprep.subr.bf16.mxu0 0
      %1744 = vmatpush1.bf16.msra.mxu0 0
      %1745 = vmatprep.subr.bf16.mxu0 0
      %1746 = vmatpush1.bf16.msra.mxu0 0
      %1747 = vmatprep.subr.bf16.mxu0 0
      %1748 = vmatpush1.bf16.msra.mxu0 0
      %1749 = vmatprep.subr.bf16.mxu0 0
      %1750 = vmatpush1.bf16.msra.mxu0 0
      %1751 = vmatprep.subr.bf16.mxu0 0
      %1752 = vmatpush1.bf16.msra.mxu0 0
      %1753 = vmatprep.subr.bf16.mxu0 0
      %1754 = vmatpush1.bf16.msra.mxu0 0
      %1755 = vmatprep.subr.bf16.mxu0 0
      %1756 = vmatpush1.bf16.msra.mxu0 0
      %1757 = vmatprep.subr.bf16.mxu0 0
      %1758 = vmatpush1.bf16.msra.mxu0 0
      %1759 = vmatprep.subr.bf16.mxu0 0
      %1760 = vmatpush1.bf16.msra.mxu0 0
      %1761 = vmatprep.subr.bf16.mxu0 0
      %1762 = vmatpush1.bf16.msra.mxu0 0
      %1763 = vmatprep.subr.bf16.mxu0 0
      %1764 = vmatpush1.bf16.msra.mxu0 0
      %1765 = vmatprep.mubr.bf16.mxu0 0
      %1766 = vmatmul.mubr.bf16.gmra.mrb[0].mxu0 %v1728
      %v1767 = vpop.f32.mrb[0].mxu0
      %v1768 = vadd.f32 0.0, %v1767
      %v1769 = vpop.f32.mrb[0].mxu0
      %v1770 = vpop.f32.mrb[0].mxu0
      %v1771 = vadd.f32 0.0, %v1770
      %v1772 = vpop.f32.mrb[0].mxu0
      %1773 = vmatprep.mubr.bf16.mxu0 0
      %1774 = vmatmul.mubr.bf16.gmra.mrb[0].mxu0 %v1731
      %v1775 = vpop.f32.mrb[0].mxu0
      %v1776 = vadd.f32 0.0, %v1775
      %v1777 = vpop.f32.mrb[0].mxu0
      %v1778 = vpop.f32.mrb[0].mxu0
      %v1779 = vadd.f32 0.0, %v1778
      %v1780 = vpop.f32.mrb[0].mxu0
      %1781 = vdwg.mxu0
      %v1782 = vadd.f32 %v1694, %v1768
      %v1783 = vadd.f32 %v1695, %v1771
      %v1784 = vadd.f32 %v1696, %v1776
      %v1785 = vadd.f32 %v1697, %v1779
      %s1786 = scalar_lea.vmem %s548, 208
      %v1787 = vld [vmem:[%s1786] sm:$0xf]
      %v1788 = vld [vmem:[%s1786 + $0x4] sm:$0xf]
      %v1789 = vld [vmem:[%s1786 + $0x8] sm:$0xf]
      %v1790 = vld [vmem:[%s1786 + $0xc] sm:$0xf]
      %v1791 = vpack.c.bf16 %v1434, %v1433
      %v1792 = vpack.c.bf16 %v1436, %v1435
      %v1797 = vunpack.c.l.b16 %v1787
      %v1798 = vunpack.c.l.b16 %v1788
      %v1799 = vunpack.c.l.b16 %v1789
      %v1800 = vunpack.c.l.b16 %v1790
      %v1801 = vpack.c.b16 %v1798, %v1797
      %v1802 = vpack.c.b16 %v1800, %v1799
      %v1804 = vsel %vm660, %v1801, 0
      %v1807 = vsel %vm660, %v1802, 0
      %1809 = vmatprep.subr.bf16.mxu0 0
      %1810 = vmatpush1.bf16.msra.mxu0 %v1791
      %1811 = vmatprep.subr.bf16.mxu0 0
      %1812 = vmatpush1.bf16.msra.mxu0 %v1792
      %1813 = vmatprep.subr.bf16.mxu0 0
      %1814 = vmatpush1.bf16.msra.mxu0 0
      %1815 = vmatprep.subr.bf16.mxu0 0
      %1816 = vmatpush1.bf16.msra.mxu0 0
      %1817 = vmatprep.subr.bf16.mxu0 0
      %1818 = vmatpush1.bf16.msra.mxu0 0
      %1819 = vmatprep.subr.bf16.mxu0 0
      %1820 = vmatpush1.bf16.msra.mxu0 0
      %1821 = vmatprep.subr.bf16.mxu0 0
      %1822 = vmatpush1.bf16.msra.mxu0 0
      %1823 = vmatprep.subr.bf16.mxu0 0
      %1824 = vmatpush1.bf16.msra.mxu0 0
      %1825 = vmatprep.subr.bf16.mxu0 0
      %1826 = vmatpush1.bf16.msra.mxu0 0
      %1827 = vmatprep.subr.bf16.mxu0 0
      %1828 = vmatpush1.bf16.msra.mxu0 0
      %1829 = vmatprep.subr.bf16.mxu0 0
      %1830 = vmatpush1.bf16.msra.mxu0 0
      %1831 = vmatprep.subr.bf16.mxu0 0
      %1832 = vmatpush1.bf16.msra.mxu0 0
      %1833 = vmatprep.subr.bf16.mxu0 0
      %1834 = vmatpush1.bf16.msra.mxu0 0
      %1835 = vmatprep.subr.bf16.mxu0 0
      %1836 = vmatpush1.bf16.msra.mxu0 0
      %1837 = vmatprep.subr.bf16.mxu0 0
      %1838 = vmatpush1.bf16.msra.mxu0 0
      %1839 = vmatprep.subr.bf16.mxu0 0
      %1840 = vmatpush1.bf16.msra.mxu0 0
      %1841 = vmatprep.mubr.bf16.mxu0 0
      %1842 = vmatmul.mubr.bf16.gmra.mrb[0].mxu0 %v1804
      %v1843 = vpop.f32.mrb[0].mxu0
      %v1844 = vadd.f32 0.0, %v1843
      %v1845 = vpop.f32.mrb[0].mxu0
      %v1846 = vpop.f32.mrb[0].mxu0
      %v1847 = vadd.f32 0.0, %v1846
      %v1848 = vpop.f32.mrb[0].mxu0
      %1849 = vmatprep.mubr.bf16.mxu0 0
      %1850 = vmatmul.mubr.bf16.gmra.mrb[0].mxu0 %v1807
      %v1851 = vpop.f32.mrb[0].mxu0
      %v1852 = vadd.f32 0.0, %v1851
      %v1853 = vpop.f32.mrb[0].mxu0
      %v1854 = vpop.f32.mrb[0].mxu0
      %v1855 = vadd.f32 0.0, %v1854
      %v1856 = vpop.f32.mrb[0].mxu0
      %1857 = vdwg.mxu0
      %v1858 = vadd.f32 %v1782, %v1844
      %v1859 = vadd.f32 %v1783, %v1847
      %v1860 = vadd.f32 %v1784, %v1852
      %v1861 = vadd.f32 %v1785, %v1855
      %1862 = vrot.lane.b32.xlu0 %v1433, 127
      %v1863 = vpop.permute.xlu0 %1862
      %1864 = vrot.lane.b32.xlu0 %v1434, 127
      %v1865 = vpop.permute.xlu0 %1864
      %1866 = vrot.lane.b32.xlu0 %v1435, 127
      %v1867 = vpop.permute.xlu0 %1866
      %1868 = vrot.lane.b32.xlu0 %v1436, 127
      %v1869 = vpop.permute.xlu0 %1868
      %v1870 = vmul.f32 %v1863, %v1052
      %v1871 = vmul.f32 %v1865, %v1052
      %v1872 = vmul.f32 %v1867, %v1052
      %v1873 = vmul.f32 %v1869, %v1052
      %s1874 = scalar_lea.vmem %s548, 224
      %v1875 = vld [vmem:[%s1874] sm:$0xf]
      %v1876 = vld [vmem:[%s1874 + $0x4] sm:$0xf]
      %v1877 = vld [vmem:[%s1874 + $0x8] sm:$0xf]
      %v1878 = vld [vmem:[%s1874 + $0xc] sm:$0xf]
      %v1879 = vpack.c.bf16 %v1871, %v1870
      %v1880 = vpack.c.bf16 %v1873, %v1872
      %v1885 = vunpack.c.l.b16 %v1875
      %v1886 = vunpack.c.l.b16 %v1876
      %v1887 = vunpack.c.l.b16 %v1877
      %v1888 = vunpack.c.l.b16 %v1878
      %v1889 = vpack.c.b16 %v1886, %v1885
      %v1890 = vpack.c.b16 %v1888, %v1887
      %v1892 = vsel %vm660, %v1889, 0
      %v1895 = vsel %vm660, %v1890, 0
      %1897 = vmatprep.subr.bf16.mxu0 0
      %1898 = vmatpush1.bf16.msra.mxu0 %v1879
      %1899 = vmatprep.subr.bf16.mxu0 0
      %1900 = vmatpush1.bf16.msra.mxu0 %v1880
      %1901 = vmatprep.subr.bf16.mxu0 0
      %1902 = vmatpush1.bf16.msra.mxu0 0
      %1903 = vmatprep.subr.bf16.mxu0 0
      %1904 = vmatpush1.bf16.msra.mxu0 0
      %1905 = vmatprep.subr.bf16.mxu0 0
      %1906 = vmatpush1.bf16.msra.mxu0 0
      %1907 = vmatprep.subr.bf16.mxu0 0
      %1908 = vmatpush1.bf16.msra.mxu0 0
      %1909 = vmatprep.subr.bf16.mxu0 0
      %1910 = vmatpush1.bf16.msra.mxu0 0
      %1911 = vmatprep.subr.bf16.mxu0 0
      %1912 = vmatpush1.bf16.msra.mxu0 0
      %1913 = vmatprep.subr.bf16.mxu0 0
      %1914 = vmatpush1.bf16.msra.mxu0 0
      %1915 = vmatprep.subr.bf16.mxu0 0
      %1916 = vmatpush1.bf16.msra.mxu0 0
      %1917 = vmatprep.subr.bf16.mxu0 0
      %1918 = vmatpush1.bf16.msra.mxu0 0
      %1919 = vmatprep.subr.bf16.mxu0 0
      %1920 = vmatpush1.bf16.msra.mxu0 0
      %1921 = vmatprep.subr.bf16.mxu0 0
      %1922 = vmatpush1.bf16.msra.mxu0 0
      %1923 = vmatprep.subr.bf16.mxu0 0
      %1924 = vmatpush1.bf16.msra.mxu0 0
      %1925 = vmatprep.subr.bf16.mxu0 0
      %1926 = vmatpush1.bf16.msra.mxu0 0
      %1927 = vmatprep.subr.bf16.mxu0 0
      %1928 = vmatpush1.bf16.msra.mxu0 0
      %1929 = vmatprep.mubr.bf16.mxu0 0
      %1930 = vmatmul.mubr.bf16.gmra.mrb[0].mxu0 %v1892
      %v1931 = vpop.f32.mrb[0].mxu0
      %v1932 = vadd.f32 0.0, %v1931
      %v1933 = vpop.f32.mrb[0].mxu0
      %v1934 = vpop.f32.mrb[0].mxu0
      %v1935 = vadd.f32 0.0, %v1934
      %v1936 = vpop.f32.mrb[0].mxu0
      %1937 = vmatprep.mubr.bf16.mxu0 0
      %1938 = vmatmul.mubr.bf16.gmra.mrb[0].mxu0 %v1895
      %v1939 = vpop.f32.mrb[0].mxu0
      %v1940 = vadd.f32 0.0, %v1939
      %v1941 = vpop.f32.mrb[0].mxu0
      %v1942 = vpop.f32.mrb[0].mxu0
      %v1943 = vadd.f32 0.0, %v1942
      %v1944 = vpop.f32.mrb[0].mxu0
      %1945 = vdwg.mxu0
      %v1946 = vadd.f32 %v1858, %v1932
      %v1947 = vadd.f32 %v1859, %v1935
      %v1948 = vadd.f32 %v1860, %v1940
      %v1949 = vadd.f32 %v1861, %v1943
      %1950 = vrot.lane.b32.xlu0 %v1433, 121
      %v1951 = vpop.permute.xlu0 %1950
      %1952 = vrot.lane.b32.xlu0 %v1434, 121
      %v1953 = vpop.permute.xlu0 %1952
      %1954 = vrot.lane.b32.xlu0 %v1435, 121
      %v1955 = vpop.permute.xlu0 %1954
      %1956 = vrot.lane.b32.xlu0 %v1436, 121
      %v1957 = vpop.permute.xlu0 %1956
      %v1958 = vmul.f32 %v1951, %v1144
      %v1959 = vmul.f32 %v1953, %v1144
      %v1960 = vmul.f32 %v1955, %v1144
      %v1961 = vmul.f32 %v1957, %v1144
      %s1962 = scalar_lea.vmem %s548, 240
      %v1963 = vld [vmem:[%s1962] sm:$0xf]
      %v1964 = vld [vmem:[%s1962 + $0x4] sm:$0xf]
      %v1965 = vld [vmem:[%s1962 + $0x8] sm:$0xf]
      %v1966 = vld [vmem:[%s1962 + $0xc] sm:$0xf]
      %v1967 = vpack.c.bf16 %v1959, %v1958
      %v1968 = vpack.c.bf16 %v1961, %v1960
      %v1973 = vunpack.c.l.b16 %v1963
      %v1974 = vunpack.c.l.b16 %v1964
      %v1975 = vunpack.c.l.b16 %v1965
      %v1976 = vunpack.c.l.b16 %v1966
      %v1977 = vpack.c.b16 %v1974, %v1973
      %v1978 = vpack.c.b16 %v1976, %v1975
      %v1980 = vsel %vm660, %v1977, 0
      %v1983 = vsel %vm660, %v1978, 0
      %1985 = vmatprep.subr.bf16.mxu0 0
      %1986 = vmatpush1.bf16.msra.mxu0 %v1967
      %1987 = vmatprep.subr.bf16.mxu0 0
      %1988 = vmatpush1.bf16.msra.mxu0 %v1968
      %1989 = vmatprep.subr.bf16.mxu0 0
      %1990 = vmatpush1.bf16.msra.mxu0 0
      %1991 = vmatprep.subr.bf16.mxu0 0
      %1992 = vmatpush1.bf16.msra.mxu0 0
      %1993 = vmatprep.subr.bf16.mxu0 0
      %1994 = vmatpush1.bf16.msra.mxu0 0
      %1995 = vmatprep.subr.bf16.mxu0 0
      %1996 = vmatpush1.bf16.msra.mxu0 0
      %1997 = vmatprep.subr.bf16.mxu0 0
      %1998 = vmatpush1.bf16.msra.mxu0 0
      %1999 = vmatprep.subr.bf16.mxu0 0
      %2000 = vmatpush1.bf16.msra.mxu0 0
      %2001 = vmatprep.subr.bf16.mxu0 0
      %2002 = vmatpush1.bf16.msra.mxu0 0
      %2003 = vmatprep.subr.bf16.mxu0 0
      %2004 = vmatpush1.bf16.msra.mxu0 0
      %2005 = vmatprep.subr.bf16.mxu0 0
      %2006 = vmatpush1.bf16.msra.mxu0 0
      %2007 = vmatprep.subr.bf16.mxu0 0
      %2008 = vmatpush1.bf16.msra.mxu0 0
      %2009 = vmatprep.subr.bf16.mxu0 0
      %2010 = vmatpush1.bf16.msra.mxu0 0
      %2011 = vmatprep.subr.bf16.mxu0 0
      %2012 = vmatpush1.bf16.msra.mxu0 0
      %2013 = vmatprep.subr.bf16.mxu0 0
      %2014 = vmatpush1.bf16.msra.mxu0 0
      %2015 = vmatprep.subr.bf16.mxu0 0
      %2016 = vmatpush1.bf16.msra.mxu0 0
      %2017 = vmatprep.mubr.bf16.mxu0 0
      %2018 = vmatmul.mubr.bf16.gmra.mrb[0].mxu0 %v1980
      %v2019 = vpop.f32.mrb[0].mxu0
      %v2020 = vadd.f32 0.0, %v2019
      %v2021 = vpop.f32.mrb[0].mxu0
      %v2022 = vpop.f32.mrb[0].mxu0
      %v2023 = vadd.f32 0.0, %v2022
      %v2024 = vpop.f32.mrb[0].mxu0
      %2025 = vmatprep.mubr.bf16.mxu0 0
      %2026 = vmatmul.mubr.bf16.gmra.mrb[0].mxu0 %v1983
      %v2027 = vpop.f32.mrb[0].mxu0
      %v2028 = vadd.f32 0.0, %v2027
      %v2029 = vpop.f32.mrb[0].mxu0
      %v2030 = vpop.f32.mrb[0].mxu0
      %v2031 = vadd.f32 0.0, %v2030
      %v2032 = vpop.f32.mrb[0].mxu0
      %2033 = vdwg.mxu0
      %v2034 = vadd.f32 %v1946, %v2020
      %v2035 = vadd.f32 %v1947, %v2023
      %v2036 = vadd.f32 %v1948, %v2028
      %v2037 = vadd.f32 %v1949, %v2031
      %2038 = vrot.lane.b32.xlu0 %v1433, 120
      %v2039 = vpop.permute.xlu0 %2038
      %2040 = vrot.lane.b32.xlu0 %v1434, 120
      %v2041 = vpop.permute.xlu0 %2040
      %2042 = vrot.lane.b32.xlu0 %v1435, 120
      %v2043 = vpop.permute.xlu0 %2042
      %2044 = vrot.lane.b32.xlu0 %v1436, 120
      %v2045 = vpop.permute.xlu0 %2044
      %v2046 = vmul.f32 %v2039, %v1236
      %v2047 = vmul.f32 %v2041, %v1236
      %v2048 = vmul.f32 %v2043, %v1236
      %v2049 = vmul.f32 %v2045, %v1236
      %s2050 = scalar_lea.vmem %s548, 256
      %v2051 = vld [vmem:[%s2050] sm:$0xf]
      %v2052 = vld [vmem:[%s2050 + $0x4] sm:$0xf]
      %v2053 = vld [vmem:[%s2050 + $0x8] sm:$0xf]
      %v2054 = vld [vmem:[%s2050 + $0xc] sm:$0xf]
      %v2055 = vpack.c.bf16 %v2047, %v2046
      %v2056 = vpack.c.bf16 %v2049, %v2048
      %v2061 = vunpack.c.l.b16 %v2051
      %v2062 = vunpack.c.l.b16 %v2052
      %v2063 = vunpack.c.l.b16 %v2053
      %v2064 = vunpack.c.l.b16 %v2054
      %v2065 = vpack.c.b16 %v2062, %v2061
      %v2066 = vpack.c.b16 %v2064, %v2063
      %v2068 = vsel %vm660, %v2065, 0
      %v2071 = vsel %vm660, %v2066, 0
      %2073 = vmatprep.subr.bf16.mxu0 0
      %2074 = vmatpush1.bf16.msra.mxu0 %v2055
      %2075 = vmatprep.subr.bf16.mxu0 0
      %2076 = vmatpush1.bf16.msra.mxu0 %v2056
      %2077 = vmatprep.subr.bf16.mxu0 0
      %2078 = vmatpush1.bf16.msra.mxu0 0
      %2079 = vmatprep.subr.bf16.mxu0 0
      %2080 = vmatpush1.bf16.msra.mxu0 0
      %2081 = vmatprep.subr.bf16.mxu0 0
      %2082 = vmatpush1.bf16.msra.mxu0 0
      %2083 = vmatprep.subr.bf16.mxu0 0
      %2084 = vmatpush1.bf16.msra.mxu0 0
      %2085 = vmatprep.subr.bf16.mxu0 0
      %2086 = vmatpush1.bf16.msra.mxu0 0
      %2087 = vmatprep.subr.bf16.mxu0 0
      %2088 = vmatpush1.bf16.msra.mxu0 0
      %2089 = vmatprep.subr.bf16.mxu0 0
      %2090 = vmatpush1.bf16.msra.mxu0 0
      %2091 = vmatprep.subr.bf16.mxu0 0
      %2092 = vmatpush1.bf16.msra.mxu0 0
      %2093 = vmatprep.subr.bf16.mxu0 0
      %2094 = vmatpush1.bf16.msra.mxu0 0
      %2095 = vmatprep.subr.bf16.mxu0 0
      %2096 = vmatpush1.bf16.msra.mxu0 0
      %2097 = vmatprep.subr.bf16.mxu0 0
      %2098 = vmatpush1.bf16.msra.mxu0 0
      %2099 = vmatprep.subr.bf16.mxu0 0
      %2100 = vmatpush1.bf16.msra.mxu0 0
      %2101 = vmatprep.subr.bf16.mxu0 0
      %2102 = vmatpush1.bf16.msra.mxu0 0
      %2103 = vmatprep.subr.bf16.mxu0 0
      %2104 = vmatpush1.bf16.msra.mxu0 0
      %2105 = vmatprep.mubr.bf16.mxu0 0
      %2106 = vmatmul.mubr.bf16.gmra.mrb[0].mxu0 %v2068
      %v2107 = vpop.f32.mrb[0].mxu0
      %v2108 = vadd.f32 0.0, %v2107
      %v2109 = vpop.f32.mrb[0].mxu0
      %v2110 = vpop.f32.mrb[0].mxu0
      %v2111 = vadd.f32 0.0, %v2110
      %v2112 = vpop.f32.mrb[0].mxu0
      %2113 = vmatprep.mubr.bf16.mxu0 0
      %2114 = vmatmul.mubr.bf16.gmra.mrb[0].mxu0 %v2071
      %v2115 = vpop.f32.mrb[0].mxu0
      %v2116 = vadd.f32 0.0, %v2115
      %v2117 = vpop.f32.mrb[0].mxu0
      %v2118 = vpop.f32.mrb[0].mxu0
      %v2119 = vadd.f32 0.0, %v2118
      %v2120 = vpop.f32.mrb[0].mxu0
      %2121 = vdwg.mxu0
      %v2122 = vadd.f32 %v2034, %v2108
      %v2123 = vadd.f32 %v2035, %v2111
      %v2124 = vadd.f32 %v2036, %v2116
      %v2125 = vadd.f32 %v2037, %v2119
      %2126 = vrot.lane.b32.xlu0 %v1433, 119
      %v2127 = vpop.permute.xlu0 %2126
      %2128 = vrot.lane.b32.xlu0 %v1434, 119
      %v2129 = vpop.permute.xlu0 %2128
      %2130 = vrot.lane.b32.xlu0 %v1435, 119
      %v2131 = vpop.permute.xlu0 %2130
      %2132 = vrot.lane.b32.xlu0 %v1436, 119
      %v2133 = vpop.permute.xlu0 %2132
      %v2134 = vmul.f32 %v2127, %v1328
      %v2135 = vmul.f32 %v2129, %v1328
      %v2136 = vmul.f32 %v2131, %v1328
      %v2137 = vmul.f32 %v2133, %v1328
      %s2138 = scalar_lea.vmem %s548, 272
      %v2139 = vld [vmem:[%s2138] sm:$0xf]
      %v2140 = vld [vmem:[%s2138 + $0x4] sm:$0xf]
      %v2141 = vld [vmem:[%s2138 + $0x8] sm:$0xf]
      %v2142 = vld [vmem:[%s2138 + $0xc] sm:$0xf]
      %v2143 = vpack.c.bf16 %v2135, %v2134
      %v2144 = vpack.c.bf16 %v2137, %v2136
      %v2149 = vunpack.c.l.b16 %v2139
      %v2150 = vunpack.c.l.b16 %v2140
      %v2151 = vunpack.c.l.b16 %v2141
      %v2152 = vunpack.c.l.b16 %v2142
      %v2153 = vpack.c.b16 %v2150, %v2149
      %v2154 = vpack.c.b16 %v2152, %v2151
      %v2156 = vsel %vm660, %v2153, 0
      %v2159 = vsel %vm660, %v2154, 0
      %2161 = vmatprep.subr.bf16.mxu0 0
      %2162 = vmatpush1.bf16.msra.mxu0 %v2143
      %2163 = vmatprep.subr.bf16.mxu0 0
      %2164 = vmatpush1.bf16.msra.mxu0 %v2144
      %2165 = vmatprep.subr.bf16.mxu0 0
      %2166 = vmatpush1.bf16.msra.mxu0 0
      %2167 = vmatprep.subr.bf16.mxu0 0
      %2168 = vmatpush1.bf16.msra.mxu0 0
      %2169 = vmatprep.subr.bf16.mxu0 0
      %2170 = vmatpush1.bf16.msra.mxu0 0
      %2171 = vmatprep.subr.bf16.mxu0 0
      %2172 = vmatpush1.bf16.msra.mxu0 0
      %2173 = vmatprep.subr.bf16.mxu0 0
      %2174 = vmatpush1.bf16.msra.mxu0 0
      %2175 = vmatprep.subr.bf16.mxu0 0
      %2176 = vmatpush1.bf16.msra.mxu0 0
      %2177 = vmatprep.subr.bf16.mxu0 0
      %2178 = vmatpush1.bf16.msra.mxu0 0
      %2179 = vmatprep.subr.bf16.mxu0 0
      %2180 = vmatpush1.bf16.msra.mxu0 0
      %2181 = vmatprep.subr.bf16.mxu0 0
      %2182 = vmatpush1.bf16.msra.mxu0 0
      %2183 = vmatprep.subr.bf16.mxu0 0
      %2184 = vmatpush1.bf16.msra.mxu0 0
      %2185 = vmatprep.subr.bf16.mxu0 0
      %2186 = vmatpush1.bf16.msra.mxu0 0
      %2187 = vmatprep.subr.bf16.mxu0 0
      %2188 = vmatpush1.bf16.msra.mxu0 0
      %2189 = vmatprep.subr.bf16.mxu0 0
      %2190 = vmatpush1.bf16.msra.mxu0 0
      %2191 = vmatprep.subr.bf16.mxu0 0
      %2192 = vmatpush1.bf16.msra.mxu0 0
      %2193 = vmatprep.mubr.bf16.mxu0 0
      %2194 = vmatmul.mubr.bf16.gmra.mrb[0].mxu0 %v2156
      %v2195 = vpop.f32.mrb[0].mxu0
      %v2196 = vadd.f32 0.0, %v2195
      %v2197 = vpop.f32.mrb[0].mxu0
      %v2198 = vpop.f32.mrb[0].mxu0
      %v2199 = vadd.f32 0.0, %v2198
      %v2200 = vpop.f32.mrb[0].mxu0
      %2201 = vmatprep.mubr.bf16.mxu0 0
      %2202 = vmatmul.mubr.bf16.gmra.mrb[0].mxu0 %v2159
      %v2203 = vpop.f32.mrb[0].mxu0
      %v2204 = vadd.f32 0.0, %v2203
      %v2205 = vpop.f32.mrb[0].mxu0
      %v2206 = vpop.f32.mrb[0].mxu0
      %v2207 = vadd.f32 0.0, %v2206
      %v2208 = vpop.f32.mrb[0].mxu0
      %2209 = vdwg.mxu0
      %v2210 = vadd.f32 %v2122, %v2196
      %v2211 = vadd.f32 %v2123, %v2199
      %v2212 = vadd.f32 %v2124, %v2204
      %v2213 = vadd.f32 %v2125, %v2207
      %2215 = vset.pattern.permute.xlu0 0
      %2216 = vperm.xlu0 %2215, %v1438
      %v2217 = vpop.permute.xlu0 %2216
      %2220 = vset.pattern.permute.xlu0 0
      %2221 = vperm.xlu0 %2220, %v1439
      %v2222 = vpop.permute.xlu0 %2221
      %2225 = vset.pattern.permute.xlu0 0
      %2226 = vperm.xlu0 %2225, %v1440
      %v2227 = vpop.permute.xlu0 %2226
      %2230 = vset.pattern.permute.xlu0 0
      %2231 = vperm.xlu0 %2230, %v1441
      %v2232 = vpop.permute.xlu0 %2231
      %v2234 = vadd.f32 %v2210, %v2217
      %v2235 = vadd.f32 %v2211, %v2222
      %v2236 = vadd.f32 %v2212, %v2227
      %v2237 = vadd.f32 %v2213, %v2232
      %v2238 = vmax.f32 %v2234, 0.0
      %v2239 = vmax.f32 %v2235, 0.0
      %v2240 = vmax.f32 %v2236, 0.0
      %v2241 = vmax.f32 %v2237, 0.0
      %s2242 = scalar_lea.vmem %s553, 64
      %v2243 = vld [vmem:[%s2242] sm:$0xff]
      %v2244 = vld [vmem:[%s2242 + $0x8] sm:$0xff]
      %v2245 = vld [vmem:[%s2242 + $0x10] sm:$0xff]
      %v2246 = vld [vmem:[%s2242 + $0x18] sm:$0xff]
      %2247 = vrot.lane.b32.xlu0 %v2238, 9
      %v2248 = vpop.permute.xlu0 %2247
      %2249 = vrot.lane.b32.xlu0 %v2239, 9
      %v2250 = vpop.permute.xlu0 %2249
      %2251 = vrot.lane.b32.xlu0 %v2240, 9
      %v2252 = vpop.permute.xlu0 %2251
      %2253 = vrot.lane.b32.xlu0 %v2241, 9
      %v2254 = vpop.permute.xlu0 %2253
      %v2255 = vmul.f32 %v2248, %v616
      %v2256 = vmul.f32 %v2250, %v616
      %v2257 = vmul.f32 %v2252, %v616
      %v2258 = vmul.f32 %v2254, %v616
      %s2259 = scalar_lea.vmem %s548, 288
      %v2260 = vld [vmem:[%s2259] sm:$0xf]
      %v2261 = vld [vmem:[%s2259 + $0x4] sm:$0xf]
      %v2262 = vld [vmem:[%s2259 + $0x8] sm:$0xf]
      %v2263 = vld [vmem:[%s2259 + $0xc] sm:$0xf]
      %v2264 = vpack.c.bf16 %v2256, %v2255
      %v2265 = vpack.c.bf16 %v2258, %v2257
      %2266 = vrot.lane.b32.xlu0 %v2238, 8
      %v2267 = vpop.permute.xlu0 %2266
      %2268 = vrot.lane.b32.xlu0 %v2239, 8
      %v2269 = vpop.permute.xlu0 %2268
      %2270 = vrot.lane.b32.xlu0 %v2240, 8
      %v2271 = vpop.permute.xlu0 %2270
      %2272 = vrot.lane.b32.xlu0 %v2241, 8
      %v2273 = vpop.permute.xlu0 %2272
      %v2274 = vmul.f32 %v2267, %v638
      %v2275 = vmul.f32 %v2269, %v638
      %v2276 = vmul.f32 %v2271, %v638
      %v2277 = vmul.f32 %v2273, %v638
      %s2278 = scalar_lea.vmem %s548, 304
      %v2279 = vld [vmem:[%s2278] sm:$0xf]
      %v2280 = vld [vmem:[%s2278 + $0x4] sm:$0xf]
      %v2281 = vld [vmem:[%s2278 + $0x8] sm:$0xf]
      %v2282 = vld [vmem:[%s2278 + $0xc] sm:$0xf]
      %v2283 = vpack.c.bf16 %v2275, %v2274
      %v2284 = vpack.c.bf16 %v2277, %v2276
      %v2289 = vunpack.c.l.b16 %v2279
      %v2290 = vunpack.c.l.b16 %v2280
      %v2291 = vunpack.c.l.b16 %v2281
      %v2292 = vunpack.c.l.b16 %v2282
      %v2293 = vpack.c.b16 %v2290, %v2289
      %v2294 = vpack.c.b16 %v2292, %v2291
      %v2296 = vsel %vm660, %v2293, 0
      %v2299 = vsel %vm660, %v2294, 0
      %2301 = vmatprep.subr.bf16.mxu0 0
      %2302 = vmatpush1.bf16.msra.mxu0 %v2283
      %2303 = vmatprep.subr.bf16.mxu0 0
      %2304 = vmatpush1.bf16.msra.mxu0 %v2284
      %2305 = vmatprep.subr.bf16.mxu0 0
      %2306 = vmatpush1.bf16.msra.mxu0 0
      %2307 = vmatprep.subr.bf16.mxu0 0
      %2308 = vmatpush1.bf16.msra.mxu0 0
      %2309 = vmatprep.subr.bf16.mxu0 0
      %2310 = vmatpush1.bf16.msra.mxu0 0
      %2311 = vmatprep.subr.bf16.mxu0 0
      %2312 = vmatpush1.bf16.msra.mxu0 0
      %2313 = vmatprep.subr.bf16.mxu0 0
      %2314 = vmatpush1.bf16.msra.mxu0 0
      %2315 = vmatprep.subr.bf16.mxu0 0
      %2316 = vmatpush1.bf16.msra.mxu0 0
      %2317 = vmatprep.subr.bf16.mxu0 0
      %2318 = vmatpush1.bf16.msra.mxu0 0
      %2319 = vmatprep.subr.bf16.mxu0 0
      %2320 = vmatpush1.bf16.msra.mxu0 0
      %2321 = vmatprep.subr.bf16.mxu0 0
      %2322 = vmatpush1.bf16.msra.mxu0 0
      %2323 = vmatprep.subr.bf16.mxu0 0
      %2324 = vmatpush1.bf16.msra.mxu0 0
      %2325 = vmatprep.subr.bf16.mxu0 0
      %2326 = vmatpush1.bf16.msra.mxu0 0
      %2327 = vmatprep.subr.bf16.mxu0 0
      %2328 = vmatpush1.bf16.msra.mxu0 0
      %2329 = vmatprep.subr.bf16.mxu0 0
      %2330 = vmatpush1.bf16.msra.mxu0 0
      %2331 = vmatprep.subr.bf16.mxu0 0
      %2332 = vmatpush1.bf16.msra.mxu0 0
      %2333 = vmatprep.mubr.bf16.mxu0 0
      %2334 = vmatmul.mubr.bf16.gmra.mrb[0].mxu0 %v2296
      %v2335 = vpop.f32.mrb[0].mxu0
      %v2336 = vadd.f32 0.0, %v2335
      %v2337 = vpop.f32.mrb[0].mxu0
      %v2338 = vpop.f32.mrb[0].mxu0
      %v2339 = vadd.f32 0.0, %v2338
      %v2340 = vpop.f32.mrb[0].mxu0
      %2341 = vmatprep.mubr.bf16.mxu0 0
      %2342 = vmatmul.mubr.bf16.gmra.mrb[0].mxu0 %v2299
      %v2343 = vpop.f32.mrb[0].mxu0
      %v2344 = vadd.f32 0.0, %v2343
      %v2345 = vpop.f32.mrb[0].mxu0
      %v2346 = vpop.f32.mrb[0].mxu0
      %v2347 = vadd.f32 0.0, %v2346
      %v2348 = vpop.f32.mrb[0].mxu0
      %2349 = vdwg.mxu0
      %v2354 = vunpack.c.l.b16 %v2260
      %v2355 = vunpack.c.l.b16 %v2261
      %v2356 = vunpack.c.l.b16 %v2262
      %v2357 = vunpack.c.l.b16 %v2263
      %v2358 = vpack.c.b16 %v2355, %v2354
      %v2359 = vpack.c.b16 %v2357, %v2356
      %v2361 = vsel %vm660, %v2358, 0
      %v2364 = vsel %vm660, %v2359, 0
      %2366 = vmatprep.subr.bf16.mxu0 0
      %2367 = vmatpush1.bf16.msra.mxu0 %v2264
      %2368 = vmatprep.subr.bf16.mxu0 0
      %2369 = vmatpush1.bf16.msra.mxu0 %v2265
      %2370 = vmatprep.subr.bf16.mxu0 0
      %2371 = vmatpush1.bf16.msra.mxu0 0
      %2372 = vmatprep.subr.bf16.mxu0 0
      %2373 = vmatpush1.bf16.msra.mxu0 0
      %2374 = vmatprep.subr.bf16.mxu0 0
      %2375 = vmatpush1.bf16.msra.mxu0 0
      %2376 = vmatprep.subr.bf16.mxu0 0
      %2377 = vmatpush1.bf16.msra.mxu0 0
      %2378 = vmatprep.subr.bf16.mxu0 0
      %2379 = vmatpush1.bf16.msra.mxu0 0
      %2380 = vmatprep.subr.bf16.mxu0 0
      %2381 = vmatpush1.bf16.msra.mxu0 0
      %2382 = vmatprep.subr.bf16.mxu0 0
      %2383 = vmatpush1.bf16.msra.mxu0 0
      %2384 = vmatprep.subr.bf16.mxu0 0
      %2385 = vmatpush1.bf16.msra.mxu0 0
      %2386 = vmatprep.subr.bf16.mxu0 0
      %2387 = vmatpush1.bf16.msra.mxu0 0
      %2388 = vmatprep.subr.bf16.mxu0 0
      %2389 = vmatpush1.bf16.msra.mxu0 0
      %2390 = vmatprep.subr.bf16.mxu0 0
      %2391 = vmatpush1.bf16.msra.mxu0 0
      %2392 = vmatprep.subr.bf16.mxu0 0
      %2393 = vmatpush1.bf16.msra.mxu0 0
      %2394 = vmatprep.subr.bf16.mxu0 0
      %2395 = vmatpush1.bf16.msra.mxu0 0
      %2396 = vmatprep.subr.bf16.mxu0 0
      %2397 = vmatpush1.bf16.msra.mxu0 0
      %2398 = vmatprep.mubr.bf16.mxu0 0
      %2399 = vmatmul.mubr.bf16.gmra.mrb[0].mxu0 %v2361
      %v2400 = vpop.f32.mrb[0].mxu0
      %v2401 = vadd.f32 %v2336, %v2400
      %v2402 = vpop.f32.mrb[0].mxu0
      %v2403 = vpop.f32.mrb[0].mxu0
      %v2404 = vadd.f32 %v2339, %v2403
      %v2405 = vpop.f32.mrb[0].mxu0
      %2406 = vmatprep.mubr.bf16.mxu0 0
      %2407 = vmatmul.mubr.bf16.gmra.mrb[0].mxu0 %v2364
      %v2408 = vpop.f32.mrb[0].mxu0
      %v2409 = vadd.f32 %v2344, %v2408
      %v2410 = vpop.f32.mrb[0].mxu0
      %v2411 = vpop.f32.mrb[0].mxu0
      %v2412 = vadd.f32 %v2347, %v2411
      %v2413 = vpop.f32.mrb[0].mxu0
      %2414 = vdwg.mxu0
      %2415 = vrot.lane.b32.xlu0 %v2238, 7
      %v2416 = vpop.permute.xlu0 %2415
      %2417 = vrot.lane.b32.xlu0 %v2239, 7
      %v2418 = vpop.permute.xlu0 %2417
      %2419 = vrot.lane.b32.xlu0 %v2240, 7
      %v2420 = vpop.permute.xlu0 %2419
      %2421 = vrot.lane.b32.xlu0 %v2241, 7
      %v2422 = vpop.permute.xlu0 %2421
      %v2423 = vmul.f32 %v2416, %v792
      %v2424 = vmul.f32 %v2418, %v792
      %v2425 = vmul.f32 %v2420, %v792
      %v2426 = vmul.f32 %v2422, %v792
      %s2427 = scalar_lea.vmem %s548, 320
      %v2428 = vld [vmem:[%s2427] sm:$0xf]
      %v2429 = vld [vmem:[%s2427 + $0x4] sm:$0xf]
      %v2430 = vld [vmem:[%s2427 + $0x8] sm:$0xf]
      %v2431 = vld [vmem:[%s2427 + $0xc] sm:$0xf]
      %v2432 = vpack.c.bf16 %v2424, %v2423
      %v2433 = vpack.c.bf16 %v2426, %v2425
      %v2438 = vunpack.c.l.b16 %v2428
      %v2439 = vunpack.c.l.b16 %v2429
      %v2440 = vunpack.c.l.b16 %v2430
      %v2441 = vunpack.c.l.b16 %v2431
      %v2442 = vpack.c.b16 %v2439, %v2438
      %v2443 = vpack.c.b16 %v2441, %v2440
      %v2445 = vsel %vm660, %v2442, 0
      %v2448 = vsel %vm660, %v2443, 0
      %2450 = vmatprep.subr.bf16.mxu0 0
      %2451 = vmatpush1.bf16.msra.mxu0 %v2432
      %2452 = vmatprep.subr.bf16.mxu0 0
      %2453 = vmatpush1.bf16.msra.mxu0 %v2433
      %2454 = vmatprep.subr.bf16.mxu0 0
      %2455 = vmatpush1.bf16.msra.mxu0 0
      %2456 = vmatprep.subr.bf16.mxu0 0
      %2457 = vmatpush1.bf16.msra.mxu0 0
      %2458 = vmatprep.subr.bf16.mxu0 0
      %2459 = vmatpush1.bf16.msra.mxu0 0
      %2460 = vmatprep.subr.bf16.mxu0 0
      %2461 = vmatpush1.bf16.msra.mxu0 0
      %2462 = vmatprep.subr.bf16.mxu0 0
      %2463 = vmatpush1.bf16.msra.mxu0 0
      %2464 = vmatprep.subr.bf16.mxu0 0
      %2465 = vmatpush1.bf16.msra.mxu0 0
      %2466 = vmatprep.subr.bf16.mxu0 0
      %2467 = vmatpush1.bf16.msra.mxu0 0
      %2468 = vmatprep.subr.bf16.mxu0 0
      %2469 = vmatpush1.bf16.msra.mxu0 0
      %2470 = vmatprep.subr.bf16.mxu0 0
      %2471 = vmatpush1.bf16.msra.mxu0 0
      %2472 = vmatprep.subr.bf16.mxu0 0
      %2473 = vmatpush1.bf16.msra.mxu0 0
      %2474 = vmatprep.subr.bf16.mxu0 0
      %2475 = vmatpush1.bf16.msra.mxu0 0
      %2476 = vmatprep.subr.bf16.mxu0 0
      %2477 = vmatpush1.bf16.msra.mxu0 0
      %2478 = vmatprep.subr.bf16.mxu0 0
      %2479 = vmatpush1.bf16.msra.mxu0 0
      %2480 = vmatprep.subr.bf16.mxu0 0
      %2481 = vmatpush1.bf16.msra.mxu0 0
      %2482 = vmatprep.mubr.bf16.mxu0 0
      %2483 = vmatmul.mubr.bf16.gmra.mrb[0].mxu0 %v2445
      %v2484 = vpop.f32.mrb[0].mxu0
      %v2485 = vadd.f32 0.0, %v2484
      %v2486 = vpop.f32.mrb[0].mxu0
      %v2487 = vpop.f32.mrb[0].mxu0
      %v2488 = vadd.f32 0.0, %v2487
      %v2489 = vpop.f32.mrb[0].mxu0
      %2490 = vmatprep.mubr.bf16.mxu0 0
      %2491 = vmatmul.mubr.bf16.gmra.mrb[0].mxu0 %v2448
      %v2492 = vpop.f32.mrb[0].mxu0
      %v2493 = vadd.f32 0.0, %v2492
      %v2494 = vpop.f32.mrb[0].mxu0
      %v2495 = vpop.f32.mrb[0].mxu0
      %v2496 = vadd.f32 0.0, %v2495
      %v2497 = vpop.f32.mrb[0].mxu0
      %2498 = vdwg.mxu0
      %v2499 = vadd.f32 %v2401, %v2485
      %v2500 = vadd.f32 %v2404, %v2488
      %v2501 = vadd.f32 %v2409, %v2493
      %v2502 = vadd.f32 %v2412, %v2496
      %2503 = vrot.lane.b32.xlu0 %v2238, 1
      %v2504 = vpop.permute.xlu0 %2503
      %2505 = vrot.lane.b32.xlu0 %v2239, 1
      %v2506 = vpop.permute.xlu0 %2505
      %2507 = vrot.lane.b32.xlu0 %v2240, 1
      %v2508 = vpop.permute.xlu0 %2507
      %2509 = vrot.lane.b32.xlu0 %v2241, 1
      %v2510 = vpop.permute.xlu0 %2509
      %v2511 = vmul.f32 %v2504, %v884
      %v2512 = vmul.f32 %v2506, %v884
      %v2513 = vmul.f32 %v2508, %v884
      %v2514 = vmul.f32 %v2510, %v884
      %s2515 = scalar_lea.vmem %s548, 336
      %v2516 = vld [vmem:[%s2515] sm:$0xf]
      %v2517 = vld [vmem:[%s2515 + $0x4] sm:$0xf]
      %v2518 = vld [vmem:[%s2515 + $0x8] sm:$0xf]
      %v2519 = vld [vmem:[%s2515 + $0xc] sm:$0xf]
      %v2520 = vpack.c.bf16 %v2512, %v2511
      %v2521 = vpack.c.bf16 %v2514, %v2513
      %v2526 = vunpack.c.l.b16 %v2516
      %v2527 = vunpack.c.l.b16 %v2517
      %v2528 = vunpack.c.l.b16 %v2518
      %v2529 = vunpack.c.l.b16 %v2519
      %v2530 = vpack.c.b16 %v2527, %v2526
      %v2531 = vpack.c.b16 %v2529, %v2528
      %v2533 = vsel %vm660, %v2530, 0
      %v2536 = vsel %vm660, %v2531, 0
      %2538 = vmatprep.subr.bf16.mxu0 0
      %2539 = vmatpush1.bf16.msra.mxu0 %v2520
      %2540 = vmatprep.subr.bf16.mxu0 0
      %2541 = vmatpush1.bf16.msra.mxu0 %v2521
      %2542 = vmatprep.subr.bf16.mxu0 0
      %2543 = vmatpush1.bf16.msra.mxu0 0
      %2544 = vmatprep.subr.bf16.mxu0 0
      %2545 = vmatpush1.bf16.msra.mxu0 0
      %2546 = vmatprep.subr.bf16.mxu0 0
      %2547 = vmatpush1.bf16.msra.mxu0 0
      %2548 = vmatprep.subr.bf16.mxu0 0
      %2549 = vmatpush1.bf16.msra.mxu0 0
      %2550 = vmatprep.subr.bf16.mxu0 0
      %2551 = vmatpush1.bf16.msra.mxu0 0
      %2552 = vmatprep.subr.bf16.mxu0 0
      %2553 = vmatpush1.bf16.msra.mxu0 0
      %2554 = vmatprep.subr.bf16.mxu0 0
      %2555 = vmatpush1.bf16.msra.mxu0 0
      %2556 = vmatprep.subr.bf16.mxu0 0
      %2557 = vmatpush1.bf16.msra.mxu0 0
      %2558 = vmatprep.subr.bf16.mxu0 0
      %2559 = vmatpush1.bf16.msra.mxu0 0
      %2560 = vmatprep.subr.bf16.mxu0 0
      %2561 = vmatpush1.bf16.msra.mxu0 0
      %2562 = vmatprep.subr.bf16.mxu0 0
      %2563 = vmatpush1.bf16.msra.mxu0 0
      %2564 = vmatprep.subr.bf16.mxu0 0
      %2565 = vmatpush1.bf16.msra.mxu0 0
      %2566 = vmatprep.subr.bf16.mxu0 0
      %2567 = vmatpush1.bf16.msra.mxu0 0
      %2568 = vmatprep.subr.bf16.mxu0 0
      %2569 = vmatpush1.bf16.msra.mxu0 0
      %2570 = vmatprep.mubr.bf16.mxu0 0
      %2571 = vmatmul.mubr.bf16.gmra.mrb[0].mxu0 %v2533
      %v2572 = vpop.f32.mrb[0].mxu0
      %v2573 = vadd.f32 0.0, %v2572
      %v2574 = vpop.f32.mrb[0].mxu0
      %v2575 = vpop.f32.mrb[0].mxu0
      %v2576 = vadd.f32 0.0, %v2575
      %v2577 = vpop.f32.mrb[0].mxu0
      %2578 = vmatprep.mubr.bf16.mxu0 0
      %2579 = vmatmul.mubr.bf16.gmra.mrb[0].mxu0 %v2536
      %v2580 = vpop.f32.mrb[0].mxu0
      %v2581 = vadd.f32 0.0, %v2580
      %v2582 = vpop.f32.mrb[0].mxu0
      %v2583 = vpop.f32.mrb[0].mxu0
      %v2584 = vadd.f32 0.0, %v2583
      %v2585 = vpop.f32.mrb[0].mxu0
      %2586 = vdwg.mxu0
      %v2587 = vadd.f32 %v2499, %v2573
      %v2588 = vadd.f32 %v2500, %v2576
      %v2589 = vadd.f32 %v2501, %v2581
      %v2590 = vadd.f32 %v2502, %v2584
      %s2591 = scalar_lea.vmem %s548, 352
      %v2592 = vld [vmem:[%s2591] sm:$0xf]
      %v2593 = vld [vmem:[%s2591 + $0x4] sm:$0xf]
      %v2594 = vld [vmem:[%s2591 + $0x8] sm:$0xf]
      %v2595 = vld [vmem:[%s2591 + $0xc] sm:$0xf]
      %v2596 = vpack.c.bf16 %v2239, %v2238
      %v2597 = vpack.c.bf16 %v2241, %v2240
      %v2602 = vunpack.c.l.b16 %v2592
      %v2603 = vunpack.c.l.b16 %v2593
      %v2604 = vunpack.c.l.b16 %v2594
      %v2605 = vunpack.c.l.b16 %v2595
      %v2606 = vpack.c.b16 %v2603, %v2602
      %v2607 = vpack.c.b16 %v2605, %v2604
      %v2609 = vsel %vm660, %v2606, 0
      %v2612 = vsel %vm660, %v2607, 0
      %2614 = vmatprep.subr.bf16.mxu0 0
      %2615 = vmatpush1.bf16.msra.mxu0 %v2596
      %2616 = vmatprep.subr.bf16.mxu0 0
      %2617 = vmatpush1.bf16.msra.mxu0 %v2597
      %2618 = vmatprep.subr.bf16.mxu0 0
      %2619 = vmatpush1.bf16.msra.mxu0 0
      %2620 = vmatprep.subr.bf16.mxu0 0
      %2621 = vmatpush1.bf16.msra.mxu0 0
      %2622 = vmatprep.subr.bf16.mxu0 0
      %2623 = vmatpush1.bf16.msra.mxu0 0
      %2624 = vmatprep.subr.bf16.mxu0 0
      %2625 = vmatpush1.bf16.msra.mxu0 0
      %2626 = vmatprep.subr.bf16.mxu0 0
      %2627 = vmatpush1.bf16.msra.mxu0 0
      %2628 = vmatprep.subr.bf16.mxu0 0
      %2629 = vmatpush1.bf16.msra.mxu0 0
      %2630 = vmatprep.subr.bf16.mxu0 0
      %2631 = vmatpush1.bf16.msra.mxu0 0
      %2632 = vmatprep.subr.bf16.mxu0 0
      %2633 = vmatpush1.bf16.msra.mxu0 0
      %2634 = vmatprep.subr.bf16.mxu0 0
      %2635 = vmatpush1.bf16.msra.mxu0 0
      %2636 = vmatprep.subr.bf16.mxu0 0
      %2637 = vmatpush1.bf16.msra.mxu0 0
      %2638 = vmatprep.subr.bf16.mxu0 0
      %2639 = vmatpush1.bf16.msra.mxu0 0
      %2640 = vmatprep.subr.bf16.mxu0 0
      %2641 = vmatpush1.bf16.msra.mxu0 0
      %2642 = vmatprep.subr.bf16.mxu0 0
      %2643 = vmatpush1.bf16.msra.mxu0 0
      %2644 = vmatprep.subr.bf16.mxu0 0
      %2645 = vmatpush1.bf16.msra.mxu0 0
      %2646 = vmatprep.mubr.bf16.mxu0 0
      %2647 = vmatmul.mubr.bf16.gmra.mrb[0].mxu0 %v2609
      %v2648 = vpop.f32.mrb[0].mxu0
      %v2649 = vadd.f32 0.0, %v2648
      %v2650 = vpop.f32.mrb[0].mxu0
      %v2651 = vpop.f32.mrb[0].mxu0
      %v2652 = vadd.f32 0.0, %v2651
      %v2653 = vpop.f32.mrb[0].mxu0
      %2654 = vmatprep.mubr.bf16.mxu0 0
      %2655 = vmatmul.mubr.bf16.gmra.mrb[0].mxu0 %v2612
      %v2656 = vpop.f32.mrb[0].mxu0
      %v2657 = vadd.f32 0.0, %v2656
      %v2658 = vpop.f32.mrb[0].mxu0
      %v2659 = vpop.f32.mrb[0].mxu0
      %v2660 = vadd.f32 0.0, %v2659
      %v2661 = vpop.f32.mrb[0].mxu0
      %2662 = vdwg.mxu0
      %v2663 = vadd.f32 %v2587, %v2649
      %v2664 = vadd.f32 %v2588, %v2652
      %v2665 = vadd.f32 %v2589, %v2657
      %v2666 = vadd.f32 %v2590, %v2660
      %2667 = vrot.lane.b32.xlu0 %v2238, 127
      %v2668 = vpop.permute.xlu0 %2667
      %2669 = vrot.lane.b32.xlu0 %v2239, 127
      %v2670 = vpop.permute.xlu0 %2669
      %2671 = vrot.lane.b32.xlu0 %v2240, 127
      %v2672 = vpop.permute.xlu0 %2671
      %2673 = vrot.lane.b32.xlu0 %v2241, 127
      %v2674 = vpop.permute.xlu0 %2673
      %v2675 = vmul.f32 %v2668, %v1052
      %v2676 = vmul.f32 %v2670, %v1052
      %v2677 = vmul.f32 %v2672, %v1052
      %v2678 = vmul.f32 %v2674, %v1052
      %s2679 = scalar_lea.vmem %s548, 368
      %v2680 = vld [vmem:[%s2679] sm:$0xf]
      %v2681 = vld [vmem:[%s2679 + $0x4] sm:$0xf]
      %v2682 = vld [vmem:[%s2679 + $0x8] sm:$0xf]
      %v2683 = vld [vmem:[%s2679 + $0xc] sm:$0xf]
      %v2684 = vpack.c.bf16 %v2676, %v2675
      %v2685 = vpack.c.bf16 %v2678, %v2677
      %v2690 = vunpack.c.l.b16 %v2680
      %v2691 = vunpack.c.l.b16 %v2681
      %v2692 = vunpack.c.l.b16 %v2682
      %v2693 = vunpack.c.l.b16 %v2683
      %v2694 = vpack.c.b16 %v2691, %v2690
      %v2695 = vpack.c.b16 %v2693, %v2692
      %v2697 = vsel %vm660, %v2694, 0
      %v2700 = vsel %vm660, %v2695, 0
      %2702 = vmatprep.subr.bf16.mxu0 0
      %2703 = vmatpush1.bf16.msra.mxu0 %v2684
      %2704 = vmatprep.subr.bf16.mxu0 0
      %2705 = vmatpush1.bf16.msra.mxu0 %v2685
      %2706 = vmatprep.subr.bf16.mxu0 0
      %2707 = vmatpush1.bf16.msra.mxu0 0
      %2708 = vmatprep.subr.bf16.mxu0 0
      %2709 = vmatpush1.bf16.msra.mxu0 0
      %2710 = vmatprep.subr.bf16.mxu0 0
      %2711 = vmatpush1.bf16.msra.mxu0 0
      %2712 = vmatprep.subr.bf16.mxu0 0
      %2713 = vmatpush1.bf16.msra.mxu0 0
      %2714 = vmatprep.subr.bf16.mxu0 0
      %2715 = vmatpush1.bf16.msra.mxu0 0
      %2716 = vmatprep.subr.bf16.mxu0 0
      %2717 = vmatpush1.bf16.msra.mxu0 0
      %2718 = vmatprep.subr.bf16.mxu0 0
      %2719 = vmatpush1.bf16.msra.mxu0 0
      %2720 = vmatprep.subr.bf16.mxu0 0
      %2721 = vmatpush1.bf16.msra.mxu0 0
      %2722 = vmatprep.subr.bf16.mxu0 0
      %2723 = vmatpush1.bf16.msra.mxu0 0
      %2724 = vmatprep.subr.bf16.mxu0 0
      %2725 = vmatpush1.bf16.msra.mxu0 0
      %2726 = vmatprep.subr.bf16.mxu0 0
      %2727 = vmatpush1.bf16.msra.mxu0 0
      %2728 = vmatprep.subr.bf16.mxu0 0
      %2729 = vmatpush1.bf16.msra.mxu0 0
      %2730 = vmatprep.subr.bf16.mxu0 0
      %2731 = vmatpush1.bf16.msra.mxu0 0
      %2732 = vmatprep.subr.bf16.mxu0 0
      %2733 = vmatpush1.bf16.msra.mxu0 0
      %2734 = vmatprep.mubr.bf16.mxu0 0
      %2735 = vmatmul.mubr.bf16.gmra.mrb[0].mxu0 %v2697
      %v2736 = vpop.f32.mrb[0].mxu0
      %v2737 = vadd.f32 0.0, %v2736
      %v2738 = vpop.f32.mrb[0].mxu0
      %v2739 = vpop.f32.mrb[0].mxu0
      %v2740 = vadd.f32 0.0, %v2739
      %v2741 = vpop.f32.mrb[0].mxu0
      %2742 = vmatprep.mubr.bf16.mxu0 0
      %2743 = vmatmul.mubr.bf16.gmra.mrb[0].mxu0 %v2700
      %v2744 = vpop.f32.mrb[0].mxu0
      %v2745 = vadd.f32 0.0, %v2744
      %v2746 = vpop.f32.mrb[0].mxu0
      %v2747 = vpop.f32.mrb[0].mxu0
      %v2748 = vadd.f32 0.0, %v2747
      %v2749 = vpop.f32.mrb[0].mxu0
      %2750 = vdwg.mxu0
      %v2751 = vadd.f32 %v2663, %v2737
      %v2752 = vadd.f32 %v2664, %v2740
      %v2753 = vadd.f32 %v2665, %v2745
      %v2754 = vadd.f32 %v2666, %v2748
      %2755 = vrot.lane.b32.xlu0 %v2238, 121
      %v2756 = vpop.permute.xlu0 %2755
      %2757 = vrot.lane.b32.xlu0 %v2239, 121
      %v2758 = vpop.permute.xlu0 %2757
      %2759 = vrot.lane.b32.xlu0 %v2240, 121
      %v2760 = vpop.permute.xlu0 %2759
      %2761 = vrot.lane.b32.xlu0 %v2241, 121
      %v2762 = vpop.permute.xlu0 %2761
      %v2763 = vmul.f32 %v2756, %v1144
      %v2764 = vmul.f32 %v2758, %v1144
      %v2765 = vmul.f32 %v2760, %v1144
      %v2766 = vmul.f32 %v2762, %v1144
      %s2767 = scalar_lea.vmem %s548, 384
      %v2768 = vld [vmem:[%s2767] sm:$0xf]
      %v2769 = vld [vmem:[%s2767 + $0x4] sm:$0xf]
      %v2770 = vld [vmem:[%s2767 + $0x8] sm:$0xf]
      %v2771 = vld [vmem:[%s2767 + $0xc] sm:$0xf]
      %v2772 = vpack.c.bf16 %v2764, %v2763
      %v2773 = vpack.c.bf16 %v2766, %v2765
      %v2778 = vunpack.c.l.b16 %v2768
      %v2779 = vunpack.c.l.b16 %v2769
      %v2780 = vunpack.c.l.b16 %v2770
      %v2781 = vunpack.c.l.b16 %v2771
      %v2782 = vpack.c.b16 %v2779, %v2778
      %v2783 = vpack.c.b16 %v2781, %v2780
      %v2785 = vsel %vm660, %v2782, 0
      %v2788 = vsel %vm660, %v2783, 0
      %2790 = vmatprep.subr.bf16.mxu0 0
      %2791 = vmatpush1.bf16.msra.mxu0 %v2772
      %2792 = vmatprep.subr.bf16.mxu0 0
      %2793 = vmatpush1.bf16.msra.mxu0 %v2773
      %2794 = vmatprep.subr.bf16.mxu0 0
      %2795 = vmatpush1.bf16.msra.mxu0 0
      %2796 = vmatprep.subr.bf16.mxu0 0
      %2797 = vmatpush1.bf16.msra.mxu0 0
      %2798 = vmatprep.subr.bf16.mxu0 0
      %2799 = vmatpush1.bf16.msra.mxu0 0
      %2800 = vmatprep.subr.bf16.mxu0 0
      %2801 = vmatpush1.bf16.msra.mxu0 0
      %2802 = vmatprep.subr.bf16.mxu0 0
      %2803 = vmatpush1.bf16.msra.mxu0 0
      %2804 = vmatprep.subr.bf16.mxu0 0
      %2805 = vmatpush1.bf16.msra.mxu0 0
      %2806 = vmatprep.subr.bf16.mxu0 0
      %2807 = vmatpush1.bf16.msra.mxu0 0
      %2808 = vmatprep.subr.bf16.mxu0 0
      %2809 = vmatpush1.bf16.msra.mxu0 0
      %2810 = vmatprep.subr.bf16.mxu0 0
      %2811 = vmatpush1.bf16.msra.mxu0 0
      %2812 = vmatprep.subr.bf16.mxu0 0
      %2813 = vmatpush1.bf16.msra.mxu0 0
      %2814 = vmatprep.subr.bf16.mxu0 0
      %2815 = vmatpush1.bf16.msra.mxu0 0
      %2816 = vmatprep.subr.bf16.mxu0 0
      %2817 = vmatpush1.bf16.msra.mxu0 0
      %2818 = vmatprep.subr.bf16.mxu0 0
      %2819 = vmatpush1.bf16.msra.mxu0 0
      %2820 = vmatprep.subr.bf16.mxu0 0
      %2821 = vmatpush1.bf16.msra.mxu0 0
      %2822 = vmatprep.mubr.bf16.mxu0 0
      %2823 = vmatmul.mubr.bf16.gmra.mrb[0].mxu0 %v2785
      %v2824 = vpop.f32.mrb[0].mxu0
      %v2825 = vadd.f32 0.0, %v2824
      %v2826 = vpop.f32.mrb[0].mxu0
      %v2827 = vpop.f32.mrb[0].mxu0
      %v2828 = vadd.f32 0.0, %v2827
      %v2829 = vpop.f32.mrb[0].mxu0
      %2830 = vmatprep.mubr.bf16.mxu0 0
      %2831 = vmatmul.mubr.bf16.gmra.mrb[0].mxu0 %v2788
      %v2832 = vpop.f32.mrb[0].mxu0
      %v2833 = vadd.f32 0.0, %v2832
      %v2834 = vpop.f32.mrb[0].mxu0
      %v2835 = vpop.f32.mrb[0].mxu0
      %v2836 = vadd.f32 0.0, %v2835
      %v2837 = vpop.f32.mrb[0].mxu0
      %2838 = vdwg.mxu0
      %v2839 = vadd.f32 %v2751, %v2825
      %v2840 = vadd.f32 %v2752, %v2828
      %v2841 = vadd.f32 %v2753, %v2833
      %v2842 = vadd.f32 %v2754, %v2836
      %2843 = vrot.lane.b32.xlu0 %v2238, 120
      %v2844 = vpop.permute.xlu0 %2843
      %2845 = vrot.lane.b32.xlu0 %v2239, 120
      %v2846 = vpop.permute.xlu0 %2845
      %2847 = vrot.lane.b32.xlu0 %v2240, 120
      %v2848 = vpop.permute.xlu0 %2847
      %2849 = vrot.lane.b32.xlu0 %v2241, 120
      %v2850 = vpop.permute.xlu0 %2849
      %v2851 = vmul.f32 %v2844, %v1236
      %v2852 = vmul.f32 %v2846, %v1236
      %v2853 = vmul.f32 %v2848, %v1236
      %v2854 = vmul.f32 %v2850, %v1236
      %s2855 = scalar_lea.vmem %s548, 400
      %v2856 = vld [vmem:[%s2855] sm:$0xf]
      %v2857 = vld [vmem:[%s2855 + $0x4] sm:$0xf]
      %v2858 = vld [vmem:[%s2855 + $0x8] sm:$0xf]
      %v2859 = vld [vmem:[%s2855 + $0xc] sm:$0xf]
      %v2860 = vpack.c.bf16 %v2852, %v2851
      %v2861 = vpack.c.bf16 %v2854, %v2853
      %v2866 = vunpack.c.l.b16 %v2856
      %v2867 = vunpack.c.l.b16 %v2857
      %v2868 = vunpack.c.l.b16 %v2858
      %v2869 = vunpack.c.l.b16 %v2859
      %v2870 = vpack.c.b16 %v2867, %v2866
      %v2871 = vpack.c.b16 %v2869, %v2868
      %v2873 = vsel %vm660, %v2870, 0
      %v2876 = vsel %vm660, %v2871, 0
      %2878 = vmatprep.subr.bf16.mxu0 0
      %2879 = vmatpush1.bf16.msra.mxu0 %v2860
      %2880 = vmatprep.subr.bf16.mxu0 0
      %2881 = vmatpush1.bf16.msra.mxu0 %v2861
      %2882 = vmatprep.subr.bf16.mxu0 0
      %2883 = vmatpush1.bf16.msra.mxu0 0
      %2884 = vmatprep.subr.bf16.mxu0 0
      %2885 = vmatpush1.bf16.msra.mxu0 0
      %2886 = vmatprep.subr.bf16.mxu0 0
      %2887 = vmatpush1.bf16.msra.mxu0 0
      %2888 = vmatprep.subr.bf16.mxu0 0
      %2889 = vmatpush1.bf16.msra.mxu0 0
      %2890 = vmatprep.subr.bf16.mxu0 0
      %2891 = vmatpush1.bf16.msra.mxu0 0
      %2892 = vmatprep.subr.bf16.mxu0 0
      %2893 = vmatpush1.bf16.msra.mxu0 0
      %2894 = vmatprep.subr.bf16.mxu0 0
      %2895 = vmatpush1.bf16.msra.mxu0 0
      %2896 = vmatprep.subr.bf16.mxu0 0
      %2897 = vmatpush1.bf16.msra.mxu0 0
      %2898 = vmatprep.subr.bf16.mxu0 0
      %2899 = vmatpush1.bf16.msra.mxu0 0
      %2900 = vmatprep.subr.bf16.mxu0 0
      %2901 = vmatpush1.bf16.msra.mxu0 0
      %2902 = vmatprep.subr.bf16.mxu0 0
      %2903 = vmatpush1.bf16.msra.mxu0 0
      %2904 = vmatprep.subr.bf16.mxu0 0
      %2905 = vmatpush1.bf16.msra.mxu0 0
      %2906 = vmatprep.subr.bf16.mxu0 0
      %2907 = vmatpush1.bf16.msra.mxu0 0
      %2908 = vmatprep.subr.bf16.mxu0 0
      %2909 = vmatpush1.bf16.msra.mxu0 0
      %2910 = vmatprep.mubr.bf16.mxu0 0
      %2911 = vmatmul.mubr.bf16.gmra.mrb[0].mxu0 %v2873
      %v2912 = vpop.f32.mrb[0].mxu0
      %v2913 = vadd.f32 0.0, %v2912
      %v2914 = vpop.f32.mrb[0].mxu0
      %v2915 = vpop.f32.mrb[0].mxu0
      %v2916 = vadd.f32 0.0, %v2915
      %v2917 = vpop.f32.mrb[0].mxu0
      %2918 = vmatprep.mubr.bf16.mxu0 0
      %2919 = vmatmul.mubr.bf16.gmra.mrb[0].mxu0 %v2876
      %v2920 = vpop.f32.mrb[0].mxu0
      %v2921 = vadd.f32 0.0, %v2920
      %v2922 = vpop.f32.mrb[0].mxu0
      %v2923 = vpop.f32.mrb[0].mxu0
      %v2924 = vadd.f32 0.0, %v2923
      %v2925 = vpop.f32.mrb[0].mxu0
      %2926 = vdwg.mxu0
      %v2927 = vadd.f32 %v2839, %v2913
      %v2928 = vadd.f32 %v2840, %v2916
      %v2929 = vadd.f32 %v2841, %v2921
      %v2930 = vadd.f32 %v2842, %v2924
      %2931 = vrot.lane.b32.xlu0 %v2238, 119
      %v2932 = vpop.permute.xlu0 %2931
      %2933 = vrot.lane.b32.xlu0 %v2239, 119
      %v2934 = vpop.permute.xlu0 %2933
      %2935 = vrot.lane.b32.xlu0 %v2240, 119
      %v2936 = vpop.permute.xlu0 %2935
      %2937 = vrot.lane.b32.xlu0 %v2241, 119
      %v2938 = vpop.permute.xlu0 %2937
      %v2939 = vmul.f32 %v2932, %v1328
      %v2940 = vmul.f32 %v2934, %v1328
      %v2941 = vmul.f32 %v2936, %v1328
      %v2942 = vmul.f32 %v2938, %v1328
      %s2943 = scalar_lea.vmem %s548, 416
      %v2944 = vld [vmem:[%s2943] sm:$0xf]
      %v2945 = vld [vmem:[%s2943 + $0x4] sm:$0xf]
      %v2946 = vld [vmem:[%s2943 + $0x8] sm:$0xf]
      %v2947 = vld [vmem:[%s2943 + $0xc] sm:$0xf]
      %v2948 = vpack.c.bf16 %v2940, %v2939
      %v2949 = vpack.c.bf16 %v2942, %v2941
      %v2954 = vunpack.c.l.b16 %v2944
      %v2955 = vunpack.c.l.b16 %v2945
      %v2956 = vunpack.c.l.b16 %v2946
      %v2957 = vunpack.c.l.b16 %v2947
      %v2958 = vpack.c.b16 %v2955, %v2954
      %v2959 = vpack.c.b16 %v2957, %v2956
      %v2961 = vsel %vm660, %v2958, 0
      %v2964 = vsel %vm660, %v2959, 0
      %2966 = vmatprep.subr.bf16.mxu0 0
      %2967 = vmatpush1.bf16.msra.mxu0 %v2948
      %2968 = vmatprep.subr.bf16.mxu0 0
      %2969 = vmatpush1.bf16.msra.mxu0 %v2949
      %2970 = vmatprep.subr.bf16.mxu0 0
      %2971 = vmatpush1.bf16.msra.mxu0 0
      %2972 = vmatprep.subr.bf16.mxu0 0
      %2973 = vmatpush1.bf16.msra.mxu0 0
      %2974 = vmatprep.subr.bf16.mxu0 0
      %2975 = vmatpush1.bf16.msra.mxu0 0
      %2976 = vmatprep.subr.bf16.mxu0 0
      %2977 = vmatpush1.bf16.msra.mxu0 0
      %2978 = vmatprep.subr.bf16.mxu0 0
      %2979 = vmatpush1.bf16.msra.mxu0 0
      %2980 = vmatprep.subr.bf16.mxu0 0
      %2981 = vmatpush1.bf16.msra.mxu0 0
      %2982 = vmatprep.subr.bf16.mxu0 0
      %2983 = vmatpush1.bf16.msra.mxu0 0
      %2984 = vmatprep.subr.bf16.mxu0 0
      %2985 = vmatpush1.bf16.msra.mxu0 0
      %2986 = vmatprep.subr.bf16.mxu0 0
      %2987 = vmatpush1.bf16.msra.mxu0 0
      %2988 = vmatprep.subr.bf16.mxu0 0
      %2989 = vmatpush1.bf16.msra.mxu0 0
      %2990 = vmatprep.subr.bf16.mxu0 0
      %2991 = vmatpush1.bf16.msra.mxu0 0
      %2992 = vmatprep.subr.bf16.mxu0 0
      %2993 = vmatpush1.bf16.msra.mxu0 0
      %2994 = vmatprep.subr.bf16.mxu0 0
      %2995 = vmatpush1.bf16.msra.mxu0 0
      %2996 = vmatprep.subr.bf16.mxu0 0
      %2997 = vmatpush1.bf16.msra.mxu0 0
      %2998 = vmatprep.mubr.bf16.mxu0 0
      %2999 = vmatmul.mubr.bf16.gmra.mrb[0].mxu0 %v2961
      %v3000 = vpop.f32.mrb[0].mxu0
      %v3001 = vadd.f32 0.0, %v3000
      %v3002 = vpop.f32.mrb[0].mxu0
      %v3003 = vpop.f32.mrb[0].mxu0
      %v3004 = vadd.f32 0.0, %v3003
      %v3005 = vpop.f32.mrb[0].mxu0
      %3006 = vmatprep.mubr.bf16.mxu0 0
      %3007 = vmatmul.mubr.bf16.gmra.mrb[0].mxu0 %v2964
      %v3008 = vpop.f32.mrb[0].mxu0
      %v3009 = vadd.f32 0.0, %v3008
      %v3010 = vpop.f32.mrb[0].mxu0
      %v3011 = vpop.f32.mrb[0].mxu0
      %v3012 = vadd.f32 0.0, %v3011
      %v3013 = vpop.f32.mrb[0].mxu0
      %3014 = vdwg.mxu0
      %v3015 = vadd.f32 %v2927, %v3001
      %v3016 = vadd.f32 %v2928, %v3004
      %v3017 = vadd.f32 %v2929, %v3009
      %v3018 = vadd.f32 %v2930, %v3012
      %3020 = vset.pattern.permute.xlu0 0
      %3021 = vperm.xlu0 %3020, %v2243
      %v3022 = vpop.permute.xlu0 %3021
      %3025 = vset.pattern.permute.xlu0 0
      %3026 = vperm.xlu0 %3025, %v2244
      %v3027 = vpop.permute.xlu0 %3026
      %3030 = vset.pattern.permute.xlu0 0
      %3031 = vperm.xlu0 %3030, %v2245
      %v3032 = vpop.permute.xlu0 %3031
      %3035 = vset.pattern.permute.xlu0 0
      %3036 = vperm.xlu0 %3035, %v2246
      %v3037 = vpop.permute.xlu0 %3036
      %v3039 = vadd.f32 %v3015, %v3022
      %v3040 = vadd.f32 %v3016, %v3027
      %v3041 = vadd.f32 %v3017, %v3032
      %v3042 = vadd.f32 %v3018, %v3037
      %v3043 = vmax.f32 %v3039, 0.0
      %v3044 = vmax.f32 %v3040, 0.0
      %v3045 = vmax.f32 %v3041, 0.0
      %v3046 = vmax.f32 %v3042, 0.0
      %s3047 = scalar_lea.vmem %s553, 96
      %v3048 = vld [vmem:[%s3047] sm:$0xff]
      %v3049 = vld [vmem:[%s3047 + $0x8] sm:$0xff]
      %v3050 = vld [vmem:[%s3047 + $0x10] sm:$0xff]
      %v3051 = vld [vmem:[%s3047 + $0x18] sm:$0xff]
      %3052 = vrot.lane.b32.xlu0 %v3043, 9
      %v3053 = vpop.permute.xlu0 %3052
      %3054 = vrot.lane.b32.xlu0 %v3044, 9
      %v3055 = vpop.permute.xlu0 %3054
      %3056 = vrot.lane.b32.xlu0 %v3045, 9
      %v3057 = vpop.permute.xlu0 %3056
      %3058 = vrot.lane.b32.xlu0 %v3046, 9
      %v3059 = vpop.permute.xlu0 %3058
      %v3060 = vmul.f32 %v3053, %v616
      %v3061 = vmul.f32 %v3055, %v616
      %v3062 = vmul.f32 %v3057, %v616
      %v3063 = vmul.f32 %v3059, %v616
      %s3064 = scalar_lea.vmem %s548, 432
      %v3065 = vld [vmem:[%s3064] sm:$0xf]
      %v3066 = vld [vmem:[%s3064 + $0x4] sm:$0xf]
      %v3067 = vld [vmem:[%s3064 + $0x8] sm:$0xf]
      %v3068 = vld [vmem:[%s3064 + $0xc] sm:$0xf]
      %v3069 = vpack.c.bf16 %v3061, %v3060
      %v3070 = vpack.c.bf16 %v3063, %v3062
      %3071 = vrot.lane.b32.xlu0 %v3043, 8
      %v3072 = vpop.permute.xlu0 %3071
      %3073 = vrot.lane.b32.xlu0 %v3044, 8
      %v3074 = vpop.permute.xlu0 %3073
      %3075 = vrot.lane.b32.xlu0 %v3045, 8
      %v3076 = vpop.permute.xlu0 %3075
      %3077 = vrot.lane.b32.xlu0 %v3046, 8
      %v3078 = vpop.permute.xlu0 %3077
      %v3079 = vmul.f32 %v3072, %v638
      %v3080 = vmul.f32 %v3074, %v638
      %v3081 = vmul.f32 %v3076, %v638
      %v3082 = vmul.f32 %v3078, %v638
      %s3083 = scalar_lea.vmem %s548, 448
      %v3084 = vld [vmem:[%s3083] sm:$0xf]
      %v3085 = vld [vmem:[%s3083 + $0x4] sm:$0xf]
      %v3086 = vld [vmem:[%s3083 + $0x8] sm:$0xf]
      %v3087 = vld [vmem:[%s3083 + $0xc] sm:$0xf]
      %v3088 = vpack.c.bf16 %v3080, %v3079
      %v3089 = vpack.c.bf16 %v3082, %v3081
      %v3094 = vunpack.c.l.b16 %v3084
      %v3095 = vunpack.c.l.b16 %v3085
      %v3096 = vunpack.c.l.b16 %v3086
      %v3097 = vunpack.c.l.b16 %v3087
      %v3098 = vpack.c.b16 %v3095, %v3094
      %v3099 = vpack.c.b16 %v3097, %v3096
      %v3101 = vsel %vm660, %v3098, 0
      %v3104 = vsel %vm660, %v3099, 0
      %3106 = vmatprep.subr.bf16.mxu0 0
      %3107 = vmatpush1.bf16.msra.mxu0 %v3088
      %3108 = vmatprep.subr.bf16.mxu0 0
      %3109 = vmatpush1.bf16.msra.mxu0 %v3089
      %3110 = vmatprep.subr.bf16.mxu0 0
      %3111 = vmatpush1.bf16.msra.mxu0 0
      %3112 = vmatprep.subr.bf16.mxu0 0
      %3113 = vmatpush1.bf16.msra.mxu0 0
      %3114 = vmatprep.subr.bf16.mxu0 0
      %3115 = vmatpush1.bf16.msra.mxu0 0
      %3116 = vmatprep.subr.bf16.mxu0 0
      %3117 = vmatpush1.bf16.msra.mxu0 0
      %3118 = vmatprep.subr.bf16.mxu0 0
      %3119 = vmatpush1.bf16.msra.mxu0 0
      %3120 = vmatprep.subr.bf16.mxu0 0
      %3121 = vmatpush1.bf16.msra.mxu0 0
      %3122 = vmatprep.subr.bf16.mxu0 0
      %3123 = vmatpush1.bf16.msra.mxu0 0
      %3124 = vmatprep.subr.bf16.mxu0 0
      %3125 = vmatpush1.bf16.msra.mxu0 0
      %3126 = vmatprep.subr.bf16.mxu0 0
      %3127 = vmatpush1.bf16.msra.mxu0 0
      %3128 = vmatprep.subr.bf16.mxu0 0
      %3129 = vmatpush1.bf16.msra.mxu0 0
      %3130 = vmatprep.subr.bf16.mxu0 0
      %3131 = vmatpush1.bf16.msra.mxu0 0
      %3132 = vmatprep.subr.bf16.mxu0 0
      %3133 = vmatpush1.bf16.msra.mxu0 0
      %3134 = vmatprep.subr.bf16.mxu0 0
      %3135 = vmatpush1.bf16.msra.mxu0 0
      %3136 = vmatprep.subr.bf16.mxu0 0
      %3137 = vmatpush1.bf16.msra.mxu0 0
      %3138 = vmatprep.mubr.bf16.mxu0 0
      %3139 = vmatmul.mubr.bf16.gmra.mrb[0].mxu0 %v3101
      %v3140 = vpop.f32.mrb[0].mxu0
      %v3141 = vadd.f32 0.0, %v3140
      %v3142 = vpop.f32.mrb[0].mxu0
      %v3143 = vpop.f32.mrb[0].mxu0
      %v3144 = vadd.f32 0.0, %v3143
      %v3145 = vpop.f32.mrb[0].mxu0
      %3146 = vmatprep.mubr.bf16.mxu0 0
      %3147 = vmatmul.mubr.bf16.gmra.mrb[0].mxu0 %v3104
      %v3148 = vpop.f32.mrb[0].mxu0
      %v3149 = vadd.f32 0.0, %v3148
      %v3150 = vpop.f32.mrb[0].mxu0
      %v3151 = vpop.f32.mrb[0].mxu0
      %v3152 = vadd.f32 0.0, %v3151
      %v3153 = vpop.f32.mrb[0].mxu0
      %3154 = vdwg.mxu0
      %v3159 = vunpack.c.l.b16 %v3065
      %v3160 = vunpack.c.l.b16 %v3066
      %v3161 = vunpack.c.l.b16 %v3067
      %v3162 = vunpack.c.l.b16 %v3068
      %v3163 = vpack.c.b16 %v3160, %v3159
      %v3164 = vpack.c.b16 %v3162, %v3161
      %v3166 = vsel %vm660, %v3163, 0
      %v3169 = vsel %vm660, %v3164, 0
      %3171 = vmatprep.subr.bf16.mxu0 0
      %3172 = vmatpush1.bf16.msra.mxu0 %v3069
      %3173 = vmatprep.subr.bf16.mxu0 0
      %3174 = vmatpush1.bf16.msra.mxu0 %v3070
      %3175 = vmatprep.subr.bf16.mxu0 0
      %3176 = vmatpush1.bf16.msra.mxu0 0
      %3177 = vmatprep.subr.bf16.mxu0 0
      %3178 = vmatpush1.bf16.msra.mxu0 0
      %3179 = vmatprep.subr.bf16.mxu0 0
      %3180 = vmatpush1.bf16.msra.mxu0 0
      %3181 = vmatprep.subr.bf16.mxu0 0
      %3182 = vmatpush1.bf16.msra.mxu0 0
      %3183 = vmatprep.subr.bf16.mxu0 0
      %3184 = vmatpush1.bf16.msra.mxu0 0
      %3185 = vmatprep.subr.bf16.mxu0 0
      %3186 = vmatpush1.bf16.msra.mxu0 0
      %3187 = vmatprep.subr.bf16.mxu0 0
      %3188 = vmatpush1.bf16.msra.mxu0 0
      %3189 = vmatprep.subr.bf16.mxu0 0
      %3190 = vmatpush1.bf16.msra.mxu0 0
      %3191 = vmatprep.subr.bf16.mxu0 0
      %3192 = vmatpush1.bf16.msra.mxu0 0
      %3193 = vmatprep.subr.bf16.mxu0 0
      %3194 = vmatpush1.bf16.msra.mxu0 0
      %3195 = vmatprep.subr.bf16.mxu0 0
      %3196 = vmatpush1.bf16.msra.mxu0 0
      %3197 = vmatprep.subr.bf16.mxu0 0
      %3198 = vmatpush1.bf16.msra.mxu0 0
      %3199 = vmatprep.subr.bf16.mxu0 0
      %3200 = vmatpush1.bf16.msra.mxu0 0
      %3201 = vmatprep.subr.bf16.mxu0 0
      %3202 = vmatpush1.bf16.msra.mxu0 0
      %3203 = vmatprep.mubr.bf16.mxu0 0
      %3204 = vmatmul.mubr.bf16.gmra.mrb[0].mxu0 %v3166
      %v3205 = vpop.f32.mrb[0].mxu0
      %v3206 = vadd.f32 %v3141, %v3205
      %v3207 = vpop.f32.mrb[0].mxu0
      %v3208 = vpop.f32.mrb[0].mxu0
      %v3209 = vadd.f32 %v3144, %v3208
      %v3210 = vpop.f32.mrb[0].mxu0
      %3211 = vmatprep.mubr.bf16.mxu0 0
      %3212 = vmatmul.mubr.bf16.gmra.mrb[0].mxu0 %v3169
      %v3213 = vpop.f32.mrb[0].mxu0
      %v3214 = vadd.f32 %v3149, %v3213
      %v3215 = vpop.f32.mrb[0].mxu0
      %v3216 = vpop.f32.mrb[0].mxu0
      %v3217 = vadd.f32 %v3152, %v3216
      %v3218 = vpop.f32.mrb[0].mxu0
      %3219 = vdwg.mxu0
      %3220 = vrot.lane.b32.xlu0 %v3043, 7
      %v3221 = vpop.permute.xlu0 %3220
      %3222 = vrot.lane.b32.xlu0 %v3044, 7
      %v3223 = vpop.permute.xlu0 %3222
      %3224 = vrot.lane.b32.xlu0 %v3045, 7
      %v3225 = vpop.permute.xlu0 %3224
      %3226 = vrot.lane.b32.xlu0 %v3046, 7
      %v3227 = vpop.permute.xlu0 %3226
      %v3228 = vmul.f32 %v3221, %v792
      %v3229 = vmul.f32 %v3223, %v792
      %v3230 = vmul.f32 %v3225, %v792
      %v3231 = vmul.f32 %v3227, %v792
      %s3232 = scalar_lea.vmem %s548, 464
      %v3233 = vld [vmem:[%s3232] sm:$0xf]
      %v3234 = vld [vmem:[%s3232 + $0x4] sm:$0xf]
      %v3235 = vld [vmem:[%s3232 + $0x8] sm:$0xf]
      %v3236 = vld [vmem:[%s3232 + $0xc] sm:$0xf]
      %v3237 = vpack.c.bf16 %v3229, %v3228
      %v3238 = vpack.c.bf16 %v3231, %v3230
      %v3243 = vunpack.c.l.b16 %v3233
      %v3244 = vunpack.c.l.b16 %v3234
      %v3245 = vunpack.c.l.b16 %v3235
      %v3246 = vunpack.c.l.b16 %v3236
      %v3247 = vpack.c.b16 %v3244, %v3243
      %v3248 = vpack.c.b16 %v3246, %v3245
      %v3250 = vsel %vm660, %v3247, 0
      %v3253 = vsel %vm660, %v3248, 0
      %3255 = vmatprep.subr.bf16.mxu0 0
      %3256 = vmatpush1.bf16.msra.mxu0 %v3237
      %3257 = vmatprep.subr.bf16.mxu0 0
      %3258 = vmatpush1.bf16.msra.mxu0 %v3238
      %3259 = vmatprep.subr.bf16.mxu0 0
      %3260 = vmatpush1.bf16.msra.mxu0 0
      %3261 = vmatprep.subr.bf16.mxu0 0
      %3262 = vmatpush1.bf16.msra.mxu0 0
      %3263 = vmatprep.subr.bf16.mxu0 0
      %3264 = vmatpush1.bf16.msra.mxu0 0
      %3265 = vmatprep.subr.bf16.mxu0 0
      %3266 = vmatpush1.bf16.msra.mxu0 0
      %3267 = vmatprep.subr.bf16.mxu0 0
      %3268 = vmatpush1.bf16.msra.mxu0 0
      %3269 = vmatprep.subr.bf16.mxu0 0
      %3270 = vmatpush1.bf16.msra.mxu0 0
      %3271 = vmatprep.subr.bf16.mxu0 0
      %3272 = vmatpush1.bf16.msra.mxu0 0
      %3273 = vmatprep.subr.bf16.mxu0 0
      %3274 = vmatpush1.bf16.msra.mxu0 0
      %3275 = vmatprep.subr.bf16.mxu0 0
      %3276 = vmatpush1.bf16.msra.mxu0 0
      %3277 = vmatprep.subr.bf16.mxu0 0
      %3278 = vmatpush1.bf16.msra.mxu0 0
      %3279 = vmatprep.subr.bf16.mxu0 0
      %3280 = vmatpush1.bf16.msra.mxu0 0
      %3281 = vmatprep.subr.bf16.mxu0 0
      %3282 = vmatpush1.bf16.msra.mxu0 0
      %3283 = vmatprep.subr.bf16.mxu0 0
      %3284 = vmatpush1.bf16.msra.mxu0 0
      %3285 = vmatprep.subr.bf16.mxu0 0
      %3286 = vmatpush1.bf16.msra.mxu0 0
      %3287 = vmatprep.mubr.bf16.mxu0 0
      %3288 = vmatmul.mubr.bf16.gmra.mrb[0].mxu0 %v3250
      %v3289 = vpop.f32.mrb[0].mxu0
      %v3290 = vadd.f32 0.0, %v3289
      %v3291 = vpop.f32.mrb[0].mxu0
      %v3292 = vpop.f32.mrb[0].mxu0
      %v3293 = vadd.f32 0.0, %v3292
      %v3294 = vpop.f32.mrb[0].mxu0
      %3295 = vmatprep.mubr.bf16.mxu0 0
      %3296 = vmatmul.mubr.bf16.gmra.mrb[0].mxu0 %v3253
      %v3297 = vpop.f32.mrb[0].mxu0
      %v3298 = vadd.f32 0.0, %v3297
      %v3299 = vpop.f32.mrb[0].mxu0
      %v3300 = vpop.f32.mrb[0].mxu0
      %v3301 = vadd.f32 0.0, %v3300
      %v3302 = vpop.f32.mrb[0].mxu0
      %3303 = vdwg.mxu0
      %v3304 = vadd.f32 %v3206, %v3290
      %v3305 = vadd.f32 %v3209, %v3293
      %v3306 = vadd.f32 %v3214, %v3298
      %v3307 = vadd.f32 %v3217, %v3301
      %3308 = vrot.lane.b32.xlu0 %v3043, 1
      %v3309 = vpop.permute.xlu0 %3308
      %3310 = vrot.lane.b32.xlu0 %v3044, 1
      %v3311 = vpop.permute.xlu0 %3310
      %3312 = vrot.lane.b32.xlu0 %v3045, 1
      %v3313 = vpop.permute.xlu0 %3312
      %3314 = vrot.lane.b32.xlu0 %v3046, 1
      %v3315 = vpop.permute.xlu0 %3314
      %v3316 = vmul.f32 %v3309, %v884
      %v3317 = vmul.f32 %v3311, %v884
      %v3318 = vmul.f32 %v3313, %v884
      %v3319 = vmul.f32 %v3315, %v884
      %s3320 = scalar_lea.vmem %s548, 480
      %v3321 = vld [vmem:[%s3320] sm:$0xf]
      %v3322 = vld [vmem:[%s3320 + $0x4] sm:$0xf]
      %v3323 = vld [vmem:[%s3320 + $0x8] sm:$0xf]
      %v3324 = vld [vmem:[%s3320 + $0xc] sm:$0xf]
      %v3325 = vpack.c.bf16 %v3317, %v3316
      %v3326 = vpack.c.bf16 %v3319, %v3318
      %v3331 = vunpack.c.l.b16 %v3321
      %v3332 = vunpack.c.l.b16 %v3322
      %v3333 = vunpack.c.l.b16 %v3323
      %v3334 = vunpack.c.l.b16 %v3324
      %v3335 = vpack.c.b16 %v3332, %v3331
      %v3336 = vpack.c.b16 %v3334, %v3333
      %v3338 = vsel %vm660, %v3335, 0
      %v3341 = vsel %vm660, %v3336, 0
      %3343 = vmatprep.subr.bf16.mxu0 0
      %3344 = vmatpush1.bf16.msra.mxu0 %v3325
      %3345 = vmatprep.subr.bf16.mxu0 0
      %3346 = vmatpush1.bf16.msra.mxu0 %v3326
      %3347 = vmatprep.subr.bf16.mxu0 0
      %3348 = vmatpush1.bf16.msra.mxu0 0
      %3349 = vmatprep.subr.bf16.mxu0 0
      %3350 = vmatpush1.bf16.msra.mxu0 0
      %3351 = vmatprep.subr.bf16.mxu0 0
      %3352 = vmatpush1.bf16.msra.mxu0 0
      %3353 = vmatprep.subr.bf16.mxu0 0
      %3354 = vmatpush1.bf16.msra.mxu0 0
      %3355 = vmatprep.subr.bf16.mxu0 0
      %3356 = vmatpush1.bf16.msra.mxu0 0
      %3357 = vmatprep.subr.bf16.mxu0 0
      %3358 = vmatpush1.bf16.msra.mxu0 0
      %3359 = vmatprep.subr.bf16.mxu0 0
      %3360 = vmatpush1.bf16.msra.mxu0 0
      %3361 = vmatprep.subr.bf16.mxu0 0
      %3362 = vmatpush1.bf16.msra.mxu0 0
      %3363 = vmatprep.subr.bf16.mxu0 0
      %3364 = vmatpush1.bf16.msra.mxu0 0
      %3365 = vmatprep.subr.bf16.mxu0 0
      %3366 = vmatpush1.bf16.msra.mxu0 0
      %3367 = vmatprep.subr.bf16.mxu0 0
      %3368 = vmatpush1.bf16.msra.mxu0 0
      %3369 = vmatprep.subr.bf16.mxu0 0
      %3370 = vmatpush1.bf16.msra.mxu0 0
      %3371 = vmatprep.subr.bf16.mxu0 0
      %3372 = vmatpush1.bf16.msra.mxu0 0
      %3373 = vmatprep.subr.bf16.mxu0 0
      %3374 = vmatpush1.bf16.msra.mxu0 0
      %3375 = vmatprep.mubr.bf16.mxu0 0
      %3376 = vmatmul.mubr.bf16.gmra.mrb[0].mxu0 %v3338
      %v3377 = vpop.f32.mrb[0].mxu0
      %v3378 = vadd.f32 0.0, %v3377
      %v3379 = vpop.f32.mrb[0].mxu0
      %v3380 = vpop.f32.mrb[0].mxu0
      %v3381 = vadd.f32 0.0, %v3380
      %v3382 = vpop.f32.mrb[0].mxu0
      %3383 = vmatprep.mubr.bf16.mxu0 0
      %3384 = vmatmul.mubr.bf16.gmra.mrb[0].mxu0 %v3341
      %v3385 = vpop.f32.mrb[0].mxu0
      %v3386 = vadd.f32 0.0, %v3385
      %v3387 = vpop.f32.mrb[0].mxu0
      %v3388 = vpop.f32.mrb[0].mxu0
      %v3389 = vadd.f32 0.0, %v3388
      %v3390 = vpop.f32.mrb[0].mxu0
      %3391 = vdwg.mxu0
      %v3392 = vadd.f32 %v3304, %v3378
      %v3393 = vadd.f32 %v3305, %v3381
      %v3394 = vadd.f32 %v3306, %v3386
      %v3395 = vadd.f32 %v3307, %v3389
      %s3396 = scalar_lea.vmem %s548, 496
      %v3397 = vld [vmem:[%s3396] sm:$0xf]
      %v3398 = vld [vmem:[%s3396 + $0x4] sm:$0xf]
      %v3399 = vld [vmem:[%s3396 + $0x8] sm:$0xf]
      %v3400 = vld [vmem:[%s3396 + $0xc] sm:$0xf]
      %v3401 = vpack.c.bf16 %v3044, %v3043
      %v3402 = vpack.c.bf16 %v3046, %v3045
      %v3407 = vunpack.c.l.b16 %v3397
      %v3408 = vunpack.c.l.b16 %v3398
      %v3409 = vunpack.c.l.b16 %v3399
      %v3410 = vunpack.c.l.b16 %v3400
      %v3411 = vpack.c.b16 %v3408, %v3407
      %v3412 = vpack.c.b16 %v3410, %v3409
      %v3414 = vsel %vm660, %v3411, 0
      %v3417 = vsel %vm660, %v3412, 0
      %3419 = vmatprep.subr.bf16.mxu0 0
      %3420 = vmatpush1.bf16.msra.mxu0 %v3401
      %3421 = vmatprep.subr.bf16.mxu0 0
      %3422 = vmatpush1.bf16.msra.mxu0 %v3402
      %3423 = vmatprep.subr.bf16.mxu0 0
      %3424 = vmatpush1.bf16.msra.mxu0 0
      %3425 = vmatprep.subr.bf16.mxu0 0
      %3426 = vmatpush1.bf16.msra.mxu0 0
      %3427 = vmatprep.subr.bf16.mxu0 0
      %3428 = vmatpush1.bf16.msra.mxu0 0
      %3429 = vmatprep.subr.bf16.mxu0 0
      %3430 = vmatpush1.bf16.msra.mxu0 0
      %3431 = vmatprep.subr.bf16.mxu0 0
      %3432 = vmatpush1.bf16.msra.mxu0 0
      %3433 = vmatprep.subr.bf16.mxu0 0
      %3434 = vmatpush1.bf16.msra.mxu0 0
      %3435 = vmatprep.subr.bf16.mxu0 0
      %3436 = vmatpush1.bf16.msra.mxu0 0
      %3437 = vmatprep.subr.bf16.mxu0 0
      %3438 = vmatpush1.bf16.msra.mxu0 0
      %3439 = vmatprep.subr.bf16.mxu0 0
      %3440 = vmatpush1.bf16.msra.mxu0 0
      %3441 = vmatprep.subr.bf16.mxu0 0
      %3442 = vmatpush1.bf16.msra.mxu0 0
      %3443 = vmatprep.subr.bf16.mxu0 0
      %3444 = vmatpush1.bf16.msra.mxu0 0
      %3445 = vmatprep.subr.bf16.mxu0 0
      %3446 = vmatpush1.bf16.msra.mxu0 0
      %3447 = vmatprep.subr.bf16.mxu0 0
      %3448 = vmatpush1.bf16.msra.mxu0 0
      %3449 = vmatprep.subr.bf16.mxu0 0
      %3450 = vmatpush1.bf16.msra.mxu0 0
      %3451 = vmatprep.mubr.bf16.mxu0 0
      %3452 = vmatmul.mubr.bf16.gmra.mrb[0].mxu0 %v3414
      %v3453 = vpop.f32.mrb[0].mxu0
      %v3454 = vadd.f32 0.0, %v3453
      %v3455 = vpop.f32.mrb[0].mxu0
      %v3456 = vpop.f32.mrb[0].mxu0
      %v3457 = vadd.f32 0.0, %v3456
      %v3458 = vpop.f32.mrb[0].mxu0
      %3459 = vmatprep.mubr.bf16.mxu0 0
      %3460 = vmatmul.mubr.bf16.gmra.mrb[0].mxu0 %v3417
      %v3461 = vpop.f32.mrb[0].mxu0
      %v3462 = vadd.f32 0.0, %v3461
      %v3463 = vpop.f32.mrb[0].mxu0
      %v3464 = vpop.f32.mrb[0].mxu0
      %v3465 = vadd.f32 0.0, %v3464
      %v3466 = vpop.f32.mrb[0].mxu0
      %3467 = vdwg.mxu0
      %v3468 = vadd.f32 %v3392, %v3454
      %v3469 = vadd.f32 %v3393, %v3457
      %v3470 = vadd.f32 %v3394, %v3462
      %v3471 = vadd.f32 %v3395, %v3465
      %3472 = vrot.lane.b32.xlu0 %v3043, 127
      %v3473 = vpop.permute.xlu0 %3472
      %3474 = vrot.lane.b32.xlu0 %v3044, 127
      %v3475 = vpop.permute.xlu0 %3474
      %3476 = vrot.lane.b32.xlu0 %v3045, 127
      %v3477 = vpop.permute.xlu0 %3476
      %3478 = vrot.lane.b32.xlu0 %v3046, 127
      %v3479 = vpop.permute.xlu0 %3478
      %v3480 = vmul.f32 %v3473, %v1052
      %v3481 = vmul.f32 %v3475, %v1052
      %v3482 = vmul.f32 %v3477, %v1052
      %v3483 = vmul.f32 %v3479, %v1052
      %s3484 = scalar_lea.vmem %s548, 512
      %v3485 = vld [vmem:[%s3484] sm:$0xf]
      %v3486 = vld [vmem:[%s3484 + $0x4] sm:$0xf]
      %v3487 = vld [vmem:[%s3484 + $0x8] sm:$0xf]
      %v3488 = vld [vmem:[%s3484 + $0xc] sm:$0xf]
      %v3489 = vpack.c.bf16 %v3481, %v3480
      %v3490 = vpack.c.bf16 %v3483, %v3482
      %v3495 = vunpack.c.l.b16 %v3485
      %v3496 = vunpack.c.l.b16 %v3486
      %v3497 = vunpack.c.l.b16 %v3487
      %v3498 = vunpack.c.l.b16 %v3488
      %v3499 = vpack.c.b16 %v3496, %v3495
      %v3500 = vpack.c.b16 %v3498, %v3497
      %v3502 = vsel %vm660, %v3499, 0
      %v3505 = vsel %vm660, %v3500, 0
      %3507 = vmatprep.subr.bf16.mxu0 0
      %3508 = vmatpush1.bf16.msra.mxu0 %v3489
      %3509 = vmatprep.subr.bf16.mxu0 0
      %3510 = vmatpush1.bf16.msra.mxu0 %v3490
      %3511 = vmatprep.subr.bf16.mxu0 0
      %3512 = vmatpush1.bf16.msra.mxu0 0
      %3513 = vmatprep.subr.bf16.mxu0 0
      %3514 = vmatpush1.bf16.msra.mxu0 0
      %3515 = vmatprep.subr.bf16.mxu0 0
      %3516 = vmatpush1.bf16.msra.mxu0 0
      %3517 = vmatprep.subr.bf16.mxu0 0
      %3518 = vmatpush1.bf16.msra.mxu0 0
      %3519 = vmatprep.subr.bf16.mxu0 0
      %3520 = vmatpush1.bf16.msra.mxu0 0
      %3521 = vmatprep.subr.bf16.mxu0 0
      %3522 = vmatpush1.bf16.msra.mxu0 0
      %3523 = vmatprep.subr.bf16.mxu0 0
      %3524 = vmatpush1.bf16.msra.mxu0 0
      %3525 = vmatprep.subr.bf16.mxu0 0
      %3526 = vmatpush1.bf16.msra.mxu0 0
      %3527 = vmatprep.subr.bf16.mxu0 0
      %3528 = vmatpush1.bf16.msra.mxu0 0
      %3529 = vmatprep.subr.bf16.mxu0 0
      %3530 = vmatpush1.bf16.msra.mxu0 0
      %3531 = vmatprep.subr.bf16.mxu0 0
      %3532 = vmatpush1.bf16.msra.mxu0 0
      %3533 = vmatprep.subr.bf16.mxu0 0
      %3534 = vmatpush1.bf16.msra.mxu0 0
      %3535 = vmatprep.subr.bf16.mxu0 0
      %3536 = vmatpush1.bf16.msra.mxu0 0
      %3537 = vmatprep.subr.bf16.mxu0 0
      %3538 = vmatpush1.bf16.msra.mxu0 0
      %3539 = vmatprep.mubr.bf16.mxu0 0
      %3540 = vmatmul.mubr.bf16.gmra.mrb[0].mxu0 %v3502
      %v3541 = vpop.f32.mrb[0].mxu0
      %v3542 = vadd.f32 0.0, %v3541
      %v3543 = vpop.f32.mrb[0].mxu0
      %v3544 = vpop.f32.mrb[0].mxu0
      %v3545 = vadd.f32 0.0, %v3544
      %v3546 = vpop.f32.mrb[0].mxu0
      %3547 = vmatprep.mubr.bf16.mxu0 0
      %3548 = vmatmul.mubr.bf16.gmra.mrb[0].mxu0 %v3505
      %v3549 = vpop.f32.mrb[0].mxu0
      %v3550 = vadd.f32 0.0, %v3549
      %v3551 = vpop.f32.mrb[0].mxu0
      %v3552 = vpop.f32.mrb[0].mxu0
      %v3553 = vadd.f32 0.0, %v3552
      %v3554 = vpop.f32.mrb[0].mxu0
      %3555 = vdwg.mxu0
      %v3556 = vadd.f32 %v3468, %v3542
      %v3557 = vadd.f32 %v3469, %v3545
      %v3558 = vadd.f32 %v3470, %v3550
      %v3559 = vadd.f32 %v3471, %v3553
      %3560 = vrot.lane.b32.xlu0 %v3043, 121
      %v3561 = vpop.permute.xlu0 %3560
      %3562 = vrot.lane.b32.xlu0 %v3044, 121
      %v3563 = vpop.permute.xlu0 %3562
      %3564 = vrot.lane.b32.xlu0 %v3045, 121
      %v3565 = vpop.permute.xlu0 %3564
      %3566 = vrot.lane.b32.xlu0 %v3046, 121
      %v3567 = vpop.permute.xlu0 %3566
      %v3568 = vmul.f32 %v3561, %v1144
      %v3569 = vmul.f32 %v3563, %v1144
      %v3570 = vmul.f32 %v3565, %v1144
      %v3571 = vmul.f32 %v3567, %v1144
      %s3572 = scalar_lea.vmem %s548, 528
      %v3573 = vld [vmem:[%s3572] sm:$0xf]
      %v3574 = vld [vmem:[%s3572 + $0x4] sm:$0xf]
      %v3575 = vld [vmem:[%s3572 + $0x8] sm:$0xf]
      %v3576 = vld [vmem:[%s3572 + $0xc] sm:$0xf]
      %v3577 = vpack.c.bf16 %v3569, %v3568
      %v3578 = vpack.c.bf16 %v3571, %v3570
      %v3583 = vunpack.c.l.b16 %v3573
      %v3584 = vunpack.c.l.b16 %v3574
      %v3585 = vunpack.c.l.b16 %v3575
      %v3586 = vunpack.c.l.b16 %v3576
      %v3587 = vpack.c.b16 %v3584, %v3583
      %v3588 = vpack.c.b16 %v3586, %v3585
      %v3590 = vsel %vm660, %v3587, 0
      %v3593 = vsel %vm660, %v3588, 0
      %3595 = vmatprep.subr.bf16.mxu0 0
      %3596 = vmatpush1.bf16.msra.mxu0 %v3577
      %3597 = vmatprep.subr.bf16.mxu0 0
      %3598 = vmatpush1.bf16.msra.mxu0 %v3578
      %3599 = vmatprep.subr.bf16.mxu0 0
      %3600 = vmatpush1.bf16.msra.mxu0 0
      %3601 = vmatprep.subr.bf16.mxu0 0
      %3602 = vmatpush1.bf16.msra.mxu0 0
      %3603 = vmatprep.subr.bf16.mxu0 0
      %3604 = vmatpush1.bf16.msra.mxu0 0
      %3605 = vmatprep.subr.bf16.mxu0 0
      %3606 = vmatpush1.bf16.msra.mxu0 0
      %3607 = vmatprep.subr.bf16.mxu0 0
      %3608 = vmatpush1.bf16.msra.mxu0 0
      %3609 = vmatprep.subr.bf16.mxu0 0
      %3610 = vmatpush1.bf16.msra.mxu0 0
      %3611 = vmatprep.subr.bf16.mxu0 0
      %3612 = vmatpush1.bf16.msra.mxu0 0
      %3613 = vmatprep.subr.bf16.mxu0 0
      %3614 = vmatpush1.bf16.msra.mxu0 0
      %3615 = vmatprep.subr.bf16.mxu0 0
      %3616 = vmatpush1.bf16.msra.mxu0 0
      %3617 = vmatprep.subr.bf16.mxu0 0
      %3618 = vmatpush1.bf16.msra.mxu0 0
      %3619 = vmatprep.subr.bf16.mxu0 0
      %3620 = vmatpush1.bf16.msra.mxu0 0
      %3621 = vmatprep.subr.bf16.mxu0 0
      %3622 = vmatpush1.bf16.msra.mxu0 0
      %3623 = vmatprep.subr.bf16.mxu0 0
      %3624 = vmatpush1.bf16.msra.mxu0 0
      %3625 = vmatprep.subr.bf16.mxu0 0
      %3626 = vmatpush1.bf16.msra.mxu0 0
      %3627 = vmatprep.mubr.bf16.mxu0 0
      %3628 = vmatmul.mubr.bf16.gmra.mrb[0].mxu0 %v3590
      %v3629 = vpop.f32.mrb[0].mxu0
      %v3630 = vadd.f32 0.0, %v3629
      %v3631 = vpop.f32.mrb[0].mxu0
      %v3632 = vpop.f32.mrb[0].mxu0
      %v3633 = vadd.f32 0.0, %v3632
      %v3634 = vpop.f32.mrb[0].mxu0
      %3635 = vmatprep.mubr.bf16.mxu0 0
      %3636 = vmatmul.mubr.bf16.gmra.mrb[0].mxu0 %v3593
      %v3637 = vpop.f32.mrb[0].mxu0
      %v3638 = vadd.f32 0.0, %v3637
      %v3639 = vpop.f32.mrb[0].mxu0
      %v3640 = vpop.f32.mrb[0].mxu0
      %v3641 = vadd.f32 0.0, %v3640
      %v3642 = vpop.f32.mrb[0].mxu0
      %3643 = vdwg.mxu0
      %v3644 = vadd.f32 %v3556, %v3630
      %v3645 = vadd.f32 %v3557, %v3633
      %v3646 = vadd.f32 %v3558, %v3638
      %v3647 = vadd.f32 %v3559, %v3641
      %3648 = vrot.lane.b32.xlu0 %v3043, 120
      %v3649 = vpop.permute.xlu0 %3648
      %3650 = vrot.lane.b32.xlu0 %v3044, 120
      %v3651 = vpop.permute.xlu0 %3650
      %3652 = vrot.lane.b32.xlu0 %v3045, 120
      %v3653 = vpop.permute.xlu0 %3652
      %3654 = vrot.lane.b32.xlu0 %v3046, 120
      %v3655 = vpop.permute.xlu0 %3654
      %v3656 = vmul.f32 %v3649, %v1236
      %v3657 = vmul.f32 %v3651, %v1236
      %v3658 = vmul.f32 %v3653, %v1236
      %v3659 = vmul.f32 %v3655, %v1236
      %s3660 = scalar_lea.vmem %s548, 544
      %v3661 = vld [vmem:[%s3660] sm:$0xf]
      %v3662 = vld [vmem:[%s3660 + $0x4] sm:$0xf]
      %v3663 = vld [vmem:[%s3660 + $0x8] sm:$0xf]
      %v3664 = vld [vmem:[%s3660 + $0xc] sm:$0xf]
      %v3665 = vpack.c.bf16 %v3657, %v3656
      %v3666 = vpack.c.bf16 %v3659, %v3658
      %v3671 = vunpack.c.l.b16 %v3661
      %v3672 = vunpack.c.l.b16 %v3662
      %v3673 = vunpack.c.l.b16 %v3663
      %v3674 = vunpack.c.l.b16 %v3664
      %v3675 = vpack.c.b16 %v3672, %v3671
      %v3676 = vpack.c.b16 %v3674, %v3673
      %v3678 = vsel %vm660, %v3675, 0
      %v3681 = vsel %vm660, %v3676, 0
      %3683 = vmatprep.subr.bf16.mxu0 0
      %3684 = vmatpush1.bf16.msra.mxu0 %v3665
      %3685 = vmatprep.subr.bf16.mxu0 0
      %3686 = vmatpush1.bf16.msra.mxu0 %v3666
      %3687 = vmatprep.subr.bf16.mxu0 0
      %3688 = vmatpush1.bf16.msra.mxu0 0
      %3689 = vmatprep.subr.bf16.mxu0 0
      %3690 = vmatpush1.bf16.msra.mxu0 0
      %3691 = vmatprep.subr.bf16.mxu0 0
      %3692 = vmatpush1.bf16.msra.mxu0 0
      %3693 = vmatprep.subr.bf16.mxu0 0
      %3694 = vmatpush1.bf16.msra.mxu0 0
      %3695 = vmatprep.subr.bf16.mxu0 0
      %3696 = vmatpush1.bf16.msra.mxu0 0
      %3697 = vmatprep.subr.bf16.mxu0 0
      %3698 = vmatpush1.bf16.msra.mxu0 0
      %3699 = vmatprep.subr.bf16.mxu0 0
      %3700 = vmatpush1.bf16.msra.mxu0 0
      %3701 = vmatprep.subr.bf16.mxu0 0
      %3702 = vmatpush1.bf16.msra.mxu0 0
      %3703 = vmatprep.subr.bf16.mxu0 0
      %3704 = vmatpush1.bf16.msra.mxu0 0
      %3705 = vmatprep.subr.bf16.mxu0 0
      %3706 = vmatpush1.bf16.msra.mxu0 0
      %3707 = vmatprep.subr.bf16.mxu0 0
      %3708 = vmatpush1.bf16.msra.mxu0 0
      %3709 = vmatprep.subr.bf16.mxu0 0
      %3710 = vmatpush1.bf16.msra.mxu0 0
      %3711 = vmatprep.subr.bf16.mxu0 0
      %3712 = vmatpush1.bf16.msra.mxu0 0
      %3713 = vmatprep.subr.bf16.mxu0 0
      %3714 = vmatpush1.bf16.msra.mxu0 0
      %3715 = vmatprep.mubr.bf16.mxu0 0
      %3716 = vmatmul.mubr.bf16.gmra.mrb[0].mxu0 %v3678
      %v3717 = vpop.f32.mrb[0].mxu0
      %v3718 = vadd.f32 0.0, %v3717
      %v3719 = vpop.f32.mrb[0].mxu0
      %v3720 = vpop.f32.mrb[0].mxu0
      %v3721 = vadd.f32 0.0, %v3720
      %v3722 = vpop.f32.mrb[0].mxu0
      %3723 = vmatprep.mubr.bf16.mxu0 0
      %3724 = vmatmul.mubr.bf16.gmra.mrb[0].mxu0 %v3681
      %v3725 = vpop.f32.mrb[0].mxu0
      %v3726 = vadd.f32 0.0, %v3725
      %v3727 = vpop.f32.mrb[0].mxu0
      %v3728 = vpop.f32.mrb[0].mxu0
      %v3729 = vadd.f32 0.0, %v3728
      %v3730 = vpop.f32.mrb[0].mxu0
      %3731 = vdwg.mxu0
      %v3732 = vadd.f32 %v3644, %v3718
      %v3733 = vadd.f32 %v3645, %v3721
      %v3734 = vadd.f32 %v3646, %v3726
      %v3735 = vadd.f32 %v3647, %v3729
      %3736 = vrot.lane.b32.xlu0 %v3043, 119
      %v3737 = vpop.permute.xlu0 %3736
      %3738 = vrot.lane.b32.xlu0 %v3044, 119
      %v3739 = vpop.permute.xlu0 %3738
      %3740 = vrot.lane.b32.xlu0 %v3045, 119
      %v3741 = vpop.permute.xlu0 %3740
      %3742 = vrot.lane.b32.xlu0 %v3046, 119
      %v3743 = vpop.permute.xlu0 %3742
      %v3744 = vmul.f32 %v3737, %v1328
      %v3745 = vmul.f32 %v3739, %v1328
      %v3746 = vmul.f32 %v3741, %v1328
      %v3747 = vmul.f32 %v3743, %v1328
      %s3748 = scalar_lea.vmem %s548, 560
      %v3749 = vld [vmem:[%s3748] sm:$0xf]
      %v3750 = vld [vmem:[%s3748 + $0x4] sm:$0xf]
      %v3751 = vld [vmem:[%s3748 + $0x8] sm:$0xf]
      %v3752 = vld [vmem:[%s3748 + $0xc] sm:$0xf]
      %v3753 = vpack.c.bf16 %v3745, %v3744
      %v3754 = vpack.c.bf16 %v3747, %v3746
      %v3759 = vunpack.c.l.b16 %v3749
      %v3760 = vunpack.c.l.b16 %v3750
      %v3761 = vunpack.c.l.b16 %v3751
      %v3762 = vunpack.c.l.b16 %v3752
      %v3763 = vpack.c.b16 %v3760, %v3759
      %v3764 = vpack.c.b16 %v3762, %v3761
      %v3766 = vsel %vm660, %v3763, 0
      %v3769 = vsel %vm660, %v3764, 0
      %3771 = vmatprep.subr.bf16.mxu0 0
      %3772 = vmatpush1.bf16.msra.mxu0 %v3753
      %3773 = vmatprep.subr.bf16.mxu0 0
      %3774 = vmatpush1.bf16.msra.mxu0 %v3754
      %3775 = vmatprep.subr.bf16.mxu0 0
      %3776 = vmatpush1.bf16.msra.mxu0 0
      %3777 = vmatprep.subr.bf16.mxu0 0
      %3778 = vmatpush1.bf16.msra.mxu0 0
      %3779 = vmatprep.subr.bf16.mxu0 0
      %3780 = vmatpush1.bf16.msra.mxu0 0
      %3781 = vmatprep.subr.bf16.mxu0 0
      %3782 = vmatpush1.bf16.msra.mxu0 0
      %3783 = vmatprep.subr.bf16.mxu0 0
      %3784 = vmatpush1.bf16.msra.mxu0 0
      %3785 = vmatprep.subr.bf16.mxu0 0
      %3786 = vmatpush1.bf16.msra.mxu0 0
      %3787 = vmatprep.subr.bf16.mxu0 0
      %3788 = vmatpush1.bf16.msra.mxu0 0
      %3789 = vmatprep.subr.bf16.mxu0 0
      %3790 = vmatpush1.bf16.msra.mxu0 0
      %3791 = vmatprep.subr.bf16.mxu0 0
      %3792 = vmatpush1.bf16.msra.mxu0 0
      %3793 = vmatprep.subr.bf16.mxu0 0
      %3794 = vmatpush1.bf16.msra.mxu0 0
      %3795 = vmatprep.subr.bf16.mxu0 0
      %3796 = vmatpush1.bf16.msra.mxu0 0
      %3797 = vmatprep.subr.bf16.mxu0 0
      %3798 = vmatpush1.bf16.msra.mxu0 0
      %3799 = vmatprep.subr.bf16.mxu0 0
      %3800 = vmatpush1.bf16.msra.mxu0 0
      %3801 = vmatprep.subr.bf16.mxu0 0
      %3802 = vmatpush1.bf16.msra.mxu0 0
      %3803 = vmatprep.mubr.bf16.mxu0 0
      %3804 = vmatmul.mubr.bf16.gmra.mrb[0].mxu0 %v3766
      %v3805 = vpop.f32.mrb[0].mxu0
      %v3806 = vadd.f32 0.0, %v3805
      %v3807 = vpop.f32.mrb[0].mxu0
      %v3808 = vpop.f32.mrb[0].mxu0
      %v3809 = vadd.f32 0.0, %v3808
      %v3810 = vpop.f32.mrb[0].mxu0
      %3811 = vmatprep.mubr.bf16.mxu0 0
      %3812 = vmatmul.mubr.bf16.gmra.mrb[0].mxu0 %v3769
      %v3813 = vpop.f32.mrb[0].mxu0
      %v3814 = vadd.f32 0.0, %v3813
      %v3815 = vpop.f32.mrb[0].mxu0
      %v3816 = vpop.f32.mrb[0].mxu0
      %v3817 = vadd.f32 0.0, %v3816
      %v3818 = vpop.f32.mrb[0].mxu0
      %3819 = vdwg.mxu0
      %v3820 = vadd.f32 %v3732, %v3806
      %v3821 = vadd.f32 %v3733, %v3809
      %v3822 = vadd.f32 %v3734, %v3814
      %v3823 = vadd.f32 %v3735, %v3817
      %3825 = vset.pattern.permute.xlu0 0
      %3826 = vperm.xlu0 %3825, %v3048
      %v3827 = vpop.permute.xlu0 %3826
      %3830 = vset.pattern.permute.xlu0 0
      %3831 = vperm.xlu0 %3830, %v3049
      %v3832 = vpop.permute.xlu0 %3831
      %3835 = vset.pattern.permute.xlu0 0
      %3836 = vperm.xlu0 %3835, %v3050
      %v3837 = vpop.permute.xlu0 %3836
      %3840 = vset.pattern.permute.xlu0 0
      %3841 = vperm.xlu0 %3840, %v3051
      %v3842 = vpop.permute.xlu0 %3841
      %v3844 = vadd.f32 %v3820, %v3827
      %v3845 = vadd.f32 %v3821, %v3832
      %v3846 = vadd.f32 %v3822, %v3837
      %v3847 = vadd.f32 %v3823, %v3842
      %v3848 = vmax.f32 %v3844, 0.0
      %v3849 = vmax.f32 %v3845, 0.0
      %v3850 = vmax.f32 %v3846, 0.0
      %v3851 = vmax.f32 %v3847, 0.0
      %v3852 = vld [vmem:[%s563] sm:$0xff]
      %v3853 = vld [vmem:[%s563 + $0x8] sm:$0xff]
      %v3854 = vld [vmem:[%s563 + $0x10] sm:$0xff]
      %3855 = vrot.lane.b32.xlu0 %v3848, 9
      %v3856 = vpop.permute.xlu0 %3855
      %3857 = vrot.lane.b32.xlu0 %v3849, 9
      %v3858 = vpop.permute.xlu0 %3857
      %3859 = vrot.lane.b32.xlu0 %v3850, 9
      %v3860 = vpop.permute.xlu0 %3859
      %3861 = vrot.lane.b32.xlu0 %v3851, 9
      %v3862 = vpop.permute.xlu0 %3861
      %v3863 = vmul.f32 %v3856, %v616
      %v3864 = vmul.f32 %v3858, %v616
      %v3865 = vmul.f32 %v3860, %v616
      %v3866 = vmul.f32 %v3862, %v616
      %v3867 = vld [vmem:[%s558] sm:$0xf]
      %v3868 = vld [vmem:[%s558 + $0x4] sm:$0xf]
      %v3869 = vld [vmem:[%s558 + $0x8] sm:$0xf]
      %v3870 = vpack.c.bf16 %v3864, %v3863
      %v3871 = vpack.c.bf16 %v3866, %v3865
      %3872 = vrot.lane.b32.xlu0 %v3848, 8
      %v3873 = vpop.permute.xlu0 %3872
      %3874 = vrot.lane.b32.xlu0 %v3849, 8
      %v3875 = vpop.permute.xlu0 %3874
      %3876 = vrot.lane.b32.xlu0 %v3850, 8
      %v3877 = vpop.permute.xlu0 %3876
      %3878 = vrot.lane.b32.xlu0 %v3851, 8
      %v3879 = vpop.permute.xlu0 %3878
      %v3880 = vmul.f32 %v3873, %v638
      %v3881 = vmul.f32 %v3875, %v638
      %v3882 = vmul.f32 %v3877, %v638
      %v3883 = vmul.f32 %v3879, %v638
      %s3884 = scalar_lea.vmem %s558, 12
      %v3885 = vld [vmem:[%s3884] sm:$0xf]
      %v3886 = vld [vmem:[%s3884 + $0x4] sm:$0xf]
      %v3887 = vld [vmem:[%s3884 + $0x8] sm:$0xf]
      %v3888 = vpack.c.bf16 %v3881, %v3880
      %v3889 = vpack.c.bf16 %v3883, %v3882
      %v3893 = vunpack.c.l.b16 %v3885
      %v3894 = vunpack.c.l.b16 %v3886
      %v3895 = vunpack.c.l.b16 %v3887
      %v3896 = vpack.c.b16 %v3894, %v3893
      %v3897 = vpack.c.b16 %v3895, %v3895
      %v3899 = vsel %vm660, %v3896, 0
      %v3902 = vsel %vm660, %v3897, 0
      %3904 = vmatprep.subr.bf16.mxu0 0
      %3905 = vmatpush1.bf16.msra.mxu0 %v3888
      %3906 = vmatprep.subr.bf16.mxu0 0
      %3907 = vmatpush1.bf16.msra.mxu0 %v3889
      %3908 = vmatprep.subr.bf16.mxu0 0
      %3909 = vmatpush1.bf16.msra.mxu0 0
      %3910 = vmatprep.subr.bf16.mxu0 0
      %3911 = vmatpush1.bf16.msra.mxu0 0
      %3912 = vmatprep.subr.bf16.mxu0 0
      %3913 = vmatpush1.bf16.msra.mxu0 0
      %3914 = vmatprep.subr.bf16.mxu0 0
      %3915 = vmatpush1.bf16.msra.mxu0 0
      %3916 = vmatprep.subr.bf16.mxu0 0
      %3917 = vmatpush1.bf16.msra.mxu0 0
      %3918 = vmatprep.subr.bf16.mxu0 0
      %3919 = vmatpush1.bf16.msra.mxu0 0
      %3920 = vmatprep.subr.bf16.mxu0 0
      %3921 = vmatpush1.bf16.msra.mxu0 0
      %3922 = vmatprep.subr.bf16.mxu0 0
      %3923 = vmatpush1.bf16.msra.mxu0 0
      %3924 = vmatprep.subr.bf16.mxu0 0
      %3925 = vmatpush1.bf16.msra.mxu0 0
      %3926 = vmatprep.subr.bf16.mxu0 0
      %3927 = vmatpush1.bf16.msra.mxu0 0
      %3928 = vmatprep.subr.bf16.mxu0 0
      %3929 = vmatpush1.bf16.msra.mxu0 0
      %3930 = vmatprep.subr.bf16.mxu0 0
      %3931 = vmatpush1.bf16.msra.mxu0 0
      %3932 = vmatprep.subr.bf16.mxu0 0
      %3933 = vmatpush1.bf16.msra.mxu0 0
      %3934 = vmatprep.subr.bf16.mxu0 0
      %3935 = vmatpush1.bf16.msra.mxu0 0
      %3936 = vmatprep.mubr.bf16.mxu0 0
      %3937 = vmatmul.mubr.bf16.gmra.mrb[0].mxu0 %v3899
      %v3938 = vpop.f32.mrb[0].mxu0
      %v3939 = vadd.f32 0.0, %v3938
      %v3940 = vpop.f32.mrb[0].mxu0
      %v3941 = vpop.f32.mrb[0].mxu0
      %v3942 = vadd.f32 0.0, %v3941
      %v3943 = vpop.f32.mrb[0].mxu0
      %3944 = vmatprep.mubr.bf16.mxu0 0
      %3945 = vmatmul.mubr.bf16.gmra.mrb[0].mxu0 %v3902
      %v3946 = vpop.f32.mrb[0].mxu0
      %v3947 = vadd.f32 0.0, %v3946
      %v3948 = vpop.f32.mrb[0].mxu0
      %v3949 = vpop.f32.mrb[0].mxu0
      %v3950 = vpop.f32.mrb[0].mxu0
      %3951 = vdwg.mxu0
      %v3955 = vunpack.c.l.b16 %v3867
      %v3956 = vunpack.c.l.b16 %v3868
      %v3957 = vunpack.c.l.b16 %v3869
      %v3958 = vpack.c.b16 %v3956, %v3955
      %v3959 = vpack.c.b16 %v3957, %v3957
      %v3961 = vsel %vm660, %v3958, 0
      %v3964 = vsel %vm660, %v3959, 0
      %3966 = vmatprep.subr.bf16.mxu0 0
      %3967 = vmatpush1.bf16.msra.mxu0 %v3870
      %3968 = vmatprep.subr.bf16.mxu0 0
      %3969 = vmatpush1.bf16.msra.mxu0 %v3871
      %3970 = vmatprep.subr.bf16.mxu0 0
      %3971 = vmatpush1.bf16.msra.mxu0 0
      %3972 = vmatprep.subr.bf16.mxu0 0
      %3973 = vmatpush1.bf16.msra.mxu0 0
      %3974 = vmatprep.subr.bf16.mxu0 0
      %3975 = vmatpush1.bf16.msra.mxu0 0
      %3976 = vmatprep.subr.bf16.mxu0 0
      %3977 = vmatpush1.bf16.msra.mxu0 0
      %3978 = vmatprep.subr.bf16.mxu0 0
      %3979 = vmatpush1.bf16.msra.mxu0 0
      %3980 = vmatprep.subr.bf16.mxu0 0
      %3981 = vmatpush1.bf16.msra.mxu0 0
      %3982 = vmatprep.subr.bf16.mxu0 0
      %3983 = vmatpush1.bf16.msra.mxu0 0
      %3984 = vmatprep.subr.bf16.mxu0 0
      %3985 = vmatpush1.bf16.msra.mxu0 0
      %3986 = vmatprep.subr.bf16.mxu0 0
      %3987 = vmatpush1.bf16.msra.mxu0 0
      %3988 = vmatprep.subr.bf16.mxu0 0
      %3989 = vmatpush1.bf16.msra.mxu0 0
      %3990 = vmatprep.subr.bf16.mxu0 0
      %3991 = vmatpush1.bf16.msra.mxu0 0
      %3992 = vmatprep.subr.bf16.mxu0 0
      %3993 = vmatpush1.bf16.msra.mxu0 0
      %3994 = vmatprep.subr.bf16.mxu0 0
      %3995 = vmatpush1.bf16.msra.mxu0 0
      %3996 = vmatprep.subr.bf16.mxu0 0
      %3997 = vmatpush1.bf16.msra.mxu0 0
      %3998 = vmatprep.mubr.bf16.mxu0 0
      %3999 = vmatmul.mubr.bf16.gmra.mrb[0].mxu0 %v3961
      %v4000 = vpop.f32.mrb[0].mxu0
      %v4001 = vadd.f32 %v3939, %v4000
      %v4002 = vpop.f32.mrb[0].mxu0
      %v4003 = vpop.f32.mrb[0].mxu0
      %v4004 = vadd.f32 %v3942, %v4003
      %v4005 = vpop.f32.mrb[0].mxu0
      %4006 = vmatprep.mubr.bf16.mxu0 0
      %4007 = vmatmul.mubr.bf16.gmra.mrb[0].mxu0 %v3964
      %v4008 = vpop.f32.mrb[0].mxu0
      %v4009 = vadd.f32 %v3947, %v4008
      %v4010 = vpop.f32.mrb[0].mxu0
      %v4011 = vpop.f32.mrb[0].mxu0
      %v4012 = vpop.f32.mrb[0].mxu0
      %4013 = vdwg.mxu0
      %4014 = vrot.lane.b32.xlu0 %v3848, 7
      %v4015 = vpop.permute.xlu0 %4014
      %4016 = vrot.lane.b32.xlu0 %v3849, 7
      %v4017 = vpop.permute.xlu0 %4016
      %4018 = vrot.lane.b32.xlu0 %v3850, 7
      %v4019 = vpop.permute.xlu0 %4018
      %4020 = vrot.lane.b32.xlu0 %v3851, 7
      %v4021 = vpop.permute.xlu0 %4020
      %v4022 = vmul.f32 %v4015, %v792
      %v4023 = vmul.f32 %v4017, %v792
      %v4024 = vmul.f32 %v4019, %v792
      %v4025 = vmul.f32 %v4021, %v792
      %s4026 = scalar_lea.vmem %s558, 24
      %v4027 = vld [vmem:[%s4026] sm:$0xf]
      %v4028 = vld [vmem:[%s4026 + $0x4] sm:$0xf]
      %v4029 = vld [vmem:[%s4026 + $0x8] sm:$0xf]
      %v4030 = vpack.c.bf16 %v4023, %v4022
      %v4031 = vpack.c.bf16 %v4025, %v4024
      %v4035 = vunpack.c.l.b16 %v4027
      %v4036 = vunpack.c.l.b16 %v4028
      %v4037 = vunpack.c.l.b16 %v4029
      %v4038 = vpack.c.b16 %v4036, %v4035
      %v4039 = vpack.c.b16 %v4037, %v4037
      %v4041 = vsel %vm660, %v4038, 0
      %v4044 = vsel %vm660, %v4039, 0
      %4046 = vmatprep.subr.bf16.mxu0 0
      %4047 = vmatpush1.bf16.msra.mxu0 %v4030
      %4048 = vmatprep.subr.bf16.mxu0 0
      %4049 = vmatpush1.bf16.msra.mxu0 %v4031
      %4050 = vmatprep.subr.bf16.mxu0 0
      %4051 = vmatpush1.bf16.msra.mxu0 0
      %4052 = vmatprep.subr.bf16.mxu0 0
      %4053 = vmatpush1.bf16.msra.mxu0 0
      %4054 = vmatprep.subr.bf16.mxu0 0
      %4055 = vmatpush1.bf16.msra.mxu0 0
      %4056 = vmatprep.subr.bf16.mxu0 0
      %4057 = vmatpush1.bf16.msra.mxu0 0
      %4058 = vmatprep.subr.bf16.mxu0 0
      %4059 = vmatpush1.bf16.msra.mxu0 0
      %4060 = vmatprep.subr.bf16.mxu0 0
      %4061 = vmatpush1.bf16.msra.mxu0 0
      %4062 = vmatprep.subr.bf16.mxu0 0
      %4063 = vmatpush1.bf16.msra.mxu0 0
      %4064 = vmatprep.subr.bf16.mxu0 0
      %4065 = vmatpush1.bf16.msra.mxu0 0
      %4066 = vmatprep.subr.bf16.mxu0 0
      %4067 = vmatpush1.bf16.msra.mxu0 0
      %4068 = vmatprep.subr.bf16.mxu0 0
      %4069 = vmatpush1.bf16.msra.mxu0 0
      %4070 = vmatprep.subr.bf16.mxu0 0
      %4071 = vmatpush1.bf16.msra.mxu0 0
      %4072 = vmatprep.subr.bf16.mxu0 0
      %4073 = vmatpush1.bf16.msra.mxu0 0
      %4074 = vmatprep.subr.bf16.mxu0 0
      %4075 = vmatpush1.bf16.msra.mxu0 0
      %4076 = vmatprep.subr.bf16.mxu0 0
      %4077 = vmatpush1.bf16.msra.mxu0 0
      %4078 = vmatprep.mubr.bf16.mxu0 0
      %4079 = vmatmul.mubr.bf16.gmra.mrb[0].mxu0 %v4041
      %v4080 = vpop.f32.mrb[0].mxu0
      %v4081 = vadd.f32 0.0, %v4080
      %v4082 = vpop.f32.mrb[0].mxu0
      %v4083 = vpop.f32.mrb[0].mxu0
      %v4084 = vadd.f32 0.0, %v4083
      %v4085 = vpop.f32.mrb[0].mxu0
      %4086 = vmatprep.mubr.bf16.mxu0 0
      %4087 = vmatmul.mubr.bf16.gmra.mrb[0].mxu0 %v4044
      %v4088 = vpop.f32.mrb[0].mxu0
      %v4089 = vadd.f32 0.0, %v4088
      %v4090 = vpop.f32.mrb[0].mxu0
      %v4091 = vpop.f32.mrb[0].mxu0
      %v4092 = vpop.f32.mrb[0].mxu0
      %4093 = vdwg.mxu0
      %v4094 = vadd.f32 %v4001, %v4081
      %v4095 = vadd.f32 %v4004, %v4084
      %v4096 = vadd.f32 %v4009, %v4089
      %4097 = vrot.lane.b32.xlu0 %v3848, 1
      %v4098 = vpop.permute.xlu0 %4097
      %4099 = vrot.lane.b32.xlu0 %v3849, 1
      %v4100 = vpop.permute.xlu0 %4099
      %4101 = vrot.lane.b32.xlu0 %v3850, 1
      %v4102 = vpop.permute.xlu0 %4101
      %4103 = vrot.lane.b32.xlu0 %v3851, 1
      %v4104 = vpop.permute.xlu0 %4103
      %v4105 = vmul.f32 %v4098, %v884
      %v4106 = vmul.f32 %v4100, %v884
      %v4107 = vmul.f32 %v4102, %v884
      %v4108 = vmul.f32 %v4104, %v884
      %s4109 = scalar_lea.vmem %s558, 36
      %v4110 = vld [vmem:[%s4109] sm:$0xf]
      %v4111 = vld [vmem:[%s4109 + $0x4] sm:$0xf]
      %v4112 = vld [vmem:[%s4109 + $0x8] sm:$0xf]
      %v4113 = vpack.c.bf16 %v4106, %v4105
      %v4114 = vpack.c.bf16 %v4108, %v4107
      %v4118 = vunpack.c.l.b16 %v4110
      %v4119 = vunpack.c.l.b16 %v4111
      %v4120 = vunpack.c.l.b16 %v4112
      %v4121 = vpack.c.b16 %v4119, %v4118
      %v4122 = vpack.c.b16 %v4120, %v4120
      %v4124 = vsel %vm660, %v4121, 0
      %v4127 = vsel %vm660, %v4122, 0
      %4129 = vmatprep.subr.bf16.mxu0 0
      %4130 = vmatpush1.bf16.msra.mxu0 %v4113
      %4131 = vmatprep.subr.bf16.mxu0 0
      %4132 = vmatpush1.bf16.msra.mxu0 %v4114
      %4133 = vmatprep.subr.bf16.mxu0 0
      %4134 = vmatpush1.bf16.msra.mxu0 0
      %4135 = vmatprep.subr.bf16.mxu0 0
      %4136 = vmatpush1.bf16.msra.mxu0 0
      %4137 = vmatprep.subr.bf16.mxu0 0
      %4138 = vmatpush1.bf16.msra.mxu0 0
      %4139 = vmatprep.subr.bf16.mxu0 0
      %4140 = vmatpush1.bf16.msra.mxu0 0
      %4141 = vmatprep.subr.bf16.mxu0 0
      %4142 = vmatpush1.bf16.msra.mxu0 0
      %4143 = vmatprep.subr.bf16.mxu0 0
      %4144 = vmatpush1.bf16.msra.mxu0 0
      %4145 = vmatprep.subr.bf16.mxu0 0
      %4146 = vmatpush1.bf16.msra.mxu0 0
      %4147 = vmatprep.subr.bf16.mxu0 0
      %4148 = vmatpush1.bf16.msra.mxu0 0
      %4149 = vmatprep.subr.bf16.mxu0 0
      %4150 = vmatpush1.bf16.msra.mxu0 0
      %4151 = vmatprep.subr.bf16.mxu0 0
      %4152 = vmatpush1.bf16.msra.mxu0 0
      %4153 = vmatprep.subr.bf16.mxu0 0
      %4154 = vmatpush1.bf16.msra.mxu0 0
      %4155 = vmatprep.subr.bf16.mxu0 0
      %4156 = vmatpush1.bf16.msra.mxu0 0
      %4157 = vmatprep.subr.bf16.mxu0 0
      %4158 = vmatpush1.bf16.msra.mxu0 0
      %4159 = vmatprep.subr.bf16.mxu0 0
      %4160 = vmatpush1.bf16.msra.mxu0 0
      %4161 = vmatprep.mubr.bf16.mxu0 0
      %4162 = vmatmul.mubr.bf16.gmra.mrb[0].mxu0 %v4124
      %v4163 = vpop.f32.mrb[0].mxu0
      %v4164 = vadd.f32 0.0, %v4163
      %v4165 = vpop.f32.mrb[0].mxu0
      %v4166 = vpop.f32.mrb[0].mxu0
      %v4167 = vadd.f32 0.0, %v4166
      %v4168 = vpop.f32.mrb[0].mxu0
      %4169 = vmatprep.mubr.bf16.mxu0 0
      %4170 = vmatmul.mubr.bf16.gmra.mrb[0].mxu0 %v4127
      %v4171 = vpop.f32.mrb[0].mxu0
      %v4172 = vadd.f32 0.0, %v4171
      %v4173 = vpop.f32.mrb[0].mxu0
      %v4174 = vpop.f32.mrb[0].mxu0
      %v4175 = vpop.f32.mrb[0].mxu0
      %4176 = vdwg.mxu0
      %v4177 = vadd.f32 %v4094, %v4164
      %v4178 = vadd.f32 %v4095, %v4167
      %v4179 = vadd.f32 %v4096, %v4172
      %s4180 = scalar_lea.vmem %s558, 48
      %v4181 = vld [vmem:[%s4180] sm:$0xf]
      %v4182 = vld [vmem:[%s4180 + $0x4] sm:$0xf]
      %v4183 = vld [vmem:[%s4180 + $0x8] sm:$0xf]
      %v4184 = vpack.c.bf16 %v3849, %v3848
      %v4185 = vpack.c.bf16 %v3851, %v3850
      %v4189 = vunpack.c.l.b16 %v4181
      %v4190 = vunpack.c.l.b16 %v4182
      %v4191 = vunpack.c.l.b16 %v4183
      %v4192 = vpack.c.b16 %v4190, %v4189
      %v4193 = vpack.c.b16 %v4191, %v4191
      %v4195 = vsel %vm660, %v4192, 0
      %v4198 = vsel %vm660, %v4193, 0
      %4200 = vmatprep.subr.bf16.mxu0 0
      %4201 = vmatpush1.bf16.msra.mxu0 %v4184
      %4202 = vmatprep.subr.bf16.mxu0 0
      %4203 = vmatpush1.bf16.msra.mxu0 %v4185
      %4204 = vmatprep.subr.bf16.mxu0 0
      %4205 = vmatpush1.bf16.msra.mxu0 0
      %4206 = vmatprep.subr.bf16.mxu0 0
      %4207 = vmatpush1.bf16.msra.mxu0 0
      %4208 = vmatprep.subr.bf16.mxu0 0
      %4209 = vmatpush1.bf16.msra.mxu0 0
      %4210 = vmatprep.subr.bf16.mxu0 0
      %4211 = vmatpush1.bf16.msra.mxu0 0
      %4212 = vmatprep.subr.bf16.mxu0 0
      %4213 = vmatpush1.bf16.msra.mxu0 0
      %4214 = vmatprep.subr.bf16.mxu0 0
      %4215 = vmatpush1.bf16.msra.mxu0 0
      %4216 = vmatprep.subr.bf16.mxu0 0
      %4217 = vmatpush1.bf16.msra.mxu0 0
      %4218 = vmatprep.subr.bf16.mxu0 0
      %4219 = vmatpush1.bf16.msra.mxu0 0
      %4220 = vmatprep.subr.bf16.mxu0 0
      %4221 = vmatpush1.bf16.msra.mxu0 0
      %4222 = vmatprep.subr.bf16.mxu0 0
      %4223 = vmatpush1.bf16.msra.mxu0 0
      %4224 = vmatprep.subr.bf16.mxu0 0
      %4225 = vmatpush1.bf16.msra.mxu0 0
      %4226 = vmatprep.subr.bf16.mxu0 0
      %4227 = vmatpush1.bf16.msra.mxu0 0
      %4228 = vmatprep.subr.bf16.mxu0 0
      %4229 = vmatpush1.bf16.msra.mxu0 0
      %4230 = vmatprep.subr.bf16.mxu0 0
      %4231 = vmatpush1.bf16.msra.mxu0 0
      %4232 = vmatprep.mubr.bf16.mxu0 0
      %4233 = vmatmul.mubr.bf16.gmra.mrb[0].mxu0 %v4195
      %v4234 = vpop.f32.mrb[0].mxu0
      %v4235 = vadd.f32 0.0, %v4234
      %v4236 = vpop.f32.mrb[0].mxu0
      %v4237 = vpop.f32.mrb[0].mxu0
      %v4238 = vadd.f32 0.0, %v4237
      %v4239 = vpop.f32.mrb[0].mxu0
      %4240 = vmatprep.mubr.bf16.mxu0 0
      %4241 = vmatmul.mubr.bf16.gmra.mrb[0].mxu0 %v4198
      %v4242 = vpop.f32.mrb[0].mxu0
      %v4243 = vadd.f32 0.0, %v4242
      %v4244 = vpop.f32.mrb[0].mxu0
      %v4245 = vpop.f32.mrb[0].mxu0
      %v4246 = vpop.f32.mrb[0].mxu0
      %4247 = vdwg.mxu0
      %v4248 = vadd.f32 %v4177, %v4235
      %v4249 = vadd.f32 %v4178, %v4238
      %v4250 = vadd.f32 %v4179, %v4243
      %4251 = vrot.lane.b32.xlu0 %v3848, 127
      %v4252 = vpop.permute.xlu0 %4251
      %4253 = vrot.lane.b32.xlu0 %v3849, 127
      %v4254 = vpop.permute.xlu0 %4253
      %4255 = vrot.lane.b32.xlu0 %v3850, 127
      %v4256 = vpop.permute.xlu0 %4255
      %4257 = vrot.lane.b32.xlu0 %v3851, 127
      %v4258 = vpop.permute.xlu0 %4257
      %v4259 = vmul.f32 %v4252, %v1052
      %v4260 = vmul.f32 %v4254, %v1052
      %v4261 = vmul.f32 %v4256, %v1052
      %v4262 = vmul.f32 %v4258, %v1052
      %s4263 = scalar_lea.vmem %s558, 60
      %v4264 = vld [vmem:[%s4263] sm:$0xf]
      %v4265 = vld [vmem:[%s4263 + $0x4] sm:$0xf]
      %v4266 = vld [vmem:[%s4263 + $0x8] sm:$0xf]
      %v4267 = vpack.c.bf16 %v4260, %v4259
      %v4268 = vpack.c.bf16 %v4262, %v4261
      %v4272 = vunpack.c.l.b16 %v4264
      %v4273 = vunpack.c.l.b16 %v4265
      %v4274 = vunpack.c.l.b16 %v4266
      %v4275 = vpack.c.b16 %v4273, %v4272
      %v4276 = vpack.c.b16 %v4274, %v4274
      %v4278 = vsel %vm660, %v4275, 0
      %v4281 = vsel %vm660, %v4276, 0
      %4283 = vmatprep.subr.bf16.mxu0 0
      %4284 = vmatpush1.bf16.msra.mxu0 %v4267
      %4285 = vmatprep.subr.bf16.mxu0 0
      %4286 = vmatpush1.bf16.msra.mxu0 %v4268
      %4287 = vmatprep.subr.bf16.mxu0 0
      %4288 = vmatpush1.bf16.msra.mxu0 0
      %4289 = vmatprep.subr.bf16.mxu0 0
      %4290 = vmatpush1.bf16.msra.mxu0 0
      %4291 = vmatprep.subr.bf16.mxu0 0
      %4292 = vmatpush1.bf16.msra.mxu0 0
      %4293 = vmatprep.subr.bf16.mxu0 0
      %4294 = vmatpush1.bf16.msra.mxu0 0
      %4295 = vmatprep.subr.bf16.mxu0 0
      %4296 = vmatpush1.bf16.msra.mxu0 0
      %4297 = vmatprep.subr.bf16.mxu0 0
      %4298 = vmatpush1.bf16.msra.mxu0 0
      %4299 = vmatprep.subr.bf16.mxu0 0
      %4300 = vmatpush1.bf16.msra.mxu0 0
      %4301 = vmatprep.subr.bf16.mxu0 0
      %4302 = vmatpush1.bf16.msra.mxu0 0
      %4303 = vmatprep.subr.bf16.mxu0 0
      %4304 = vmatpush1.bf16.msra.mxu0 0
      %4305 = vmatprep.subr.bf16.mxu0 0
      %4306 = vmatpush1.bf16.msra.mxu0 0
      %4307 = vmatprep.subr.bf16.mxu0 0
      %4308 = vmatpush1.bf16.msra.mxu0 0
      %4309 = vmatprep.subr.bf16.mxu0 0
      %4310 = vmatpush1.bf16.msra.mxu0 0
      %4311 = vmatprep.subr.bf16.mxu0 0
      %4312 = vmatpush1.bf16.msra.mxu0 0
      %4313 = vmatprep.subr.bf16.mxu0 0
      %4314 = vmatpush1.bf16.msra.mxu0 0
      %4315 = vmatprep.mubr.bf16.mxu0 0
      %4316 = vmatmul.mubr.bf16.gmra.mrb[0].mxu0 %v4278
      %v4317 = vpop.f32.mrb[0].mxu0
      %v4318 = vadd.f32 0.0, %v4317
      %v4319 = vpop.f32.mrb[0].mxu0
      %v4320 = vpop.f32.mrb[0].mxu0
      %v4321 = vadd.f32 0.0, %v4320
      %v4322 = vpop.f32.mrb[0].mxu0
      %4323 = vmatprep.mubr.bf16.mxu0 0
      %4324 = vmatmul.mubr.bf16.gmra.mrb[0].mxu0 %v4281
      %v4325 = vpop.f32.mrb[0].mxu0
      %v4326 = vadd.f32 0.0, %v4325
      %v4327 = vpop.f32.mrb[0].mxu0
      %v4328 = vpop.f32.mrb[0].mxu0
      %v4329 = vpop.f32.mrb[0].mxu0
      %4330 = vdwg.mxu0
      %v4331 = vadd.f32 %v4248, %v4318
      %v4332 = vadd.f32 %v4249, %v4321
      %v4333 = vadd.f32 %v4250, %v4326
      %4334 = vrot.lane.b32.xlu0 %v3848, 121
      %v4335 = vpop.permute.xlu0 %4334
      %4336 = vrot.lane.b32.xlu0 %v3849, 121
      %v4337 = vpop.permute.xlu0 %4336
      %4338 = vrot.lane.b32.xlu0 %v3850, 121
      %v4339 = vpop.permute.xlu0 %4338
      %4340 = vrot.lane.b32.xlu0 %v3851, 121
      %v4341 = vpop.permute.xlu0 %4340
      %v4342 = vmul.f32 %v4335, %v1144
      %v4343 = vmul.f32 %v4337, %v1144
      %v4344 = vmul.f32 %v4339, %v1144
      %v4345 = vmul.f32 %v4341, %v1144
      %s4346 = scalar_lea.vmem %s558, 72
      %v4347 = vld [vmem:[%s4346] sm:$0xf]
      %v4348 = vld [vmem:[%s4346 + $0x4] sm:$0xf]
      %v4349 = vld [vmem:[%s4346 + $0x8] sm:$0xf]
      %v4350 = vpack.c.bf16 %v4343, %v4342
      %v4351 = vpack.c.bf16 %v4345, %v4344
      %v4355 = vunpack.c.l.b16 %v4347
      %v4356 = vunpack.c.l.b16 %v4348
      %v4357 = vunpack.c.l.b16 %v4349
      %v4358 = vpack.c.b16 %v4356, %v4355
      %v4359 = vpack.c.b16 %v4357, %v4357
      %v4361 = vsel %vm660, %v4358, 0
      %v4364 = vsel %vm660, %v4359, 0
      %4366 = vmatprep.subr.bf16.mxu0 0
      %4367 = vmatpush1.bf16.msra.mxu0 %v4350
      %4368 = vmatprep.subr.bf16.mxu0 0
      %4369 = vmatpush1.bf16.msra.mxu0 %v4351
      %4370 = vmatprep.subr.bf16.mxu0 0
      %4371 = vmatpush1.bf16.msra.mxu0 0
      %4372 = vmatprep.subr.bf16.mxu0 0
      %4373 = vmatpush1.bf16.msra.mxu0 0
      %4374 = vmatprep.subr.bf16.mxu0 0
      %4375 = vmatpush1.bf16.msra.mxu0 0
      %4376 = vmatprep.subr.bf16.mxu0 0
      %4377 = vmatpush1.bf16.msra.mxu0 0
      %4378 = vmatprep.subr.bf16.mxu0 0
      %4379 = vmatpush1.bf16.msra.mxu0 0
      %4380 = vmatprep.subr.bf16.mxu0 0
      %4381 = vmatpush1.bf16.msra.mxu0 0
      %4382 = vmatprep.subr.bf16.mxu0 0
      %4383 = vmatpush1.bf16.msra.mxu0 0
      %4384 = vmatprep.subr.bf16.mxu0 0
      %4385 = vmatpush1.bf16.msra.mxu0 0
      %4386 = vmatprep.subr.bf16.mxu0 0
      %4387 = vmatpush1.bf16.msra.mxu0 0
      %4388 = vmatprep.subr.bf16.mxu0 0
      %4389 = vmatpush1.bf16.msra.mxu0 0
      %4390 = vmatprep.subr.bf16.mxu0 0
      %4391 = vmatpush1.bf16.msra.mxu0 0
      %4392 = vmatprep.subr.bf16.mxu0 0
      %4393 = vmatpush1.bf16.msra.mxu0 0
      %4394 = vmatprep.subr.bf16.mxu0 0
      %4395 = vmatpush1.bf16.msra.mxu0 0
      %4396 = vmatprep.subr.bf16.mxu0 0
      %4397 = vmatpush1.bf16.msra.mxu0 0
      %4398 = vmatprep.mubr.bf16.mxu0 0
      %4399 = vmatmul.mubr.bf16.gmra.mrb[0].mxu0 %v4361
      %v4400 = vpop.f32.mrb[0].mxu0
      %v4401 = vadd.f32 0.0, %v4400
      %v4402 = vpop.f32.mrb[0].mxu0
      %v4403 = vpop.f32.mrb[0].mxu0
      %v4404 = vadd.f32 0.0, %v4403
      %v4405 = vpop.f32.mrb[0].mxu0
      %4406 = vmatprep.mubr.bf16.mxu0 0
      %4407 = vmatmul.mubr.bf16.gmra.mrb[0].mxu0 %v4364
      %v4408 = vpop.f32.mrb[0].mxu0
      %v4409 = vadd.f32 0.0, %v4408
      %v4410 = vpop.f32.mrb[0].mxu0
      %v4411 = vpop.f32.mrb[0].mxu0
      %v4412 = vpop.f32.mrb[0].mxu0
      %4413 = vdwg.mxu0
      %v4414 = vadd.f32 %v4331, %v4401
      %v4415 = vadd.f32 %v4332, %v4404
      %v4416 = vadd.f32 %v4333, %v4409
      %4417 = vrot.lane.b32.xlu0 %v3848, 120
      %v4418 = vpop.permute.xlu0 %4417
      %4419 = vrot.lane.b32.xlu0 %v3849, 120
      %v4420 = vpop.permute.xlu0 %4419
      %4421 = vrot.lane.b32.xlu0 %v3850, 120
      %v4422 = vpop.permute.xlu0 %4421
      %4423 = vrot.lane.b32.xlu0 %v3851, 120
      %v4424 = vpop.permute.xlu0 %4423
      %v4425 = vmul.f32 %v4418, %v1236
      %v4426 = vmul.f32 %v4420, %v1236
      %v4427 = vmul.f32 %v4422, %v1236
      %v4428 = vmul.f32 %v4424, %v1236
      %s4429 = scalar_lea.vmem %s558, 84
      %v4430 = vld [vmem:[%s4429] sm:$0xf]
      %v4431 = vld [vmem:[%s4429 + $0x4] sm:$0xf]
      %v4432 = vld [vmem:[%s4429 + $0x8] sm:$0xf]
      %v4433 = vpack.c.bf16 %v4426, %v4425
      %v4434 = vpack.c.bf16 %v4428, %v4427
      %v4438 = vunpack.c.l.b16 %v4430
      %v4439 = vunpack.c.l.b16 %v4431
      %v4440 = vunpack.c.l.b16 %v4432
      %v4441 = vpack.c.b16 %v4439, %v4438
      %v4442 = vpack.c.b16 %v4440, %v4440
      %v4444 = vsel %vm660, %v4441, 0
      %v4447 = vsel %vm660, %v4442, 0
      %4449 = vmatprep.subr.bf16.mxu0 0
      %4450 = vmatpush1.bf16.msra.mxu0 %v4433
      %4451 = vmatprep.subr.bf16.mxu0 0
      %4452 = vmatpush1.bf16.msra.mxu0 %v4434
      %4453 = vmatprep.subr.bf16.mxu0 0
      %4454 = vmatpush1.bf16.msra.mxu0 0
      %4455 = vmatprep.subr.bf16.mxu0 0
      %4456 = vmatpush1.bf16.msra.mxu0 0
      %4457 = vmatprep.subr.bf16.mxu0 0
      %4458 = vmatpush1.bf16.msra.mxu0 0
      %4459 = vmatprep.subr.bf16.mxu0 0
      %4460 = vmatpush1.bf16.msra.mxu0 0
      %4461 = vmatprep.subr.bf16.mxu0 0
      %4462 = vmatpush1.bf16.msra.mxu0 0
      %4463 = vmatprep.subr.bf16.mxu0 0
      %4464 = vmatpush1.bf16.msra.mxu0 0
      %4465 = vmatprep.subr.bf16.mxu0 0
      %4466 = vmatpush1.bf16.msra.mxu0 0
      %4467 = vmatprep.subr.bf16.mxu0 0
      %4468 = vmatpush1.bf16.msra.mxu0 0
      %4469 = vmatprep.subr.bf16.mxu0 0
      %4470 = vmatpush1.bf16.msra.mxu0 0
      %4471 = vmatprep.subr.bf16.mxu0 0
      %4472 = vmatpush1.bf16.msra.mxu0 0
      %4473 = vmatprep.subr.bf16.mxu0 0
      %4474 = vmatpush1.bf16.msra.mxu0 0
      %4475 = vmatprep.subr.bf16.mxu0 0
      %4476 = vmatpush1.bf16.msra.mxu0 0
      %4477 = vmatprep.subr.bf16.mxu0 0
      %4478 = vmatpush1.bf16.msra.mxu0 0
      %4479 = vmatprep.subr.bf16.mxu0 0
      %4480 = vmatpush1.bf16.msra.mxu0 0
      %4481 = vmatprep.mubr.bf16.mxu0 0
      %4482 = vmatmul.mubr.bf16.gmra.mrb[0].mxu0 %v4444
      %v4483 = vpop.f32.mrb[0].mxu0
      %v4484 = vadd.f32 0.0, %v4483
      %v4485 = vpop.f32.mrb[0].mxu0
      %v4486 = vpop.f32.mrb[0].mxu0
      %v4487 = vadd.f32 0.0, %v4486
      %v4488 = vpop.f32.mrb[0].mxu0
      %4489 = vmatprep.mubr.bf16.mxu0 0
      %4490 = vmatmul.mubr.bf16.gmra.mrb[0].mxu0 %v4447
      %v4491 = vpop.f32.mrb[0].mxu0
      %v4492 = vadd.f32 0.0, %v4491
      %v4493 = vpop.f32.mrb[0].mxu0
      %v4494 = vpop.f32.mrb[0].mxu0
      %v4495 = vpop.f32.mrb[0].mxu0
      %4496 = vdwg.mxu0
      %v4497 = vadd.f32 %v4414, %v4484
      %v4498 = vadd.f32 %v4415, %v4487
      %v4499 = vadd.f32 %v4416, %v4492
      %4500 = vrot.lane.b32.xlu0 %v3848, 119
      %v4501 = vpop.permute.xlu0 %4500
      %4502 = vrot.lane.b32.xlu0 %v3849, 119
      %v4503 = vpop.permute.xlu0 %4502
      %4504 = vrot.lane.b32.xlu0 %v3850, 119
      %v4505 = vpop.permute.xlu0 %4504
      %4506 = vrot.lane.b32.xlu0 %v3851, 119
      %v4507 = vpop.permute.xlu0 %4506
      %v4508 = vmul.f32 %v4501, %v1328
      %v4509 = vmul.f32 %v4503, %v1328
      %v4510 = vmul.f32 %v4505, %v1328
      %v4511 = vmul.f32 %v4507, %v1328
      %s4512 = scalar_lea.vmem %s558, 96
      %v4513 = vld [vmem:[%s4512] sm:$0xf]
      %v4514 = vld [vmem:[%s4512 + $0x4] sm:$0xf]
      %v4515 = vld [vmem:[%s4512 + $0x8] sm:$0xf]
      %v4516 = vpack.c.bf16 %v4509, %v4508
      %v4517 = vpack.c.bf16 %v4511, %v4510
      %v4521 = vunpack.c.l.b16 %v4513
      %v4522 = vunpack.c.l.b16 %v4514
      %v4523 = vunpack.c.l.b16 %v4515
      %v4524 = vpack.c.b16 %v4522, %v4521
      %v4525 = vpack.c.b16 %v4523, %v4523
      %v4527 = vsel %vm660, %v4524, 0
      %v4530 = vsel %vm660, %v4525, 0
      %4532 = vmatprep.subr.bf16.mxu0 0
      %4533 = vmatpush1.bf16.msra.mxu0 %v4516
      %4534 = vmatprep.subr.bf16.mxu0 0
      %4535 = vmatpush1.bf16.msra.mxu0 %v4517
      %4536 = vmatprep.subr.bf16.mxu0 0
      %4537 = vmatpush1.bf16.msra.mxu0 0
      %4538 = vmatprep.subr.bf16.mxu0 0
      %4539 = vmatpush1.bf16.msra.mxu0 0
      %4540 = vmatprep.subr.bf16.mxu0 0
      %4541 = vmatpush1.bf16.msra.mxu0 0
      %4542 = vmatprep.subr.bf16.mxu0 0
      %4543 = vmatpush1.bf16.msra.mxu0 0
      %4544 = vmatprep.subr.bf16.mxu0 0
      %4545 = vmatpush1.bf16.msra.mxu0 0
      %4546 = vmatprep.subr.bf16.mxu0 0
      %4547 = vmatpush1.bf16.msra.mxu0 0
      %4548 = vmatprep.subr.bf16.mxu0 0
      %4549 = vmatpush1.bf16.msra.mxu0 0
      %4550 = vmatprep.subr.bf16.mxu0 0
      %4551 = vmatpush1.bf16.msra.mxu0 0
      %4552 = vmatprep.subr.bf16.mxu0 0
      %4553 = vmatpush1.bf16.msra.mxu0 0
      %4554 = vmatprep.subr.bf16.mxu0 0
      %4555 = vmatpush1.bf16.msra.mxu0 0
      %4556 = vmatprep.subr.bf16.mxu0 0
      %4557 = vmatpush1.bf16.msra.mxu0 0
      %4558 = vmatprep.subr.bf16.mxu0 0
      %4559 = vmatpush1.bf16.msra.mxu0 0
      %4560 = vmatprep.subr.bf16.mxu0 0
      %4561 = vmatpush1.bf16.msra.mxu0 0
      %4562 = vmatprep.subr.bf16.mxu0 0
      %4563 = vmatpush1.bf16.msra.mxu0 0
      %4564 = vmatprep.mubr.bf16.mxu0 0
      %4565 = vmatmul.mubr.bf16.gmra.mrb[0].mxu0 %v4527
      %v4566 = vpop.f32.mrb[0].mxu0
      %v4567 = vadd.f32 0.0, %v4566
      %v4568 = vpop.f32.mrb[0].mxu0
      %v4569 = vpop.f32.mrb[0].mxu0
      %v4570 = vadd.f32 0.0, %v4569
      %v4571 = vpop.f32.mrb[0].mxu0
      %4572 = vmatprep.mubr.bf16.mxu0 0
      %4573 = vmatmul.mubr.bf16.gmra.mrb[0].mxu0 %v4530
      %v4574 = vpop.f32.mrb[0].mxu0
      %v4575 = vadd.f32 0.0, %v4574
      %v4576 = vpop.f32.mrb[0].mxu0
      %v4577 = vpop.f32.mrb[0].mxu0
      %v4578 = vpop.f32.mrb[0].mxu0
      %4579 = vdwg.mxu0
      %v4580 = vadd.f32 %v4497, %v4567
      %v4581 = vadd.f32 %v4498, %v4570
      %v4582 = vadd.f32 %v4499, %v4575
      %4584 = vset.pattern.permute.xlu0 0
      %4585 = vperm.xlu0 %4584, %v3852
      %v4586 = vpop.permute.xlu0 %4585
      %4589 = vset.pattern.permute.xlu0 0
      %4590 = vperm.xlu0 %4589, %v3853
      %v4591 = vpop.permute.xlu0 %4590
      %4594 = vset.pattern.permute.xlu0 0
      %4595 = vperm.xlu0 %4594, %v3854
      %v4596 = vpop.permute.xlu0 %4595
      %v4598 = vadd.f32 %v4580, %v4586
      %v4599 = vadd.f32 %v4581, %v4591
      %v4600 = vadd.f32 %v4582, %v4596
      %4601 = vst [vmem:[%s588] sm:$0xff] %v4598
      %4602 = vst [vmem:[%s588 + $0x8] sm:$0xff] %v4599
      %4603 = vst [vmem:[%s588 + $0x10] sm:$0xff] %v4600
      %v4604 = vld [vmem:[%s3] sm:$0xff]
      %v4605 = vld [vmem:[%s3 + $0x8] sm:$0x1]
      %v4606 = vld [vmem:[%s1] sm:$0xff]
      %v4607 = vld [vmem:[%s1 + $0x8] sm:$0xff]
      %v4608 = vld [vmem:[%s1 + $0x10] sm:$0xff]
      %v4609 = vld [vmem:[%s1 + $0x18] sm:$0xff]
      %v4610 = vld [vmem:[%s573] sm:$0xff]
      %v4611 = vld [vmem:[%s573 + $0x8] sm:$0xff]
      %v4612 = vld [vmem:[%s573 + $0x10] sm:$0xff]
      %v4613 = vld [vmem:[%s573 + $0x18] sm:$0xff]
      %4614 = vrot.lane.b32.xlu0 %v4606, 5
      %v4615 = vpop.permute.xlu0 %4614
      %4616 = vrot.lane.b32.xlu0 %v4607, 5
      %v4617 = vpop.permute.xlu0 %4616
      %4618 = vrot.lane.b32.xlu0 %v4608, 5
      %v4619 = vpop.permute.xlu0 %4618
      %4620 = vrot.lane.b32.xlu0 %v4609, 5
      %v4621 = vpop.permute.xlu0 %4620
      %v4622 = vlaneseq
      %v4623 = vshrl.u32 %v4622, 7
      %v4624 = vsub.s32 0, %v4623
      %v4625 = vrot.slane %v4604, %v4624
      %v4626 = vmul.f32 %v4615, %v4625
      %v4627 = vmul.f32 %v4617, %v4625
      %v4628 = vmul.f32 %v4619, %v4625
      %v4629 = vmul.f32 %v4621, %v4625
      %v4630 = vld [vmem:[%s568] sm:$0xf]
      %v4631 = vld [vmem:[%s568 + $0x4] sm:$0xf]
      %v4632 = vld [vmem:[%s568 + $0x8] sm:$0xf]
      %v4633 = vld [vmem:[%s568 + $0xc] sm:$0xf]
      %v4634 = vpack.c.bf16 %v4627, %v4626
      %v4635 = vpack.c.bf16 %v4629, %v4628
      %4636 = vrot.lane.b32.xlu0 %v4606, 4
      %v4637 = vpop.permute.xlu0 %4636
      %4638 = vrot.lane.b32.xlu0 %v4607, 4
      %v4639 = vpop.permute.xlu0 %4638
      %4640 = vrot.lane.b32.xlu0 %v4608, 4
      %v4641 = vpop.permute.xlu0 %4640
      %4642 = vrot.lane.b32.xlu0 %v4609, 4
      %v4643 = vpop.permute.xlu0 %4642
      %v4644 = vlaneseq
      %v4645 = vshrl.u32 %v4644, 7
      %v4646 = vsub.s32 1, %v4645
      %v4647 = vrot.slane %v4604, %v4646
      %v4648 = vmul.f32 %v4637, %v4647
      %v4649 = vmul.f32 %v4639, %v4647
      %v4650 = vmul.f32 %v4641, %v4647
      %v4651 = vmul.f32 %v4643, %v4647
      %s4652 = scalar_lea.vmem %s568, 16
      %v4653 = vld [vmem:[%s4652] sm:$0xf]
      %v4654 = vld [vmem:[%s4652 + $0x4] sm:$0xf]
      %v4655 = vld [vmem:[%s4652 + $0x8] sm:$0xf]
      %v4656 = vld [vmem:[%s4652 + $0xc] sm:$0xf]
      %v4657 = vpack.c.bf16 %v4649, %v4648
      %v4658 = vpack.c.bf16 %v4651, %v4650
      %v4663 = vunpack.c.l.b16 %v4653
      %v4664 = vunpack.c.l.b16 %v4654
      %v4665 = vunpack.c.l.b16 %v4655
      %v4666 = vunpack.c.l.b16 %v4656
      %v4667 = vpack.c.b16 %v4664, %v4663
      %v4668 = vpack.c.b16 %v4666, %v4665
      %v4670 = vsel %vm660, %v4667, 0
      %v4673 = vsel %vm660, %v4668, 0
      %4675 = vmatprep.subr.bf16.mxu0 0
      %4676 = vmatpush1.bf16.msra.mxu0 %v4657
      %4677 = vmatprep.subr.bf16.mxu0 0
      %4678 = vmatpush1.bf16.msra.mxu0 %v4658
      %4679 = vmatprep.subr.bf16.mxu0 0
      %4680 = vmatpush1.bf16.msra.mxu0 0
      %4681 = vmatprep.subr.bf16.mxu0 0
      %4682 = vmatpush1.bf16.msra.mxu0 0
      %4683 = vmatprep.subr.bf16.mxu0 0
      %4684 = vmatpush1.bf16.msra.mxu0 0
      %4685 = vmatprep.subr.bf16.mxu0 0
      %4686 = vmatpush1.bf16.msra.mxu0 0
      %4687 = vmatprep.subr.bf16.mxu0 0
      %4688 = vmatpush1.bf16.msra.mxu0 0
      %4689 = vmatprep.subr.bf16.mxu0 0
      %4690 = vmatpush1.bf16.msra.mxu0 0
      %4691 = vmatprep.subr.bf16.mxu0 0
      %4692 = vmatpush1.bf16.msra.mxu0 0
      %4693 = vmatprep.subr.bf16.mxu0 0
      %4694 = vmatpush1.bf16.msra.mxu0 0
      %4695 = vmatprep.subr.bf16.mxu0 0
      %4696 = vmatpush1.bf16.msra.mxu0 0
      %4697 = vmatprep.subr.bf16.mxu0 0
      %4698 = vmatpush1.bf16.msra.mxu0 0
      %4699 = vmatprep.subr.bf16.mxu0 0
      %4700 = vmatpush1.bf16.msra.mxu0 0
      %4701 = vmatprep.subr.bf16.mxu0 0
      %4702 = vmatpush1.bf16.msra.mxu0 0
      %4703 = vmatprep.subr.bf16.mxu0 0
      %4704 = vmatpush1.bf16.msra.mxu0 0
      %4705 = vmatprep.subr.bf16.mxu0 0
      %4706 = vmatpush1.bf16.msra.mxu0 0
      %4707 = vmatprep.mubr.bf16.mxu0 0
      %4708 = vmatmul.mubr.bf16.gmra.mrb[0].mxu0 %v4670
      %v4709 = vpop.f32.mrb[0].mxu0
      %v4710 = vadd.f32 0.0, %v4709
      %v4711 = vpop.f32.mrb[0].mxu0
      %v4712 = vpop.f32.mrb[0].mxu0
      %v4713 = vadd.f32 0.0, %v4712
      %v4714 = vpop.f32.mrb[0].mxu0
      %4715 = vmatprep.mubr.bf16.mxu0 0
      %4716 = vmatmul.mubr.bf16.gmra.mrb[0].mxu0 %v4673
      %v4717 = vpop.f32.mrb[0].mxu0
      %v4718 = vadd.f32 0.0, %v4717
      %v4719 = vpop.f32.mrb[0].mxu0
      %v4720 = vpop.f32.mrb[0].mxu0
      %v4721 = vadd.f32 0.0, %v4720
      %v4722 = vpop.f32.mrb[0].mxu0
      %4723 = vdwg.mxu0
      %v4728 = vunpack.c.l.b16 %v4630
      %v4729 = vunpack.c.l.b16 %v4631
      %v4730 = vunpack.c.l.b16 %v4632
      %v4731 = vunpack.c.l.b16 %v4633
      %v4732 = vpack.c.b16 %v4729, %v4728
      %v4733 = vpack.c.b16 %v4731, %v4730
      %v4735 = vsel %vm660, %v4732, 0
      %v4738 = vsel %vm660, %v4733, 0
      %4740 = vmatprep.subr.bf16.mxu0 0
      %4741 = vmatpush1.bf16.msra.mxu0 %v4634
      %4742 = vmatprep.subr.bf16.mxu0 0
      %4743 = vmatpush1.bf16.msra.mxu0 %v4635
      %4744 = vmatprep.subr.bf16.mxu0 0
      %4745 = vmatpush1.bf16.msra.mxu0 0
      %4746 = vmatprep.subr.bf16.mxu0 0
      %4747 = vmatpush1.bf16.msra.mxu0 0
      %4748 = vmatprep.subr.bf16.mxu0 0
      %4749 = vmatpush1.bf16.msra.mxu0 0
      %4750 = vmatprep.subr.bf16.mxu0 0
      %4751 = vmatpush1.bf16.msra.mxu0 0
      %4752 = vmatprep.subr.bf16.mxu0 0
      %4753 = vmatpush1.bf16.msra.mxu0 0
      %4754 = vmatprep.subr.bf16.mxu0 0
      %4755 = vmatpush1.bf16.msra.mxu0 0
      %4756 = vmatprep.subr.bf16.mxu0 0
      %4757 = vmatpush1.bf16.msra.mxu0 0
      %4758 = vmatprep.subr.bf16.mxu0 0
      %4759 = vmatpush1.bf16.msra.mxu0 0
      %4760 = vmatprep.subr.bf16.mxu0 0
      %4761 = vmatpush1.bf16.msra.mxu0 0
      %4762 = vmatprep.subr.bf16.mxu0 0
      %4763 = vmatpush1.bf16.msra.mxu0 0
      %4764 = vmatprep.subr.bf16.mxu0 0
      %4765 = vmatpush1.bf16.msra.mxu0 0
      %4766 = vmatprep.subr.bf16.mxu0 0
      %4767 = vmatpush1.bf16.msra.mxu0 0
      %4768 = vmatprep.subr.bf16.mxu0 0
      %4769 = vmatpush1.bf16.msra.mxu0 0
      %4770 = vmatprep.subr.bf16.mxu0 0
      %4771 = vmatpush1.bf16.msra.mxu0 0
      %4772 = vmatprep.mubr.bf16.mxu0 0
      %4773 = vmatmul.mubr.bf16.gmra.mrb[0].mxu0 %v4735
      %v4774 = vpop.f32.mrb[0].mxu0
      %v4775 = vadd.f32 %v4710, %v4774
      %v4776 = vpop.f32.mrb[0].mxu0
      %v4777 = vpop.f32.mrb[0].mxu0
      %v4778 = vadd.f32 %v4713, %v4777
      %v4779 = vpop.f32.mrb[0].mxu0
      %4780 = vmatprep.mubr.bf16.mxu0 0
      %4781 = vmatmul.mubr.bf16.gmra.mrb[0].mxu0 %v4738
      %v4782 = vpop.f32.mrb[0].mxu0
      %v4783 = vadd.f32 %v4718, %v4782
      %v4784 = vpop.f32.mrb[0].mxu0
      %v4785 = vpop.f32.mrb[0].mxu0
      %v4786 = vadd.f32 %v4721, %v4785
      %v4787 = vpop.f32.mrb[0].mxu0
      %4788 = vdwg.mxu0
      %4789 = vrot.lane.b32.xlu0 %v4606, 3
      %v4790 = vpop.permute.xlu0 %4789
      %4791 = vrot.lane.b32.xlu0 %v4607, 3
      %v4792 = vpop.permute.xlu0 %4791
      %4793 = vrot.lane.b32.xlu0 %v4608, 3
      %v4794 = vpop.permute.xlu0 %4793
      %4795 = vrot.lane.b32.xlu0 %v4609, 3
      %v4796 = vpop.permute.xlu0 %4795
      %v4797 = vlaneseq
      %v4798 = vshrl.u32 %v4797, 7
      %v4799 = vsub.s32 2, %v4798
      %v4800 = vrot.slane %v4604, %v4799
      %v4801 = vmul.f32 %v4790, %v4800
      %v4802 = vmul.f32 %v4792, %v4800
      %v4803 = vmul.f32 %v4794, %v4800
      %v4804 = vmul.f32 %v4796, %v4800
      %s4805 = scalar_lea.vmem %s568, 32
      %v4806 = vld [vmem:[%s4805] sm:$0xf]
      %v4807 = vld [vmem:[%s4805 + $0x4] sm:$0xf]
      %v4808 = vld [vmem:[%s4805 + $0x8] sm:$0xf]
      %v4809 = vld [vmem:[%s4805 + $0xc] sm:$0xf]
      %v4810 = vpack.c.bf16 %v4802, %v4801
      %v4811 = vpack.c.bf16 %v4804, %v4803
      %v4816 = vunpack.c.l.b16 %v4806
      %v4817 = vunpack.c.l.b16 %v4807
      %v4818 = vunpack.c.l.b16 %v4808
      %v4819 = vunpack.c.l.b16 %v4809
      %v4820 = vpack.c.b16 %v4817, %v4816
      %v4821 = vpack.c.b16 %v4819, %v4818
      %v4823 = vsel %vm660, %v4820, 0
      %v4826 = vsel %vm660, %v4821, 0
      %4828 = vmatprep.subr.bf16.mxu0 0
      %4829 = vmatpush1.bf16.msra.mxu0 %v4810
      %4830 = vmatprep.subr.bf16.mxu0 0
      %4831 = vmatpush1.bf16.msra.mxu0 %v4811
      %4832 = vmatprep.subr.bf16.mxu0 0
      %4833 = vmatpush1.bf16.msra.mxu0 0
      %4834 = vmatprep.subr.bf16.mxu0 0
      %4835 = vmatpush1.bf16.msra.mxu0 0
      %4836 = vmatprep.subr.bf16.mxu0 0
      %4837 = vmatpush1.bf16.msra.mxu0 0
      %4838 = vmatprep.subr.bf16.mxu0 0
      %4839 = vmatpush1.bf16.msra.mxu0 0
      %4840 = vmatprep.subr.bf16.mxu0 0
      %4841 = vmatpush1.bf16.msra.mxu0 0
      %4842 = vmatprep.subr.bf16.mxu0 0
      %4843 = vmatpush1.bf16.msra.mxu0 0
      %4844 = vmatprep.subr.bf16.mxu0 0
      %4845 = vmatpush1.bf16.msra.mxu0 0
      %4846 = vmatprep.subr.bf16.mxu0 0
      %4847 = vmatpush1.bf16.msra.mxu0 0
      %4848 = vmatprep.subr.bf16.mxu0 0
      %4849 = vmatpush1.bf16.msra.mxu0 0
      %4850 = vmatprep.subr.bf16.mxu0 0
      %4851 = vmatpush1.bf16.msra.mxu0 0
      %4852 = vmatprep.subr.bf16.mxu0 0
      %4853 = vmatpush1.bf16.msra.mxu0 0
      %4854 = vmatprep.subr.bf16.mxu0 0
      %4855 = vmatpush1.bf16.msra.mxu0 0
      %4856 = vmatprep.subr.bf16.mxu0 0
      %4857 = vmatpush1.bf16.msra.mxu0 0
      %4858 = vmatprep.subr.bf16.mxu0 0
      %4859 = vmatpush1.bf16.msra.mxu0 0
      %4860 = vmatprep.mubr.bf16.mxu0 0
      %4861 = vmatmul.mubr.bf16.gmra.mrb[0].mxu0 %v4823
      %v4862 = vpop.f32.mrb[0].mxu0
      %v4863 = vadd.f32 0.0, %v4862
      %v4864 = vpop.f32.mrb[0].mxu0
      %v4865 = vpop.f32.mrb[0].mxu0
      %v4866 = vadd.f32 0.0, %v4865
      %v4867 = vpop.f32.mrb[0].mxu0
      %4868 = vmatprep.mubr.bf16.mxu0 0
      %4869 = vmatmul.mubr.bf16.gmra.mrb[0].mxu0 %v4826
      %v4870 = vpop.f32.mrb[0].mxu0
      %v4871 = vadd.f32 0.0, %v4870
      %v4872 = vpop.f32.mrb[0].mxu0
      %v4873 = vpop.f32.mrb[0].mxu0
      %v4874 = vadd.f32 0.0, %v4873
      %v4875 = vpop.f32.mrb[0].mxu0
      %4876 = vdwg.mxu0
      %v4877 = vadd.f32 %v4775, %v4863
      %v4878 = vadd.f32 %v4778, %v4866
      %v4879 = vadd.f32 %v4783, %v4871
      %v4880 = vadd.f32 %v4786, %v4874
      %4881 = vrot.lane.b32.xlu0 %v4606, 1
      %v4882 = vpop.permute.xlu0 %4881
      %4883 = vrot.lane.b32.xlu0 %v4607, 1
      %v4884 = vpop.permute.xlu0 %4883
      %4885 = vrot.lane.b32.xlu0 %v4608, 1
      %v4886 = vpop.permute.xlu0 %4885
      %4887 = vrot.lane.b32.xlu0 %v4609, 1
      %v4888 = vpop.permute.xlu0 %4887
      %v4889 = vlaneseq
      %v4890 = vshrl.u32 %v4889, 7
      %v4891 = vsub.s32 3, %v4890
      %v4892 = vrot.slane %v4604, %v4891
      %v4893 = vmul.f32 %v4882, %v4892
      %v4894 = vmul.f32 %v4884, %v4892
      %v4895 = vmul.f32 %v4886, %v4892
      %v4896 = vmul.f32 %v4888, %v4892
      %s4897 = scalar_lea.vmem %s568, 48
      %v4898 = vld [vmem:[%s4897] sm:$0xf]
      %v4899 = vld [vmem:[%s4897 + $0x4] sm:$0xf]
      %v4900 = vld [vmem:[%s4897 + $0x8] sm:$0xf]
      %v4901 = vld [vmem:[%s4897 + $0xc] sm:$0xf]
      %v4902 = vpack.c.bf16 %v4894, %v4893
      %v4903 = vpack.c.bf16 %v4896, %v4895
      %v4908 = vunpack.c.l.b16 %v4898
      %v4909 = vunpack.c.l.b16 %v4899
      %v4910 = vunpack.c.l.b16 %v4900
      %v4911 = vunpack.c.l.b16 %v4901
      %v4912 = vpack.c.b16 %v4909, %v4908
      %v4913 = vpack.c.b16 %v4911, %v4910
      %v4915 = vsel %vm660, %v4912, 0
      %v4918 = vsel %vm660, %v4913, 0
      %4920 = vmatprep.subr.bf16.mxu0 0
      %4921 = vmatpush1.bf16.msra.mxu0 %v4902
      %4922 = vmatprep.subr.bf16.mxu0 0
      %4923 = vmatpush1.bf16.msra.mxu0 %v4903
      %4924 = vmatprep.subr.bf16.mxu0 0
      %4925 = vmatpush1.bf16.msra.mxu0 0
      %4926 = vmatprep.subr.bf16.mxu0 0
      %4927 = vmatpush1.bf16.msra.mxu0 0
      %4928 = vmatprep.subr.bf16.mxu0 0
      %4929 = vmatpush1.bf16.msra.mxu0 0
      %4930 = vmatprep.subr.bf16.mxu0 0
      %4931 = vmatpush1.bf16.msra.mxu0 0
      %4932 = vmatprep.subr.bf16.mxu0 0
      %4933 = vmatpush1.bf16.msra.mxu0 0
      %4934 = vmatprep.subr.bf16.mxu0 0
      %4935 = vmatpush1.bf16.msra.mxu0 0
      %4936 = vmatprep.subr.bf16.mxu0 0
      %4937 = vmatpush1.bf16.msra.mxu0 0
      %4938 = vmatprep.subr.bf16.mxu0 0
      %4939 = vmatpush1.bf16.msra.mxu0 0
      %4940 = vmatprep.subr.bf16.mxu0 0
      %4941 = vmatpush1.bf16.msra.mxu0 0
      %4942 = vmatprep.subr.bf16.mxu0 0
      %4943 = vmatpush1.bf16.msra.mxu0 0
      %4944 = vmatprep.subr.bf16.mxu0 0
      %4945 = vmatpush1.bf16.msra.mxu0 0
      %4946 = vmatprep.subr.bf16.mxu0 0
      %4947 = vmatpush1.bf16.msra.mxu0 0
      %4948 = vmatprep.subr.bf16.mxu0 0
      %4949 = vmatpush1.bf16.msra.mxu0 0
      %4950 = vmatprep.subr.bf16.mxu0 0
      %4951 = vmatpush1.bf16.msra.mxu0 0
      %4952 = vmatprep.mubr.bf16.mxu0 0
      %4953 = vmatmul.mubr.bf16.gmra.mrb[0].mxu0 %v4915
      %v4954 = vpop.f32.mrb[0].mxu0
      %v4955 = vadd.f32 0.0, %v4954
      %v4956 = vpop.f32.mrb[0].mxu0
      %v4957 = vpop.f32.mrb[0].mxu0
      %v4958 = vadd.f32 0.0, %v4957
      %v4959 = vpop.f32.mrb[0].mxu0
      %4960 = vmatprep.mubr.bf16.mxu0 0
      %4961 = vmatmul.mubr.bf16.gmra.mrb[0].mxu0 %v4918
      %v4962 = vpop.f32.mrb[0].mxu0
      %v4963 = vadd.f32 0.0, %v4962
      %v4964 = vpop.f32.mrb[0].mxu0
      %v4965 = vpop.f32.mrb[0].mxu0
      %v4966 = vadd.f32 0.0, %v4965
      %v4967 = vpop.f32.mrb[0].mxu0
      %4968 = vdwg.mxu0
      %v4969 = vadd.f32 %v4877, %v4955
      %v4970 = vadd.f32 %v4878, %v4958
      %v4971 = vadd.f32 %v4879, %v4963
      %v4972 = vadd.f32 %v4880, %v4966
      %s4973 = scalar_lea.vmem %s568, 64
      %v4974 = vld [vmem:[%s4973] sm:$0xf]
      %v4975 = vld [vmem:[%s4973 + $0x4] sm:$0xf]
      %v4976 = vld [vmem:[%s4973 + $0x8] sm:$0xf]
      %v4977 = vld [vmem:[%s4973 + $0xc] sm:$0xf]
      %v4978 = vpack.c.bf16 %v4607, %v4606
      %v4979 = vpack.c.bf16 %v4609, %v4608
      %v4984 = vunpack.c.l.b16 %v4974
      %v4985 = vunpack.c.l.b16 %v4975
      %v4986 = vunpack.c.l.b16 %v4976
      %v4987 = vunpack.c.l.b16 %v4977
      %v4988 = vpack.c.b16 %v4985, %v4984
      %v4989 = vpack.c.b16 %v4987, %v4986
      %v4991 = vsel %vm660, %v4988, 0
      %v4994 = vsel %vm660, %v4989, 0
      %4996 = vmatprep.subr.bf16.mxu0 0
      %4997 = vmatpush1.bf16.msra.mxu0 %v4978
      %4998 = vmatprep.subr.bf16.mxu0 0
      %4999 = vmatpush1.bf16.msra.mxu0 %v4979
      %5000 = vmatprep.subr.bf16.mxu0 0
      %5001 = vmatpush1.bf16.msra.mxu0 0
      %5002 = vmatprep.subr.bf16.mxu0 0
      %5003 = vmatpush1.bf16.msra.mxu0 0
      %5004 = vmatprep.subr.bf16.mxu0 0
      %5005 = vmatpush1.bf16.msra.mxu0 0
      %5006 = vmatprep.subr.bf16.mxu0 0
      %5007 = vmatpush1.bf16.msra.mxu0 0
      %5008 = vmatprep.subr.bf16.mxu0 0
      %5009 = vmatpush1.bf16.msra.mxu0 0
      %5010 = vmatprep.subr.bf16.mxu0 0
      %5011 = vmatpush1.bf16.msra.mxu0 0
      %5012 = vmatprep.subr.bf16.mxu0 0
      %5013 = vmatpush1.bf16.msra.mxu0 0
      %5014 = vmatprep.subr.bf16.mxu0 0
      %5015 = vmatpush1.bf16.msra.mxu0 0
      %5016 = vmatprep.subr.bf16.mxu0 0
      %5017 = vmatpush1.bf16.msra.mxu0 0
      %5018 = vmatprep.subr.bf16.mxu0 0
      %5019 = vmatpush1.bf16.msra.mxu0 0
      %5020 = vmatprep.subr.bf16.mxu0 0
      %5021 = vmatpush1.bf16.msra.mxu0 0
      %5022 = vmatprep.subr.bf16.mxu0 0
      %5023 = vmatpush1.bf16.msra.mxu0 0
      %5024 = vmatprep.subr.bf16.mxu0 0
      %5025 = vmatpush1.bf16.msra.mxu0 0
      %5026 = vmatprep.subr.bf16.mxu0 0
      %5027 = vmatpush1.bf16.msra.mxu0 0
      %5028 = vmatprep.mubr.bf16.mxu0 0
      %5029 = vmatmul.mubr.bf16.gmra.mrb[0].mxu0 %v4991
      %v5030 = vpop.f32.mrb[0].mxu0
      %v5031 = vadd.f32 0.0, %v5030
      %v5032 = vpop.f32.mrb[0].mxu0
      %v5033 = vpop.f32.mrb[0].mxu0
      %v5034 = vadd.f32 0.0, %v5033
      %v5035 = vpop.f32.mrb[0].mxu0
      %5036 = vmatprep.mubr.bf16.mxu0 0
      %5037 = vmatmul.mubr.bf16.gmra.mrb[0].mxu0 %v4994
      %v5038 = vpop.f32.mrb[0].mxu0
      %v5039 = vadd.f32 0.0, %v5038
      %v5040 = vpop.f32.mrb[0].mxu0
      %v5041 = vpop.f32.mrb[0].mxu0
      %v5042 = vadd.f32 0.0, %v5041
      %v5043 = vpop.f32.mrb[0].mxu0
      %5044 = vdwg.mxu0
      %v5045 = vadd.f32 %v4969, %v5031
      %v5046 = vadd.f32 %v4970, %v5034
      %v5047 = vadd.f32 %v4971, %v5039
      %v5048 = vadd.f32 %v4972, %v5042
      %5049 = vrot.lane.b32.xlu0 %v4606, 127
      %v5050 = vpop.permute.xlu0 %5049
      %5051 = vrot.lane.b32.xlu0 %v4607, 127
      %v5052 = vpop.permute.xlu0 %5051
      %5053 = vrot.lane.b32.xlu0 %v4608, 127
      %v5054 = vpop.permute.xlu0 %5053
      %5055 = vrot.lane.b32.xlu0 %v4609, 127
      %v5056 = vpop.permute.xlu0 %5055
      %v5057 = vlaneseq
      %v5058 = vshrl.u32 %v5057, 7
      %v5059 = vsub.s32 5, %v5058
      %v5060 = vrot.slane %v4604, %v5059
      %v5061 = vmul.f32 %v5050, %v5060
      %v5062 = vmul.f32 %v5052, %v5060
      %v5063 = vmul.f32 %v5054, %v5060
      %v5064 = vmul.f32 %v5056, %v5060
      %s5065 = scalar_lea.vmem %s568, 80
      %v5066 = vld [vmem:[%s5065] sm:$0xf]
      %v5067 = vld [vmem:[%s5065 + $0x4] sm:$0xf]
      %v5068 = vld [vmem:[%s5065 + $0x8] sm:$0xf]
      %v5069 = vld [vmem:[%s5065 + $0xc] sm:$0xf]
      %v5070 = vpack.c.bf16 %v5062, %v5061
      %v5071 = vpack.c.bf16 %v5064, %v5063
      %v5076 = vunpack.c.l.b16 %v5066
      %v5077 = vunpack.c.l.b16 %v5067
      %v5078 = vunpack.c.l.b16 %v5068
      %v5079 = vunpack.c.l.b16 %v5069
      %v5080 = vpack.c.b16 %v5077, %v5076
      %v5081 = vpack.c.b16 %v5079, %v5078
      %v5083 = vsel %vm660, %v5080, 0
      %v5086 = vsel %vm660, %v5081, 0
      %5088 = vmatprep.subr.bf16.mxu0 0
      %5089 = vmatpush1.bf16.msra.mxu0 %v5070
      %5090 = vmatprep.subr.bf16.mxu0 0
      %5091 = vmatpush1.bf16.msra.mxu0 %v5071
      %5092 = vmatprep.subr.bf16.mxu0 0
      %5093 = vmatpush1.bf16.msra.mxu0 0
      %5094 = vmatprep.subr.bf16.mxu0 0
      %5095 = vmatpush1.bf16.msra.mxu0 0
      %5096 = vmatprep.subr.bf16.mxu0 0
      %5097 = vmatpush1.bf16.msra.mxu0 0
      %5098 = vmatprep.subr.bf16.mxu0 0
      %5099 = vmatpush1.bf16.msra.mxu0 0
      %5100 = vmatprep.subr.bf16.mxu0 0
      %5101 = vmatpush1.bf16.msra.mxu0 0
      %5102 = vmatprep.subr.bf16.mxu0 0
      %5103 = vmatpush1.bf16.msra.mxu0 0
      %5104 = vmatprep.subr.bf16.mxu0 0
      %5105 = vmatpush1.bf16.msra.mxu0 0
      %5106 = vmatprep.subr.bf16.mxu0 0
      %5107 = vmatpush1.bf16.msra.mxu0 0
      %5108 = vmatprep.subr.bf16.mxu0 0
      %5109 = vmatpush1.bf16.msra.mxu0 0
      %5110 = vmatprep.subr.bf16.mxu0 0
      %5111 = vmatpush1.bf16.msra.mxu0 0
      %5112 = vmatprep.subr.bf16.mxu0 0
      %5113 = vmatpush1.bf16.msra.mxu0 0
      %5114 = vmatprep.subr.bf16.mxu0 0
      %5115 = vmatpush1.bf16.msra.mxu0 0
      %5116 = vmatprep.subr.bf16.mxu0 0
      %5117 = vmatpush1.bf16.msra.mxu0 0
      %5118 = vmatprep.subr.bf16.mxu0 0
      %5119 = vmatpush1.bf16.msra.mxu0 0
      %5120 = vmatprep.mubr.bf16.mxu0 0
      %5121 = vmatmul.mubr.bf16.gmra.mrb[0].mxu0 %v5083
      %v5122 = vpop.f32.mrb[0].mxu0
      %v5123 = vadd.f32 0.0, %v5122
      %v5124 = vpop.f32.mrb[0].mxu0
      %v5125 = vpop.f32.mrb[0].mxu0
      %v5126 = vadd.f32 0.0, %v5125
      %v5127 = vpop.f32.mrb[0].mxu0
      %5128 = vmatprep.mubr.bf16.mxu0 0
      %5129 = vmatmul.mubr.bf16.gmra.mrb[0].mxu0 %v5086
      %v5130 = vpop.f32.mrb[0].mxu0
      %v5131 = vadd.f32 0.0, %v5130
      %v5132 = vpop.f32.mrb[0].mxu0
      %v5133 = vpop.f32.mrb[0].mxu0
      %v5134 = vadd.f32 0.0, %v5133
      %v5135 = vpop.f32.mrb[0].mxu0
      %5136 = vdwg.mxu0
      %v5137 = vadd.f32 %v5045, %v5123
      %v5138 = vadd.f32 %v5046, %v5126
      %v5139 = vadd.f32 %v5047, %v5131
      %v5140 = vadd.f32 %v5048, %v5134
      %5141 = vrot.lane.b32.xlu0 %v4606, 125
      %v5142 = vpop.permute.xlu0 %5141
      %5143 = vrot.lane.b32.xlu0 %v4607, 125
      %v5144 = vpop.permute.xlu0 %5143
      %5145 = vrot.lane.b32.xlu0 %v4608, 125
      %v5146 = vpop.permute.xlu0 %5145
      %5147 = vrot.lane.b32.xlu0 %v4609, 125
      %v5148 = vpop.permute.xlu0 %5147
      %v5149 = vlaneseq
      %v5150 = vshrl.u32 %v5149, 7
      %v5151 = vsub.s32 6, %v5150
      %v5152 = vrot.slane %v4604, %v5151
      %v5153 = vmul.f32 %v5142, %v5152
      %v5154 = vmul.f32 %v5144, %v5152
      %v5155 = vmul.f32 %v5146, %v5152
      %v5156 = vmul.f32 %v5148, %v5152
      %s5157 = scalar_lea.vmem %s568, 96
      %v5158 = vld [vmem:[%s5157] sm:$0xf]
      %v5159 = vld [vmem:[%s5157 + $0x4] sm:$0xf]
      %v5160 = vld [vmem:[%s5157 + $0x8] sm:$0xf]
      %v5161 = vld [vmem:[%s5157 + $0xc] sm:$0xf]
      %v5162 = vpack.c.bf16 %v5154, %v5153
      %v5163 = vpack.c.bf16 %v5156, %v5155
      %v5168 = vunpack.c.l.b16 %v5158
      %v5169 = vunpack.c.l.b16 %v5159
      %v5170 = vunpack.c.l.b16 %v5160
      %v5171 = vunpack.c.l.b16 %v5161
      %v5172 = vpack.c.b16 %v5169, %v5168
      %v5173 = vpack.c.b16 %v5171, %v5170
      %v5175 = vsel %vm660, %v5172, 0
      %v5178 = vsel %vm660, %v5173, 0
      %5180 = vmatprep.subr.bf16.mxu0 0
      %5181 = vmatpush1.bf16.msra.mxu0 %v5162
      %5182 = vmatprep.subr.bf16.mxu0 0
      %5183 = vmatpush1.bf16.msra.mxu0 %v5163
      %5184 = vmatprep.subr.bf16.mxu0 0
      %5185 = vmatpush1.bf16.msra.mxu0 0
      %5186 = vmatprep.subr.bf16.mxu0 0
      %5187 = vmatpush1.bf16.msra.mxu0 0
      %5188 = vmatprep.subr.bf16.mxu0 0
      %5189 = vmatpush1.bf16.msra.mxu0 0
      %5190 = vmatprep.subr.bf16.mxu0 0
      %5191 = vmatpush1.bf16.msra.mxu0 0
      %5192 = vmatprep.subr.bf16.mxu0 0
      %5193 = vmatpush1.bf16.msra.mxu0 0
      %5194 = vmatprep.subr.bf16.mxu0 0
      %5195 = vmatpush1.bf16.msra.mxu0 0
      %5196 = vmatprep.subr.bf16.mxu0 0
      %5197 = vmatpush1.bf16.msra.mxu0 0
      %5198 = vmatprep.subr.bf16.mxu0 0
      %5199 = vmatpush1.bf16.msra.mxu0 0
      %5200 = vmatprep.subr.bf16.mxu0 0
      %5201 = vmatpush1.bf16.msra.mxu0 0
      %5202 = vmatprep.subr.bf16.mxu0 0
      %5203 = vmatpush1.bf16.msra.mxu0 0
      %5204 = vmatprep.subr.bf16.mxu0 0
      %5205 = vmatpush1.bf16.msra.mxu0 0
      %5206 = vmatprep.subr.bf16.mxu0 0
      %5207 = vmatpush1.bf16.msra.mxu0 0
      %5208 = vmatprep.subr.bf16.mxu0 0
      %5209 = vmatpush1.bf16.msra.mxu0 0
      %5210 = vmatprep.subr.bf16.mxu0 0
      %5211 = vmatpush1.bf16.msra.mxu0 0
      %5212 = vmatprep.mubr.bf16.mxu0 0
      %5213 = vmatmul.mubr.bf16.gmra.mrb[0].mxu0 %v5175
      %v5214 = vpop.f32.mrb[0].mxu0
      %v5215 = vadd.f32 0.0, %v5214
      %v5216 = vpop.f32.mrb[0].mxu0
      %v5217 = vpop.f32.mrb[0].mxu0
      %v5218 = vadd.f32 0.0, %v5217
      %v5219 = vpop.f32.mrb[0].mxu0
      %5220 = vmatprep.mubr.bf16.mxu0 0
      %5221 = vmatmul.mubr.bf16.gmra.mrb[0].mxu0 %v5178
      %v5222 = vpop.f32.mrb[0].mxu0
      %v5223 = vadd.f32 0.0, %v5222
      %v5224 = vpop.f32.mrb[0].mxu0
      %v5225 = vpop.f32.mrb[0].mxu0
      %v5226 = vadd.f32 0.0, %v5225
      %v5227 = vpop.f32.mrb[0].mxu0
      %5228 = vdwg.mxu0
      %v5229 = vadd.f32 %v5137, %v5215
      %v5230 = vadd.f32 %v5138, %v5218
      %v5231 = vadd.f32 %v5139, %v5223
      %v5232 = vadd.f32 %v5140, %v5226
      %5233 = vrot.lane.b32.xlu0 %v4606, 124
      %v5234 = vpop.permute.xlu0 %5233
      %5235 = vrot.lane.b32.xlu0 %v4607, 124
      %v5236 = vpop.permute.xlu0 %5235
      %5237 = vrot.lane.b32.xlu0 %v4608, 124
      %v5238 = vpop.permute.xlu0 %5237
      %5239 = vrot.lane.b32.xlu0 %v4609, 124
      %v5240 = vpop.permute.xlu0 %5239
      %v5241 = vlaneseq
      %v5242 = vshrl.u32 %v5241, 7
      %v5243 = vsub.s32 7, %v5242
      %v5244 = vrot.slane %v4604, %v5243
      %v5245 = vmul.f32 %v5234, %v5244
      %v5246 = vmul.f32 %v5236, %v5244
      %v5247 = vmul.f32 %v5238, %v5244
      %v5248 = vmul.f32 %v5240, %v5244
      %s5249 = scalar_lea.vmem %s568, 112
      %v5250 = vld [vmem:[%s5249] sm:$0xf]
      %v5251 = vld [vmem:[%s5249 + $0x4] sm:$0xf]
      %v5252 = vld [vmem:[%s5249 + $0x8] sm:$0xf]
      %v5253 = vld [vmem:[%s5249 + $0xc] sm:$0xf]
      %v5254 = vpack.c.bf16 %v5246, %v5245
      %v5255 = vpack.c.bf16 %v5248, %v5247
      %v5260 = vunpack.c.l.b16 %v5250
      %v5261 = vunpack.c.l.b16 %v5251
      %v5262 = vunpack.c.l.b16 %v5252
      %v5263 = vunpack.c.l.b16 %v5253
      %v5264 = vpack.c.b16 %v5261, %v5260
      %v5265 = vpack.c.b16 %v5263, %v5262
      %v5267 = vsel %vm660, %v5264, 0
      %v5270 = vsel %vm660, %v5265, 0
      %5272 = vmatprep.subr.bf16.mxu0 0
      %5273 = vmatpush1.bf16.msra.mxu0 %v5254
      %5274 = vmatprep.subr.bf16.mxu0 0
      %5275 = vmatpush1.bf16.msra.mxu0 %v5255
      %5276 = vmatprep.subr.bf16.mxu0 0
      %5277 = vmatpush1.bf16.msra.mxu0 0
      %5278 = vmatprep.subr.bf16.mxu0 0
      %5279 = vmatpush1.bf16.msra.mxu0 0
      %5280 = vmatprep.subr.bf16.mxu0 0
      %5281 = vmatpush1.bf16.msra.mxu0 0
      %5282 = vmatprep.subr.bf16.mxu0 0
      %5283 = vmatpush1.bf16.msra.mxu0 0
      %5284 = vmatprep.subr.bf16.mxu0 0
      %5285 = vmatpush1.bf16.msra.mxu0 0
      %5286 = vmatprep.subr.bf16.mxu0 0
      %5287 = vmatpush1.bf16.msra.mxu0 0
      %5288 = vmatprep.subr.bf16.mxu0 0
      %5289 = vmatpush1.bf16.msra.mxu0 0
      %5290 = vmatprep.subr.bf16.mxu0 0
      %5291 = vmatpush1.bf16.msra.mxu0 0
      %5292 = vmatprep.subr.bf16.mxu0 0
      %5293 = vmatpush1.bf16.msra.mxu0 0
      %5294 = vmatprep.subr.bf16.mxu0 0
      %5295 = vmatpush1.bf16.msra.mxu0 0
      %5296 = vmatprep.subr.bf16.mxu0 0
      %5297 = vmatpush1.bf16.msra.mxu0 0
      %5298 = vmatprep.subr.bf16.mxu0 0
      %5299 = vmatpush1.bf16.msra.mxu0 0
      %5300 = vmatprep.subr.bf16.mxu0 0
      %5301 = vmatpush1.bf16.msra.mxu0 0
      %5302 = vmatprep.subr.bf16.mxu0 0
      %5303 = vmatpush1.bf16.msra.mxu0 0
      %5304 = vmatprep.mubr.bf16.mxu0 0
      %5305 = vmatmul.mubr.bf16.gmra.mrb[0].mxu0 %v5267
      %v5306 = vpop.f32.mrb[0].mxu0
      %v5307 = vadd.f32 0.0, %v5306
      %v5308 = vpop.f32.mrb[0].mxu0
      %v5309 = vpop.f32.mrb[0].mxu0
      %v5310 = vadd.f32 0.0, %v5309
      %v5311 = vpop.f32.mrb[0].mxu0
      %5312 = vmatprep.mubr.bf16.mxu0 0
      %5313 = vmatmul.mubr.bf16.gmra.mrb[0].mxu0 %v5270
      %v5314 = vpop.f32.mrb[0].mxu0
      %v5315 = vadd.f32 0.0, %v5314
      %v5316 = vpop.f32.mrb[0].mxu0
      %v5317 = vpop.f32.mrb[0].mxu0
      %v5318 = vadd.f32 0.0, %v5317
      %v5319 = vpop.f32.mrb[0].mxu0
      %5320 = vdwg.mxu0
      %v5321 = vadd.f32 %v5229, %v5307
      %v5322 = vadd.f32 %v5230, %v5310
      %v5323 = vadd.f32 %v5231, %v5315
      %v5324 = vadd.f32 %v5232, %v5318
      %5325 = vrot.lane.b32.xlu0 %v4606, 123
      %v5326 = vpop.permute.xlu0 %5325
      %5327 = vrot.lane.b32.xlu0 %v4607, 123
      %v5328 = vpop.permute.xlu0 %5327
      %5329 = vrot.lane.b32.xlu0 %v4608, 123
      %v5330 = vpop.permute.xlu0 %5329
      %5331 = vrot.lane.b32.xlu0 %v4609, 123
      %v5332 = vpop.permute.xlu0 %5331
      %v5333 = vlaneseq
      %v5334 = vshrl.u32 %v5333, 7
      %v5335 = vsub.s32 0, %v5334
      %v5336 = vrot.slane %v4605, %v5335
      %v5337 = vmul.f32 %v5326, %v5336
      %v5338 = vmul.f32 %v5328, %v5336
      %v5339 = vmul.f32 %v5330, %v5336
      %v5340 = vmul.f32 %v5332, %v5336
      %s5341 = scalar_lea.vmem %s568, 128
      %v5342 = vld [vmem:[%s5341] sm:$0xf]
      %v5343 = vld [vmem:[%s5341 + $0x4] sm:$0xf]
      %v5344 = vld [vmem:[%s5341 + $0x8] sm:$0xf]
      %v5345 = vld [vmem:[%s5341 + $0xc] sm:$0xf]
      %v5346 = vpack.c.bf16 %v5338, %v5337
      %v5347 = vpack.c.bf16 %v5340, %v5339
      %v5352 = vunpack.c.l.b16 %v5342
      %v5353 = vunpack.c.l.b16 %v5343
      %v5354 = vunpack.c.l.b16 %v5344
      %v5355 = vunpack.c.l.b16 %v5345
      %v5356 = vpack.c.b16 %v5353, %v5352
      %v5357 = vpack.c.b16 %v5355, %v5354
      %v5359 = vsel %vm660, %v5356, 0
      %v5362 = vsel %vm660, %v5357, 0
      %5364 = vmatprep.subr.bf16.mxu0 0
      %5365 = vmatpush1.bf16.msra.mxu0 %v5346
      %5366 = vmatprep.subr.bf16.mxu0 0
      %5367 = vmatpush1.bf16.msra.mxu0 %v5347
      %5368 = vmatprep.subr.bf16.mxu0 0
      %5369 = vmatpush1.bf16.msra.mxu0 0
      %5370 = vmatprep.subr.bf16.mxu0 0
      %5371 = vmatpush1.bf16.msra.mxu0 0
      %5372 = vmatprep.subr.bf16.mxu0 0
      %5373 = vmatpush1.bf16.msra.mxu0 0
      %5374 = vmatprep.subr.bf16.mxu0 0
      %5375 = vmatpush1.bf16.msra.mxu0 0
      %5376 = vmatprep.subr.bf16.mxu0 0
      %5377 = vmatpush1.bf16.msra.mxu0 0
      %5378 = vmatprep.subr.bf16.mxu0 0
      %5379 = vmatpush1.bf16.msra.mxu0 0
      %5380 = vmatprep.subr.bf16.mxu0 0
      %5381 = vmatpush1.bf16.msra.mxu0 0
      %5382 = vmatprep.subr.bf16.mxu0 0
      %5383 = vmatpush1.bf16.msra.mxu0 0
      %5384 = vmatprep.subr.bf16.mxu0 0
      %5385 = vmatpush1.bf16.msra.mxu0 0
      %5386 = vmatprep.subr.bf16.mxu0 0
      %5387 = vmatpush1.bf16.msra.mxu0 0
      %5388 = vmatprep.subr.bf16.mxu0 0
      %5389 = vmatpush1.bf16.msra.mxu0 0
      %5390 = vmatprep.subr.bf16.mxu0 0
      %5391 = vmatpush1.bf16.msra.mxu0 0
      %5392 = vmatprep.subr.bf16.mxu0 0
      %5393 = vmatpush1.bf16.msra.mxu0 0
      %5394 = vmatprep.subr.bf16.mxu0 0
      %5395 = vmatpush1.bf16.msra.mxu0 0
      %5396 = vmatprep.mubr.bf16.mxu0 0
      %5397 = vmatmul.mubr.bf16.gmra.mrb[0].mxu0 %v5359
      %v5398 = vpop.f32.mrb[0].mxu0
      %v5399 = vadd.f32 0.0, %v5398
      %v5400 = vpop.f32.mrb[0].mxu0
      %v5401 = vpop.f32.mrb[0].mxu0
      %v5402 = vadd.f32 0.0, %v5401
      %v5403 = vpop.f32.mrb[0].mxu0
      %5404 = vmatprep.mubr.bf16.mxu0 0
      %5405 = vmatmul.mubr.bf16.gmra.mrb[0].mxu0 %v5362
      %v5406 = vpop.f32.mrb[0].mxu0
      %v5407 = vadd.f32 0.0, %v5406
      %v5408 = vpop.f32.mrb[0].mxu0
      %v5409 = vpop.f32.mrb[0].mxu0
      %v5410 = vadd.f32 0.0, %v5409
      %v5411 = vpop.f32.mrb[0].mxu0
      %5412 = vdwg.mxu0
      %v5413 = vadd.f32 %v5321, %v5399
      %v5414 = vadd.f32 %v5322, %v5402
      %v5415 = vadd.f32 %v5323, %v5407
      %v5416 = vadd.f32 %v5324, %v5410
      %5418 = vset.pattern.permute.xlu0 0
      %5419 = vperm.xlu0 %5418, %v4610
      %v5420 = vpop.permute.xlu0 %5419
      %5423 = vset.pattern.permute.xlu0 0
      %5424 = vperm.xlu0 %5423, %v4611
      %v5425 = vpop.permute.xlu0 %5424
      %5428 = vset.pattern.permute.xlu0 0
      %5429 = vperm.xlu0 %5428, %v4612
      %v5430 = vpop.permute.xlu0 %5429
      %5433 = vset.pattern.permute.xlu0 0
      %5434 = vperm.xlu0 %5433, %v4613
      %v5435 = vpop.permute.xlu0 %5434
      %v5437 = vadd.f32 %v5413, %v5420
      %v5438 = vadd.f32 %v5414, %v5425
      %v5439 = vadd.f32 %v5415, %v5430
      %v5440 = vadd.f32 %v5416, %v5435
      %v5441 = vmax.f32 %v5437, 0.0
      %v5442 = vmax.f32 %v5438, 0.0
      %v5443 = vmax.f32 %v5439, 0.0
      %v5444 = vmax.f32 %v5440, 0.0
      %s5445 = scalar_lea.vmem %s573, 32
      %v5446 = vld [vmem:[%s5445] sm:$0xff]
      %v5447 = vld [vmem:[%s5445 + $0x8] sm:$0xff]
      %v5448 = vld [vmem:[%s5445 + $0x10] sm:$0xff]
      %v5449 = vld [vmem:[%s5445 + $0x18] sm:$0xff]
      %5450 = vrot.lane.b32.xlu0 %v5441, 5
      %v5451 = vpop.permute.xlu0 %5450
      %5452 = vrot.lane.b32.xlu0 %v5442, 5
      %v5453 = vpop.permute.xlu0 %5452
      %5454 = vrot.lane.b32.xlu0 %v5443, 5
      %v5455 = vpop.permute.xlu0 %5454
      %5456 = vrot.lane.b32.xlu0 %v5444, 5
      %v5457 = vpop.permute.xlu0 %5456
      %v5458 = vmul.f32 %v5451, %v4625
      %v5459 = vmul.f32 %v5453, %v4625
      %v5460 = vmul.f32 %v5455, %v4625
      %v5461 = vmul.f32 %v5457, %v4625
      %s5462 = scalar_lea.vmem %s568, 144
      %v5463 = vld [vmem:[%s5462] sm:$0xf]
      %v5464 = vld [vmem:[%s5462 + $0x4] sm:$0xf]
      %v5465 = vld [vmem:[%s5462 + $0x8] sm:$0xf]
      %v5466 = vld [vmem:[%s5462 + $0xc] sm:$0xf]
      %v5467 = vpack.c.bf16 %v5459, %v5458
      %v5468 = vpack.c.bf16 %v5461, %v5460
      %5469 = vrot.lane.b32.xlu0 %v5441, 4
      %v5470 = vpop.permute.xlu0 %5469
      %5471 = vrot.lane.b32.xlu0 %v5442, 4
      %v5472 = vpop.permute.xlu0 %5471
      %5473 = vrot.lane.b32.xlu0 %v5443, 4
      %v5474 = vpop.permute.xlu0 %5473
      %5475 = vrot.lane.b32.xlu0 %v5444, 4
      %v5476 = vpop.permute.xlu0 %5475
      %v5477 = vmul.f32 %v5470, %v4647
      %v5478 = vmul.f32 %v5472, %v4647
      %v5479 = vmul.f32 %v5474, %v4647
      %v5480 = vmul.f32 %v5476, %v4647
      %s5481 = scalar_lea.vmem %s568, 160
      %v5482 = vld [vmem:[%s5481] sm:$0xf]
      %v5483 = vld [vmem:[%s5481 + $0x4] sm:$0xf]
      %v5484 = vld [vmem:[%s5481 + $0x8] sm:$0xf]
      %v5485 = vld [vmem:[%s5481 + $0xc] sm:$0xf]
      %v5486 = vpack.c.bf16 %v5478, %v5477
      %v5487 = vpack.c.bf16 %v5480, %v5479
      %v5492 = vunpack.c.l.b16 %v5482
      %v5493 = vunpack.c.l.b16 %v5483
      %v5494 = vunpack.c.l.b16 %v5484
      %v5495 = vunpack.c.l.b16 %v5485
      %v5496 = vpack.c.b16 %v5493, %v5492
      %v5497 = vpack.c.b16 %v5495, %v5494
      %v5499 = vsel %vm660, %v5496, 0
      %v5502 = vsel %vm660, %v5497, 0
      %5504 = vmatprep.subr.bf16.mxu0 0
      %5505 = vmatpush1.bf16.msra.mxu0 %v5486
      %5506 = vmatprep.subr.bf16.mxu0 0
      %5507 = vmatpush1.bf16.msra.mxu0 %v5487
      %5508 = vmatprep.subr.bf16.mxu0 0
      %5509 = vmatpush1.bf16.msra.mxu0 0
      %5510 = vmatprep.subr.bf16.mxu0 0
      %5511 = vmatpush1.bf16.msra.mxu0 0
      %5512 = vmatprep.subr.bf16.mxu0 0
      %5513 = vmatpush1.bf16.msra.mxu0 0
      %5514 = vmatprep.subr.bf16.mxu0 0
      %5515 = vmatpush1.bf16.msra.mxu0 0
      %5516 = vmatprep.subr.bf16.mxu0 0
      %5517 = vmatpush1.bf16.msra.mxu0 0
      %5518 = vmatprep.subr.bf16.mxu0 0
      %5519 = vmatpush1.bf16.msra.mxu0 0
      %5520 = vmatprep.subr.bf16.mxu0 0
      %5521 = vmatpush1.bf16.msra.mxu0 0
      %5522 = vmatprep.subr.bf16.mxu0 0
      %5523 = vmatpush1.bf16.msra.mxu0 0
      %5524 = vmatprep.subr.bf16.mxu0 0
      %5525 = vmatpush1.bf16.msra.mxu0 0
      %5526 = vmatprep.subr.bf16.mxu0 0
      %5527 = vmatpush1.bf16.msra.mxu0 0
      %5528 = vmatprep.subr.bf16.mxu0 0
      %5529 = vmatpush1.bf16.msra.mxu0 0
      %5530 = vmatprep.subr.bf16.mxu0 0
      %5531 = vmatpush1.bf16.msra.mxu0 0
      %5532 = vmatprep.subr.bf16.mxu0 0
      %5533 = vmatpush1.bf16.msra.mxu0 0
      %5534 = vmatprep.subr.bf16.mxu0 0
      %5535 = vmatpush1.bf16.msra.mxu0 0
      %5536 = vmatprep.mubr.bf16.mxu0 0
      %5537 = vmatmul.mubr.bf16.gmra.mrb[0].mxu0 %v5499
      %v5538 = vpop.f32.mrb[0].mxu0
      %v5539 = vadd.f32 0.0, %v5538
      %v5540 = vpop.f32.mrb[0].mxu0
      %v5541 = vpop.f32.mrb[0].mxu0
      %v5542 = vadd.f32 0.0, %v5541
      %v5543 = vpop.f32.mrb[0].mxu0
      %5544 = vmatprep.mubr.bf16.mxu0 0
      %5545 = vmatmul.mubr.bf16.gmra.mrb[0].mxu0 %v5502
      %v5546 = vpop.f32.mrb[0].mxu0
      %v5547 = vadd.f32 0.0, %v5546
      %v5548 = vpop.f32.mrb[0].mxu0
      %v5549 = vpop.f32.mrb[0].mxu0
      %v5550 = vadd.f32 0.0, %v5549
      %v5551 = vpop.f32.mrb[0].mxu0
      %5552 = vdwg.mxu0
      %v5557 = vunpack.c.l.b16 %v5463
      %v5558 = vunpack.c.l.b16 %v5464
      %v5559 = vunpack.c.l.b16 %v5465
      %v5560 = vunpack.c.l.b16 %v5466
      %v5561 = vpack.c.b16 %v5558, %v5557
      %v5562 = vpack.c.b16 %v5560, %v5559
      %v5564 = vsel %vm660, %v5561, 0
      %v5567 = vsel %vm660, %v5562, 0
      %5569 = vmatprep.subr.bf16.mxu0 0
      %5570 = vmatpush1.bf16.msra.mxu0 %v5467
      %5571 = vmatprep.subr.bf16.mxu0 0
      %5572 = vmatpush1.bf16.msra.mxu0 %v5468
      %5573 = vmatprep.subr.bf16.mxu0 0
      %5574 = vmatpush1.bf16.msra.mxu0 0
      %5575 = vmatprep.subr.bf16.mxu0 0
      %5576 = vmatpush1.bf16.msra.mxu0 0
      %5577 = vmatprep.subr.bf16.mxu0 0
      %5578 = vmatpush1.bf16.msra.mxu0 0
      %5579 = vmatprep.subr.bf16.mxu0 0
      %5580 = vmatpush1.bf16.msra.mxu0 0
      %5581 = vmatprep.subr.bf16.mxu0 0
      %5582 = vmatpush1.bf16.msra.mxu0 0
      %5583 = vmatprep.subr.bf16.mxu0 0
      %5584 = vmatpush1.bf16.msra.mxu0 0
      %5585 = vmatprep.subr.bf16.mxu0 0
      %5586 = vmatpush1.bf16.msra.mxu0 0
      %5587 = vmatprep.subr.bf16.mxu0 0
      %5588 = vmatpush1.bf16.msra.mxu0 0
      %5589 = vmatprep.subr.bf16.mxu0 0
      %5590 = vmatpush1.bf16.msra.mxu0 0
      %5591 = vmatprep.subr.bf16.mxu0 0
      %5592 = vmatpush1.bf16.msra.mxu0 0
      %5593 = vmatprep.subr.bf16.mxu0 0
      %5594 = vmatpush1.bf16.msra.mxu0 0
      %5595 = vmatprep.subr.bf16.mxu0 0
      %5596 = vmatpush1.bf16.msra.mxu0 0
      %5597 = vmatprep.subr.bf16.mxu0 0
      %5598 = vmatpush1.bf16.msra.mxu0 0
      %5599 = vmatprep.subr.bf16.mxu0 0
      %5600 = vmatpush1.bf16.msra.mxu0 0
      %5601 = vmatprep.mubr.bf16.mxu0 0
      %5602 = vmatmul.mubr.bf16.gmra.mrb[0].mxu0 %v5564
      %v5603 = vpop.f32.mrb[0].mxu0
      %v5604 = vadd.f32 %v5539, %v5603
      %v5605 = vpop.f32.mrb[0].mxu0
      %v5606 = vpop.f32.mrb[0].mxu0
      %v5607 = vadd.f32 %v5542, %v5606
      %v5608 = vpop.f32.mrb[0].mxu0
      %5609 = vmatprep.mubr.bf16.mxu0 0
      %5610 = vmatmul.mubr.bf16.gmra.mrb[0].mxu0 %v5567
      %v5611 = vpop.f32.mrb[0].mxu0
      %v5612 = vadd.f32 %v5547, %v5611
      %v5613 = vpop.f32.mrb[0].mxu0
      %v5614 = vpop.f32.mrb[0].mxu0
      %v5615 = vadd.f32 %v5550, %v5614
      %v5616 = vpop.f32.mrb[0].mxu0
      %5617 = vdwg.mxu0
      %5618 = vrot.lane.b32.xlu0 %v5441, 3
      %v5619 = vpop.permute.xlu0 %5618
      %5620 = vrot.lane.b32.xlu0 %v5442, 3
      %v5621 = vpop.permute.xlu0 %5620
      %5622 = vrot.lane.b32.xlu0 %v5443, 3
      %v5623 = vpop.permute.xlu0 %5622
      %5624 = vrot.lane.b32.xlu0 %v5444, 3
      %v5625 = vpop.permute.xlu0 %5624
      %v5626 = vmul.f32 %v5619, %v4800
      %v5627 = vmul.f32 %v5621, %v4800
      %v5628 = vmul.f32 %v5623, %v4800
      %v5629 = vmul.f32 %v5625, %v4800
      %s5630 = scalar_lea.vmem %s568, 176
      %v5631 = vld [vmem:[%s5630] sm:$0xf]
      %v5632 = vld [vmem:[%s5630 + $0x4] sm:$0xf]
      %v5633 = vld [vmem:[%s5630 + $0x8] sm:$0xf]
      %v5634 = vld [vmem:[%s5630 + $0xc] sm:$0xf]
      %v5635 = vpack.c.bf16 %v5627, %v5626
      %v5636 = vpack.c.bf16 %v5629, %v5628
      %v5641 = vunpack.c.l.b16 %v5631
      %v5642 = vunpack.c.l.b16 %v5632
      %v5643 = vunpack.c.l.b16 %v5633
      %v5644 = vunpack.c.l.b16 %v5634
      %v5645 = vpack.c.b16 %v5642, %v5641
      %v5646 = vpack.c.b16 %v5644, %v5643
      %v5648 = vsel %vm660, %v5645, 0
      %v5651 = vsel %vm660, %v5646, 0
      %5653 = vmatprep.subr.bf16.mxu0 0
      %5654 = vmatpush1.bf16.msra.mxu0 %v5635
      %5655 = vmatprep.subr.bf16.mxu0 0
      %5656 = vmatpush1.bf16.msra.mxu0 %v5636
      %5657 = vmatprep.subr.bf16.mxu0 0
      %5658 = vmatpush1.bf16.msra.mxu0 0
      %5659 = vmatprep.subr.bf16.mxu0 0
      %5660 = vmatpush1.bf16.msra.mxu0 0
      %5661 = vmatprep.subr.bf16.mxu0 0
      %5662 = vmatpush1.bf16.msra.mxu0 0
      %5663 = vmatprep.subr.bf16.mxu0 0
      %5664 = vmatpush1.bf16.msra.mxu0 0
      %5665 = vmatprep.subr.bf16.mxu0 0
      %5666 = vmatpush1.bf16.msra.mxu0 0
      %5667 = vmatprep.subr.bf16.mxu0 0
      %5668 = vmatpush1.bf16.msra.mxu0 0
      %5669 = vmatprep.subr.bf16.mxu0 0
      %5670 = vmatpush1.bf16.msra.mxu0 0
      %5671 = vmatprep.subr.bf16.mxu0 0
      %5672 = vmatpush1.bf16.msra.mxu0 0
      %5673 = vmatprep.subr.bf16.mxu0 0
      %5674 = vmatpush1.bf16.msra.mxu0 0
      %5675 = vmatprep.subr.bf16.mxu0 0
      %5676 = vmatpush1.bf16.msra.mxu0 0
      %5677 = vmatprep.subr.bf16.mxu0 0
      %5678 = vmatpush1.bf16.msra.mxu0 0
      %5679 = vmatprep.subr.bf16.mxu0 0
      %5680 = vmatpush1.bf16.msra.mxu0 0
      %5681 = vmatprep.subr.bf16.mxu0 0
      %5682 = vmatpush1.bf16.msra.mxu0 0
      %5683 = vmatprep.subr.bf16.mxu0 0
      %5684 = vmatpush1.bf16.msra.mxu0 0
      %5685 = vmatprep.mubr.bf16.mxu0 0
      %5686 = vmatmul.mubr.bf16.gmra.mrb[0].mxu0 %v5648
      %v5687 = vpop.f32.mrb[0].mxu0
      %v5688 = vadd.f32 0.0, %v5687
      %v5689 = vpop.f32.mrb[0].mxu0
      %v5690 = vpop.f32.mrb[0].mxu0
      %v5691 = vadd.f32 0.0, %v5690
      %v5692 = vpop.f32.mrb[0].mxu0
      %5693 = vmatprep.mubr.bf16.mxu0 0
      %5694 = vmatmul.mubr.bf16.gmra.mrb[0].mxu0 %v5651
      %v5695 = vpop.f32.mrb[0].mxu0
      %v5696 = vadd.f32 0.0, %v5695
      %v5697 = vpop.f32.mrb[0].mxu0
      %v5698 = vpop.f32.mrb[0].mxu0
      %v5699 = vadd.f32 0.0, %v5698
      %v5700 = vpop.f32.mrb[0].mxu0
      %5701 = vdwg.mxu0
      %v5702 = vadd.f32 %v5604, %v5688
      %v5703 = vadd.f32 %v5607, %v5691
      %v5704 = vadd.f32 %v5612, %v5696
      %v5705 = vadd.f32 %v5615, %v5699
      %5706 = vrot.lane.b32.xlu0 %v5441, 1
      %v5707 = vpop.permute.xlu0 %5706
      %5708 = vrot.lane.b32.xlu0 %v5442, 1
      %v5709 = vpop.permute.xlu0 %5708
      %5710 = vrot.lane.b32.xlu0 %v5443, 1
      %v5711 = vpop.permute.xlu0 %5710
      %5712 = vrot.lane.b32.xlu0 %v5444, 1
      %v5713 = vpop.permute.xlu0 %5712
      %v5714 = vmul.f32 %v5707, %v4892
      %v5715 = vmul.f32 %v5709, %v4892
      %v5716 = vmul.f32 %v5711, %v4892
      %v5717 = vmul.f32 %v5713, %v4892
      %s5718 = scalar_lea.vmem %s568, 192
      %v5719 = vld [vmem:[%s5718] sm:$0xf]
      %v5720 = vld [vmem:[%s5718 + $0x4] sm:$0xf]
      %v5721 = vld [vmem:[%s5718 + $0x8] sm:$0xf]
      %v5722 = vld [vmem:[%s5718 + $0xc] sm:$0xf]
      %v5723 = vpack.c.bf16 %v5715, %v5714
      %v5724 = vpack.c.bf16 %v5717, %v5716
      %v5729 = vunpack.c.l.b16 %v5719
      %v5730 = vunpack.c.l.b16 %v5720
      %v5731 = vunpack.c.l.b16 %v5721
      %v5732 = vunpack.c.l.b16 %v5722
      %v5733 = vpack.c.b16 %v5730, %v5729
      %v5734 = vpack.c.b16 %v5732, %v5731
      %v5736 = vsel %vm660, %v5733, 0
      %v5739 = vsel %vm660, %v5734, 0
      %5741 = vmatprep.subr.bf16.mxu0 0
      %5742 = vmatpush1.bf16.msra.mxu0 %v5723
      %5743 = vmatprep.subr.bf16.mxu0 0
      %5744 = vmatpush1.bf16.msra.mxu0 %v5724
      %5745 = vmatprep.subr.bf16.mxu0 0
      %5746 = vmatpush1.bf16.msra.mxu0 0
      %5747 = vmatprep.subr.bf16.mxu0 0
      %5748 = vmatpush1.bf16.msra.mxu0 0
      %5749 = vmatprep.subr.bf16.mxu0 0
      %5750 = vmatpush1.bf16.msra.mxu0 0
      %5751 = vmatprep.subr.bf16.mxu0 0
      %5752 = vmatpush1.bf16.msra.mxu0 0
      %5753 = vmatprep.subr.bf16.mxu0 0
      %5754 = vmatpush1.bf16.msra.mxu0 0
      %5755 = vmatprep.subr.bf16.mxu0 0
      %5756 = vmatpush1.bf16.msra.mxu0 0
      %5757 = vmatprep.subr.bf16.mxu0 0
      %5758 = vmatpush1.bf16.msra.mxu0 0
      %5759 = vmatprep.subr.bf16.mxu0 0
      %5760 = vmatpush1.bf16.msra.mxu0 0
      %5761 = vmatprep.subr.bf16.mxu0 0
      %5762 = vmatpush1.bf16.msra.mxu0 0
      %5763 = vmatprep.subr.bf16.mxu0 0
      %5764 = vmatpush1.bf16.msra.mxu0 0
      %5765 = vmatprep.subr.bf16.mxu0 0
      %5766 = vmatpush1.bf16.msra.mxu0 0
      %5767 = vmatprep.subr.bf16.mxu0 0
      %5768 = vmatpush1.bf16.msra.mxu0 0
      %5769 = vmatprep.subr.bf16.mxu0 0
      %5770 = vmatpush1.bf16.msra.mxu0 0
      %5771 = vmatprep.subr.bf16.mxu0 0
      %5772 = vmatpush1.bf16.msra.mxu0 0
      %5773 = vmatprep.mubr.bf16.mxu0 0
      %5774 = vmatmul.mubr.bf16.gmra.mrb[0].mxu0 %v5736
      %v5775 = vpop.f32.mrb[0].mxu0
      %v5776 = vadd.f32 0.0, %v5775
      %v5777 = vpop.f32.mrb[0].mxu0
      %v5778 = vpop.f32.mrb[0].mxu0
      %v5779 = vadd.f32 0.0, %v5778
      %v5780 = vpop.f32.mrb[0].mxu0
      %5781 = vmatprep.mubr.bf16.mxu0 0
      %5782 = vmatmul.mubr.bf16.gmra.mrb[0].mxu0 %v5739
      %v5783 = vpop.f32.mrb[0].mxu0
      %v5784 = vadd.f32 0.0, %v5783
      %v5785 = vpop.f32.mrb[0].mxu0
      %v5786 = vpop.f32.mrb[0].mxu0
      %v5787 = vadd.f32 0.0, %v5786
      %v5788 = vpop.f32.mrb[0].mxu0
      %5789 = vdwg.mxu0
      %v5790 = vadd.f32 %v5702, %v5776
      %v5791 = vadd.f32 %v5703, %v5779
      %v5792 = vadd.f32 %v5704, %v5784
      %v5793 = vadd.f32 %v5705, %v5787
      %s5794 = scalar_lea.vmem %s568, 208
      %v5795 = vld [vmem:[%s5794] sm:$0xf]
      %v5796 = vld [vmem:[%s5794 + $0x4] sm:$0xf]
      %v5797 = vld [vmem:[%s5794 + $0x8] sm:$0xf]
      %v5798 = vld [vmem:[%s5794 + $0xc] sm:$0xf]
      %v5799 = vpack.c.bf16 %v5442, %v5441
      %v5800 = vpack.c.bf16 %v5444, %v5443
      %v5805 = vunpack.c.l.b16 %v5795
      %v5806 = vunpack.c.l.b16 %v5796
      %v5807 = vunpack.c.l.b16 %v5797
      %v5808 = vunpack.c.l.b16 %v5798
      %v5809 = vpack.c.b16 %v5806, %v5805
      %v5810 = vpack.c.b16 %v5808, %v5807
      %v5812 = vsel %vm660, %v5809, 0
      %v5815 = vsel %vm660, %v5810, 0
      %5817 = vmatprep.subr.bf16.mxu0 0
      %5818 = vmatpush1.bf16.msra.mxu0 %v5799
      %5819 = vmatprep.subr.bf16.mxu0 0
      %5820 = vmatpush1.bf16.msra.mxu0 %v5800
      %5821 = vmatprep.subr.bf16.mxu0 0
      %5822 = vmatpush1.bf16.msra.mxu0 0
      %5823 = vmatprep.subr.bf16.mxu0 0
      %5824 = vmatpush1.bf16.msra.mxu0 0
      %5825 = vmatprep.subr.bf16.mxu0 0
      %5826 = vmatpush1.bf16.msra.mxu0 0
      %5827 = vmatprep.subr.bf16.mxu0 0
      %5828 = vmatpush1.bf16.msra.mxu0 0
      %5829 = vmatprep.subr.bf16.mxu0 0
      %5830 = vmatpush1.bf16.msra.mxu0 0
      %5831 = vmatprep.subr.bf16.mxu0 0
      %5832 = vmatpush1.bf16.msra.mxu0 0
      %5833 = vmatprep.subr.bf16.mxu0 0
      %5834 = vmatpush1.bf16.msra.mxu0 0
      %5835 = vmatprep.subr.bf16.mxu0 0
      %5836 = vmatpush1.bf16.msra.mxu0 0
      %5837 = vmatprep.subr.bf16.mxu0 0
      %5838 = vmatpush1.bf16.msra.mxu0 0
      %5839 = vmatprep.subr.bf16.mxu0 0
      %5840 = vmatpush1.bf16.msra.mxu0 0
      %5841 = vmatprep.subr.bf16.mxu0 0
      %5842 = vmatpush1.bf16.msra.mxu0 0
      %5843 = vmatprep.subr.bf16.mxu0 0
      %5844 = vmatpush1.bf16.msra.mxu0 0
      %5845 = vmatprep.subr.bf16.mxu0 0
      %5846 = vmatpush1.bf16.msra.mxu0 0
      %5847 = vmatprep.subr.bf16.mxu0 0
      %5848 = vmatpush1.bf16.msra.mxu0 0
      %5849 = vmatprep.mubr.bf16.mxu0 0
      %5850 = vmatmul.mubr.bf16.gmra.mrb[0].mxu0 %v5812
      %v5851 = vpop.f32.mrb[0].mxu0
      %v5852 = vadd.f32 0.0, %v5851
      %v5853 = vpop.f32.mrb[0].mxu0
      %v5854 = vpop.f32.mrb[0].mxu0
      %v5855 = vadd.f32 0.0, %v5854
      %v5856 = vpop.f32.mrb[0].mxu0
      %5857 = vmatprep.mubr.bf16.mxu0 0
      %5858 = vmatmul.mubr.bf16.gmra.mrb[0].mxu0 %v5815
      %v5859 = vpop.f32.mrb[0].mxu0
      %v5860 = vadd.f32 0.0, %v5859
      %v5861 = vpop.f32.mrb[0].mxu0
      %v5862 = vpop.f32.mrb[0].mxu0
      %v5863 = vadd.f32 0.0, %v5862
      %v5864 = vpop.f32.mrb[0].mxu0
      %5865 = vdwg.mxu0
      %v5866 = vadd.f32 %v5790, %v5852
      %v5867 = vadd.f32 %v5791, %v5855
      %v5868 = vadd.f32 %v5792, %v5860
      %v5869 = vadd.f32 %v5793, %v5863
      %5870 = vrot.lane.b32.xlu0 %v5441, 127
      %v5871 = vpop.permute.xlu0 %5870
      %5872 = vrot.lane.b32.xlu0 %v5442, 127
      %v5873 = vpop.permute.xlu0 %5872
      %5874 = vrot.lane.b32.xlu0 %v5443, 127
      %v5875 = vpop.permute.xlu0 %5874
      %5876 = vrot.lane.b32.xlu0 %v5444, 127
      %v5877 = vpop.permute.xlu0 %5876
      %v5878 = vmul.f32 %v5871, %v5060
      %v5879 = vmul.f32 %v5873, %v5060
      %v5880 = vmul.f32 %v5875, %v5060
      %v5881 = vmul.f32 %v5877, %v5060
      %s5882 = scalar_lea.vmem %s568, 224
      %v5883 = vld [vmem:[%s5882] sm:$0xf]
      %v5884 = vld [vmem:[%s5882 + $0x4] sm:$0xf]
      %v5885 = vld [vmem:[%s5882 + $0x8] sm:$0xf]
      %v5886 = vld [vmem:[%s5882 + $0xc] sm:$0xf]
      %v5887 = vpack.c.bf16 %v5879, %v5878
      %v5888 = vpack.c.bf16 %v5881, %v5880
      %v5893 = vunpack.c.l.b16 %v5883
      %v5894 = vunpack.c.l.b16 %v5884
      %v5895 = vunpack.c.l.b16 %v5885
      %v5896 = vunpack.c.l.b16 %v5886
      %v5897 = vpack.c.b16 %v5894, %v5893
      %v5898 = vpack.c.b16 %v5896, %v5895
      %v5900 = vsel %vm660, %v5897, 0
      %v5903 = vsel %vm660, %v5898, 0
      %5905 = vmatprep.subr.bf16.mxu0 0
      %5906 = vmatpush1.bf16.msra.mxu0 %v5887
      %5907 = vmatprep.subr.bf16.mxu0 0
      %5908 = vmatpush1.bf16.msra.mxu0 %v5888
      %5909 = vmatprep.subr.bf16.mxu0 0
      %5910 = vmatpush1.bf16.msra.mxu0 0
      %5911 = vmatprep.subr.bf16.mxu0 0
      %5912 = vmatpush1.bf16.msra.mxu0 0
      %5913 = vmatprep.subr.bf16.mxu0 0
      %5914 = vmatpush1.bf16.msra.mxu0 0
      %5915 = vmatprep.subr.bf16.mxu0 0
      %5916 = vmatpush1.bf16.msra.mxu0 0
      %5917 = vmatprep.subr.bf16.mxu0 0
      %5918 = vmatpush1.bf16.msra.mxu0 0
      %5919 = vmatprep.subr.bf16.mxu0 0
      %5920 = vmatpush1.bf16.msra.mxu0 0
      %5921 = vmatprep.subr.bf16.mxu0 0
      %5922 = vmatpush1.bf16.msra.mxu0 0
      %5923 = vmatprep.subr.bf16.mxu0 0
      %5924 = vmatpush1.bf16.msra.mxu0 0
      %5925 = vmatprep.subr.bf16.mxu0 0
      %5926 = vmatpush1.bf16.msra.mxu0 0
      %5927 = vmatprep.subr.bf16.mxu0 0
      %5928 = vmatpush1.bf16.msra.mxu0 0
      %5929 = vmatprep.subr.bf16.mxu0 0
      %5930 = vmatpush1.bf16.msra.mxu0 0
      %5931 = vmatprep.subr.bf16.mxu0 0
      %5932 = vmatpush1.bf16.msra.mxu0 0
      %5933 = vmatprep.subr.bf16.mxu0 0
      %5934 = vmatpush1.bf16.msra.mxu0 0
      %5935 = vmatprep.subr.bf16.mxu0 0
      %5936 = vmatpush1.bf16.msra.mxu0 0
      %5937 = vmatprep.mubr.bf16.mxu0 0
      %5938 = vmatmul.mubr.bf16.gmra.mrb[0].mxu0 %v5900
      %v5939 = vpop.f32.mrb[0].mxu0
      %v5940 = vadd.f32 0.0, %v5939
      %v5941 = vpop.f32.mrb[0].mxu0
      %v5942 = vpop.f32.mrb[0].mxu0
      %v5943 = vadd.f32 0.0, %v5942
      %v5944 = vpop.f32.mrb[0].mxu0
      %5945 = vmatprep.mubr.bf16.mxu0 0
      %5946 = vmatmul.mubr.bf16.gmra.mrb[0].mxu0 %v5903
      %v5947 = vpop.f32.mrb[0].mxu0
      %v5948 = vadd.f32 0.0, %v5947
      %v5949 = vpop.f32.mrb[0].mxu0
      %v5950 = vpop.f32.mrb[0].mxu0
      %v5951 = vadd.f32 0.0, %v5950
      %v5952 = vpop.f32.mrb[0].mxu0
      %5953 = vdwg.mxu0
      %v5954 = vadd.f32 %v5866, %v5940
      %v5955 = vadd.f32 %v5867, %v5943
      %v5956 = vadd.f32 %v5868, %v5948
      %v5957 = vadd.f32 %v5869, %v5951
      %5958 = vrot.lane.b32.xlu0 %v5441, 125
      %v5959 = vpop.permute.xlu0 %5958
      %5960 = vrot.lane.b32.xlu0 %v5442, 125
      %v5961 = vpop.permute.xlu0 %5960
      %5962 = vrot.lane.b32.xlu0 %v5443, 125
      %v5963 = vpop.permute.xlu0 %5962
      %5964 = vrot.lane.b32.xlu0 %v5444, 125
      %v5965 = vpop.permute.xlu0 %5964
      %v5966 = vmul.f32 %v5959, %v5152
      %v5967 = vmul.f32 %v5961, %v5152
      %v5968 = vmul.f32 %v5963, %v5152
      %v5969 = vmul.f32 %v5965, %v5152
      %s5970 = scalar_lea.vmem %s568, 240
      %v5971 = vld [vmem:[%s5970] sm:$0xf]
      %v5972 = vld [vmem:[%s5970 + $0x4] sm:$0xf]
      %v5973 = vld [vmem:[%s5970 + $0x8] sm:$0xf]
      %v5974 = vld [vmem:[%s5970 + $0xc] sm:$0xf]
      %v5975 = vpack.c.bf16 %v5967, %v5966
      %v5976 = vpack.c.bf16 %v5969, %v5968
      %v5981 = vunpack.c.l.b16 %v5971
      %v5982 = vunpack.c.l.b16 %v5972
      %v5983 = vunpack.c.l.b16 %v5973
      %v5984 = vunpack.c.l.b16 %v5974
      %v5985 = vpack.c.b16 %v5982, %v5981
      %v5986 = vpack.c.b16 %v5984, %v5983
      %v5988 = vsel %vm660, %v5985, 0
      %v5991 = vsel %vm660, %v5986, 0
      %5993 = vmatprep.subr.bf16.mxu0 0
      %5994 = vmatpush1.bf16.msra.mxu0 %v5975
      %5995 = vmatprep.subr.bf16.mxu0 0
      %5996 = vmatpush1.bf16.msra.mxu0 %v5976
      %5997 = vmatprep.subr.bf16.mxu0 0
      %5998 = vmatpush1.bf16.msra.mxu0 0
      %5999 = vmatprep.subr.bf16.mxu0 0
      %6000 = vmatpush1.bf16.msra.mxu0 0
      %6001 = vmatprep.subr.bf16.mxu0 0
      %6002 = vmatpush1.bf16.msra.mxu0 0
      %6003 = vmatprep.subr.bf16.mxu0 0
      %6004 = vmatpush1.bf16.msra.mxu0 0
      %6005 = vmatprep.subr.bf16.mxu0 0
      %6006 = vmatpush1.bf16.msra.mxu0 0
      %6007 = vmatprep.subr.bf16.mxu0 0
      %6008 = vmatpush1.bf16.msra.mxu0 0
      %6009 = vmatprep.subr.bf16.mxu0 0
      %6010 = vmatpush1.bf16.msra.mxu0 0
      %6011 = vmatprep.subr.bf16.mxu0 0
      %6012 = vmatpush1.bf16.msra.mxu0 0
      %6013 = vmatprep.subr.bf16.mxu0 0
      %6014 = vmatpush1.bf16.msra.mxu0 0
      %6015 = vmatprep.subr.bf16.mxu0 0
      %6016 = vmatpush1.bf16.msra.mxu0 0
      %6017 = vmatprep.subr.bf16.mxu0 0
      %6018 = vmatpush1.bf16.msra.mxu0 0
      %6019 = vmatprep.subr.bf16.mxu0 0
      %6020 = vmatpush1.bf16.msra.mxu0 0
      %6021 = vmatprep.subr.bf16.mxu0 0
      %6022 = vmatpush1.bf16.msra.mxu0 0
      %6023 = vmatprep.subr.bf16.mxu0 0
      %6024 = vmatpush1.bf16.msra.mxu0 0
      %6025 = vmatprep.mubr.bf16.mxu0 0
      %6026 = vmatmul.mubr.bf16.gmra.mrb[0].mxu0 %v5988
      %v6027 = vpop.f32.mrb[0].mxu0
      %v6028 = vadd.f32 0.0, %v6027
      %v6029 = vpop.f32.mrb[0].mxu0
      %v6030 = vpop.f32.mrb[0].mxu0
      %v6031 = vadd.f32 0.0, %v6030
      %v6032 = vpop.f32.mrb[0].mxu0
      %6033 = vmatprep.mubr.bf16.mxu0 0
      %6034 = vmatmul.mubr.bf16.gmra.mrb[0].mxu0 %v5991
      %v6035 = vpop.f32.mrb[0].mxu0
      %v6036 = vadd.f32 0.0, %v6035
      %v6037 = vpop.f32.mrb[0].mxu0
      %v6038 = vpop.f32.mrb[0].mxu0
      %v6039 = vadd.f32 0.0, %v6038
      %v6040 = vpop.f32.mrb[0].mxu0
      %6041 = vdwg.mxu0
      %v6042 = vadd.f32 %v5954, %v6028
      %v6043 = vadd.f32 %v5955, %v6031
      %v6044 = vadd.f32 %v5956, %v6036
      %v6045 = vadd.f32 %v5957, %v6039
      %6046 = vrot.lane.b32.xlu0 %v5441, 124
      %v6047 = vpop.permute.xlu0 %6046
      %6048 = vrot.lane.b32.xlu0 %v5442, 124
      %v6049 = vpop.permute.xlu0 %6048
      %6050 = vrot.lane.b32.xlu0 %v5443, 124
      %v6051 = vpop.permute.xlu0 %6050
      %6052 = vrot.lane.b32.xlu0 %v5444, 124
      %v6053 = vpop.permute.xlu0 %6052
      %v6054 = vmul.f32 %v6047, %v5244
      %v6055 = vmul.f32 %v6049, %v5244
      %v6056 = vmul.f32 %v6051, %v5244
      %v6057 = vmul.f32 %v6053, %v5244
      %s6058 = scalar_lea.vmem %s568, 256
      %v6059 = vld [vmem:[%s6058] sm:$0xf]
      %v6060 = vld [vmem:[%s6058 + $0x4] sm:$0xf]
      %v6061 = vld [vmem:[%s6058 + $0x8] sm:$0xf]
      %v6062 = vld [vmem:[%s6058 + $0xc] sm:$0xf]
      %v6063 = vpack.c.bf16 %v6055, %v6054
      %v6064 = vpack.c.bf16 %v6057, %v6056
      %v6069 = vunpack.c.l.b16 %v6059
      %v6070 = vunpack.c.l.b16 %v6060
      %v6071 = vunpack.c.l.b16 %v6061
      %v6072 = vunpack.c.l.b16 %v6062
      %v6073 = vpack.c.b16 %v6070, %v6069
      %v6074 = vpack.c.b16 %v6072, %v6071
      %v6076 = vsel %vm660, %v6073, 0
      %v6079 = vsel %vm660, %v6074, 0
      %6081 = vmatprep.subr.bf16.mxu0 0
      %6082 = vmatpush1.bf16.msra.mxu0 %v6063
      %6083 = vmatprep.subr.bf16.mxu0 0
      %6084 = vmatpush1.bf16.msra.mxu0 %v6064
      %6085 = vmatprep.subr.bf16.mxu0 0
      %6086 = vmatpush1.bf16.msra.mxu0 0
      %6087 = vmatprep.subr.bf16.mxu0 0
      %6088 = vmatpush1.bf16.msra.mxu0 0
      %6089 = vmatprep.subr.bf16.mxu0 0
      %6090 = vmatpush1.bf16.msra.mxu0 0
      %6091 = vmatprep.subr.bf16.mxu0 0
      %6092 = vmatpush1.bf16.msra.mxu0 0
      %6093 = vmatprep.subr.bf16.mxu0 0
      %6094 = vmatpush1.bf16.msra.mxu0 0
      %6095 = vmatprep.subr.bf16.mxu0 0
      %6096 = vmatpush1.bf16.msra.mxu0 0
      %6097 = vmatprep.subr.bf16.mxu0 0
      %6098 = vmatpush1.bf16.msra.mxu0 0
      %6099 = vmatprep.subr.bf16.mxu0 0
      %6100 = vmatpush1.bf16.msra.mxu0 0
      %6101 = vmatprep.subr.bf16.mxu0 0
      %6102 = vmatpush1.bf16.msra.mxu0 0
      %6103 = vmatprep.subr.bf16.mxu0 0
      %6104 = vmatpush1.bf16.msra.mxu0 0
      %6105 = vmatprep.subr.bf16.mxu0 0
      %6106 = vmatpush1.bf16.msra.mxu0 0
      %6107 = vmatprep.subr.bf16.mxu0 0
      %6108 = vmatpush1.bf16.msra.mxu0 0
      %6109 = vmatprep.subr.bf16.mxu0 0
      %6110 = vmatpush1.bf16.msra.mxu0 0
      %6111 = vmatprep.subr.bf16.mxu0 0
      %6112 = vmatpush1.bf16.msra.mxu0 0
      %6113 = vmatprep.mubr.bf16.mxu0 0
      %6114 = vmatmul.mubr.bf16.gmra.mrb[0].mxu0 %v6076
      %v6115 = vpop.f32.mrb[0].mxu0
      %v6116 = vadd.f32 0.0, %v6115
      %v6117 = vpop.f32.mrb[0].mxu0
      %v6118 = vpop.f32.mrb[0].mxu0
      %v6119 = vadd.f32 0.0, %v6118
      %v6120 = vpop.f32.mrb[0].mxu0
      %6121 = vmatprep.mubr.bf16.mxu0 0
      %6122 = vmatmul.mubr.bf16.gmra.mrb[0].mxu0 %v6079
      %v6123 = vpop.f32.mrb[0].mxu0
      %v6124 = vadd.f32 0.0, %v6123
      %v6125 = vpop.f32.mrb[0].mxu0
      %v6126 = vpop.f32.mrb[0].mxu0
      %v6127 = vadd.f32 0.0, %v6126
      %v6128 = vpop.f32.mrb[0].mxu0
      %6129 = vdwg.mxu0
      %v6130 = vadd.f32 %v6042, %v6116
      %v6131 = vadd.f32 %v6043, %v6119
      %v6132 = vadd.f32 %v6044, %v6124
      %v6133 = vadd.f32 %v6045, %v6127
      %6134 = vrot.lane.b32.xlu0 %v5441, 123
      %v6135 = vpop.permute.xlu0 %6134
      %6136 = vrot.lane.b32.xlu0 %v5442, 123
      %v6137 = vpop.permute.xlu0 %6136
      %6138 = vrot.lane.b32.xlu0 %v5443, 123
      %v6139 = vpop.permute.xlu0 %6138
      %6140 = vrot.lane.b32.xlu0 %v5444, 123
      %v6141 = vpop.permute.xlu0 %6140
      %v6142 = vmul.f32 %v6135, %v5336
      %v6143 = vmul.f32 %v6137, %v5336
      %v6144 = vmul.f32 %v6139, %v5336
      %v6145 = vmul.f32 %v6141, %v5336
      %s6146 = scalar_lea.vmem %s568, 272
      %v6147 = vld [vmem:[%s6146] sm:$0xf]
      %v6148 = vld [vmem:[%s6146 + $0x4] sm:$0xf]
      %v6149 = vld [vmem:[%s6146 + $0x8] sm:$0xf]
      %v6150 = vld [vmem:[%s6146 + $0xc] sm:$0xf]
      %v6151 = vpack.c.bf16 %v6143, %v6142
      %v6152 = vpack.c.bf16 %v6145, %v6144
      %v6157 = vunpack.c.l.b16 %v6147
      %v6158 = vunpack.c.l.b16 %v6148
      %v6159 = vunpack.c.l.b16 %v6149
      %v6160 = vunpack.c.l.b16 %v6150
      %v6161 = vpack.c.b16 %v6158, %v6157
      %v6162 = vpack.c.b16 %v6160, %v6159
      %v6164 = vsel %vm660, %v6161, 0
      %v6167 = vsel %vm660, %v6162, 0
      %6169 = vmatprep.subr.bf16.mxu0 0
      %6170 = vmatpush1.bf16.msra.mxu0 %v6151
      %6171 = vmatprep.subr.bf16.mxu0 0
      %6172 = vmatpush1.bf16.msra.mxu0 %v6152
      %6173 = vmatprep.subr.bf16.mxu0 0
      %6174 = vmatpush1.bf16.msra.mxu0 0
      %6175 = vmatprep.subr.bf16.mxu0 0
      %6176 = vmatpush1.bf16.msra.mxu0 0
      %6177 = vmatprep.subr.bf16.mxu0 0
      %6178 = vmatpush1.bf16.msra.mxu0 0
      %6179 = vmatprep.subr.bf16.mxu0 0
      %6180 = vmatpush1.bf16.msra.mxu0 0
      %6181 = vmatprep.subr.bf16.mxu0 0
      %6182 = vmatpush1.bf16.msra.mxu0 0
      %6183 = vmatprep.subr.bf16.mxu0 0
      %6184 = vmatpush1.bf16.msra.mxu0 0
      %6185 = vmatprep.subr.bf16.mxu0 0
      %6186 = vmatpush1.bf16.msra.mxu0 0
      %6187 = vmatprep.subr.bf16.mxu0 0
      %6188 = vmatpush1.bf16.msra.mxu0 0
      %6189 = vmatprep.subr.bf16.mxu0 0
      %6190 = vmatpush1.bf16.msra.mxu0 0
      %6191 = vmatprep.subr.bf16.mxu0 0
      %6192 = vmatpush1.bf16.msra.mxu0 0
      %6193 = vmatprep.subr.bf16.mxu0 0
      %6194 = vmatpush1.bf16.msra.mxu0 0
      %6195 = vmatprep.subr.bf16.mxu0 0
      %6196 = vmatpush1.bf16.msra.mxu0 0
      %6197 = vmatprep.subr.bf16.mxu0 0
      %6198 = vmatpush1.bf16.msra.mxu0 0
      %6199 = vmatprep.subr.bf16.mxu0 0
      %6200 = vmatpush1.bf16.msra.mxu0 0
      %6201 = vmatprep.mubr.bf16.mxu0 0
      %6202 = vmatmul.mubr.bf16.gmra.mrb[0].mxu0 %v6164
      %v6203 = vpop.f32.mrb[0].mxu0
      %v6204 = vadd.f32 0.0, %v6203
      %v6205 = vpop.f32.mrb[0].mxu0
      %v6206 = vpop.f32.mrb[0].mxu0
      %v6207 = vadd.f32 0.0, %v6206
      %v6208 = vpop.f32.mrb[0].mxu0
      %6209 = vmatprep.mubr.bf16.mxu0 0
      %6210 = vmatmul.mubr.bf16.gmra.mrb[0].mxu0 %v6167
      %v6211 = vpop.f32.mrb[0].mxu0
      %v6212 = vadd.f32 0.0, %v6211
      %v6213 = vpop.f32.mrb[0].mxu0
      %v6214 = vpop.f32.mrb[0].mxu0
      %v6215 = vadd.f32 0.0, %v6214
      %v6216 = vpop.f32.mrb[0].mxu0
      %6217 = vdwg.mxu0
      %v6218 = vadd.f32 %v6130, %v6204
      %v6219 = vadd.f32 %v6131, %v6207
      %v6220 = vadd.f32 %v6132, %v6212
      %v6221 = vadd.f32 %v6133, %v6215
      %6223 = vset.pattern.permute.xlu0 0
      %6224 = vperm.xlu0 %6223, %v5446
      %v6225 = vpop.permute.xlu0 %6224
      %6228 = vset.pattern.permute.xlu0 0
      %6229 = vperm.xlu0 %6228, %v5447
      %v6230 = vpop.permute.xlu0 %6229
      %6233 = vset.pattern.permute.xlu0 0
      %6234 = vperm.xlu0 %6233, %v5448
      %v6235 = vpop.permute.xlu0 %6234
      %6238 = vset.pattern.permute.xlu0 0
      %6239 = vperm.xlu0 %6238, %v5449
      %v6240 = vpop.permute.xlu0 %6239
      %v6242 = vadd.f32 %v6218, %v6225
      %v6243 = vadd.f32 %v6219, %v6230
      %v6244 = vadd.f32 %v6220, %v6235
      %v6245 = vadd.f32 %v6221, %v6240
      %v6246 = vmax.f32 %v6242, 0.0
      %v6247 = vmax.f32 %v6243, 0.0
      %v6248 = vmax.f32 %v6244, 0.0
      %v6249 = vmax.f32 %v6245, 0.0
      %s6250 = scalar_lea.vmem %s573, 64
      %v6251 = vld [vmem:[%s6250] sm:$0xff]
      %v6252 = vld [vmem:[%s6250 + $0x8] sm:$0xff]
      %v6253 = vld [vmem:[%s6250 + $0x10] sm:$0xff]
      %v6254 = vld [vmem:[%s6250 + $0x18] sm:$0xff]
      %6255 = vrot.lane.b32.xlu0 %v6246, 5
      %v6256 = vpop.permute.xlu0 %6255
      %6257 = vrot.lane.b32.xlu0 %v6247, 5
      %v6258 = vpop.permute.xlu0 %6257
      %6259 = vrot.lane.b32.xlu0 %v6248, 5
      %v6260 = vpop.permute.xlu0 %6259
      %6261 = vrot.lane.b32.xlu0 %v6249, 5
      %v6262 = vpop.permute.xlu0 %6261
      %v6263 = vmul.f32 %v6256, %v4625
      %v6264 = vmul.f32 %v6258, %v4625
      %v6265 = vmul.f32 %v6260, %v4625
      %v6266 = vmul.f32 %v6262, %v4625
      %s6267 = scalar_lea.vmem %s568, 288
      %v6268 = vld [vmem:[%s6267] sm:$0xf]
      %v6269 = vld [vmem:[%s6267 + $0x4] sm:$0xf]
      %v6270 = vld [vmem:[%s6267 + $0x8] sm:$0xf]
      %v6271 = vld [vmem:[%s6267 + $0xc] sm:$0xf]
      %v6272 = vpack.c.bf16 %v6264, %v6263
      %v6273 = vpack.c.bf16 %v6266, %v6265
      %6274 = vrot.lane.b32.xlu0 %v6246, 4
      %v6275 = vpop.permute.xlu0 %6274
      %6276 = vrot.lane.b32.xlu0 %v6247, 4
      %v6277 = vpop.permute.xlu0 %6276
      %6278 = vrot.lane.b32.xlu0 %v6248, 4
      %v6279 = vpop.permute.xlu0 %6278
      %6280 = vrot.lane.b32.xlu0 %v6249, 4
      %v6281 = vpop.permute.xlu0 %6280
      %v6282 = vmul.f32 %v6275, %v4647
      %v6283 = vmul.f32 %v6277, %v4647
      %v6284 = vmul.f32 %v6279, %v4647
      %v6285 = vmul.f32 %v6281, %v4647
      %s6286 = scalar_lea.vmem %s568, 304
      %v6287 = vld [vmem:[%s6286] sm:$0xf]
      %v6288 = vld [vmem:[%s6286 + $0x4] sm:$0xf]
      %v6289 = vld [vmem:[%s6286 + $0x8] sm:$0xf]
      %v6290 = vld [vmem:[%s6286 + $0xc] sm:$0xf]
      %v6291 = vpack.c.bf16 %v6283, %v6282
      %v6292 = vpack.c.bf16 %v6285, %v6284
      %v6297 = vunpack.c.l.b16 %v6287
      %v6298 = vunpack.c.l.b16 %v6288
      %v6299 = vunpack.c.l.b16 %v6289
      %v6300 = vunpack.c.l.b16 %v6290
      %v6301 = vpack.c.b16 %v6298, %v6297
      %v6302 = vpack.c.b16 %v6300, %v6299
      %v6304 = vsel %vm660, %v6301, 0
      %v6307 = vsel %vm660, %v6302, 0
      %6309 = vmatprep.subr.bf16.mxu0 0
      %6310 = vmatpush1.bf16.msra.mxu0 %v6291
      %6311 = vmatprep.subr.bf16.mxu0 0
      %6312 = vmatpush1.bf16.msra.mxu0 %v6292
      %6313 = vmatprep.subr.bf16.mxu0 0
      %6314 = vmatpush1.bf16.msra.mxu0 0
      %6315 = vmatprep.subr.bf16.mxu0 0
      %6316 = vmatpush1.bf16.msra.mxu0 0
      %6317 = vmatprep.subr.bf16.mxu0 0
      %6318 = vmatpush1.bf16.msra.mxu0 0
      %6319 = vmatprep.subr.bf16.mxu0 0
      %6320 = vmatpush1.bf16.msra.mxu0 0
      %6321 = vmatprep.subr.bf16.mxu0 0
      %6322 = vmatpush1.bf16.msra.mxu0 0
      %6323 = vmatprep.subr.bf16.mxu0 0
      %6324 = vmatpush1.bf16.msra.mxu0 0
      %6325 = vmatprep.subr.bf16.mxu0 0
      %6326 = vmatpush1.bf16.msra.mxu0 0
      %6327 = vmatprep.subr.bf16.mxu0 0
      %6328 = vmatpush1.bf16.msra.mxu0 0
      %6329 = vmatprep.subr.bf16.mxu0 0
      %6330 = vmatpush1.bf16.msra.mxu0 0
      %6331 = vmatprep.subr.bf16.mxu0 0
      %6332 = vmatpush1.bf16.msra.mxu0 0
      %6333 = vmatprep.subr.bf16.mxu0 0
      %6334 = vmatpush1.bf16.msra.mxu0 0
      %6335 = vmatprep.subr.bf16.mxu0 0
      %6336 = vmatpush1.bf16.msra.mxu0 0
      %6337 = vmatprep.subr.bf16.mxu0 0
      %6338 = vmatpush1.bf16.msra.mxu0 0
      %6339 = vmatprep.subr.bf16.mxu0 0
      %6340 = vmatpush1.bf16.msra.mxu0 0
      %6341 = vmatprep.mubr.bf16.mxu0 0
      %6342 = vmatmul.mubr.bf16.gmra.mrb[0].mxu0 %v6304
      %v6343 = vpop.f32.mrb[0].mxu0
      %v6344 = vadd.f32 0.0, %v6343
      %v6345 = vpop.f32.mrb[0].mxu0
      %v6346 = vpop.f32.mrb[0].mxu0
      %v6347 = vadd.f32 0.0, %v6346
      %v6348 = vpop.f32.mrb[0].mxu0
      %6349 = vmatprep.mubr.bf16.mxu0 0
      %6350 = vmatmul.mubr.bf16.gmra.mrb[0].mxu0 %v6307
      %v6351 = vpop.f32.mrb[0].mxu0
      %v6352 = vadd.f32 0.0, %v6351
      %v6353 = vpop.f32.mrb[0].mxu0
      %v6354 = vpop.f32.mrb[0].mxu0
      %v6355 = vadd.f32 0.0, %v6354
      %v6356 = vpop.f32.mrb[0].mxu0
      %6357 = vdwg.mxu0
      %v6362 = vunpack.c.l.b16 %v6268
      %v6363 = vunpack.c.l.b16 %v6269
      %v6364 = vunpack.c.l.b16 %v6270
      %v6365 = vunpack.c.l.b16 %v6271
      %v6366 = vpack.c.b16 %v6363, %v6362
      %v6367 = vpack.c.b16 %v6365, %v6364
      %v6369 = vsel %vm660, %v6366, 0
      %v6372 = vsel %vm660, %v6367, 0
      %6374 = vmatprep.subr.bf16.mxu0 0
      %6375 = vmatpush1.bf16.msra.mxu0 %v6272
      %6376 = vmatprep.subr.bf16.mxu0 0
      %6377 = vmatpush1.bf16.msra.mxu0 %v6273
      %6378 = vmatprep.subr.bf16.mxu0 0
      %6379 = vmatpush1.bf16.msra.mxu0 0
      %6380 = vmatprep.subr.bf16.mxu0 0
      %6381 = vmatpush1.bf16.msra.mxu0 0
      %6382 = vmatprep.subr.bf16.mxu0 0
      %6383 = vmatpush1.bf16.msra.mxu0 0
      %6384 = vmatprep.subr.bf16.mxu0 0
      %6385 = vmatpush1.bf16.msra.mxu0 0
      %6386 = vmatprep.subr.bf16.mxu0 0
      %6387 = vmatpush1.bf16.msra.mxu0 0
      %6388 = vmatprep.subr.bf16.mxu0 0
      %6389 = vmatpush1.bf16.msra.mxu0 0
      %6390 = vmatprep.subr.bf16.mxu0 0
      %6391 = vmatpush1.bf16.msra.mxu0 0
      %6392 = vmatprep.subr.bf16.mxu0 0
      %6393 = vmatpush1.bf16.msra.mxu0 0
      %6394 = vmatprep.subr.bf16.mxu0 0
      %6395 = vmatpush1.bf16.msra.mxu0 0
      %6396 = vmatprep.subr.bf16.mxu0 0
      %6397 = vmatpush1.bf16.msra.mxu0 0
      %6398 = vmatprep.subr.bf16.mxu0 0
      %6399 = vmatpush1.bf16.msra.mxu0 0
      %6400 = vmatprep.subr.bf16.mxu0 0
      %6401 = vmatpush1.bf16.msra.mxu0 0
      %6402 = vmatprep.subr.bf16.mxu0 0
      %6403 = vmatpush1.bf16.msra.mxu0 0
      %6404 = vmatprep.subr.bf16.mxu0 0
      %6405 = vmatpush1.bf16.msra.mxu0 0
      %6406 = vmatprep.mubr.bf16.mxu0 0
      %6407 = vmatmul.mubr.bf16.gmra.mrb[0].mxu0 %v6369
      %v6408 = vpop.f32.mrb[0].mxu0
      %v6409 = vadd.f32 %v6344, %v6408
      %v6410 = vpop.f32.mrb[0].mxu0
      %v6411 = vpop.f32.mrb[0].mxu0
      %v6412 = vadd.f32 %v6347, %v6411
      %v6413 = vpop.f32.mrb[0].mxu0
      %6414 = vmatprep.mubr.bf16.mxu0 0
      %6415 = vmatmul.mubr.bf16.gmra.mrb[0].mxu0 %v6372
      %v6416 = vpop.f32.mrb[0].mxu0
      %v6417 = vadd.f32 %v6352, %v6416
      %v6418 = vpop.f32.mrb[0].mxu0
      %v6419 = vpop.f32.mrb[0].mxu0
      %v6420 = vadd.f32 %v6355, %v6419
      %v6421 = vpop.f32.mrb[0].mxu0
      %6422 = vdwg.mxu0
      %6423 = vrot.lane.b32.xlu0 %v6246, 3
      %v6424 = vpop.permute.xlu0 %6423
      %6425 = vrot.lane.b32.xlu0 %v6247, 3
      %v6426 = vpop.permute.xlu0 %6425
      %6427 = vrot.lane.b32.xlu0 %v6248, 3
      %v6428 = vpop.permute.xlu0 %6427
      %6429 = vrot.lane.b32.xlu0 %v6249, 3
      %v6430 = vpop.permute.xlu0 %6429
      %v6431 = vmul.f32 %v6424, %v4800
      %v6432 = vmul.f32 %v6426, %v4800
      %v6433 = vmul.f32 %v6428, %v4800
      %v6434 = vmul.f32 %v6430, %v4800
      %s6435 = scalar_lea.vmem %s568, 320
      %v6436 = vld [vmem:[%s6435] sm:$0xf]
      %v6437 = vld [vmem:[%s6435 + $0x4] sm:$0xf]
      %v6438 = vld [vmem:[%s6435 + $0x8] sm:$0xf]
      %v6439 = vld [vmem:[%s6435 + $0xc] sm:$0xf]
      %v6440 = vpack.c.bf16 %v6432, %v6431
      %v6441 = vpack.c.bf16 %v6434, %v6433
      %v6446 = vunpack.c.l.b16 %v6436
      %v6447 = vunpack.c.l.b16 %v6437
      %v6448 = vunpack.c.l.b16 %v6438
      %v6449 = vunpack.c.l.b16 %v6439
      %v6450 = vpack.c.b16 %v6447, %v6446
      %v6451 = vpack.c.b16 %v6449, %v6448
      %v6453 = vsel %vm660, %v6450, 0
      %v6456 = vsel %vm660, %v6451, 0
      %6458 = vmatprep.subr.bf16.mxu0 0
      %6459 = vmatpush1.bf16.msra.mxu0 %v6440
      %6460 = vmatprep.subr.bf16.mxu0 0
      %6461 = vmatpush1.bf16.msra.mxu0 %v6441
      %6462 = vmatprep.subr.bf16.mxu0 0
      %6463 = vmatpush1.bf16.msra.mxu0 0
      %6464 = vmatprep.subr.bf16.mxu0 0
      %6465 = vmatpush1.bf16.msra.mxu0 0
      %6466 = vmatprep.subr.bf16.mxu0 0
      %6467 = vmatpush1.bf16.msra.mxu0 0
      %6468 = vmatprep.subr.bf16.mxu0 0
      %6469 = vmatpush1.bf16.msra.mxu0 0
      %6470 = vmatprep.subr.bf16.mxu0 0
      %6471 = vmatpush1.bf16.msra.mxu0 0
      %6472 = vmatprep.subr.bf16.mxu0 0
      %6473 = vmatpush1.bf16.msra.mxu0 0
      %6474 = vmatprep.subr.bf16.mxu0 0
      %6475 = vmatpush1.bf16.msra.mxu0 0
      %6476 = vmatprep.subr.bf16.mxu0 0
      %6477 = vmatpush1.bf16.msra.mxu0 0
      %6478 = vmatprep.subr.bf16.mxu0 0
      %6479 = vmatpush1.bf16.msra.mxu0 0
      %6480 = vmatprep.subr.bf16.mxu0 0
      %6481 = vmatpush1.bf16.msra.mxu0 0
      %6482 = vmatprep.subr.bf16.mxu0 0
      %6483 = vmatpush1.bf16.msra.mxu0 0
      %6484 = vmatprep.subr.bf16.mxu0 0
      %6485 = vmatpush1.bf16.msra.mxu0 0
      %6486 = vmatprep.subr.bf16.mxu0 0
      %6487 = vmatpush1.bf16.msra.mxu0 0
      %6488 = vmatprep.subr.bf16.mxu0 0
      %6489 = vmatpush1.bf16.msra.mxu0 0
      %6490 = vmatprep.mubr.bf16.mxu0 0
      %6491 = vmatmul.mubr.bf16.gmra.mrb[0].mxu0 %v6453
      %v6492 = vpop.f32.mrb[0].mxu0
      %v6493 = vadd.f32 0.0, %v6492
      %v6494 = vpop.f32.mrb[0].mxu0
      %v6495 = vpop.f32.mrb[0].mxu0
      %v6496 = vadd.f32 0.0, %v6495
      %v6497 = vpop.f32.mrb[0].mxu0
      %6498 = vmatprep.mubr.bf16.mxu0 0
      %6499 = vmatmul.mubr.bf16.gmra.mrb[0].mxu0 %v6456
      %v6500 = vpop.f32.mrb[0].mxu0
      %v6501 = vadd.f32 0.0, %v6500
      %v6502 = vpop.f32.mrb[0].mxu0
      %v6503 = vpop.f32.mrb[0].mxu0
      %v6504 = vadd.f32 0.0, %v6503
      %v6505 = vpop.f32.mrb[0].mxu0
      %6506 = vdwg.mxu0
      %v6507 = vadd.f32 %v6409, %v6493
      %v6508 = vadd.f32 %v6412, %v6496
      %v6509 = vadd.f32 %v6417, %v6501
      %v6510 = vadd.f32 %v6420, %v6504
      %6511 = vrot.lane.b32.xlu0 %v6246, 1
      %v6512 = vpop.permute.xlu0 %6511
      %6513 = vrot.lane.b32.xlu0 %v6247, 1
      %v6514 = vpop.permute.xlu0 %6513
      %6515 = vrot.lane.b32.xlu0 %v6248, 1
      %v6516 = vpop.permute.xlu0 %6515
      %6517 = vrot.lane.b32.xlu0 %v6249, 1
      %v6518 = vpop.permute.xlu0 %6517
      %v6519 = vmul.f32 %v6512, %v4892
      %v6520 = vmul.f32 %v6514, %v4892
      %v6521 = vmul.f32 %v6516, %v4892
      %v6522 = vmul.f32 %v6518, %v4892
      %s6523 = scalar_lea.vmem %s568, 336
      %v6524 = vld [vmem:[%s6523] sm:$0xf]
      %v6525 = vld [vmem:[%s6523 + $0x4] sm:$0xf]
      %v6526 = vld [vmem:[%s6523 + $0x8] sm:$0xf]
      %v6527 = vld [vmem:[%s6523 + $0xc] sm:$0xf]
      %v6528 = vpack.c.bf16 %v6520, %v6519
      %v6529 = vpack.c.bf16 %v6522, %v6521
      %v6534 = vunpack.c.l.b16 %v6524
      %v6535 = vunpack.c.l.b16 %v6525
      %v6536 = vunpack.c.l.b16 %v6526
      %v6537 = vunpack.c.l.b16 %v6527
      %v6538 = vpack.c.b16 %v6535, %v6534
      %v6539 = vpack.c.b16 %v6537, %v6536
      %v6541 = vsel %vm660, %v6538, 0
      %v6544 = vsel %vm660, %v6539, 0
      %6546 = vmatprep.subr.bf16.mxu0 0
      %6547 = vmatpush1.bf16.msra.mxu0 %v6528
      %6548 = vmatprep.subr.bf16.mxu0 0
      %6549 = vmatpush1.bf16.msra.mxu0 %v6529
      %6550 = vmatprep.subr.bf16.mxu0 0
      %6551 = vmatpush1.bf16.msra.mxu0 0
      %6552 = vmatprep.subr.bf16.mxu0 0
      %6553 = vmatpush1.bf16.msra.mxu0 0
      %6554 = vmatprep.subr.bf16.mxu0 0
      %6555 = vmatpush1.bf16.msra.mxu0 0
      %6556 = vmatprep.subr.bf16.mxu0 0
      %6557 = vmatpush1.bf16.msra.mxu0 0
      %6558 = vmatprep.subr.bf16.mxu0 0
      %6559 = vmatpush1.bf16.msra.mxu0 0
      %6560 = vmatprep.subr.bf16.mxu0 0
      %6561 = vmatpush1.bf16.msra.mxu0 0
      %6562 = vmatprep.subr.bf16.mxu0 0
      %6563 = vmatpush1.bf16.msra.mxu0 0
      %6564 = vmatprep.subr.bf16.mxu0 0
      %6565 = vmatpush1.bf16.msra.mxu0 0
      %6566 = vmatprep.subr.bf16.mxu0 0
      %6567 = vmatpush1.bf16.msra.mxu0 0
      %6568 = vmatprep.subr.bf16.mxu0 0
      %6569 = vmatpush1.bf16.msra.mxu0 0
      %6570 = vmatprep.subr.bf16.mxu0 0
      %6571 = vmatpush1.bf16.msra.mxu0 0
      %6572 = vmatprep.subr.bf16.mxu0 0
      %6573 = vmatpush1.bf16.msra.mxu0 0
      %6574 = vmatprep.subr.bf16.mxu0 0
      %6575 = vmatpush1.bf16.msra.mxu0 0
      %6576 = vmatprep.subr.bf16.mxu0 0
      %6577 = vmatpush1.bf16.msra.mxu0 0
      %6578 = vmatprep.mubr.bf16.mxu0 0
      %6579 = vmatmul.mubr.bf16.gmra.mrb[0].mxu0 %v6541
      %v6580 = vpop.f32.mrb[0].mxu0
      %v6581 = vadd.f32 0.0, %v6580
      %v6582 = vpop.f32.mrb[0].mxu0
      %v6583 = vpop.f32.mrb[0].mxu0
      %v6584 = vadd.f32 0.0, %v6583
      %v6585 = vpop.f32.mrb[0].mxu0
      %6586 = vmatprep.mubr.bf16.mxu0 0
      %6587 = vmatmul.mubr.bf16.gmra.mrb[0].mxu0 %v6544
      %v6588 = vpop.f32.mrb[0].mxu0
      %v6589 = vadd.f32 0.0, %v6588
      %v6590 = vpop.f32.mrb[0].mxu0
      %v6591 = vpop.f32.mrb[0].mxu0
      %v6592 = vadd.f32 0.0, %v6591
      %v6593 = vpop.f32.mrb[0].mxu0
      %6594 = vdwg.mxu0
      %v6595 = vadd.f32 %v6507, %v6581
      %v6596 = vadd.f32 %v6508, %v6584
      %v6597 = vadd.f32 %v6509, %v6589
      %v6598 = vadd.f32 %v6510, %v6592
      %s6599 = scalar_lea.vmem %s568, 352
      %v6600 = vld [vmem:[%s6599] sm:$0xf]
      %v6601 = vld [vmem:[%s6599 + $0x4] sm:$0xf]
      %v6602 = vld [vmem:[%s6599 + $0x8] sm:$0xf]
      %v6603 = vld [vmem:[%s6599 + $0xc] sm:$0xf]
      %v6604 = vpack.c.bf16 %v6247, %v6246
      %v6605 = vpack.c.bf16 %v6249, %v6248
      %v6610 = vunpack.c.l.b16 %v6600
      %v6611 = vunpack.c.l.b16 %v6601
      %v6612 = vunpack.c.l.b16 %v6602
      %v6613 = vunpack.c.l.b16 %v6603
      %v6614 = vpack.c.b16 %v6611, %v6610
      %v6615 = vpack.c.b16 %v6613, %v6612
      %v6617 = vsel %vm660, %v6614, 0
      %v6620 = vsel %vm660, %v6615, 0
      %6622 = vmatprep.subr.bf16.mxu0 0
      %6623 = vmatpush1.bf16.msra.mxu0 %v6604
      %6624 = vmatprep.subr.bf16.mxu0 0
      %6625 = vmatpush1.bf16.msra.mxu0 %v6605
      %6626 = vmatprep.subr.bf16.mxu0 0
      %6627 = vmatpush1.bf16.msra.mxu0 0
      %6628 = vmatprep.subr.bf16.mxu0 0
      %6629 = vmatpush1.bf16.msra.mxu0 0
      %6630 = vmatprep.subr.bf16.mxu0 0
      %6631 = vmatpush1.bf16.msra.mxu0 0
      %6632 = vmatprep.subr.bf16.mxu0 0
      %6633 = vmatpush1.bf16.msra.mxu0 0
      %6634 = vmatprep.subr.bf16.mxu0 0
      %6635 = vmatpush1.bf16.msra.mxu0 0
      %6636 = vmatprep.subr.bf16.mxu0 0
      %6637 = vmatpush1.bf16.msra.mxu0 0
      %6638 = vmatprep.subr.bf16.mxu0 0
      %6639 = vmatpush1.bf16.msra.mxu0 0
      %6640 = vmatprep.subr.bf16.mxu0 0
      %6641 = vmatpush1.bf16.msra.mxu0 0
      %6642 = vmatprep.subr.bf16.mxu0 0
      %6643 = vmatpush1.bf16.msra.mxu0 0
      %6644 = vmatprep.subr.bf16.mxu0 0
      %6645 = vmatpush1.bf16.msra.mxu0 0
      %6646 = vmatprep.subr.bf16.mxu0 0
      %6647 = vmatpush1.bf16.msra.mxu0 0
      %6648 = vmatprep.subr.bf16.mxu0 0
      %6649 = vmatpush1.bf16.msra.mxu0 0
      %6650 = vmatprep.subr.bf16.mxu0 0
      %6651 = vmatpush1.bf16.msra.mxu0 0
      %6652 = vmatprep.subr.bf16.mxu0 0
      %6653 = vmatpush1.bf16.msra.mxu0 0
      %6654 = vmatprep.mubr.bf16.mxu0 0
      %6655 = vmatmul.mubr.bf16.gmra.mrb[0].mxu0 %v6617
      %v6656 = vpop.f32.mrb[0].mxu0
      %v6657 = vadd.f32 0.0, %v6656
      %v6658 = vpop.f32.mrb[0].mxu0
      %v6659 = vpop.f32.mrb[0].mxu0
      %v6660 = vadd.f32 0.0, %v6659
      %v6661 = vpop.f32.mrb[0].mxu0
      %6662 = vmatprep.mubr.bf16.mxu0 0
      %6663 = vmatmul.mubr.bf16.gmra.mrb[0].mxu0 %v6620
      %v6664 = vpop.f32.mrb[0].mxu0
      %v6665 = vadd.f32 0.0, %v6664
      %v6666 = vpop.f32.mrb[0].mxu0
      %v6667 = vpop.f32.mrb[0].mxu0
      %v6668 = vadd.f32 0.0, %v6667
      %v6669 = vpop.f32.mrb[0].mxu0
      %6670 = vdwg.mxu0
      %v6671 = vadd.f32 %v6595, %v6657
      %v6672 = vadd.f32 %v6596, %v6660
      %v6673 = vadd.f32 %v6597, %v6665
      %v6674 = vadd.f32 %v6598, %v6668
      %6675 = vrot.lane.b32.xlu0 %v6246, 127
      %v6676 = vpop.permute.xlu0 %6675
      %6677 = vrot.lane.b32.xlu0 %v6247, 127
      %v6678 = vpop.permute.xlu0 %6677
      %6679 = vrot.lane.b32.xlu0 %v6248, 127
      %v6680 = vpop.permute.xlu0 %6679
      %6681 = vrot.lane.b32.xlu0 %v6249, 127
      %v6682 = vpop.permute.xlu0 %6681
      %v6683 = vmul.f32 %v6676, %v5060
      %v6684 = vmul.f32 %v6678, %v5060
      %v6685 = vmul.f32 %v6680, %v5060
      %v6686 = vmul.f32 %v6682, %v5060
      %s6687 = scalar_lea.vmem %s568, 368
      %v6688 = vld [vmem:[%s6687] sm:$0xf]
      %v6689 = vld [vmem:[%s6687 + $0x4] sm:$0xf]
      %v6690 = vld [vmem:[%s6687 + $0x8] sm:$0xf]
      %v6691 = vld [vmem:[%s6687 + $0xc] sm:$0xf]
      %v6692 = vpack.c.bf16 %v6684, %v6683
      %v6693 = vpack.c.bf16 %v6686, %v6685
      %v6698 = vunpack.c.l.b16 %v6688
      %v6699 = vunpack.c.l.b16 %v6689
      %v6700 = vunpack.c.l.b16 %v6690
      %v6701 = vunpack.c.l.b16 %v6691
      %v6702 = vpack.c.b16 %v6699, %v6698
      %v6703 = vpack.c.b16 %v6701, %v6700
      %v6705 = vsel %vm660, %v6702, 0
      %v6708 = vsel %vm660, %v6703, 0
      %6710 = vmatprep.subr.bf16.mxu0 0
      %6711 = vmatpush1.bf16.msra.mxu0 %v6692
      %6712 = vmatprep.subr.bf16.mxu0 0
      %6713 = vmatpush1.bf16.msra.mxu0 %v6693
      %6714 = vmatprep.subr.bf16.mxu0 0
      %6715 = vmatpush1.bf16.msra.mxu0 0
      %6716 = vmatprep.subr.bf16.mxu0 0
      %6717 = vmatpush1.bf16.msra.mxu0 0
      %6718 = vmatprep.subr.bf16.mxu0 0
      %6719 = vmatpush1.bf16.msra.mxu0 0
      %6720 = vmatprep.subr.bf16.mxu0 0
      %6721 = vmatpush1.bf16.msra.mxu0 0
      %6722 = vmatprep.subr.bf16.mxu0 0
      %6723 = vmatpush1.bf16.msra.mxu0 0
      %6724 = vmatprep.subr.bf16.mxu0 0
      %6725 = vmatpush1.bf16.msra.mxu0 0
      %6726 = vmatprep.subr.bf16.mxu0 0
      %6727 = vmatpush1.bf16.msra.mxu0 0
      %6728 = vmatprep.subr.bf16.mxu0 0
      %6729 = vmatpush1.bf16.msra.mxu0 0
      %6730 = vmatprep.subr.bf16.mxu0 0
      %6731 = vmatpush1.bf16.msra.mxu0 0
      %6732 = vmatprep.subr.bf16.mxu0 0
      %6733 = vmatpush1.bf16.msra.mxu0 0
      %6734 = vmatprep.subr.bf16.mxu0 0
      %6735 = vmatpush1.bf16.msra.mxu0 0
      %6736 = vmatprep.subr.bf16.mxu0 0
      %6737 = vmatpush1.bf16.msra.mxu0 0
      %6738 = vmatprep.subr.bf16.mxu0 0
      %6739 = vmatpush1.bf16.msra.mxu0 0
      %6740 = vmatprep.subr.bf16.mxu0 0
      %6741 = vmatpush1.bf16.msra.mxu0 0
      %6742 = vmatprep.mubr.bf16.mxu0 0
      %6743 = vmatmul.mubr.bf16.gmra.mrb[0].mxu0 %v6705
      %v6744 = vpop.f32.mrb[0].mxu0
      %v6745 = vadd.f32 0.0, %v6744
      %v6746 = vpop.f32.mrb[0].mxu0
      %v6747 = vpop.f32.mrb[0].mxu0
      %v6748 = vadd.f32 0.0, %v6747
      %v6749 = vpop.f32.mrb[0].mxu0
      %6750 = vmatprep.mubr.bf16.mxu0 0
      %6751 = vmatmul.mubr.bf16.gmra.mrb[0].mxu0 %v6708
      %v6752 = vpop.f32.mrb[0].mxu0
      %v6753 = vadd.f32 0.0, %v6752
      %v6754 = vpop.f32.mrb[0].mxu0
      %v6755 = vpop.f32.mrb[0].mxu0
      %v6756 = vadd.f32 0.0, %v6755
      %v6757 = vpop.f32.mrb[0].mxu0
      %6758 = vdwg.mxu0
      %v6759 = vadd.f32 %v6671, %v6745
      %v6760 = vadd.f32 %v6672, %v6748
      %v6761 = vadd.f32 %v6673, %v6753
      %v6762 = vadd.f32 %v6674, %v6756
      %6763 = vrot.lane.b32.xlu0 %v6246, 125
      %v6764 = vpop.permute.xlu0 %6763
      %6765 = vrot.lane.b32.xlu0 %v6247, 125
      %v6766 = vpop.permute.xlu0 %6765
      %6767 = vrot.lane.b32.xlu0 %v6248, 125
      %v6768 = vpop.permute.xlu0 %6767
      %6769 = vrot.lane.b32.xlu0 %v6249, 125
      %v6770 = vpop.permute.xlu0 %6769
      %v6771 = vmul.f32 %v6764, %v5152
      %v6772 = vmul.f32 %v6766, %v5152
      %v6773 = vmul.f32 %v6768, %v5152
      %v6774 = vmul.f32 %v6770, %v5152
      %s6775 = scalar_lea.vmem %s568, 384
      %v6776 = vld [vmem:[%s6775] sm:$0xf]
      %v6777 = vld [vmem:[%s6775 + $0x4] sm:$0xf]
      %v6778 = vld [vmem:[%s6775 + $0x8] sm:$0xf]
      %v6779 = vld [vmem:[%s6775 + $0xc] sm:$0xf]
      %v6780 = vpack.c.bf16 %v6772, %v6771
      %v6781 = vpack.c.bf16 %v6774, %v6773
      %v6786 = vunpack.c.l.b16 %v6776
      %v6787 = vunpack.c.l.b16 %v6777
      %v6788 = vunpack.c.l.b16 %v6778
      %v6789 = vunpack.c.l.b16 %v6779
      %v6790 = vpack.c.b16 %v6787, %v6786
      %v6791 = vpack.c.b16 %v6789, %v6788
      %v6793 = vsel %vm660, %v6790, 0
      %v6796 = vsel %vm660, %v6791, 0
      %6798 = vmatprep.subr.bf16.mxu0 0
      %6799 = vmatpush1.bf16.msra.mxu0 %v6780
      %6800 = vmatprep.subr.bf16.mxu0 0
      %6801 = vmatpush1.bf16.msra.mxu0 %v6781
      %6802 = vmatprep.subr.bf16.mxu0 0
      %6803 = vmatpush1.bf16.msra.mxu0 0
      %6804 = vmatprep.subr.bf16.mxu0 0
      %6805 = vmatpush1.bf16.msra.mxu0 0
      %6806 = vmatprep.subr.bf16.mxu0 0
      %6807 = vmatpush1.bf16.msra.mxu0 0
      %6808 = vmatprep.subr.bf16.mxu0 0
      %6809 = vmatpush1.bf16.msra.mxu0 0
      %6810 = vmatprep.subr.bf16.mxu0 0
      %6811 = vmatpush1.bf16.msra.mxu0 0
      %6812 = vmatprep.subr.bf16.mxu0 0
      %6813 = vmatpush1.bf16.msra.mxu0 0
      %6814 = vmatprep.subr.bf16.mxu0 0
      %6815 = vmatpush1.bf16.msra.mxu0 0
      %6816 = vmatprep.subr.bf16.mxu0 0
      %6817 = vmatpush1.bf16.msra.mxu0 0
      %6818 = vmatprep.subr.bf16.mxu0 0
      %6819 = vmatpush1.bf16.msra.mxu0 0
      %6820 = vmatprep.subr.bf16.mxu0 0
      %6821 = vmatpush1.bf16.msra.mxu0 0
      %6822 = vmatprep.subr.bf16.mxu0 0
      %6823 = vmatpush1.bf16.msra.mxu0 0
      %6824 = vmatprep.subr.bf16.mxu0 0
      %6825 = vmatpush1.bf16.msra.mxu0 0
      %6826 = vmatprep.subr.bf16.mxu0 0
      %6827 = vmatpush1.bf16.msra.mxu0 0
      %6828 = vmatprep.subr.bf16.mxu0 0
      %6829 = vmatpush1.bf16.msra.mxu0 0
      %6830 = vmatprep.mubr.bf16.mxu0 0
      %6831 = vmatmul.mubr.bf16.gmra.mrb[0].mxu0 %v6793
      %v6832 = vpop.f32.mrb[0].mxu0
      %v6833 = vadd.f32 0.0, %v6832
      %v6834 = vpop.f32.mrb[0].mxu0
      %v6835 = vpop.f32.mrb[0].mxu0
      %v6836 = vadd.f32 0.0, %v6835
      %v6837 = vpop.f32.mrb[0].mxu0
      %6838 = vmatprep.mubr.bf16.mxu0 0
      %6839 = vmatmul.mubr.bf16.gmra.mrb[0].mxu0 %v6796
      %v6840 = vpop.f32.mrb[0].mxu0
      %v6841 = vadd.f32 0.0, %v6840
      %v6842 = vpop.f32.mrb[0].mxu0
      %v6843 = vpop.f32.mrb[0].mxu0
      %v6844 = vadd.f32 0.0, %v6843
      %v6845 = vpop.f32.mrb[0].mxu0
      %6846 = vdwg.mxu0
      %v6847 = vadd.f32 %v6759, %v6833
      %v6848 = vadd.f32 %v6760, %v6836
      %v6849 = vadd.f32 %v6761, %v6841
      %v6850 = vadd.f32 %v6762, %v6844
      %6851 = vrot.lane.b32.xlu0 %v6246, 124
      %v6852 = vpop.permute.xlu0 %6851
      %6853 = vrot.lane.b32.xlu0 %v6247, 124
      %v6854 = vpop.permute.xlu0 %6853
      %6855 = vrot.lane.b32.xlu0 %v6248, 124
      %v6856 = vpop.permute.xlu0 %6855
      %6857 = vrot.lane.b32.xlu0 %v6249, 124
      %v6858 = vpop.permute.xlu0 %6857
      %v6859 = vmul.f32 %v6852, %v5244
      %v6860 = vmul.f32 %v6854, %v5244
      %v6861 = vmul.f32 %v6856, %v5244
      %v6862 = vmul.f32 %v6858, %v5244
      %s6863 = scalar_lea.vmem %s568, 400
      %v6864 = vld [vmem:[%s6863] sm:$0xf]
      %v6865 = vld [vmem:[%s6863 + $0x4] sm:$0xf]
      %v6866 = vld [vmem:[%s6863 + $0x8] sm:$0xf]
      %v6867 = vld [vmem:[%s6863 + $0xc] sm:$0xf]
      %v6868 = vpack.c.bf16 %v6860, %v6859
      %v6869 = vpack.c.bf16 %v6862, %v6861
      %v6874 = vunpack.c.l.b16 %v6864
      %v6875 = vunpack.c.l.b16 %v6865
      %v6876 = vunpack.c.l.b16 %v6866
      %v6877 = vunpack.c.l.b16 %v6867
      %v6878 = vpack.c.b16 %v6875, %v6874
      %v6879 = vpack.c.b16 %v6877, %v6876
      %v6881 = vsel %vm660, %v6878, 0
      %v6884 = vsel %vm660, %v6879, 0
      %6886 = vmatprep.subr.bf16.mxu0 0
      %6887 = vmatpush1.bf16.msra.mxu0 %v6868
      %6888 = vmatprep.subr.bf16.mxu0 0
      %6889 = vmatpush1.bf16.msra.mxu0 %v6869
      %6890 = vmatprep.subr.bf16.mxu0 0
      %6891 = vmatpush1.bf16.msra.mxu0 0
      %6892 = vmatprep.subr.bf16.mxu0 0
      %6893 = vmatpush1.bf16.msra.mxu0 0
      %6894 = vmatprep.subr.bf16.mxu0 0
      %6895 = vmatpush1.bf16.msra.mxu0 0
      %6896 = vmatprep.subr.bf16.mxu0 0
      %6897 = vmatpush1.bf16.msra.mxu0 0
      %6898 = vmatprep.subr.bf16.mxu0 0
      %6899 = vmatpush1.bf16.msra.mxu0 0
      %6900 = vmatprep.subr.bf16.mxu0 0
      %6901 = vmatpush1.bf16.msra.mxu0 0
      %6902 = vmatprep.subr.bf16.mxu0 0
      %6903 = vmatpush1.bf16.msra.mxu0 0
      %6904 = vmatprep.subr.bf16.mxu0 0
      %6905 = vmatpush1.bf16.msra.mxu0 0
      %6906 = vmatprep.subr.bf16.mxu0 0
      %6907 = vmatpush1.bf16.msra.mxu0 0
      %6908 = vmatprep.subr.bf16.mxu0 0
      %6909 = vmatpush1.bf16.msra.mxu0 0
      %6910 = vmatprep.subr.bf16.mxu0 0
      %6911 = vmatpush1.bf16.msra.mxu0 0
      %6912 = vmatprep.subr.bf16.mxu0 0
      %6913 = vmatpush1.bf16.msra.mxu0 0
      %6914 = vmatprep.subr.bf16.mxu0 0
      %6915 = vmatpush1.bf16.msra.mxu0 0
      %6916 = vmatprep.subr.bf16.mxu0 0
      %6917 = vmatpush1.bf16.msra.mxu0 0
      %6918 = vmatprep.mubr.bf16.mxu0 0
      %6919 = vmatmul.mubr.bf16.gmra.mrb[0].mxu0 %v6881
      %v6920 = vpop.f32.mrb[0].mxu0
      %v6921 = vadd.f32 0.0, %v6920
      %v6922 = vpop.f32.mrb[0].mxu0
      %v6923 = vpop.f32.mrb[0].mxu0
      %v6924 = vadd.f32 0.0, %v6923
      %v6925 = vpop.f32.mrb[0].mxu0
      %6926 = vmatprep.mubr.bf16.mxu0 0
      %6927 = vmatmul.mubr.bf16.gmra.mrb[0].mxu0 %v6884
      %v6928 = vpop.f32.mrb[0].mxu0
      %v6929 = vadd.f32 0.0, %v6928
      %v6930 = vpop.f32.mrb[0].mxu0
      %v6931 = vpop.f32.mrb[0].mxu0
      %v6932 = vadd.f32 0.0, %v6931
      %v6933 = vpop.f32.mrb[0].mxu0
      %6934 = vdwg.mxu0
      %v6935 = vadd.f32 %v6847, %v6921
      %v6936 = vadd.f32 %v6848, %v6924
      %v6937 = vadd.f32 %v6849, %v6929
      %v6938 = vadd.f32 %v6850, %v6932
      %6939 = vrot.lane.b32.xlu0 %v6246, 123
      %v6940 = vpop.permute.xlu0 %6939
      %6941 = vrot.lane.b32.xlu0 %v6247, 123
      %v6942 = vpop.permute.xlu0 %6941
      %6943 = vrot.lane.b32.xlu0 %v6248, 123
      %v6944 = vpop.permute.xlu0 %6943
      %6945 = vrot.lane.b32.xlu0 %v6249, 123
      %v6946 = vpop.permute.xlu0 %6945
      %v6947 = vmul.f32 %v6940, %v5336
      %v6948 = vmul.f32 %v6942, %v5336
      %v6949 = vmul.f32 %v6944, %v5336
      %v6950 = vmul.f32 %v6946, %v5336
      %s6951 = scalar_lea.vmem %s568, 416
      %v6952 = vld [vmem:[%s6951] sm:$0xf]
      %v6953 = vld [vmem:[%s6951 + $0x4] sm:$0xf]
      %v6954 = vld [vmem:[%s6951 + $0x8] sm:$0xf]
      %v6955 = vld [vmem:[%s6951 + $0xc] sm:$0xf]
      %v6956 = vpack.c.bf16 %v6948, %v6947
      %v6957 = vpack.c.bf16 %v6950, %v6949
      %v6962 = vunpack.c.l.b16 %v6952
      %v6963 = vunpack.c.l.b16 %v6953
      %v6964 = vunpack.c.l.b16 %v6954
      %v6965 = vunpack.c.l.b16 %v6955
      %v6966 = vpack.c.b16 %v6963, %v6962
      %v6967 = vpack.c.b16 %v6965, %v6964
      %v6969 = vsel %vm660, %v6966, 0
      %v6972 = vsel %vm660, %v6967, 0
      %6974 = vmatprep.subr.bf16.mxu0 0
      %6975 = vmatpush1.bf16.msra.mxu0 %v6956
      %6976 = vmatprep.subr.bf16.mxu0 0
      %6977 = vmatpush1.bf16.msra.mxu0 %v6957
      %6978 = vmatprep.subr.bf16.mxu0 0
      %6979 = vmatpush1.bf16.msra.mxu0 0
      %6980 = vmatprep.subr.bf16.mxu0 0
      %6981 = vmatpush1.bf16.msra.mxu0 0
      %6982 = vmatprep.subr.bf16.mxu0 0
      %6983 = vmatpush1.bf16.msra.mxu0 0
      %6984 = vmatprep.subr.bf16.mxu0 0
      %6985 = vmatpush1.bf16.msra.mxu0 0
      %6986 = vmatprep.subr.bf16.mxu0 0
      %6987 = vmatpush1.bf16.msra.mxu0 0
      %6988 = vmatprep.subr.bf16.mxu0 0
      %6989 = vmatpush1.bf16.msra.mxu0 0
      %6990 = vmatprep.subr.bf16.mxu0 0
      %6991 = vmatpush1.bf16.msra.mxu0 0
      %6992 = vmatprep.subr.bf16.mxu0 0
      %6993 = vmatpush1.bf16.msra.mxu0 0
      %6994 = vmatprep.subr.bf16.mxu0 0
      %6995 = vmatpush1.bf16.msra.mxu0 0
      %6996 = vmatprep.subr.bf16.mxu0 0
      %6997 = vmatpush1.bf16.msra.mxu0 0
      %6998 = vmatprep.subr.bf16.mxu0 0
      %6999 = vmatpush1.bf16.msra.mxu0 0
      %7000 = vmatprep.subr.bf16.mxu0 0
      %7001 = vmatpush1.bf16.msra.mxu0 0
      %7002 = vmatprep.subr.bf16.mxu0 0
      %7003 = vmatpush1.bf16.msra.mxu0 0
      %7004 = vmatprep.subr.bf16.mxu0 0
      %7005 = vmatpush1.bf16.msra.mxu0 0
      %7006 = vmatprep.mubr.bf16.mxu0 0
      %7007 = vmatmul.mubr.bf16.gmra.mrb[0].mxu0 %v6969
      %v7008 = vpop.f32.mrb[0].mxu0
      %v7009 = vadd.f32 0.0, %v7008
      %v7010 = vpop.f32.mrb[0].mxu0
      %v7011 = vpop.f32.mrb[0].mxu0
      %v7012 = vadd.f32 0.0, %v7011
      %v7013 = vpop.f32.mrb[0].mxu0
      %7014 = vmatprep.mubr.bf16.mxu0 0
      %7015 = vmatmul.mubr.bf16.gmra.mrb[0].mxu0 %v6972
      %v7016 = vpop.f32.mrb[0].mxu0
      %v7017 = vadd.f32 0.0, %v7016
      %v7018 = vpop.f32.mrb[0].mxu0
      %v7019 = vpop.f32.mrb[0].mxu0
      %v7020 = vadd.f32 0.0, %v7019
      %v7021 = vpop.f32.mrb[0].mxu0
      %7022 = vdwg.mxu0
      %v7023 = vadd.f32 %v6935, %v7009
      %v7024 = vadd.f32 %v6936, %v7012
      %v7025 = vadd.f32 %v6937, %v7017
      %v7026 = vadd.f32 %v6938, %v7020
      %7028 = vset.pattern.permute.xlu0 0
      %7029 = vperm.xlu0 %7028, %v6251
      %v7030 = vpop.permute.xlu0 %7029
      %7033 = vset.pattern.permute.xlu0 0
      %7034 = vperm.xlu0 %7033, %v6252
      %v7035 = vpop.permute.xlu0 %7034
      %7038 = vset.pattern.permute.xlu0 0
      %7039 = vperm.xlu0 %7038, %v6253
      %v7040 = vpop.permute.xlu0 %7039
      %7043 = vset.pattern.permute.xlu0 0
      %7044 = vperm.xlu0 %7043, %v6254
      %v7045 = vpop.permute.xlu0 %7044
      %v7047 = vadd.f32 %v7023, %v7030
      %v7048 = vadd.f32 %v7024, %v7035
      %v7049 = vadd.f32 %v7025, %v7040
      %v7050 = vadd.f32 %v7026, %v7045
      %v7051 = vmax.f32 %v7047, 0.0
      %v7052 = vmax.f32 %v7048, 0.0
      %v7053 = vmax.f32 %v7049, 0.0
      %v7054 = vmax.f32 %v7050, 0.0
      %s7055 = scalar_lea.vmem %s573, 96
      %v7056 = vld [vmem:[%s7055] sm:$0xff]
      %v7057 = vld [vmem:[%s7055 + $0x8] sm:$0xff]
      %v7058 = vld [vmem:[%s7055 + $0x10] sm:$0xff]
      %v7059 = vld [vmem:[%s7055 + $0x18] sm:$0xff]
      %7060 = vrot.lane.b32.xlu0 %v7051, 5
      %v7061 = vpop.permute.xlu0 %7060
      %7062 = vrot.lane.b32.xlu0 %v7052, 5
      %v7063 = vpop.permute.xlu0 %7062
      %7064 = vrot.lane.b32.xlu0 %v7053, 5
      %v7065 = vpop.permute.xlu0 %7064
      %7066 = vrot.lane.b32.xlu0 %v7054, 5
      %v7067 = vpop.permute.xlu0 %7066
      %v7068 = vmul.f32 %v7061, %v4625
      %v7069 = vmul.f32 %v7063, %v4625
      %v7070 = vmul.f32 %v7065, %v4625
      %v7071 = vmul.f32 %v7067, %v4625
      %s7072 = scalar_lea.vmem %s568, 432
      %v7073 = vld [vmem:[%s7072] sm:$0xf]
      %v7074 = vld [vmem:[%s7072 + $0x4] sm:$0xf]
      %v7075 = vld [vmem:[%s7072 + $0x8] sm:$0xf]
      %v7076 = vld [vmem:[%s7072 + $0xc] sm:$0xf]
      %v7077 = vpack.c.bf16 %v7069, %v7068
      %v7078 = vpack.c.bf16 %v7071, %v7070
      %7079 = vrot.lane.b32.xlu0 %v7051, 4
      %v7080 = vpop.permute.xlu0 %7079
      %7081 = vrot.lane.b32.xlu0 %v7052, 4
      %v7082 = vpop.permute.xlu0 %7081
      %7083 = vrot.lane.b32.xlu0 %v7053, 4
      %v7084 = vpop.permute.xlu0 %7083
      %7085 = vrot.lane.b32.xlu0 %v7054, 4
      %v7086 = vpop.permute.xlu0 %7085
      %v7087 = vmul.f32 %v7080, %v4647
      %v7088 = vmul.f32 %v7082, %v4647
      %v7089 = vmul.f32 %v7084, %v4647
      %v7090 = vmul.f32 %v7086, %v4647
      %s7091 = scalar_lea.vmem %s568, 448
      %v7092 = vld [vmem:[%s7091] sm:$0xf]
      %v7093 = vld [vmem:[%s7091 + $0x4] sm:$0xf]
      %v7094 = vld [vmem:[%s7091 + $0x8] sm:$0xf]
      %v7095 = vld [vmem:[%s7091 + $0xc] sm:$0xf]
      %v7096 = vpack.c.bf16 %v7088, %v7087
      %v7097 = vpack.c.bf16 %v7090, %v7089
      %v7102 = vunpack.c.l.b16 %v7092
      %v7103 = vunpack.c.l.b16 %v7093
      %v7104 = vunpack.c.l.b16 %v7094
      %v7105 = vunpack.c.l.b16 %v7095
      %v7106 = vpack.c.b16 %v7103, %v7102
      %v7107 = vpack.c.b16 %v7105, %v7104
      %v7109 = vsel %vm660, %v7106, 0
      %v7112 = vsel %vm660, %v7107, 0
      %7114 = vmatprep.subr.bf16.mxu0 0
      %7115 = vmatpush1.bf16.msra.mxu0 %v7096
      %7116 = vmatprep.subr.bf16.mxu0 0
      %7117 = vmatpush1.bf16.msra.mxu0 %v7097
      %7118 = vmatprep.subr.bf16.mxu0 0
      %7119 = vmatpush1.bf16.msra.mxu0 0
      %7120 = vmatprep.subr.bf16.mxu0 0
      %7121 = vmatpush1.bf16.msra.mxu0 0
      %7122 = vmatprep.subr.bf16.mxu0 0
      %7123 = vmatpush1.bf16.msra.mxu0 0
      %7124 = vmatprep.subr.bf16.mxu0 0
      %7125 = vmatpush1.bf16.msra.mxu0 0
      %7126 = vmatprep.subr.bf16.mxu0 0
      %7127 = vmatpush1.bf16.msra.mxu0 0
      %7128 = vmatprep.subr.bf16.mxu0 0
      %7129 = vmatpush1.bf16.msra.mxu0 0
      %7130 = vmatprep.subr.bf16.mxu0 0
      %7131 = vmatpush1.bf16.msra.mxu0 0
      %7132 = vmatprep.subr.bf16.mxu0 0
      %7133 = vmatpush1.bf16.msra.mxu0 0
      %7134 = vmatprep.subr.bf16.mxu0 0
      %7135 = vmatpush1.bf16.msra.mxu0 0
      %7136 = vmatprep.subr.bf16.mxu0 0
      %7137 = vmatpush1.bf16.msra.mxu0 0
      %7138 = vmatprep.subr.bf16.mxu0 0
      %7139 = vmatpush1.bf16.msra.mxu0 0
      %7140 = vmatprep.subr.bf16.mxu0 0
      %7141 = vmatpush1.bf16.msra.mxu0 0
      %7142 = vmatprep.subr.bf16.mxu0 0
      %7143 = vmatpush1.bf16.msra.mxu0 0
      %7144 = vmatprep.subr.bf16.mxu0 0
      %7145 = vmatpush1.bf16.msra.mxu0 0
      %7146 = vmatprep.mubr.bf16.mxu0 0
      %7147 = vmatmul.mubr.bf16.gmra.mrb[0].mxu0 %v7109
      %v7148 = vpop.f32.mrb[0].mxu0
      %v7149 = vadd.f32 0.0, %v7148
      %v7150 = vpop.f32.mrb[0].mxu0
      %v7151 = vpop.f32.mrb[0].mxu0
      %v7152 = vadd.f32 0.0, %v7151
      %v7153 = vpop.f32.mrb[0].mxu0
      %7154 = vmatprep.mubr.bf16.mxu0 0
      %7155 = vmatmul.mubr.bf16.gmra.mrb[0].mxu0 %v7112
      %v7156 = vpop.f32.mrb[0].mxu0
      %v7157 = vadd.f32 0.0, %v7156
      %v7158 = vpop.f32.mrb[0].mxu0
      %v7159 = vpop.f32.mrb[0].mxu0
      %v7160 = vadd.f32 0.0, %v7159
      %v7161 = vpop.f32.mrb[0].mxu0
      %7162 = vdwg.mxu0
      %v7167 = vunpack.c.l.b16 %v7073
      %v7168 = vunpack.c.l.b16 %v7074
      %v7169 = vunpack.c.l.b16 %v7075
      %v7170 = vunpack.c.l.b16 %v7076
      %v7171 = vpack.c.b16 %v7168, %v7167
      %v7172 = vpack.c.b16 %v7170, %v7169
      %v7174 = vsel %vm660, %v7171, 0
      %v7177 = vsel %vm660, %v7172, 0
      %7179 = vmatprep.subr.bf16.mxu0 0
      %7180 = vmatpush1.bf16.msra.mxu0 %v7077
      %7181 = vmatprep.subr.bf16.mxu0 0
      %7182 = vmatpush1.bf16.msra.mxu0 %v7078
      %7183 = vmatprep.subr.bf16.mxu0 0
      %7184 = vmatpush1.bf16.msra.mxu0 0
      %7185 = vmatprep.subr.bf16.mxu0 0
      %7186 = vmatpush1.bf16.msra.mxu0 0
      %7187 = vmatprep.subr.bf16.mxu0 0
      %7188 = vmatpush1.bf16.msra.mxu0 0
      %7189 = vmatprep.subr.bf16.mxu0 0
      %7190 = vmatpush1.bf16.msra.mxu0 0
      %7191 = vmatprep.subr.bf16.mxu0 0
      %7192 = vmatpush1.bf16.msra.mxu0 0
      %7193 = vmatprep.subr.bf16.mxu0 0
      %7194 = vmatpush1.bf16.msra.mxu0 0
      %7195 = vmatprep.subr.bf16.mxu0 0
      %7196 = vmatpush1.bf16.msra.mxu0 0
      %7197 = vmatprep.subr.bf16.mxu0 0
      %7198 = vmatpush1.bf16.msra.mxu0 0
      %7199 = vmatprep.subr.bf16.mxu0 0
      %7200 = vmatpush1.bf16.msra.mxu0 0
      %7201 = vmatprep.subr.bf16.mxu0 0
      %7202 = vmatpush1.bf16.msra.mxu0 0
      %7203 = vmatprep.subr.bf16.mxu0 0
      %7204 = vmatpush1.bf16.msra.mxu0 0
      %7205 = vmatprep.subr.bf16.mxu0 0
      %7206 = vmatpush1.bf16.msra.mxu0 0
      %7207 = vmatprep.subr.bf16.mxu0 0
      %7208 = vmatpush1.bf16.msra.mxu0 0
      %7209 = vmatprep.subr.bf16.mxu0 0
      %7210 = vmatpush1.bf16.msra.mxu0 0
      %7211 = vmatprep.mubr.bf16.mxu0 0
      %7212 = vmatmul.mubr.bf16.gmra.mrb[0].mxu0 %v7174
      %v7213 = vpop.f32.mrb[0].mxu0
      %v7214 = vadd.f32 %v7149, %v7213
      %v7215 = vpop.f32.mrb[0].mxu0
      %v7216 = vpop.f32.mrb[0].mxu0
      %v7217 = vadd.f32 %v7152, %v7216
      %v7218 = vpop.f32.mrb[0].mxu0
      %7219 = vmatprep.mubr.bf16.mxu0 0
      %7220 = vmatmul.mubr.bf16.gmra.mrb[0].mxu0 %v7177
      %v7221 = vpop.f32.mrb[0].mxu0
      %v7222 = vadd.f32 %v7157, %v7221
      %v7223 = vpop.f32.mrb[0].mxu0
      %v7224 = vpop.f32.mrb[0].mxu0
      %v7225 = vadd.f32 %v7160, %v7224
      %v7226 = vpop.f32.mrb[0].mxu0
      %7227 = vdwg.mxu0
      %7228 = vrot.lane.b32.xlu0 %v7051, 3
      %v7229 = vpop.permute.xlu0 %7228
      %7230 = vrot.lane.b32.xlu0 %v7052, 3
      %v7231 = vpop.permute.xlu0 %7230
      %7232 = vrot.lane.b32.xlu0 %v7053, 3
      %v7233 = vpop.permute.xlu0 %7232
      %7234 = vrot.lane.b32.xlu0 %v7054, 3
      %v7235 = vpop.permute.xlu0 %7234
      %v7236 = vmul.f32 %v7229, %v4800
      %v7237 = vmul.f32 %v7231, %v4800
      %v7238 = vmul.f32 %v7233, %v4800
      %v7239 = vmul.f32 %v7235, %v4800
      %s7240 = scalar_lea.vmem %s568, 464
      %v7241 = vld [vmem:[%s7240] sm:$0xf]
      %v7242 = vld [vmem:[%s7240 + $0x4] sm:$0xf]
      %v7243 = vld [vmem:[%s7240 + $0x8] sm:$0xf]
      %v7244 = vld [vmem:[%s7240 + $0xc] sm:$0xf]
      %v7245 = vpack.c.bf16 %v7237, %v7236
      %v7246 = vpack.c.bf16 %v7239, %v7238
      %v7251 = vunpack.c.l.b16 %v7241
      %v7252 = vunpack.c.l.b16 %v7242
      %v7253 = vunpack.c.l.b16 %v7243
      %v7254 = vunpack.c.l.b16 %v7244
      %v7255 = vpack.c.b16 %v7252, %v7251
      %v7256 = vpack.c.b16 %v7254, %v7253
      %v7258 = vsel %vm660, %v7255, 0
      %v7261 = vsel %vm660, %v7256, 0
      %7263 = vmatprep.subr.bf16.mxu0 0
      %7264 = vmatpush1.bf16.msra.mxu0 %v7245
      %7265 = vmatprep.subr.bf16.mxu0 0
      %7266 = vmatpush1.bf16.msra.mxu0 %v7246
      %7267 = vmatprep.subr.bf16.mxu0 0
      %7268 = vmatpush1.bf16.msra.mxu0 0
      %7269 = vmatprep.subr.bf16.mxu0 0
      %7270 = vmatpush1.bf16.msra.mxu0 0
      %7271 = vmatprep.subr.bf16.mxu0 0
      %7272 = vmatpush1.bf16.msra.mxu0 0
      %7273 = vmatprep.subr.bf16.mxu0 0
      %7274 = vmatpush1.bf16.msra.mxu0 0
      %7275 = vmatprep.subr.bf16.mxu0 0
      %7276 = vmatpush1.bf16.msra.mxu0 0
      %7277 = vmatprep.subr.bf16.mxu0 0
      %7278 = vmatpush1.bf16.msra.mxu0 0
      %7279 = vmatprep.subr.bf16.mxu0 0
      %7280 = vmatpush1.bf16.msra.mxu0 0
      %7281 = vmatprep.subr.bf16.mxu0 0
      %7282 = vmatpush1.bf16.msra.mxu0 0
      %7283 = vmatprep.subr.bf16.mxu0 0
      %7284 = vmatpush1.bf16.msra.mxu0 0
      %7285 = vmatprep.subr.bf16.mxu0 0
      %7286 = vmatpush1.bf16.msra.mxu0 0
      %7287 = vmatprep.subr.bf16.mxu0 0
      %7288 = vmatpush1.bf16.msra.mxu0 0
      %7289 = vmatprep.subr.bf16.mxu0 0
      %7290 = vmatpush1.bf16.msra.mxu0 0
      %7291 = vmatprep.subr.bf16.mxu0 0
      %7292 = vmatpush1.bf16.msra.mxu0 0
      %7293 = vmatprep.subr.bf16.mxu0 0
      %7294 = vmatpush1.bf16.msra.mxu0 0
      %7295 = vmatprep.mubr.bf16.mxu0 0
      %7296 = vmatmul.mubr.bf16.gmra.mrb[0].mxu0 %v7258
      %v7297 = vpop.f32.mrb[0].mxu0
      %v7298 = vadd.f32 0.0, %v7297
      %v7299 = vpop.f32.mrb[0].mxu0
      %v7300 = vpop.f32.mrb[0].mxu0
      %v7301 = vadd.f32 0.0, %v7300
      %v7302 = vpop.f32.mrb[0].mxu0
      %7303 = vmatprep.mubr.bf16.mxu0 0
      %7304 = vmatmul.mubr.bf16.gmra.mrb[0].mxu0 %v7261
      %v7305 = vpop.f32.mrb[0].mxu0
      %v7306 = vadd.f32 0.0, %v7305
      %v7307 = vpop.f32.mrb[0].mxu0
      %v7308 = vpop.f32.mrb[0].mxu0
      %v7309 = vadd.f32 0.0, %v7308
      %v7310 = vpop.f32.mrb[0].mxu0
      %7311 = vdwg.mxu0
      %v7312 = vadd.f32 %v7214, %v7298
      %v7313 = vadd.f32 %v7217, %v7301
      %v7314 = vadd.f32 %v7222, %v7306
      %v7315 = vadd.f32 %v7225, %v7309
      %7316 = vrot.lane.b32.xlu0 %v7051, 1
      %v7317 = vpop.permute.xlu0 %7316
      %7318 = vrot.lane.b32.xlu0 %v7052, 1
      %v7319 = vpop.permute.xlu0 %7318
      %7320 = vrot.lane.b32.xlu0 %v7053, 1
      %v7321 = vpop.permute.xlu0 %7320
      %7322 = vrot.lane.b32.xlu0 %v7054, 1
      %v7323 = vpop.permute.xlu0 %7322
      %v7324 = vmul.f32 %v7317, %v4892
      %v7325 = vmul.f32 %v7319, %v4892
      %v7326 = vmul.f32 %v7321, %v4892
      %v7327 = vmul.f32 %v7323, %v4892
      %s7328 = scalar_lea.vmem %s568, 480
      %v7329 = vld [vmem:[%s7328] sm:$0xf]
      %v7330 = vld [vmem:[%s7328 + $0x4] sm:$0xf]
      %v7331 = vld [vmem:[%s7328 + $0x8] sm:$0xf]
      %v7332 = vld [vmem:[%s7328 + $0xc] sm:$0xf]
      %v7333 = vpack.c.bf16 %v7325, %v7324
      %v7334 = vpack.c.bf16 %v7327, %v7326
      %v7339 = vunpack.c.l.b16 %v7329
      %v7340 = vunpack.c.l.b16 %v7330
      %v7341 = vunpack.c.l.b16 %v7331
      %v7342 = vunpack.c.l.b16 %v7332
      %v7343 = vpack.c.b16 %v7340, %v7339
      %v7344 = vpack.c.b16 %v7342, %v7341
      %v7346 = vsel %vm660, %v7343, 0
      %v7349 = vsel %vm660, %v7344, 0
      %7351 = vmatprep.subr.bf16.mxu0 0
      %7352 = vmatpush1.bf16.msra.mxu0 %v7333
      %7353 = vmatprep.subr.bf16.mxu0 0
      %7354 = vmatpush1.bf16.msra.mxu0 %v7334
      %7355 = vmatprep.subr.bf16.mxu0 0
      %7356 = vmatpush1.bf16.msra.mxu0 0
      %7357 = vmatprep.subr.bf16.mxu0 0
      %7358 = vmatpush1.bf16.msra.mxu0 0
      %7359 = vmatprep.subr.bf16.mxu0 0
      %7360 = vmatpush1.bf16.msra.mxu0 0
      %7361 = vmatprep.subr.bf16.mxu0 0
      %7362 = vmatpush1.bf16.msra.mxu0 0
      %7363 = vmatprep.subr.bf16.mxu0 0
      %7364 = vmatpush1.bf16.msra.mxu0 0
      %7365 = vmatprep.subr.bf16.mxu0 0
      %7366 = vmatpush1.bf16.msra.mxu0 0
      %7367 = vmatprep.subr.bf16.mxu0 0
      %7368 = vmatpush1.bf16.msra.mxu0 0
      %7369 = vmatprep.subr.bf16.mxu0 0
      %7370 = vmatpush1.bf16.msra.mxu0 0
      %7371 = vmatprep.subr.bf16.mxu0 0
      %7372 = vmatpush1.bf16.msra.mxu0 0
      %7373 = vmatprep.subr.bf16.mxu0 0
      %7374 = vmatpush1.bf16.msra.mxu0 0
      %7375 = vmatprep.subr.bf16.mxu0 0
      %7376 = vmatpush1.bf16.msra.mxu0 0
      %7377 = vmatprep.subr.bf16.mxu0 0
      %7378 = vmatpush1.bf16.msra.mxu0 0
      %7379 = vmatprep.subr.bf16.mxu0 0
      %7380 = vmatpush1.bf16.msra.mxu0 0
      %7381 = vmatprep.subr.bf16.mxu0 0
      %7382 = vmatpush1.bf16.msra.mxu0 0
      %7383 = vmatprep.mubr.bf16.mxu0 0
      %7384 = vmatmul.mubr.bf16.gmra.mrb[0].mxu0 %v7346
      %v7385 = vpop.f32.mrb[0].mxu0
      %v7386 = vadd.f32 0.0, %v7385
      %v7387 = vpop.f32.mrb[0].mxu0
      %v7388 = vpop.f32.mrb[0].mxu0
      %v7389 = vadd.f32 0.0, %v7388
      %v7390 = vpop.f32.mrb[0].mxu0
      %7391 = vmatprep.mubr.bf16.mxu0 0
      %7392 = vmatmul.mubr.bf16.gmra.mrb[0].mxu0 %v7349
      %v7393 = vpop.f32.mrb[0].mxu0
      %v7394 = vadd.f32 0.0, %v7393
      %v7395 = vpop.f32.mrb[0].mxu0
      %v7396 = vpop.f32.mrb[0].mxu0
      %v7397 = vadd.f32 0.0, %v7396
      %v7398 = vpop.f32.mrb[0].mxu0
      %7399 = vdwg.mxu0
      %v7400 = vadd.f32 %v7312, %v7386
      %v7401 = vadd.f32 %v7313, %v7389
      %v7402 = vadd.f32 %v7314, %v7394
      %v7403 = vadd.f32 %v7315, %v7397
      %s7404 = scalar_lea.vmem %s568, 496
      %v7405 = vld [vmem:[%s7404] sm:$0xf]
      %v7406 = vld [vmem:[%s7404 + $0x4] sm:$0xf]
      %v7407 = vld [vmem:[%s7404 + $0x8] sm:$0xf]
      %v7408 = vld [vmem:[%s7404 + $0xc] sm:$0xf]
      %v7409 = vpack.c.bf16 %v7052, %v7051
      %v7410 = vpack.c.bf16 %v7054, %v7053
      %v7415 = vunpack.c.l.b16 %v7405
      %v7416 = vunpack.c.l.b16 %v7406
      %v7417 = vunpack.c.l.b16 %v7407
      %v7418 = vunpack.c.l.b16 %v7408
      %v7419 = vpack.c.b16 %v7416, %v7415
      %v7420 = vpack.c.b16 %v7418, %v7417
      %v7422 = vsel %vm660, %v7419, 0
      %v7425 = vsel %vm660, %v7420, 0
      %7427 = vmatprep.subr.bf16.mxu0 0
      %7428 = vmatpush1.bf16.msra.mxu0 %v7409
      %7429 = vmatprep.subr.bf16.mxu0 0
      %7430 = vmatpush1.bf16.msra.mxu0 %v7410
      %7431 = vmatprep.subr.bf16.mxu0 0
      %7432 = vmatpush1.bf16.msra.mxu0 0
      %7433 = vmatprep.subr.bf16.mxu0 0
      %7434 = vmatpush1.bf16.msra.mxu0 0
      %7435 = vmatprep.subr.bf16.mxu0 0
      %7436 = vmatpush1.bf16.msra.mxu0 0
      %7437 = vmatprep.subr.bf16.mxu0 0
      %7438 = vmatpush1.bf16.msra.mxu0 0
      %7439 = vmatprep.subr.bf16.mxu0 0
      %7440 = vmatpush1.bf16.msra.mxu0 0
      %7441 = vmatprep.subr.bf16.mxu0 0
      %7442 = vmatpush1.bf16.msra.mxu0 0
      %7443 = vmatprep.subr.bf16.mxu0 0
      %7444 = vmatpush1.bf16.msra.mxu0 0
      %7445 = vmatprep.subr.bf16.mxu0 0
      %7446 = vmatpush1.bf16.msra.mxu0 0
      %7447 = vmatprep.subr.bf16.mxu0 0
      %7448 = vmatpush1.bf16.msra.mxu0 0
      %7449 = vmatprep.subr.bf16.mxu0 0
      %7450 = vmatpush1.bf16.msra.mxu0 0
      %7451 = vmatprep.subr.bf16.mxu0 0
      %7452 = vmatpush1.bf16.msra.mxu0 0
      %7453 = vmatprep.subr.bf16.mxu0 0
      %7454 = vmatpush1.bf16.msra.mxu0 0
      %7455 = vmatprep.subr.bf16.mxu0 0
      %7456 = vmatpush1.bf16.msra.mxu0 0
      %7457 = vmatprep.subr.bf16.mxu0 0
      %7458 = vmatpush1.bf16.msra.mxu0 0
      %7459 = vmatprep.mubr.bf16.mxu0 0
      %7460 = vmatmul.mubr.bf16.gmra.mrb[0].mxu0 %v7422
      %v7461 = vpop.f32.mrb[0].mxu0
      %v7462 = vadd.f32 0.0, %v7461
      %v7463 = vpop.f32.mrb[0].mxu0
      %v7464 = vpop.f32.mrb[0].mxu0
      %v7465 = vadd.f32 0.0, %v7464
      %v7466 = vpop.f32.mrb[0].mxu0
      %7467 = vmatprep.mubr.bf16.mxu0 0
      %7468 = vmatmul.mubr.bf16.gmra.mrb[0].mxu0 %v7425
      %v7469 = vpop.f32.mrb[0].mxu0
      %v7470 = vadd.f32 0.0, %v7469
      %v7471 = vpop.f32.mrb[0].mxu0
      %v7472 = vpop.f32.mrb[0].mxu0
      %v7473 = vadd.f32 0.0, %v7472
      %v7474 = vpop.f32.mrb[0].mxu0
      %7475 = vdwg.mxu0
      %v7476 = vadd.f32 %v7400, %v7462
      %v7477 = vadd.f32 %v7401, %v7465
      %v7478 = vadd.f32 %v7402, %v7470
      %v7479 = vadd.f32 %v7403, %v7473
      %7480 = vrot.lane.b32.xlu0 %v7051, 127
      %v7481 = vpop.permute.xlu0 %7480
      %7482 = vrot.lane.b32.xlu0 %v7052, 127
      %v7483 = vpop.permute.xlu0 %7482
      %7484 = vrot.lane.b32.xlu0 %v7053, 127
      %v7485 = vpop.permute.xlu0 %7484
      %7486 = vrot.lane.b32.xlu0 %v7054, 127
      %v7487 = vpop.permute.xlu0 %7486
      %v7488 = vmul.f32 %v7481, %v5060
      %v7489 = vmul.f32 %v7483, %v5060
      %v7490 = vmul.f32 %v7485, %v5060
      %v7491 = vmul.f32 %v7487, %v5060
      %s7492 = scalar_lea.vmem %s568, 512
      %v7493 = vld [vmem:[%s7492] sm:$0xf]
      %v7494 = vld [vmem:[%s7492 + $0x4] sm:$0xf]
      %v7495 = vld [vmem:[%s7492 + $0x8] sm:$0xf]
      %v7496 = vld [vmem:[%s7492 + $0xc] sm:$0xf]
      %v7497 = vpack.c.bf16 %v7489, %v7488
      %v7498 = vpack.c.bf16 %v7491, %v7490
      %v7503 = vunpack.c.l.b16 %v7493
      %v7504 = vunpack.c.l.b16 %v7494
      %v7505 = vunpack.c.l.b16 %v7495
      %v7506 = vunpack.c.l.b16 %v7496
      %v7507 = vpack.c.b16 %v7504, %v7503
      %v7508 = vpack.c.b16 %v7506, %v7505
      %v7510 = vsel %vm660, %v7507, 0
      %v7513 = vsel %vm660, %v7508, 0
      %7515 = vmatprep.subr.bf16.mxu0 0
      %7516 = vmatpush1.bf16.msra.mxu0 %v7497
      %7517 = vmatprep.subr.bf16.mxu0 0
      %7518 = vmatpush1.bf16.msra.mxu0 %v7498
      %7519 = vmatprep.subr.bf16.mxu0 0
      %7520 = vmatpush1.bf16.msra.mxu0 0
      %7521 = vmatprep.subr.bf16.mxu0 0
      %7522 = vmatpush1.bf16.msra.mxu0 0
      %7523 = vmatprep.subr.bf16.mxu0 0
      %7524 = vmatpush1.bf16.msra.mxu0 0
      %7525 = vmatprep.subr.bf16.mxu0 0
      %7526 = vmatpush1.bf16.msra.mxu0 0
      %7527 = vmatprep.subr.bf16.mxu0 0
      %7528 = vmatpush1.bf16.msra.mxu0 0
      %7529 = vmatprep.subr.bf16.mxu0 0
      %7530 = vmatpush1.bf16.msra.mxu0 0
      %7531 = vmatprep.subr.bf16.mxu0 0
      %7532 = vmatpush1.bf16.msra.mxu0 0
      %7533 = vmatprep.subr.bf16.mxu0 0
      %7534 = vmatpush1.bf16.msra.mxu0 0
      %7535 = vmatprep.subr.bf16.mxu0 0
      %7536 = vmatpush1.bf16.msra.mxu0 0
      %7537 = vmatprep.subr.bf16.mxu0 0
      %7538 = vmatpush1.bf16.msra.mxu0 0
      %7539 = vmatprep.subr.bf16.mxu0 0
      %7540 = vmatpush1.bf16.msra.mxu0 0
      %7541 = vmatprep.subr.bf16.mxu0 0
      %7542 = vmatpush1.bf16.msra.mxu0 0
      %7543 = vmatprep.subr.bf16.mxu0 0
      %7544 = vmatpush1.bf16.msra.mxu0 0
      %7545 = vmatprep.subr.bf16.mxu0 0
      %7546 = vmatpush1.bf16.msra.mxu0 0
      %7547 = vmatprep.mubr.bf16.mxu0 0
      %7548 = vmatmul.mubr.bf16.gmra.mrb[0].mxu0 %v7510
      %v7549 = vpop.f32.mrb[0].mxu0
      %v7550 = vadd.f32 0.0, %v7549
      %v7551 = vpop.f32.mrb[0].mxu0
      %v7552 = vpop.f32.mrb[0].mxu0
      %v7553 = vadd.f32 0.0, %v7552
      %v7554 = vpop.f32.mrb[0].mxu0
      %7555 = vmatprep.mubr.bf16.mxu0 0
      %7556 = vmatmul.mubr.bf16.gmra.mrb[0].mxu0 %v7513
      %v7557 = vpop.f32.mrb[0].mxu0
      %v7558 = vadd.f32 0.0, %v7557
      %v7559 = vpop.f32.mrb[0].mxu0
      %v7560 = vpop.f32.mrb[0].mxu0
      %v7561 = vadd.f32 0.0, %v7560
      %v7562 = vpop.f32.mrb[0].mxu0
      %7563 = vdwg.mxu0
      %v7564 = vadd.f32 %v7476, %v7550
      %v7565 = vadd.f32 %v7477, %v7553
      %v7566 = vadd.f32 %v7478, %v7558
      %v7567 = vadd.f32 %v7479, %v7561
      %7568 = vrot.lane.b32.xlu0 %v7051, 125
      %v7569 = vpop.permute.xlu0 %7568
      %7570 = vrot.lane.b32.xlu0 %v7052, 125
      %v7571 = vpop.permute.xlu0 %7570
      %7572 = vrot.lane.b32.xlu0 %v7053, 125
      %v7573 = vpop.permute.xlu0 %7572
      %7574 = vrot.lane.b32.xlu0 %v7054, 125
      %v7575 = vpop.permute.xlu0 %7574
      %v7576 = vmul.f32 %v7569, %v5152
      %v7577 = vmul.f32 %v7571, %v5152
      %v7578 = vmul.f32 %v7573, %v5152
      %v7579 = vmul.f32 %v7575, %v5152
      %s7580 = scalar_lea.vmem %s568, 528
      %v7581 = vld [vmem:[%s7580] sm:$0xf]
      %v7582 = vld [vmem:[%s7580 + $0x4] sm:$0xf]
      %v7583 = vld [vmem:[%s7580 + $0x8] sm:$0xf]
      %v7584 = vld [vmem:[%s7580 + $0xc] sm:$0xf]
      %v7585 = vpack.c.bf16 %v7577, %v7576
      %v7586 = vpack.c.bf16 %v7579, %v7578
      %v7591 = vunpack.c.l.b16 %v7581
      %v7592 = vunpack.c.l.b16 %v7582
      %v7593 = vunpack.c.l.b16 %v7583
      %v7594 = vunpack.c.l.b16 %v7584
      %v7595 = vpack.c.b16 %v7592, %v7591
      %v7596 = vpack.c.b16 %v7594, %v7593
      %v7598 = vsel %vm660, %v7595, 0
      %v7601 = vsel %vm660, %v7596, 0
      %7603 = vmatprep.subr.bf16.mxu0 0
      %7604 = vmatpush1.bf16.msra.mxu0 %v7585
      %7605 = vmatprep.subr.bf16.mxu0 0
      %7606 = vmatpush1.bf16.msra.mxu0 %v7586
      %7607 = vmatprep.subr.bf16.mxu0 0
      %7608 = vmatpush1.bf16.msra.mxu0 0
      %7609 = vmatprep.subr.bf16.mxu0 0
      %7610 = vmatpush1.bf16.msra.mxu0 0
      %7611 = vmatprep.subr.bf16.mxu0 0
      %7612 = vmatpush1.bf16.msra.mxu0 0
      %7613 = vmatprep.subr.bf16.mxu0 0
      %7614 = vmatpush1.bf16.msra.mxu0 0
      %7615 = vmatprep.subr.bf16.mxu0 0
      %7616 = vmatpush1.bf16.msra.mxu0 0
      %7617 = vmatprep.subr.bf16.mxu0 0
      %7618 = vmatpush1.bf16.msra.mxu0 0
      %7619 = vmatprep.subr.bf16.mxu0 0
      %7620 = vmatpush1.bf16.msra.mxu0 0
      %7621 = vmatprep.subr.bf16.mxu0 0
      %7622 = vmatpush1.bf16.msra.mxu0 0
      %7623 = vmatprep.subr.bf16.mxu0 0
      %7624 = vmatpush1.bf16.msra.mxu0 0
      %7625 = vmatprep.subr.bf16.mxu0 0
      %7626 = vmatpush1.bf16.msra.mxu0 0
      %7627 = vmatprep.subr.bf16.mxu0 0
      %7628 = vmatpush1.bf16.msra.mxu0 0
      %7629 = vmatprep.subr.bf16.mxu0 0
      %7630 = vmatpush1.bf16.msra.mxu0 0
      %7631 = vmatprep.subr.bf16.mxu0 0
      %7632 = vmatpush1.bf16.msra.mxu0 0
      %7633 = vmatprep.subr.bf16.mxu0 0
      %7634 = vmatpush1.bf16.msra.mxu0 0
      %7635 = vmatprep.mubr.bf16.mxu0 0
      %7636 = vmatmul.mubr.bf16.gmra.mrb[0].mxu0 %v7598
      %v7637 = vpop.f32.mrb[0].mxu0
      %v7638 = vadd.f32 0.0, %v7637
      %v7639 = vpop.f32.mrb[0].mxu0
      %v7640 = vpop.f32.mrb[0].mxu0
      %v7641 = vadd.f32 0.0, %v7640
      %v7642 = vpop.f32.mrb[0].mxu0
      %7643 = vmatprep.mubr.bf16.mxu0 0
      %7644 = vmatmul.mubr.bf16.gmra.mrb[0].mxu0 %v7601
      %v7645 = vpop.f32.mrb[0].mxu0
      %v7646 = vadd.f32 0.0, %v7645
      %v7647 = vpop.f32.mrb[0].mxu0
      %v7648 = vpop.f32.mrb[0].mxu0
      %v7649 = vadd.f32 0.0, %v7648
      %v7650 = vpop.f32.mrb[0].mxu0
      %7651 = vdwg.mxu0
      %v7652 = vadd.f32 %v7564, %v7638
      %v7653 = vadd.f32 %v7565, %v7641
      %v7654 = vadd.f32 %v7566, %v7646
      %v7655 = vadd.f32 %v7567, %v7649
      %7656 = vrot.lane.b32.xlu0 %v7051, 124
      %v7657 = vpop.permute.xlu0 %7656
      %7658 = vrot.lane.b32.xlu0 %v7052, 124
      %v7659 = vpop.permute.xlu0 %7658
      %7660 = vrot.lane.b32.xlu0 %v7053, 124
      %v7661 = vpop.permute.xlu0 %7660
      %7662 = vrot.lane.b32.xlu0 %v7054, 124
      %v7663 = vpop.permute.xlu0 %7662
      %v7664 = vmul.f32 %v7657, %v5244
      %v7665 = vmul.f32 %v7659, %v5244
      %v7666 = vmul.f32 %v7661, %v5244
      %v7667 = vmul.f32 %v7663, %v5244
      %s7668 = scalar_lea.vmem %s568, 544
      %v7669 = vld [vmem:[%s7668] sm:$0xf]
      %v7670 = vld [vmem:[%s7668 + $0x4] sm:$0xf]
      %v7671 = vld [vmem:[%s7668 + $0x8] sm:$0xf]
      %v7672 = vld [vmem:[%s7668 + $0xc] sm:$0xf]
      %v7673 = vpack.c.bf16 %v7665, %v7664
      %v7674 = vpack.c.bf16 %v7667, %v7666
      %v7679 = vunpack.c.l.b16 %v7669
      %v7680 = vunpack.c.l.b16 %v7670
      %v7681 = vunpack.c.l.b16 %v7671
      %v7682 = vunpack.c.l.b16 %v7672
      %v7683 = vpack.c.b16 %v7680, %v7679
      %v7684 = vpack.c.b16 %v7682, %v7681
      %v7686 = vsel %vm660, %v7683, 0
      %v7689 = vsel %vm660, %v7684, 0
      %7691 = vmatprep.subr.bf16.mxu0 0
      %7692 = vmatpush1.bf16.msra.mxu0 %v7673
      %7693 = vmatprep.subr.bf16.mxu0 0
      %7694 = vmatpush1.bf16.msra.mxu0 %v7674
      %7695 = vmatprep.subr.bf16.mxu0 0
      %7696 = vmatpush1.bf16.msra.mxu0 0
      %7697 = vmatprep.subr.bf16.mxu0 0
      %7698 = vmatpush1.bf16.msra.mxu0 0
      %7699 = vmatprep.subr.bf16.mxu0 0
      %7700 = vmatpush1.bf16.msra.mxu0 0
      %7701 = vmatprep.subr.bf16.mxu0 0
      %7702 = vmatpush1.bf16.msra.mxu0 0
      %7703 = vmatprep.subr.bf16.mxu0 0
      %7704 = vmatpush1.bf16.msra.mxu0 0
      %7705 = vmatprep.subr.bf16.mxu0 0
      %7706 = vmatpush1.bf16.msra.mxu0 0
      %7707 = vmatprep.subr.bf16.mxu0 0
      %7708 = vmatpush1.bf16.msra.mxu0 0
      %7709 = vmatprep.subr.bf16.mxu0 0
      %7710 = vmatpush1.bf16.msra.mxu0 0
      %7711 = vmatprep.subr.bf16.mxu0 0
      %7712 = vmatpush1.bf16.msra.mxu0 0
      %7713 = vmatprep.subr.bf16.mxu0 0
      %7714 = vmatpush1.bf16.msra.mxu0 0
      %7715 = vmatprep.subr.bf16.mxu0 0
      %7716 = vmatpush1.bf16.msra.mxu0 0
      %7717 = vmatprep.subr.bf16.mxu0 0
      %7718 = vmatpush1.bf16.msra.mxu0 0
      %7719 = vmatprep.subr.bf16.mxu0 0
      %7720 = vmatpush1.bf16.msra.mxu0 0
      %7721 = vmatprep.subr.bf16.mxu0 0
      %7722 = vmatpush1.bf16.msra.mxu0 0
      %7723 = vmatprep.mubr.bf16.mxu0 0
      %7724 = vmatmul.mubr.bf16.gmra.mrb[0].mxu0 %v7686
      %v7725 = vpop.f32.mrb[0].mxu0
      %v7726 = vadd.f32 0.0, %v7725
      %v7727 = vpop.f32.mrb[0].mxu0
      %v7728 = vpop.f32.mrb[0].mxu0
      %v7729 = vadd.f32 0.0, %v7728
      %v7730 = vpop.f32.mrb[0].mxu0
      %7731 = vmatprep.mubr.bf16.mxu0 0
      %7732 = vmatmul.mubr.bf16.gmra.mrb[0].mxu0 %v7689
      %v7733 = vpop.f32.mrb[0].mxu0
      %v7734 = vadd.f32 0.0, %v7733
      %v7735 = vpop.f32.mrb[0].mxu0
      %v7736 = vpop.f32.mrb[0].mxu0
      %v7737 = vadd.f32 0.0, %v7736
      %v7738 = vpop.f32.mrb[0].mxu0
      %7739 = vdwg.mxu0
      %v7740 = vadd.f32 %v7652, %v7726
      %v7741 = vadd.f32 %v7653, %v7729
      %v7742 = vadd.f32 %v7654, %v7734
      %v7743 = vadd.f32 %v7655, %v7737
      %7744 = vrot.lane.b32.xlu0 %v7051, 123
      %v7745 = vpop.permute.xlu0 %7744
      %7746 = vrot.lane.b32.xlu0 %v7052, 123
      %v7747 = vpop.permute.xlu0 %7746
      %7748 = vrot.lane.b32.xlu0 %v7053, 123
      %v7749 = vpop.permute.xlu0 %7748
      %7750 = vrot.lane.b32.xlu0 %v7054, 123
      %v7751 = vpop.permute.xlu0 %7750
      %v7752 = vmul.f32 %v7745, %v5336
      %v7753 = vmul.f32 %v7747, %v5336
      %v7754 = vmul.f32 %v7749, %v5336
      %v7755 = vmul.f32 %v7751, %v5336
      %s7756 = scalar_lea.vmem %s568, 560
      %v7757 = vld [vmem:[%s7756] sm:$0xf]
      %v7758 = vld [vmem:[%s7756 + $0x4] sm:$0xf]
      %v7759 = vld [vmem:[%s7756 + $0x8] sm:$0xf]
      %v7760 = vld [vmem:[%s7756 + $0xc] sm:$0xf]
      %v7761 = vpack.c.bf16 %v7753, %v7752
      %v7762 = vpack.c.bf16 %v7755, %v7754
      %v7767 = vunpack.c.l.b16 %v7757
      %v7768 = vunpack.c.l.b16 %v7758
      %v7769 = vunpack.c.l.b16 %v7759
      %v7770 = vunpack.c.l.b16 %v7760
      %v7771 = vpack.c.b16 %v7768, %v7767
      %v7772 = vpack.c.b16 %v7770, %v7769
      %v7774 = vsel %vm660, %v7771, 0
      %v7777 = vsel %vm660, %v7772, 0
      %7779 = vmatprep.subr.bf16.mxu0 0
      %7780 = vmatpush1.bf16.msra.mxu0 %v7761
      %7781 = vmatprep.subr.bf16.mxu0 0
      %7782 = vmatpush1.bf16.msra.mxu0 %v7762
      %7783 = vmatprep.subr.bf16.mxu0 0
      %7784 = vmatpush1.bf16.msra.mxu0 0
      %7785 = vmatprep.subr.bf16.mxu0 0
      %7786 = vmatpush1.bf16.msra.mxu0 0
      %7787 = vmatprep.subr.bf16.mxu0 0
      %7788 = vmatpush1.bf16.msra.mxu0 0
      %7789 = vmatprep.subr.bf16.mxu0 0
      %7790 = vmatpush1.bf16.msra.mxu0 0
      %7791 = vmatprep.subr.bf16.mxu0 0
      %7792 = vmatpush1.bf16.msra.mxu0 0
      %7793 = vmatprep.subr.bf16.mxu0 0
      %7794 = vmatpush1.bf16.msra.mxu0 0
      %7795 = vmatprep.subr.bf16.mxu0 0
      %7796 = vmatpush1.bf16.msra.mxu0 0
      %7797 = vmatprep.subr.bf16.mxu0 0
      %7798 = vmatpush1.bf16.msra.mxu0 0
      %7799 = vmatprep.subr.bf16.mxu0 0
      %7800 = vmatpush1.bf16.msra.mxu0 0
      %7801 = vmatprep.subr.bf16.mxu0 0
      %7802 = vmatpush1.bf16.msra.mxu0 0
      %7803 = vmatprep.subr.bf16.mxu0 0
      %7804 = vmatpush1.bf16.msra.mxu0 0
      %7805 = vmatprep.subr.bf16.mxu0 0
      %7806 = vmatpush1.bf16.msra.mxu0 0
      %7807 = vmatprep.subr.bf16.mxu0 0
      %7808 = vmatpush1.bf16.msra.mxu0 0
      %7809 = vmatprep.subr.bf16.mxu0 0
      %7810 = vmatpush1.bf16.msra.mxu0 0
      %7811 = vmatprep.mubr.bf16.mxu0 0
      %7812 = vmatmul.mubr.bf16.gmra.mrb[0].mxu0 %v7774
      %v7813 = vpop.f32.mrb[0].mxu0
      %v7814 = vadd.f32 0.0, %v7813
      %v7815 = vpop.f32.mrb[0].mxu0
      %v7816 = vpop.f32.mrb[0].mxu0
      %v7817 = vadd.f32 0.0, %v7816
      %v7818 = vpop.f32.mrb[0].mxu0
      %7819 = vmatprep.mubr.bf16.mxu0 0
      %7820 = vmatmul.mubr.bf16.gmra.mrb[0].mxu0 %v7777
      %v7821 = vpop.f32.mrb[0].mxu0
      %v7822 = vadd.f32 0.0, %v7821
      %v7823 = vpop.f32.mrb[0].mxu0
      %v7824 = vpop.f32.mrb[0].mxu0
      %v7825 = vadd.f32 0.0, %v7824
      %v7826 = vpop.f32.mrb[0].mxu0
      %7827 = vdwg.mxu0
      %v7828 = vadd.f32 %v7740, %v7814
      %v7829 = vadd.f32 %v7741, %v7817
      %v7830 = vadd.f32 %v7742, %v7822
      %v7831 = vadd.f32 %v7743, %v7825
      %7833 = vset.pattern.permute.xlu0 0
      %7834 = vperm.xlu0 %7833, %v7056
      %v7835 = vpop.permute.xlu0 %7834
      %7838 = vset.pattern.permute.xlu0 0
      %7839 = vperm.xlu0 %7838, %v7057
      %v7840 = vpop.permute.xlu0 %7839
      %7843 = vset.pattern.permute.xlu0 0
      %7844 = vperm.xlu0 %7843, %v7058
      %v7845 = vpop.permute.xlu0 %7844
      %7848 = vset.pattern.permute.xlu0 0
      %7849 = vperm.xlu0 %7848, %v7059
      %v7850 = vpop.permute.xlu0 %7849
      %v7852 = vadd.f32 %v7828, %v7835
      %v7853 = vadd.f32 %v7829, %v7840
      %v7854 = vadd.f32 %v7830, %v7845
      %v7855 = vadd.f32 %v7831, %v7850
      %v7856 = vmax.f32 %v7852, 0.0
      %v7857 = vmax.f32 %v7853, 0.0
      %v7858 = vmax.f32 %v7854, 0.0
      %v7859 = vmax.f32 %v7855, 0.0
      %v7860 = vld [vmem:[%s583] sm:$0xff]
      %v7861 = vld [vmem:[%s583 + $0x8] sm:$0xff]
      %v7862 = vld [vmem:[%s583 + $0x10] sm:$0xff]
      %v7863 = vld [vmem:[%s583 + $0x18] sm:$0xff]
      %7864 = vrot.lane.b32.xlu0 %v7856, 5
      %v7865 = vpop.permute.xlu0 %7864
      %7866 = vrot.lane.b32.xlu0 %v7857, 5
      %v7867 = vpop.permute.xlu0 %7866
      %7868 = vrot.lane.b32.xlu0 %v7858, 5
      %v7869 = vpop.permute.xlu0 %7868
      %7870 = vrot.lane.b32.xlu0 %v7859, 5
      %v7871 = vpop.permute.xlu0 %7870
      %v7872 = vmul.f32 %v7865, %v4625
      %v7873 = vmul.f32 %v7867, %v4625
      %v7874 = vmul.f32 %v7869, %v4625
      %v7875 = vmul.f32 %v7871, %v4625
      %v7876 = vld [vmem:[%s578] sm:$0xf]
      %v7877 = vld [vmem:[%s578 + $0x4] sm:$0xf]
      %v7878 = vld [vmem:[%s578 + $0x8] sm:$0xf]
      %v7879 = vld [vmem:[%s578 + $0xc] sm:$0xf]
      %v7880 = vpack.c.bf16 %v7873, %v7872
      %v7881 = vpack.c.bf16 %v7875, %v7874
      %7882 = vrot.lane.b32.xlu0 %v7856, 4
      %v7883 = vpop.permute.xlu0 %7882
      %7884 = vrot.lane.b32.xlu0 %v7857, 4
      %v7885 = vpop.permute.xlu0 %7884
      %7886 = vrot.lane.b32.xlu0 %v7858, 4
      %v7887 = vpop.permute.xlu0 %7886
      %7888 = vrot.lane.b32.xlu0 %v7859, 4
      %v7889 = vpop.permute.xlu0 %7888
      %v7890 = vmul.f32 %v7883, %v4647
      %v7891 = vmul.f32 %v7885, %v4647
      %v7892 = vmul.f32 %v7887, %v4647
      %v7893 = vmul.f32 %v7889, %v4647
      %s7894 = scalar_lea.vmem %s578, 16
      %v7895 = vld [vmem:[%s7894] sm:$0xf]
      %v7896 = vld [vmem:[%s7894 + $0x4] sm:$0xf]
      %v7897 = vld [vmem:[%s7894 + $0x8] sm:$0xf]
      %v7898 = vld [vmem:[%s7894 + $0xc] sm:$0xf]
      %v7899 = vpack.c.bf16 %v7891, %v7890
      %v7900 = vpack.c.bf16 %v7893, %v7892
      %v7905 = vunpack.c.l.b16 %v7895
      %v7906 = vunpack.c.l.b16 %v7896
      %v7907 = vunpack.c.l.b16 %v7897
      %v7908 = vunpack.c.l.b16 %v7898
      %v7909 = vpack.c.b16 %v7906, %v7905
      %v7910 = vpack.c.b16 %v7908, %v7907
      %v7912 = vsel %vm660, %v7909, 0
      %v7915 = vsel %vm660, %v7910, 0
      %7917 = vmatprep.subr.bf16.mxu0 0
      %7918 = vmatpush1.bf16.msra.mxu0 %v7899
      %7919 = vmatprep.subr.bf16.mxu0 0
      %7920 = vmatpush1.bf16.msra.mxu0 %v7900
      %7921 = vmatprep.subr.bf16.mxu0 0
      %7922 = vmatpush1.bf16.msra.mxu0 0
      %7923 = vmatprep.subr.bf16.mxu0 0
      %7924 = vmatpush1.bf16.msra.mxu0 0
      %7925 = vmatprep.subr.bf16.mxu0 0
      %7926 = vmatpush1.bf16.msra.mxu0 0
      %7927 = vmatprep.subr.bf16.mxu0 0
      %7928 = vmatpush1.bf16.msra.mxu0 0
      %7929 = vmatprep.subr.bf16.mxu0 0
      %7930 = vmatpush1.bf16.msra.mxu0 0
      %7931 = vmatprep.subr.bf16.mxu0 0
      %7932 = vmatpush1.bf16.msra.mxu0 0
      %7933 = vmatprep.subr.bf16.mxu0 0
      %7934 = vmatpush1.bf16.msra.mxu0 0
      %7935 = vmatprep.subr.bf16.mxu0 0
      %7936 = vmatpush1.bf16.msra.mxu0 0
      %7937 = vmatprep.subr.bf16.mxu0 0
      %7938 = vmatpush1.bf16.msra.mxu0 0
      %7939 = vmatprep.subr.bf16.mxu0 0
      %7940 = vmatpush1.bf16.msra.mxu0 0
      %7941 = vmatprep.subr.bf16.mxu0 0
      %7942 = vmatpush1.bf16.msra.mxu0 0
      %7943 = vmatprep.subr.bf16.mxu0 0
      %7944 = vmatpush1.bf16.msra.mxu0 0
      %7945 = vmatprep.subr.bf16.mxu0 0
      %7946 = vmatpush1.bf16.msra.mxu0 0
      %7947 = vmatprep.subr.bf16.mxu0 0
      %7948 = vmatpush1.bf16.msra.mxu0 0
      %7949 = vmatprep.mubr.bf16.mxu0 0
      %7950 = vmatmul.mubr.bf16.gmra.mrb[0].mxu0 %v7912
      %v7951 = vpop.f32.mrb[0].mxu0
      %v7952 = vadd.f32 0.0, %v7951
      %v7953 = vpop.f32.mrb[0].mxu0
      %v7954 = vpop.f32.mrb[0].mxu0
      %v7955 = vadd.f32 0.0, %v7954
      %v7956 = vpop.f32.mrb[0].mxu0
      %7957 = vmatprep.mubr.bf16.mxu0 0
      %7958 = vmatmul.mubr.bf16.gmra.mrb[0].mxu0 %v7915
      %v7959 = vpop.f32.mrb[0].mxu0
      %v7960 = vadd.f32 0.0, %v7959
      %v7961 = vpop.f32.mrb[0].mxu0
      %v7962 = vpop.f32.mrb[0].mxu0
      %v7963 = vadd.f32 0.0, %v7962
      %v7964 = vpop.f32.mrb[0].mxu0
      %7965 = vdwg.mxu0
      %v7970 = vunpack.c.l.b16 %v7876
      %v7971 = vunpack.c.l.b16 %v7877
      %v7972 = vunpack.c.l.b16 %v7878
      %v7973 = vunpack.c.l.b16 %v7879
      %v7974 = vpack.c.b16 %v7971, %v7970
      %v7975 = vpack.c.b16 %v7973, %v7972
      %v7977 = vsel %vm660, %v7974, 0
      %v7980 = vsel %vm660, %v7975, 0
      %7982 = vmatprep.subr.bf16.mxu0 0
      %7983 = vmatpush1.bf16.msra.mxu0 %v7880
      %7984 = vmatprep.subr.bf16.mxu0 0
      %7985 = vmatpush1.bf16.msra.mxu0 %v7881
      %7986 = vmatprep.subr.bf16.mxu0 0
      %7987 = vmatpush1.bf16.msra.mxu0 0
      %7988 = vmatprep.subr.bf16.mxu0 0
      %7989 = vmatpush1.bf16.msra.mxu0 0
      %7990 = vmatprep.subr.bf16.mxu0 0
      %7991 = vmatpush1.bf16.msra.mxu0 0
      %7992 = vmatprep.subr.bf16.mxu0 0
      %7993 = vmatpush1.bf16.msra.mxu0 0
      %7994 = vmatprep.subr.bf16.mxu0 0
      %7995 = vmatpush1.bf16.msra.mxu0 0
      %7996 = vmatprep.subr.bf16.mxu0 0
      %7997 = vmatpush1.bf16.msra.mxu0 0
      %7998 = vmatprep.subr.bf16.mxu0 0
      %7999 = vmatpush1.bf16.msra.mxu0 0
      %8000 = vmatprep.subr.bf16.mxu0 0
      %8001 = vmatpush1.bf16.msra.mxu0 0
      %8002 = vmatprep.subr.bf16.mxu0 0
      %8003 = vmatpush1.bf16.msra.mxu0 0
      %8004 = vmatprep.subr.bf16.mxu0 0
      %8005 = vmatpush1.bf16.msra.mxu0 0
      %8006 = vmatprep.subr.bf16.mxu0 0
      %8007 = vmatpush1.bf16.msra.mxu0 0
      %8008 = vmatprep.subr.bf16.mxu0 0
      %8009 = vmatpush1.bf16.msra.mxu0 0
      %8010 = vmatprep.subr.bf16.mxu0 0
      %8011 = vmatpush1.bf16.msra.mxu0 0
      %8012 = vmatprep.subr.bf16.mxu0 0
      %8013 = vmatpush1.bf16.msra.mxu0 0
      %8014 = vmatprep.mubr.bf16.mxu0 0
      %8015 = vmatmul.mubr.bf16.gmra.mrb[0].mxu0 %v7977
      %v8016 = vpop.f32.mrb[0].mxu0
      %v8017 = vadd.f32 %v7952, %v8016
      %v8018 = vpop.f32.mrb[0].mxu0
      %v8019 = vpop.f32.mrb[0].mxu0
      %v8020 = vadd.f32 %v7955, %v8019
      %v8021 = vpop.f32.mrb[0].mxu0
      %8022 = vmatprep.mubr.bf16.mxu0 0
      %8023 = vmatmul.mubr.bf16.gmra.mrb[0].mxu0 %v7980
      %v8024 = vpop.f32.mrb[0].mxu0
      %v8025 = vadd.f32 %v7960, %v8024
      %v8026 = vpop.f32.mrb[0].mxu0
      %v8027 = vpop.f32.mrb[0].mxu0
      %v8028 = vadd.f32 %v7963, %v8027
      %v8029 = vpop.f32.mrb[0].mxu0
      %8030 = vdwg.mxu0
      %8031 = vrot.lane.b32.xlu0 %v7856, 3
      %v8032 = vpop.permute.xlu0 %8031
      %8033 = vrot.lane.b32.xlu0 %v7857, 3
      %v8034 = vpop.permute.xlu0 %8033
      %8035 = vrot.lane.b32.xlu0 %v7858, 3
      %v8036 = vpop.permute.xlu0 %8035
      %8037 = vrot.lane.b32.xlu0 %v7859, 3
      %v8038 = vpop.permute.xlu0 %8037
      %v8039 = vmul.f32 %v8032, %v4800
      %v8040 = vmul.f32 %v8034, %v4800
      %v8041 = vmul.f32 %v8036, %v4800
      %v8042 = vmul.f32 %v8038, %v4800
      %s8043 = scalar_lea.vmem %s578, 32
      %v8044 = vld [vmem:[%s8043] sm:$0xf]
      %v8045 = vld [vmem:[%s8043 + $0x4] sm:$0xf]
      %v8046 = vld [vmem:[%s8043 + $0x8] sm:$0xf]
      %v8047 = vld [vmem:[%s8043 + $0xc] sm:$0xf]
      %v8048 = vpack.c.bf16 %v8040, %v8039
      %v8049 = vpack.c.bf16 %v8042, %v8041
      %v8054 = vunpack.c.l.b16 %v8044
      %v8055 = vunpack.c.l.b16 %v8045
      %v8056 = vunpack.c.l.b16 %v8046
      %v8057 = vunpack.c.l.b16 %v8047
      %v8058 = vpack.c.b16 %v8055, %v8054
      %v8059 = vpack.c.b16 %v8057, %v8056
      %v8061 = vsel %vm660, %v8058, 0
      %v8064 = vsel %vm660, %v8059, 0
      %8066 = vmatprep.subr.bf16.mxu0 0
      %8067 = vmatpush1.bf16.msra.mxu0 %v8048
      %8068 = vmatprep.subr.bf16.mxu0 0
      %8069 = vmatpush1.bf16.msra.mxu0 %v8049
      %8070 = vmatprep.subr.bf16.mxu0 0
      %8071 = vmatpush1.bf16.msra.mxu0 0
      %8072 = vmatprep.subr.bf16.mxu0 0
      %8073 = vmatpush1.bf16.msra.mxu0 0
      %8074 = vmatprep.subr.bf16.mxu0 0
      %8075 = vmatpush1.bf16.msra.mxu0 0
      %8076 = vmatprep.subr.bf16.mxu0 0
      %8077 = vmatpush1.bf16.msra.mxu0 0
      %8078 = vmatprep.subr.bf16.mxu0 0
      %8079 = vmatpush1.bf16.msra.mxu0 0
      %8080 = vmatprep.subr.bf16.mxu0 0
      %8081 = vmatpush1.bf16.msra.mxu0 0
      %8082 = vmatprep.subr.bf16.mxu0 0
      %8083 = vmatpush1.bf16.msra.mxu0 0
      %8084 = vmatprep.subr.bf16.mxu0 0
      %8085 = vmatpush1.bf16.msra.mxu0 0
      %8086 = vmatprep.subr.bf16.mxu0 0
      %8087 = vmatpush1.bf16.msra.mxu0 0
      %8088 = vmatprep.subr.bf16.mxu0 0
      %8089 = vmatpush1.bf16.msra.mxu0 0
      %8090 = vmatprep.subr.bf16.mxu0 0
      %8091 = vmatpush1.bf16.msra.mxu0 0
      %8092 = vmatprep.subr.bf16.mxu0 0
      %8093 = vmatpush1.bf16.msra.mxu0 0
      %8094 = vmatprep.subr.bf16.mxu0 0
      %8095 = vmatpush1.bf16.msra.mxu0 0
      %8096 = vmatprep.subr.bf16.mxu0 0
      %8097 = vmatpush1.bf16.msra.mxu0 0
      %8098 = vmatprep.mubr.bf16.mxu0 0
      %8099 = vmatmul.mubr.bf16.gmra.mrb[0].mxu0 %v8061
      %v8100 = vpop.f32.mrb[0].mxu0
      %v8101 = vadd.f32 0.0, %v8100
      %v8102 = vpop.f32.mrb[0].mxu0
      %v8103 = vpop.f32.mrb[0].mxu0
      %v8104 = vadd.f32 0.0, %v8103
      %v8105 = vpop.f32.mrb[0].mxu0
      %8106 = vmatprep.mubr.bf16.mxu0 0
      %8107 = vmatmul.mubr.bf16.gmra.mrb[0].mxu0 %v8064
      %v8108 = vpop.f32.mrb[0].mxu0
      %v8109 = vadd.f32 0.0, %v8108
      %v8110 = vpop.f32.mrb[0].mxu0
      %v8111 = vpop.f32.mrb[0].mxu0
      %v8112 = vadd.f32 0.0, %v8111
      %v8113 = vpop.f32.mrb[0].mxu0
      %8114 = vdwg.mxu0
      %v8115 = vadd.f32 %v8017, %v8101
      %v8116 = vadd.f32 %v8020, %v8104
      %v8117 = vadd.f32 %v8025, %v8109
      %v8118 = vadd.f32 %v8028, %v8112
      %8119 = vrot.lane.b32.xlu0 %v7856, 1
      %v8120 = vpop.permute.xlu0 %8119
      %8121 = vrot.lane.b32.xlu0 %v7857, 1
      %v8122 = vpop.permute.xlu0 %8121
      %8123 = vrot.lane.b32.xlu0 %v7858, 1
      %v8124 = vpop.permute.xlu0 %8123
      %8125 = vrot.lane.b32.xlu0 %v7859, 1
      %v8126 = vpop.permute.xlu0 %8125
      %v8127 = vmul.f32 %v8120, %v4892
      %v8128 = vmul.f32 %v8122, %v4892
      %v8129 = vmul.f32 %v8124, %v4892
      %v8130 = vmul.f32 %v8126, %v4892
      %s8131 = scalar_lea.vmem %s578, 48
      %v8132 = vld [vmem:[%s8131] sm:$0xf]
      %v8133 = vld [vmem:[%s8131 + $0x4] sm:$0xf]
      %v8134 = vld [vmem:[%s8131 + $0x8] sm:$0xf]
      %v8135 = vld [vmem:[%s8131 + $0xc] sm:$0xf]
      %v8136 = vpack.c.bf16 %v8128, %v8127
      %v8137 = vpack.c.bf16 %v8130, %v8129
      %v8142 = vunpack.c.l.b16 %v8132
      %v8143 = vunpack.c.l.b16 %v8133
      %v8144 = vunpack.c.l.b16 %v8134
      %v8145 = vunpack.c.l.b16 %v8135
      %v8146 = vpack.c.b16 %v8143, %v8142
      %v8147 = vpack.c.b16 %v8145, %v8144
      %v8149 = vsel %vm660, %v8146, 0
      %v8152 = vsel %vm660, %v8147, 0
      %8154 = vmatprep.subr.bf16.mxu0 0
      %8155 = vmatpush1.bf16.msra.mxu0 %v8136
      %8156 = vmatprep.subr.bf16.mxu0 0
      %8157 = vmatpush1.bf16.msra.mxu0 %v8137
      %8158 = vmatprep.subr.bf16.mxu0 0
      %8159 = vmatpush1.bf16.msra.mxu0 0
      %8160 = vmatprep.subr.bf16.mxu0 0
      %8161 = vmatpush1.bf16.msra.mxu0 0
      %8162 = vmatprep.subr.bf16.mxu0 0
      %8163 = vmatpush1.bf16.msra.mxu0 0
      %8164 = vmatprep.subr.bf16.mxu0 0
      %8165 = vmatpush1.bf16.msra.mxu0 0
      %8166 = vmatprep.subr.bf16.mxu0 0
      %8167 = vmatpush1.bf16.msra.mxu0 0
      %8168 = vmatprep.subr.bf16.mxu0 0
      %8169 = vmatpush1.bf16.msra.mxu0 0
      %8170 = vmatprep.subr.bf16.mxu0 0
      %8171 = vmatpush1.bf16.msra.mxu0 0
      %8172 = vmatprep.subr.bf16.mxu0 0
      %8173 = vmatpush1.bf16.msra.mxu0 0
      %8174 = vmatprep.subr.bf16.mxu0 0
      %8175 = vmatpush1.bf16.msra.mxu0 0
      %8176 = vmatprep.subr.bf16.mxu0 0
      %8177 = vmatpush1.bf16.msra.mxu0 0
      %8178 = vmatprep.subr.bf16.mxu0 0
      %8179 = vmatpush1.bf16.msra.mxu0 0
      %8180 = vmatprep.subr.bf16.mxu0 0
      %8181 = vmatpush1.bf16.msra.mxu0 0
      %8182 = vmatprep.subr.bf16.mxu0 0
      %8183 = vmatpush1.bf16.msra.mxu0 0
      %8184 = vmatprep.subr.bf16.mxu0 0
      %8185 = vmatpush1.bf16.msra.mxu0 0
      %8186 = vmatprep.mubr.bf16.mxu0 0
      %8187 = vmatmul.mubr.bf16.gmra.mrb[0].mxu0 %v8149
      %v8188 = vpop.f32.mrb[0].mxu0
      %v8189 = vadd.f32 0.0, %v8188
      %v8190 = vpop.f32.mrb[0].mxu0
      %v8191 = vpop.f32.mrb[0].mxu0
      %v8192 = vadd.f32 0.0, %v8191
      %v8193 = vpop.f32.mrb[0].mxu0
      %8194 = vmatprep.mubr.bf16.mxu0 0
      %8195 = vmatmul.mubr.bf16.gmra.mrb[0].mxu0 %v8152
      %v8196 = vpop.f32.mrb[0].mxu0
      %v8197 = vadd.f32 0.0, %v8196
      %v8198 = vpop.f32.mrb[0].mxu0
      %v8199 = vpop.f32.mrb[0].mxu0
      %v8200 = vadd.f32 0.0, %v8199
      %v8201 = vpop.f32.mrb[0].mxu0
      %8202 = vdwg.mxu0
      %v8203 = vadd.f32 %v8115, %v8189
      %v8204 = vadd.f32 %v8116, %v8192
      %v8205 = vadd.f32 %v8117, %v8197
      %v8206 = vadd.f32 %v8118, %v8200
      %s8207 = scalar_lea.vmem %s578, 64
      %v8208 = vld [vmem:[%s8207] sm:$0xf]
      %v8209 = vld [vmem:[%s8207 + $0x4] sm:$0xf]
      %v8210 = vld [vmem:[%s8207 + $0x8] sm:$0xf]
      %v8211 = vld [vmem:[%s8207 + $0xc] sm:$0xf]
      %v8212 = vpack.c.bf16 %v7857, %v7856
      %v8213 = vpack.c.bf16 %v7859, %v7858
      %v8218 = vunpack.c.l.b16 %v8208
      %v8219 = vunpack.c.l.b16 %v8209
      %v8220 = vunpack.c.l.b16 %v8210
      %v8221 = vunpack.c.l.b16 %v8211
      %v8222 = vpack.c.b16 %v8219, %v8218
      %v8223 = vpack.c.b16 %v8221, %v8220
      %v8225 = vsel %vm660, %v8222, 0
      %v8228 = vsel %vm660, %v8223, 0
      %8230 = vmatprep.subr.bf16.mxu0 0
      %8231 = vmatpush1.bf16.msra.mxu0 %v8212
      %8232 = vmatprep.subr.bf16.mxu0 0
      %8233 = vmatpush1.bf16.msra.mxu0 %v8213
      %8234 = vmatprep.subr.bf16.mxu0 0
      %8235 = vmatpush1.bf16.msra.mxu0 0
      %8236 = vmatprep.subr.bf16.mxu0 0
      %8237 = vmatpush1.bf16.msra.mxu0 0
      %8238 = vmatprep.subr.bf16.mxu0 0
      %8239 = vmatpush1.bf16.msra.mxu0 0
      %8240 = vmatprep.subr.bf16.mxu0 0
      %8241 = vmatpush1.bf16.msra.mxu0 0
      %8242 = vmatprep.subr.bf16.mxu0 0
      %8243 = vmatpush1.bf16.msra.mxu0 0
      %8244 = vmatprep.subr.bf16.mxu0 0
      %8245 = vmatpush1.bf16.msra.mxu0 0
      %8246 = vmatprep.subr.bf16.mxu0 0
      %8247 = vmatpush1.bf16.msra.mxu0 0
      %8248 = vmatprep.subr.bf16.mxu0 0
      %8249 = vmatpush1.bf16.msra.mxu0 0
      %8250 = vmatprep.subr.bf16.mxu0 0
      %8251 = vmatpush1.bf16.msra.mxu0 0
      %8252 = vmatprep.subr.bf16.mxu0 0
      %8253 = vmatpush1.bf16.msra.mxu0 0
      %8254 = vmatprep.subr.bf16.mxu0 0
      %8255 = vmatpush1.bf16.msra.mxu0 0
      %8256 = vmatprep.subr.bf16.mxu0 0
      %8257 = vmatpush1.bf16.msra.mxu0 0
      %8258 = vmatprep.subr.bf16.mxu0 0
      %8259 = vmatpush1.bf16.msra.mxu0 0
      %8260 = vmatprep.subr.bf16.mxu0 0
      %8261 = vmatpush1.bf16.msra.mxu0 0
      %8262 = vmatprep.mubr.bf16.mxu0 0
      %8263 = vmatmul.mubr.bf16.gmra.mrb[0].mxu0 %v8225
      %v8264 = vpop.f32.mrb[0].mxu0
      %v8265 = vadd.f32 0.0, %v8264
      %v8266 = vpop.f32.mrb[0].mxu0
      %v8267 = vpop.f32.mrb[0].mxu0
      %v8268 = vadd.f32 0.0, %v8267
      %v8269 = vpop.f32.mrb[0].mxu0
      %8270 = vmatprep.mubr.bf16.mxu0 0
      %8271 = vmatmul.mubr.bf16.gmra.mrb[0].mxu0 %v8228
      %v8272 = vpop.f32.mrb[0].mxu0
      %v8273 = vadd.f32 0.0, %v8272
      %v8274 = vpop.f32.mrb[0].mxu0
      %v8275 = vpop.f32.mrb[0].mxu0
      %v8276 = vadd.f32 0.0, %v8275
      %v8277 = vpop.f32.mrb[0].mxu0
      %8278 = vdwg.mxu0
      %v8279 = vadd.f32 %v8203, %v8265
      %v8280 = vadd.f32 %v8204, %v8268
      %v8281 = vadd.f32 %v8205, %v8273
      %v8282 = vadd.f32 %v8206, %v8276
      %8283 = vrot.lane.b32.xlu0 %v7856, 127
      %v8284 = vpop.permute.xlu0 %8283
      %8285 = vrot.lane.b32.xlu0 %v7857, 127
      %v8286 = vpop.permute.xlu0 %8285
      %8287 = vrot.lane.b32.xlu0 %v7858, 127
      %v8288 = vpop.permute.xlu0 %8287
      %8289 = vrot.lane.b32.xlu0 %v7859, 127
      %v8290 = vpop.permute.xlu0 %8289
      %v8291 = vmul.f32 %v8284, %v5060
      %v8292 = vmul.f32 %v8286, %v5060
      %v8293 = vmul.f32 %v8288, %v5060
      %v8294 = vmul.f32 %v8290, %v5060
      %s8295 = scalar_lea.vmem %s578, 80
      %v8296 = vld [vmem:[%s8295] sm:$0xf]
      %v8297 = vld [vmem:[%s8295 + $0x4] sm:$0xf]
      %v8298 = vld [vmem:[%s8295 + $0x8] sm:$0xf]
      %v8299 = vld [vmem:[%s8295 + $0xc] sm:$0xf]
      %v8300 = vpack.c.bf16 %v8292, %v8291
      %v8301 = vpack.c.bf16 %v8294, %v8293
      %v8306 = vunpack.c.l.b16 %v8296
      %v8307 = vunpack.c.l.b16 %v8297
      %v8308 = vunpack.c.l.b16 %v8298
      %v8309 = vunpack.c.l.b16 %v8299
      %v8310 = vpack.c.b16 %v8307, %v8306
      %v8311 = vpack.c.b16 %v8309, %v8308
      %v8313 = vsel %vm660, %v8310, 0
      %v8316 = vsel %vm660, %v8311, 0
      %8318 = vmatprep.subr.bf16.mxu0 0
      %8319 = vmatpush1.bf16.msra.mxu0 %v8300
      %8320 = vmatprep.subr.bf16.mxu0 0
      %8321 = vmatpush1.bf16.msra.mxu0 %v8301
      %8322 = vmatprep.subr.bf16.mxu0 0
      %8323 = vmatpush1.bf16.msra.mxu0 0
      %8324 = vmatprep.subr.bf16.mxu0 0
      %8325 = vmatpush1.bf16.msra.mxu0 0
      %8326 = vmatprep.subr.bf16.mxu0 0
      %8327 = vmatpush1.bf16.msra.mxu0 0
      %8328 = vmatprep.subr.bf16.mxu0 0
      %8329 = vmatpush1.bf16.msra.mxu0 0
      %8330 = vmatprep.subr.bf16.mxu0 0
      %8331 = vmatpush1.bf16.msra.mxu0 0
      %8332 = vmatprep.subr.bf16.mxu0 0
      %8333 = vmatpush1.bf16.msra.mxu0 0
      %8334 = vmatprep.subr.bf16.mxu0 0
      %8335 = vmatpush1.bf16.msra.mxu0 0
      %8336 = vmatprep.subr.bf16.mxu0 0
      %8337 = vmatpush1.bf16.msra.mxu0 0
      %8338 = vmatprep.subr.bf16.mxu0 0
      %8339 = vmatpush1.bf16.msra.mxu0 0
      %8340 = vmatprep.subr.bf16.mxu0 0
      %8341 = vmatpush1.bf16.msra.mxu0 0
      %8342 = vmatprep.subr.bf16.mxu0 0
      %8343 = vmatpush1.bf16.msra.mxu0 0
      %8344 = vmatprep.subr.bf16.mxu0 0
      %8345 = vmatpush1.bf16.msra.mxu0 0
      %8346 = vmatprep.subr.bf16.mxu0 0
      %8347 = vmatpush1.bf16.msra.mxu0 0
      %8348 = vmatprep.subr.bf16.mxu0 0
      %8349 = vmatpush1.bf16.msra.mxu0 0
      %8350 = vmatprep.mubr.bf16.mxu0 0
      %8351 = vmatmul.mubr.bf16.gmra.mrb[0].mxu0 %v8313
      %v8352 = vpop.f32.mrb[0].mxu0
      %v8353 = vadd.f32 0.0, %v8352
      %v8354 = vpop.f32.mrb[0].mxu0
      %v8355 = vpop.f32.mrb[0].mxu0
      %v8356 = vadd.f32 0.0, %v8355
      %v8357 = vpop.f32.mrb[0].mxu0
      %8358 = vmatprep.mubr.bf16.mxu0 0
      %8359 = vmatmul.mubr.bf16.gmra.mrb[0].mxu0 %v8316
      %v8360 = vpop.f32.mrb[0].mxu0
      %v8361 = vadd.f32 0.0, %v8360
      %v8362 = vpop.f32.mrb[0].mxu0
      %v8363 = vpop.f32.mrb[0].mxu0
      %v8364 = vadd.f32 0.0, %v8363
      %v8365 = vpop.f32.mrb[0].mxu0
      %8366 = vdwg.mxu0
      %v8367 = vadd.f32 %v8279, %v8353
      %v8368 = vadd.f32 %v8280, %v8356
      %v8369 = vadd.f32 %v8281, %v8361
      %v8370 = vadd.f32 %v8282, %v8364
      %8371 = vrot.lane.b32.xlu0 %v7856, 125
      %v8372 = vpop.permute.xlu0 %8371
      %8373 = vrot.lane.b32.xlu0 %v7857, 125
      %v8374 = vpop.permute.xlu0 %8373
      %8375 = vrot.lane.b32.xlu0 %v7858, 125
      %v8376 = vpop.permute.xlu0 %8375
      %8377 = vrot.lane.b32.xlu0 %v7859, 125
      %v8378 = vpop.permute.xlu0 %8377
      %v8379 = vmul.f32 %v8372, %v5152
      %v8380 = vmul.f32 %v8374, %v5152
      %v8381 = vmul.f32 %v8376, %v5152
      %v8382 = vmul.f32 %v8378, %v5152
      %s8383 = scalar_lea.vmem %s578, 96
      %v8384 = vld [vmem:[%s8383] sm:$0xf]
      %v8385 = vld [vmem:[%s8383 + $0x4] sm:$0xf]
      %v8386 = vld [vmem:[%s8383 + $0x8] sm:$0xf]
      %v8387 = vld [vmem:[%s8383 + $0xc] sm:$0xf]
      %v8388 = vpack.c.bf16 %v8380, %v8379
      %v8389 = vpack.c.bf16 %v8382, %v8381
      %v8394 = vunpack.c.l.b16 %v8384
      %v8395 = vunpack.c.l.b16 %v8385
      %v8396 = vunpack.c.l.b16 %v8386
      %v8397 = vunpack.c.l.b16 %v8387
      %v8398 = vpack.c.b16 %v8395, %v8394
      %v8399 = vpack.c.b16 %v8397, %v8396
      %v8401 = vsel %vm660, %v8398, 0
      %v8404 = vsel %vm660, %v8399, 0
      %8406 = vmatprep.subr.bf16.mxu0 0
      %8407 = vmatpush1.bf16.msra.mxu0 %v8388
      %8408 = vmatprep.subr.bf16.mxu0 0
      %8409 = vmatpush1.bf16.msra.mxu0 %v8389
      %8410 = vmatprep.subr.bf16.mxu0 0
      %8411 = vmatpush1.bf16.msra.mxu0 0
      %8412 = vmatprep.subr.bf16.mxu0 0
      %8413 = vmatpush1.bf16.msra.mxu0 0
      %8414 = vmatprep.subr.bf16.mxu0 0
      %8415 = vmatpush1.bf16.msra.mxu0 0
      %8416 = vmatprep.subr.bf16.mxu0 0
      %8417 = vmatpush1.bf16.msra.mxu0 0
      %8418 = vmatprep.subr.bf16.mxu0 0
      %8419 = vmatpush1.bf16.msra.mxu0 0
      %8420 = vmatprep.subr.bf16.mxu0 0
      %8421 = vmatpush1.bf16.msra.mxu0 0
      %8422 = vmatprep.subr.bf16.mxu0 0
      %8423 = vmatpush1.bf16.msra.mxu0 0
      %8424 = vmatprep.subr.bf16.mxu0 0
      %8425 = vmatpush1.bf16.msra.mxu0 0
      %8426 = vmatprep.subr.bf16.mxu0 0
      %8427 = vmatpush1.bf16.msra.mxu0 0
      %8428 = vmatprep.subr.bf16.mxu0 0
      %8429 = vmatpush1.bf16.msra.mxu0 0
      %8430 = vmatprep.subr.bf16.mxu0 0
      %8431 = vmatpush1.bf16.msra.mxu0 0
      %8432 = vmatprep.subr.bf16.mxu0 0
      %8433 = vmatpush1.bf16.msra.mxu0 0
      %8434 = vmatprep.subr.bf16.mxu0 0
      %8435 = vmatpush1.bf16.msra.mxu0 0
      %8436 = vmatprep.subr.bf16.mxu0 0
      %8437 = vmatpush1.bf16.msra.mxu0 0
      %8438 = vmatprep.mubr.bf16.mxu0 0
      %8439 = vmatmul.mubr.bf16.gmra.mrb[0].mxu0 %v8401
      %v8440 = vpop.f32.mrb[0].mxu0
      %v8441 = vadd.f32 0.0, %v8440
      %v8442 = vpop.f32.mrb[0].mxu0
      %v8443 = vpop.f32.mrb[0].mxu0
      %v8444 = vadd.f32 0.0, %v8443
      %v8445 = vpop.f32.mrb[0].mxu0
      %8446 = vmatprep.mubr.bf16.mxu0 0
      %8447 = vmatmul.mubr.bf16.gmra.mrb[0].mxu0 %v8404
      %v8448 = vpop.f32.mrb[0].mxu0
      %v8449 = vadd.f32 0.0, %v8448
      %v8450 = vpop.f32.mrb[0].mxu0
      %v8451 = vpop.f32.mrb[0].mxu0
      %v8452 = vadd.f32 0.0, %v8451
      %v8453 = vpop.f32.mrb[0].mxu0
      %8454 = vdwg.mxu0
      %v8455 = vadd.f32 %v8367, %v8441
      %v8456 = vadd.f32 %v8368, %v8444
      %v8457 = vadd.f32 %v8369, %v8449
      %v8458 = vadd.f32 %v8370, %v8452
      %8459 = vrot.lane.b32.xlu0 %v7856, 124
      %v8460 = vpop.permute.xlu0 %8459
      %8461 = vrot.lane.b32.xlu0 %v7857, 124
      %v8462 = vpop.permute.xlu0 %8461
      %8463 = vrot.lane.b32.xlu0 %v7858, 124
      %v8464 = vpop.permute.xlu0 %8463
      %8465 = vrot.lane.b32.xlu0 %v7859, 124
      %v8466 = vpop.permute.xlu0 %8465
      %v8467 = vmul.f32 %v8460, %v5244
      %v8468 = vmul.f32 %v8462, %v5244
      %v8469 = vmul.f32 %v8464, %v5244
      %v8470 = vmul.f32 %v8466, %v5244
      %s8471 = scalar_lea.vmem %s578, 112
      %v8472 = vld [vmem:[%s8471] sm:$0xf]
      %v8473 = vld [vmem:[%s8471 + $0x4] sm:$0xf]
      %v8474 = vld [vmem:[%s8471 + $0x8] sm:$0xf]
      %v8475 = vld [vmem:[%s8471 + $0xc] sm:$0xf]
      %v8476 = vpack.c.bf16 %v8468, %v8467
      %v8477 = vpack.c.bf16 %v8470, %v8469
      %v8482 = vunpack.c.l.b16 %v8472
      %v8483 = vunpack.c.l.b16 %v8473
      %v8484 = vunpack.c.l.b16 %v8474
      %v8485 = vunpack.c.l.b16 %v8475
      %v8486 = vpack.c.b16 %v8483, %v8482
      %v8487 = vpack.c.b16 %v8485, %v8484
      %v8489 = vsel %vm660, %v8486, 0
      %v8492 = vsel %vm660, %v8487, 0
      %8494 = vmatprep.subr.bf16.mxu0 0
      %8495 = vmatpush1.bf16.msra.mxu0 %v8476
      %8496 = vmatprep.subr.bf16.mxu0 0
      %8497 = vmatpush1.bf16.msra.mxu0 %v8477
      %8498 = vmatprep.subr.bf16.mxu0 0
      %8499 = vmatpush1.bf16.msra.mxu0 0
      %8500 = vmatprep.subr.bf16.mxu0 0
      %8501 = vmatpush1.bf16.msra.mxu0 0
      %8502 = vmatprep.subr.bf16.mxu0 0
      %8503 = vmatpush1.bf16.msra.mxu0 0
      %8504 = vmatprep.subr.bf16.mxu0 0
      %8505 = vmatpush1.bf16.msra.mxu0 0
      %8506 = vmatprep.subr.bf16.mxu0 0
      %8507 = vmatpush1.bf16.msra.mxu0 0
      %8508 = vmatprep.subr.bf16.mxu0 0
      %8509 = vmatpush1.bf16.msra.mxu0 0
      %8510 = vmatprep.subr.bf16.mxu0 0
      %8511 = vmatpush1.bf16.msra.mxu0 0
      %8512 = vmatprep.subr.bf16.mxu0 0
      %8513 = vmatpush1.bf16.msra.mxu0 0
      %8514 = vmatprep.subr.bf16.mxu0 0
      %8515 = vmatpush1.bf16.msra.mxu0 0
      %8516 = vmatprep.subr.bf16.mxu0 0
      %8517 = vmatpush1.bf16.msra.mxu0 0
      %8518 = vmatprep.subr.bf16.mxu0 0
      %8519 = vmatpush1.bf16.msra.mxu0 0
      %8520 = vmatprep.subr.bf16.mxu0 0
      %8521 = vmatpush1.bf16.msra.mxu0 0
      %8522 = vmatprep.subr.bf16.mxu0 0
      %8523 = vmatpush1.bf16.msra.mxu0 0
      %8524 = vmatprep.subr.bf16.mxu0 0
      %8525 = vmatpush1.bf16.msra.mxu0 0
      %8526 = vmatprep.mubr.bf16.mxu0 0
      %8527 = vmatmul.mubr.bf16.gmra.mrb[0].mxu0 %v8489
      %v8528 = vpop.f32.mrb[0].mxu0
      %v8529 = vadd.f32 0.0, %v8528
      %v8530 = vpop.f32.mrb[0].mxu0
      %v8531 = vpop.f32.mrb[0].mxu0
      %v8532 = vadd.f32 0.0, %v8531
      %v8533 = vpop.f32.mrb[0].mxu0
      %8534 = vmatprep.mubr.bf16.mxu0 0
      %8535 = vmatmul.mubr.bf16.gmra.mrb[0].mxu0 %v8492
      %v8536 = vpop.f32.mrb[0].mxu0
      %v8537 = vadd.f32 0.0, %v8536
      %v8538 = vpop.f32.mrb[0].mxu0
      %v8539 = vpop.f32.mrb[0].mxu0
      %v8540 = vadd.f32 0.0, %v8539
      %v8541 = vpop.f32.mrb[0].mxu0
      %8542 = vdwg.mxu0
      %v8543 = vadd.f32 %v8455, %v8529
      %v8544 = vadd.f32 %v8456, %v8532
      %v8545 = vadd.f32 %v8457, %v8537
      %v8546 = vadd.f32 %v8458, %v8540
      %8547 = vrot.lane.b32.xlu0 %v7856, 123
      %v8548 = vpop.permute.xlu0 %8547
      %8549 = vrot.lane.b32.xlu0 %v7857, 123
      %v8550 = vpop.permute.xlu0 %8549
      %8551 = vrot.lane.b32.xlu0 %v7858, 123
      %v8552 = vpop.permute.xlu0 %8551
      %8553 = vrot.lane.b32.xlu0 %v7859, 123
      %v8554 = vpop.permute.xlu0 %8553
      %v8555 = vmul.f32 %v8548, %v5336
      %v8556 = vmul.f32 %v8550, %v5336
      %v8557 = vmul.f32 %v8552, %v5336
      %v8558 = vmul.f32 %v8554, %v5336
      %s8559 = scalar_lea.vmem %s578, 128
      %v8560 = vld [vmem:[%s8559] sm:$0xf]
      %v8561 = vld [vmem:[%s8559 + $0x4] sm:$0xf]
      %v8562 = vld [vmem:[%s8559 + $0x8] sm:$0xf]
      %v8563 = vld [vmem:[%s8559 + $0xc] sm:$0xf]
      %v8564 = vpack.c.bf16 %v8556, %v8555
      %v8565 = vpack.c.bf16 %v8558, %v8557
      %v8570 = vunpack.c.l.b16 %v8560
      %v8571 = vunpack.c.l.b16 %v8561
      %v8572 = vunpack.c.l.b16 %v8562
      %v8573 = vunpack.c.l.b16 %v8563
      %v8574 = vpack.c.b16 %v8571, %v8570
      %v8575 = vpack.c.b16 %v8573, %v8572
      %v8577 = vsel %vm660, %v8574, 0
      %v8580 = vsel %vm660, %v8575, 0
      %8582 = vmatprep.subr.bf16.mxu0 0
      %8583 = vmatpush1.bf16.msra.mxu0 %v8564
      %8584 = vmatprep.subr.bf16.mxu0 0
      %8585 = vmatpush1.bf16.msra.mxu0 %v8565
      %8586 = vmatprep.subr.bf16.mxu0 0
      %8587 = vmatpush1.bf16.msra.mxu0 0
      %8588 = vmatprep.subr.bf16.mxu0 0
      %8589 = vmatpush1.bf16.msra.mxu0 0
      %8590 = vmatprep.subr.bf16.mxu0 0
      %8591 = vmatpush1.bf16.msra.mxu0 0
      %8592 = vmatprep.subr.bf16.mxu0 0
      %8593 = vmatpush1.bf16.msra.mxu0 0
      %8594 = vmatprep.subr.bf16.mxu0 0
      %8595 = vmatpush1.bf16.msra.mxu0 0
      %8596 = vmatprep.subr.bf16.mxu0 0
      %8597 = vmatpush1.bf16.msra.mxu0 0
      %8598 = vmatprep.subr.bf16.mxu0 0
      %8599 = vmatpush1.bf16.msra.mxu0 0
      %8600 = vmatprep.subr.bf16.mxu0 0
      %8601 = vmatpush1.bf16.msra.mxu0 0
      %8602 = vmatprep.subr.bf16.mxu0 0
      %8603 = vmatpush1.bf16.msra.mxu0 0
      %8604 = vmatprep.subr.bf16.mxu0 0
      %8605 = vmatpush1.bf16.msra.mxu0 0
      %8606 = vmatprep.subr.bf16.mxu0 0
      %8607 = vmatpush1.bf16.msra.mxu0 0
      %8608 = vmatprep.subr.bf16.mxu0 0
      %8609 = vmatpush1.bf16.msra.mxu0 0
      %8610 = vmatprep.subr.bf16.mxu0 0
      %8611 = vmatpush1.bf16.msra.mxu0 0
      %8612 = vmatprep.subr.bf16.mxu0 0
      %8613 = vmatpush1.bf16.msra.mxu0 0
      %8614 = vmatprep.mubr.bf16.mxu0 0
      %8615 = vmatmul.mubr.bf16.gmra.mrb[0].mxu0 %v8577
      %v8616 = vpop.f32.mrb[0].mxu0
      %v8617 = vadd.f32 0.0, %v8616
      %v8618 = vpop.f32.mrb[0].mxu0
      %v8619 = vpop.f32.mrb[0].mxu0
      %v8620 = vadd.f32 0.0, %v8619
      %v8621 = vpop.f32.mrb[0].mxu0
      %8622 = vmatprep.mubr.bf16.mxu0 0
      %8623 = vmatmul.mubr.bf16.gmra.mrb[0].mxu0 %v8580
      %v8624 = vpop.f32.mrb[0].mxu0
      %v8625 = vadd.f32 0.0, %v8624
      %v8626 = vpop.f32.mrb[0].mxu0
      %v8627 = vpop.f32.mrb[0].mxu0
      %v8628 = vadd.f32 0.0, %v8627
      %v8629 = vpop.f32.mrb[0].mxu0
      %8630 = vdwg.mxu0
      %v8631 = vadd.f32 %v8543, %v8617
      %v8632 = vadd.f32 %v8544, %v8620
      %v8633 = vadd.f32 %v8545, %v8625
      %v8634 = vadd.f32 %v8546, %v8628
      %8636 = vset.pattern.permute.xlu0 0
      %8637 = vperm.xlu0 %8636, %v7860
      %v8638 = vpop.permute.xlu0 %8637
      %8641 = vset.pattern.permute.xlu0 0
      %8642 = vperm.xlu0 %8641, %v7861
      %v8643 = vpop.permute.xlu0 %8642
      %8646 = vset.pattern.permute.xlu0 0
      %8647 = vperm.xlu0 %8646, %v7862
      %v8648 = vpop.permute.xlu0 %8647
      %8651 = vset.pattern.permute.xlu0 0
      %8652 = vperm.xlu0 %8651, %v7863
      %v8653 = vpop.permute.xlu0 %8652
      %v8655 = vadd.f32 %v8631, %v8638
      %v8656 = vadd.f32 %v8632, %v8643
      %v8657 = vadd.f32 %v8633, %v8648
      %v8658 = vadd.f32 %v8634, %v8653
      %8659 = vst [vmem:[%s593] sm:$0xff] %v8655
      %8660 = vst [vmem:[%s593 + $0x8] sm:$0xff] %v8656
      %8661 = vst [vmem:[%s593 + $0x10] sm:$0xff] %v8657
      %8662 = vst [vmem:[%s593 + $0x18] sm:$0xff] %v8658
      %p8663 = scmp.lt.s32.totalorder %s25, 1
      %s8664 = scalar_select %p8663, %s25, 1
      %s8665 = smul.addr %s8664, 3
      %s8666 = smul.addr %s8665, 8
      %s8667 = scalar_lea.vmem %s12, %s8666
      %p8668 = scmp.lt.s32.totalorder %s25, 1
      %s8669 = scalar_select %p8668, %s25, 1
      %s8670 = smul.addr %s8669, 4
      %s8671 = smul.addr %s8670, 8
      %s8672 = scalar_lea.vmem %s13, %s8671
      // Predicated region
      $region69: #{forward.1} parent=67 // pred_check
        %p8673 = pneg %p335
      $region70: #{forward.1} parent=67 // pred_check_branch
        %8675 = sbr.rel (%p8673) target = $region72
      $region71: #{forward.1} parent=67 // pred_region
        _
      $region72: #{forward.1} parent=67 // pred_fallthru
        _
      // Predicated region
      $region73: #{forward.1} parent=67 // pred_check
        %p8676 = pneg %p361
      $region74: #{forward.1} parent=67 // pred_check_branch
        %8678 = sbr.rel (%p8676) target = $region76
      $region75: #{forward.1} parent=67 // pred_region
        _
      $region76: #{forward.1} parent=67 // pred_fallthru
        _
    $region68: #{forward.1} parent=5 // pred_fallthru
      _
    %p8679 = scmp.le.s32.totalorder 2, %s20
    // Predicated region
    $region77: #{forward.1} parent=5 // pred_check
      %p8680 = pneg %p8679
    $region78: #{forward.1} parent=5 // pred_check_branch
      %8682 = sbr.rel (%p8680) target = $region80
    $region79: #{forward.1} parent=5 // pred_region
      %s8683 = ssub.s32 %s20, 2
      // Predicated region
      $region81: #{forward.1} parent=79 // pred_check
        %p8684 = pneg %p341
      $region82: #{forward.1} parent=79 // pred_check_branch
        %8686 = sbr.rel (%p8684) target = $region84
      $region83: #{forward.1} parent=79 // pred_region
        %p8687 = scmp.lt.s32.totalorder %s26, 1
        %s8688 = scalar_select %p8687, %s26, 1
        %s8689 = smul.addr %s8688, 3
        %s8690 = smul.addr %s8689, 8
        %s8691 = scalar_lea.vmem %s12, %s8690
      $region84: #{forward.1} parent=79 // pred_fallthru
        _
      // Predicated region
      $region85: #{forward.1} parent=79 // pred_check
        %p8692 = pneg %p367
      $region86: #{forward.1} parent=79 // pred_check_branch
        %8694 = sbr.rel (%p8692) target = $region88
      $region87: #{forward.1} parent=79 // pred_region
        %p8695 = scmp.lt.s32.totalorder %s26, 1
        %s8696 = scalar_select %p8695, %s26, 1
        %s8697 = smul.addr %s8696, 4
        %s8698 = smul.addr %s8697, 8
        %s8699 = scalar_lea.vmem %s13, %s8698
      $region88: #{forward.1} parent=79 // pred_fallthru
        _
    $region80: #{forward.1} parent=5 // pred_fallthru
      _
  $region6: #{forward.1} parent=0 // loop_footer
    %s24 = sadd.s32 1, %s20
  $region7: #{forward.1} parent=0 // loop_footer_branch
    %19 = sbr.rel target = $region3
  $region8: #{forward.1} parent=0 // loop_exit
    _

</llo_original>
